<compile_context>
chip_gen: v6e
topology: v6e:2x2x1
jax: 0.10.0
libtpu: 0.0.40
codegen_flags: <defaults>
</compile_context>

<pallas_src>
import functools

import jax
import jax.numpy as jnp
from jax.experimental import pallas as pl
from jax.experimental.pallas import tpu as pltpu


NT_PAD = 128   # lane-dense padded output width (n_targets is tiny)
PADR = 8       # sublane-aligned zero-pad rows on each side of conv2 input
LANE = 128


def _round_up(x, m):
    return ((x + m - 1) // m) * m


def _elu(x):
    # nn.ELU(alpha=1.0); exp on the clamped arg avoids inf in the unselected
    # branch of the select (precision vs torch's expm1 ~1e-7).
    return jnp.where(x > 0, x, jnp.exp(jnp.minimum(x, 0.0)) - 1.0)


def rna_kernel(
    # CNN branch
    x_ref,                  # (TB, L, K1Cp)  bf16  conv1 im2col rows (lane-padded)
    w1c_ref,                # (K1Cp, F1)     bf16
    scale1_ref, bias1_ref,  # (1, F1)        f32   conv1 bias + BN folded
    w2c_ref,                # (K2*F1, F2)    bf16
    scale2_ref, bias2_ref,  # (1, F2)        f32   conv2 bias + BN folded
    # MLP branch
    mer_ref,                # (TB, Dmer)     f32
    s1_ref, t1_ref,         # (1, Dmer)      f32   BN1 folded
    wm1_ref, bm1_ref,       # (Dmer, H) bf16, (1, H) f32
    s2_ref, t2_ref,         # (1, H)
    wm2_ref, bm2_ref,       # (H, H) bf16, (1, H)
    s3_ref, t3_ref,         # (1, H)
    wm3_ref, bm3_ref,       # (H, F2) bf16, (1, F2)
    # fusion head
    wf1_ref, bf1_ref,       # (F2, FC) bf16, (1, FC)
    wf2_ref, bf2_ref,       # (FC, NT_PAD) bf16, (1, NT_PAD)
    # output
    out_ref,                # (TB, NT_PAD) f32
    # scratch
    h1p_ref,                # (TB, L + 2*PADR, F1) bf16  zero-padded conv1 acts
):
    TBk, L, K1Cp = x_ref.shape
    F1 = w1c_ref.shape[1]
    K2F1, F2 = w2c_ref.shape
    K2 = K2F1 // F1
    pad2 = K2 // 2

    # ---------------- conv1 (one fused im2col matmul) -> BN -> ReLU ----------
    x = x_ref[...].reshape(TBk * L, K1Cp)                              # bf16
    h1 = jnp.dot(x, w1c_ref[...], preferred_element_type=jnp.float32)
    h1 = jnp.maximum(h1 * scale1_ref[...] + bias1_ref[...], 0.0)       # (TB*L, F1) f32

    # Stage into the zero-padded bf16 scratch (cast once).  Pad rows are
    # re-zeroed each step (see header note); interior writes are
    # sublane-aligned (PADR=8, L multiple of 8).
    zpad = jnp.zeros((TBk, PADR, F1), jnp.bfloat16)
    h1p_ref[:, :PADR, :] = zpad
    h1p_ref[:, PADR + L:, :] = zpad
    h1p_ref[:, PADR:PADR + L, :] = h1.reshape(TBk, L, F1).astype(jnp.bfloat16)

    # ---------------- conv2 as K2 shifted matmuls, f32 accumulation ----------
    # No im2col materialization: each tap k contributes
    #   h1[i + k - pad2] @ w2[k]   (zero-padded boundary via the scratch).
    h2 = None
    for k in range(K2):                                 # static unroll
        s = PADR - pad2 + k
        sl = h1p_ref[:, s:s + L, :].reshape(TBk * L, F1)               # bf16
        part = jnp.dot(sl, w2c_ref[k * F1:(k + 1) * F1, :],
                       preferred_element_type=jnp.float32)
        h2 = part if h2 is None else h2 + part
    h2 = jnp.maximum(h2 * scale2_ref[...] + bias2_ref[...], 0.0)       # (TB*L, F2)
    h_mat = jnp.max(h2.reshape(TBk, L, F2), axis=1)                    # (TB, F2)

    # ---------------- MLP branch (BN folded; dropout = inference identity) ---
    z = mer_ref[...] * s1_ref[...] + t1_ref[...]
    z = _elu(jnp.dot(z.astype(jnp.bfloat16), wm1_ref[...],
                     preferred_element_type=jnp.float32) + bm1_ref[...])
    z = z * s2_ref[...] + t2_ref[...]
    z = _elu(jnp.dot(z.astype(jnp.bfloat16), wm2_ref[...],
                     preferred_element_type=jnp.float32) + bm2_ref[...])
    z = z * s3_ref[...] + t3_ref[...]
    h_mer = _elu(jnp.dot(z.astype(jnp.bfloat16), wm3_ref[...],
                         preferred_element_type=jnp.float32) + bm3_ref[...])  # (TB, F2)

    # ---------------- fusion head (use_model == 'BOTH' branch) ---------------
    res = h_mat + h_mer + h_mat * h_mer
    res = _elu(jnp.dot(res.astype(jnp.bfloat16), wf1_ref[...],
                       preferred_element_type=jnp.float32) + bf1_ref[...])
    out = jnp.dot(res.astype(jnp.bfloat16), wf2_ref[...],
                  preferred_element_type=jnp.float32) + bf2_ref[...]
    out_ref[...] = out.astype(out_ref.dtype)


def prepare_params(p):
    """One-time re-layout of folded params: im2col weight reshapes, lane
    padding of the conv1 weight and the output weight, bf16 casts for MXU
    operands."""
    K1, Cin, F1 = p["w1"].shape
    K2, _, F2 = p["w2"].shape
    nt = p["wf2"].shape[1]
    k1c = K1 * Cin
    k1c_pad = _round_up(k1c, LANE)
    w1c = jnp.pad(p["w1"].reshape(k1c, F1), ((0, k1c_pad - k1c), (0, 0)))
    return dict(
        w1c=w1c.astype(jnp.bfloat16),
        scale1=p["scale1"], bias1=p["bias1"],
        w2c=p["w2"].reshape(K2 * F1, F2).astype(jnp.bfloat16),
        scale2=p["scale2"], bias2=p["bias2"],
        s1=p["s1"], t1=p["t1"],
        wm1=p["wm1"].astype(jnp.bfloat16), bm1=p["bm1"],
        s2=p["s2"], t2=p["t2"],
        wm2=p["wm2"].astype(jnp.bfloat16), bm2=p["bm2"],
        s3=p["s3"], t3=p["t3"],
        wm3=p["wm3"].astype(jnp.bfloat16), bm3=p["bm3"],
        wf1=p["wf1"].astype(jnp.bfloat16), bf1=p["bf1"],
        wf2=jnp.pad(p["wf2"], ((0, 0), (0, NT_PAD - nt))).astype(jnp.bfloat16),
        bf2=jnp.pad(p["bf2"], ((0, 0), (0, NT_PAD - nt))),
    )


def _num_tensorcores():
    # v7x has 2 TensorCores per chip; v5e/v6e have 1. Default to 1 if unknown.
    try:
        kind = jax.devices()[0].device_kind.lower()
    except Exception:
        return 1
    return 2 if ("v7" in kind or "tpu7" in kind or "7x" in kind) else 1


def _choose_tb(B, L, F1, n_tc):
    """Largest divisor of B that (a) targets one grid step per TensorCore and
    (b) keeps the bf16 conv scratch within a ~8 MiB budget (prevents latent
    VMEM blow-up for large B / L)."""
    max_tb = max(1, (8 << 20) // ((L + 2 * PADR) * F1 * 2))
    target = B // n_tc if (B % n_tc == 0 and B >= n_tc) else B
    target = max(1, min(target, max_tb))
    for tb in range(target, 0, -1):
        if B % tb == 0:
            return tb
    return B


@functools.partial(jax.jit, static_argnames=("n_targets", "k1"))
def rna_model_pallas(seq_mat, seq_mer, kp, *, n_targets, k1):
    B, L, Cin = seq_mat.shape
    K1Cp, F1 = kp["w1c"].shape
    K2F1 = kp["w2c"].shape[0]
    K2 = K2F1 // F1
    Dmer = seq_mer.shape[1]
    pad1 = k1 // 2
    K1C = k1 * Cin

    assert L % 8 == 0, "L must be a multiple of 8 for aligned staging"
    assert PADR >= K2 // 2
    assert K1C <= K1Cp

    n_tc = _num_tensorcores()
    tb = _choose_tb(B, L, F1, n_tc)

    # conv1 im2col rows built XLA-side (input has only Cin=4 channels, so this
    # is a few KB); lane-padded to K1Cp and pre-cast to bf16 so the x vregs
    # are unmasked full-lane loads and input DMA is halved.
    xp = jnp.pad(seq_mat, ((0, 0), (pad1, pad1), (0, 0)))
    x_cols = jnp.concatenate([xp[:, k:k + L, :] for k in range(k1)], axis=-1)
    x_cols = jnp.pad(x_cols, ((0, 0), (0, 0), (0, K1Cp - K1C))).astype(jnp.bfloat16)

    def resident(a):
        nd = a.ndim
        return pl.BlockSpec(a.shape, lambda b, _nd=nd: (0,) * _nd)

    cnn_w = [kp["w1c"], kp["scale1"], kp["bias1"],
             kp["w2c"], kp["scale2"], kp["bias2"]]
    mlp_w = [kp["s1"], kp["t1"], kp["wm1"], kp["bm1"],
             kp["s2"], kp["t2"], kp["wm2"], kp["bm2"],
             kp["s3"], kp["t3"], kp["wm3"], kp["bm3"],
             kp["wf1"], kp["bf1"], kp["wf2"], kp["bf2"]]

    in_specs = (
        [pl.BlockSpec((tb, L, K1Cp), lambda b: (b, 0, 0))]
        + [resident(a) for a in cnn_w]
        + [pl.BlockSpec((tb, Dmer), lambda b: (b, 0))]
        + [resident(a) for a in mlp_w]
    )
    inputs = [x_cols] + cnn_w + [seq_mer] + mlp_w

    # VMEM limit from actual buffer math (double-buffered inputs/outputs +
    # scratch) with generous headroom, clamped to v7x's 64 MiB physical VMEM.
    def nbytes(a):
        return a.size * a.dtype.itemsize

    resident_bytes = sum(nbytes(a) for a in cnn_w + mlp_w)
    tile_bytes = tb * L * K1Cp * 2 + tb * Dmer * 4 + tb * NT_PAD * 4
    scratch_bytes = tb * (L + 2 * PADR) * F1 * 2
    vmem_limit = int(min(
        max(4 * (resident_bytes + tile_bytes + scratch_bytes) + (8 << 20),
            16 << 20),
        64 << 20))

    out = pl.pallas_call(
        rna_kernel,
        out_shape=jax.ShapeDtypeStruct((B, NT_PAD), jnp.float32),
        grid=(B // tb,),
        in_specs=in_specs,
        out_specs=pl.BlockSpec((tb, NT_PAD), lambda b: (b, 0)),
        scratch_shapes=[
            pltpu.VMEM((tb, L + 2 * PADR, F1), jnp.bfloat16),  # padded conv1 acts
        ],
        compiler_params=pltpu.CompilerParams(
            dimension_semantics=("parallel",),
            vmem_limit_bytes=vmem_limit,
        ),
    )(*inputs)
    return out[:, :n_targets]


# ---------------- pure-JAX reference (mirrors the PyTorch forward) ----------
def rna_model_reference(seq_mat, seq_mer, p):
    dn = ("NWC", "WIO", "NWC")
    K1 = p["w1"].shape[0]
    K2 = p["w2"].shape[0]
    y = jax.lax.conv_general_dilated(
        seq_mat.astype(jnp.float32), p["w1"], window_strides=(1,),
        padding=[(K1 // 2, K1 // 2)], dimension_numbers=dn)
    y = jnp.maximum(y * p["scale1"] + p["bias1"], 0.0)
    y = jax.lax.conv_general_dilated(
        y, p["w2"], window_strides=(1,),
        padding=[(K2 // 2, K2 // 2)], dimension_numbers=dn)
    y = jnp.maximum(y * p["scale2"] + p["bias2"], 0.0)
    h_mat = jnp.max(y, axis=1)

    z = seq_mer * p["s1"] + p["t1"]
    z = _elu(z @ p["wm1"] + p["bm1"])
    z = z * p["s2"] + p["t2"]
    z = _elu(z @ p["wm2"] + p["bm2"])
    z = z * p["s3"] + p["t3"]
    h_mer = _elu(z @ p["wm3"] + p["bm3"])

    r = h_mat + h_mer + h_mat * h_mer
    r = _elu(r @ p["wf1"] + p["bf1"])
    return r @ p["wf2"] + p["bf2"]


# ---------------- deterministic synthetic parameters -------------------------
def make_params(key, seq_mat_dim, seq_mer_dim, n_targets, hidden_size):
    filters = [256, 64]
    kernels = [7, 15]
    fc_input_dim = 256
    eps = 1e-5
    ks = iter(jax.random.split(key, 64))

    def normal(shape, scale=0.1):
        return scale * jax.random.normal(next(ks), shape, jnp.float32)

    def bn_fold(dim, conv_bias=None):
        gamma = 1.0 + 0.1 * jax.random.normal(next(ks), (dim,), jnp.float32)
        beta = 0.1 * jax.random.normal(next(ks), (dim,), jnp.float32)
        mean = 0.1 * jax.random.normal(next(ks), (dim,), jnp.float32)
        var = 0.5 + jax.nn.softplus(jax.random.normal(next(ks), (dim,), jnp.float32))
        scale = gamma / jnp.sqrt(var + eps)
        shift = beta - mean * scale
        if conv_bias is not None:
            shift = shift + conv_bias * scale  # fold conv bias through BN
        return scale.reshape(1, dim), shift.reshape(1, dim)

    p = {}
    # CNN (weights stored as (K, Cin, Cout) == lax 'WIO')
    p["w1"] = normal((kernels[0], seq_mat_dim, filters[0]))
    b1 = normal((filters[0],))
    p["scale1"], p["bias1"] = bn_fold(filters[0], conv_bias=b1)
    p["w2"] = normal((kernels[1], filters[0], filters[1]))
    b2 = normal((filters[1],))
    p["scale2"], p["bias2"] = bn_fold(filters[1], conv_bias=b2)
    # MLP (Linear weights stored transposed vs torch: (in, out))
    p["s1"], p["t1"] = bn_fold(seq_mer_dim)
    p["wm1"], p["bm1"] = normal((seq_mer_dim, hidden_size)), normal((hidden_size,)).reshape(1, -1)
    p["s2"], p["t2"] = bn_fold(hidden_size)
    p["wm2"], p["bm2"] = normal((hidden_size, hidden_size)), normal((hidden_size,)).reshape(1, -1)
    p["s3"], p["t3"] = bn_fold(hidden_size)
    p["wm3"], p["bm3"] = normal((hidden_size, filters[1])), normal((filters[1],)).reshape(1, -1)
    # fusion head
    p["wf1"], p["bf1"] = normal((filters[1], fc_input_dim)), normal((fc_input_dim,)).reshape(1, -1)
    p["wf2"], p["bf2"] = normal((fc_input_dim, n_targets)), normal((n_targets,)).reshape(1, -1)
    return p


if __name__ == "__main__":
    B, L = 16, 16
    seq_mat_dim, seq_mer_dim = 4, 32
    n_targets, hidden_size = 4, 32

    key = jax.random.PRNGKey(0)
    k_mat, k_mer, k_par = jax.random.split(key, 3)
    seq_mat = jax.random.normal(k_mat, (B, L, seq_mat_dim), jnp.float32)
    seq_mer = jax.random.normal(k_mer, (B, seq_mer_dim), jnp.float32)
    params = make_params(k_par, seq_mat_dim, seq_mer_dim, n_targets, hidden_size)
    kparams = prepare_params(params)
    k1 = params["w1"].shape[0]

    out = jax.block_until_ready(
        rna_model_pallas(seq_mat, seq_mer, kparams, n_targets=n_targets, k1=k1))
    ref = jax.block_until_ready(rna_model_reference(seq_mat, seq_mer, params))

    assert out.shape == (B, n_targets), out.shape
    # Kernel uses bf16 MXU operands (f32 accumulation); reference is pure f32.
    assert jnp.allclose(out, ref, rtol=5e-2, atol=2e-1), float(jnp.max(jnp.abs(out - ref)))
    print("KERNEL_OK")
</pallas_src>

<mosaic_0001>
module attributes {stable_mosaic.version = 11 : i64} {
  func.func @rna_kernel(%arg0: i32, %arg1: memref<16x16x128xbf16, #tpu.memory_space<vmem>>, %arg2: memref<128x256xbf16, #tpu.memory_space<vmem>>, %arg3: memref<1x256xf32, #tpu.memory_space<vmem>>, %arg4: memref<1x256xf32, #tpu.memory_space<vmem>>, %arg5: memref<3840x64xbf16, #tpu.memory_space<vmem>>, %arg6: memref<1x64xf32, #tpu.memory_space<vmem>>, %arg7: memref<1x64xf32, #tpu.memory_space<vmem>>, %arg8: memref<16x32xf32, #tpu.memory_space<vmem>>, %arg9: memref<1x32xf32, #tpu.memory_space<vmem>>, %arg10: memref<1x32xf32, #tpu.memory_space<vmem>>, %arg11: memref<32x32xbf16, #tpu.memory_space<vmem>>, %arg12: memref<1x32xf32, #tpu.memory_space<vmem>>, %arg13: memref<1x32xf32, #tpu.memory_space<vmem>>, %arg14: memref<1x32xf32, #tpu.memory_space<vmem>>, %arg15: memref<32x32xbf16, #tpu.memory_space<vmem>>, %arg16: memref<1x32xf32, #tpu.memory_space<vmem>>, %arg17: memref<1x32xf32, #tpu.memory_space<vmem>>, %arg18: memref<1x32xf32, #tpu.memory_space<vmem>>, %arg19: memref<32x64xbf16, #tpu.memory_space<vmem>>, %arg20: memref<1x64xf32, #tpu.memory_space<vmem>>, %arg21: memref<64x256xbf16, #tpu.memory_space<vmem>>, %arg22: memref<1x256xf32, #tpu.memory_space<vmem>>, %arg23: memref<256x128xbf16, #tpu.memory_space<vmem>>, %arg24: memref<1x128xf32, #tpu.memory_space<vmem>>, %arg25: memref<16x128xf32, #tpu.memory_space<vmem>>, %arg26: memref<16x32x256xbf16, #tpu.memory_space<vmem>>) attributes {dimension_semantics = [#tpu.dimension_semantics<parallel>], iteration_bounds = array<i64: 1>, scalar_prefetch = 0 : i64, scratch_operands = 1 : i64, tpu.core_type = #tpu.core_type<tc>, window_params = [{transform_indices = @transform_0, window_bounds = array<i64: 16, 16, 128>}, {pipeline_mode = #tpu.pipeline_mode<synchronous>, transform_indices = @transform_1, window_bounds = array<i64: 128, 256>}, {pipeline_mode = #tpu.pipeline_mode<synchronous>, transform_indices = @transform_2, window_bounds = array<i64: 1, 256>}, {pipeline_mode = #tpu.pipeline_mode<synchronous>, transform_indices = @transform_3, window_bounds = array<i64: 1, 256>}, {pipeline_mode = #tpu.pipeline_mode<synchronous>, transform_indices = @transform_4, window_bounds = array<i64: 3840, 64>}, {pipeline_mode = #tpu.pipeline_mode<synchronous>, transform_indices = @transform_5, window_bounds = array<i64: 1, 64>}, {pipeline_mode = #tpu.pipeline_mode<synchronous>, transform_indices = @transform_6, window_bounds = array<i64: 1, 64>}, {transform_indices = @transform_7, window_bounds = array<i64: 16, 32>}, {pipeline_mode = #tpu.pipeline_mode<synchronous>, transform_indices = @transform_8, window_bounds = array<i64: 1, 32>}, {pipeline_mode = #tpu.pipeline_mode<synchronous>, transform_indices = @transform_9, window_bounds = array<i64: 1, 32>}, {pipeline_mode = #tpu.pipeline_mode<synchronous>, transform_indices = @transform_10, window_bounds = array<i64: 32, 32>}, {pipeline_mode = #tpu.pipeline_mode<synchronous>, transform_indices = @transform_11, window_bounds = array<i64: 1, 32>}, {pipeline_mode = #tpu.pipeline_mode<synchronous>, transform_indices = @transform_12, window_bounds = array<i64: 1, 32>}, {pipeline_mode = #tpu.pipeline_mode<synchronous>, transform_indices = @transform_13, window_bounds = array<i64: 1, 32>}, {pipeline_mode = #tpu.pipeline_mode<synchronous>, transform_indices = @transform_14, window_bounds = array<i64: 32, 32>}, {pipeline_mode = #tpu.pipeline_mode<synchronous>, transform_indices = @transform_15, window_bounds = array<i64: 1, 32>}, {pipeline_mode = #tpu.pipeline_mode<synchronous>, transform_indices = @transform_16, window_bounds = array<i64: 1, 32>}, {pipeline_mode = #tpu.pipeline_mode<synchronous>, transform_indices = @transform_17, window_bounds = array<i64: 1, 32>}, {pipeline_mode = #tpu.pipeline_mode<synchronous>, transform_indices = @transform_18, window_bounds = array<i64: 32, 64>}, {pipeline_mode = #tpu.pipeline_mode<synchronous>, transform_indices = @transform_19, window_bounds = array<i64: 1, 64>}, {pipeline_mode = #tpu.pipeline_mode<synchronous>, transform_indices = @transform_20, window_bounds = array<i64: 64, 256>}, {pipeline_mode = #tpu.pipeline_mode<synchronous>, transform_indices = @transform_21, window_bounds = array<i64: 1, 256>}, {pipeline_mode = #tpu.pipeline_mode<synchronous>, transform_indices = @transform_22, window_bounds = array<i64: 256, 128>}, {pipeline_mode = #tpu.pipeline_mode<synchronous>, transform_indices = @transform_23, window_bounds = array<i64: 1, 128>}, {transform_indices = @transform_24, window_bounds = array<i64: 16, 128>}]} {
    %c0 = arith.constant 0 : index
    %c0_0 = arith.constant 0 : index
    %c0_1 = arith.constant 0 : index
    %0 = vector.load %arg1[%c0, %c0_0, %c0_1] : memref<16x16x128xbf16, #tpu.memory_space<vmem>>, vector<16x16x128xbf16>
    %1 = vector.shape_cast %0 : vector<16x16x128xbf16> to vector<256x128xbf16>
    %c0_2 = arith.constant 0 : index
    %c0_3 = arith.constant 0 : index
    %2 = vector.load %arg2[%c0_2, %c0_3] : memref<128x256xbf16, #tpu.memory_space<vmem>>, vector<128x256xbf16>
    %cst = arith.constant dense<0.000000e+00> : vector<256x256xf32>
    %3 = tpu.matmul %1, %2, %cst {dimension_numbers = #tpu.dot_dimension_numbers<[1], [0], [0], [1], [0, 0, 1, 1], [], []>} : vector<256x128xbf16>, vector<128x256xbf16>, vector<256x256xf32> -> vector<256x256xf32>
    %c0_4 = arith.constant 0 : index
    %c0_5 = arith.constant 0 : index
    %4 = vector.load %arg3[%c0_4, %c0_5] : memref<1x256xf32, #tpu.memory_space<vmem>>, vector<1x256xf32>
    %5 = vector.broadcast %4 : vector<1x256xf32> to vector<256x256xf32>
    %6 = arith.mulf %3, %5 : vector<256x256xf32>
    %c0_6 = arith.constant 0 : index
    %c0_7 = arith.constant 0 : index
    %7 = vector.load %arg4[%c0_6, %c0_7] : memref<1x256xf32, #tpu.memory_space<vmem>>, vector<1x256xf32>
    %8 = vector.broadcast %7 : vector<1x256xf32> to vector<256x256xf32>
    %9 = arith.addf %6, %8 : vector<256x256xf32>
    %cst_8 = arith.constant 0.000000e+00 : f32
    %10 = vector.broadcast %cst_8 : f32 to vector<256x256xf32>
    %11 = arith.maximumf %9, %10 : vector<256x256xf32>
    %cst_9 = arith.constant 0.000000e+00 : bf16
    %12 = vector.broadcast %cst_9 : bf16 to vector<16x8x256xbf16>
    %c0_10 = arith.constant 0 : index
    %c0_11 = arith.constant 0 : index
    %c0_12 = arith.constant 0 : index
    %13 = vector.load %arg26[%c0_10, %c0_11, %c0_12] : memref<16x32x256xbf16, #tpu.memory_space<vmem>>, vector<16x8x256xbf16>
    tpu.vector_store %arg26[%c0_10, %c0_11, %c0_12], %12 {strides = array<i32>} : memref<16x32x256xbf16, #tpu.memory_space<vmem>>, vector<16x8x256xbf16>,
    %c0_13 = arith.constant 0 : index
    %c24 = arith.constant 24 : index
    %c0_14 = arith.constant 0 : index
    %14 = vector.load %arg26[%c0_13, %c24, %c0_14] : memref<16x32x256xbf16, #tpu.memory_space<vmem>>, vector<16x8x256xbf16>
    tpu.vector_store %arg26[%c0_13, %c24, %c0_14], %12 {strides = array<i32>} : memref<16x32x256xbf16, #tpu.memory_space<vmem>>, vector<16x8x256xbf16>,
    %15 = vector.shape_cast %11 : vector<256x256xf32> to vector<16x16x256xf32>
    %16 = arith.truncf %15 : vector<16x16x256xf32> to vector<16x16x256xbf16>
    %c0_15 = arith.constant 0 : index
    %c8 = arith.constant 8 : index
    %c0_16 = arith.constant 0 : index
    %17 = vector.load %arg26[%c0_15, %c8, %c0_16] : memref<16x32x256xbf16, #tpu.memory_space<vmem>>, vector<16x16x256xbf16>
    tpu.vector_store %arg26[%c0_15, %c8, %c0_16], %16 {strides = array<i32>} : memref<16x32x256xbf16, #tpu.memory_space<vmem>>, vector<16x16x256xbf16>,
    %c0_17 = arith.constant 0 : index
    %c1 = arith.constant 1 : index
    %c0_18 = arith.constant 0 : index
    %18 = vector.load %arg26[%c0_17, %c1, %c0_18] : memref<16x32x256xbf16, #tpu.memory_space<vmem>>, vector<16x16x256xbf16>
    %19 = vector.shape_cast %18 : vector<16x16x256xbf16> to vector<256x256xbf16>
    %c0_19 = arith.constant 0 : index
    %c0_20 = arith.constant 0 : index
    %20 = vector.load %arg5[%c0_19, %c0_20] : memref<3840x64xbf16, #tpu.memory_space<vmem>>, vector<256x64xbf16>
    %cst_21 = arith.constant dense<0.000000e+00> : vector<256x64xf32>
    %21 = tpu.matmul %19, %20, %cst_21 {dimension_numbers = #tpu.dot_dimension_numbers<[1], [0], [0], [1], [0, 0, 1, 1], [], []>} : vector<256x256xbf16>, vector<256x64xbf16>, vector<256x64xf32> -> vector<256x64xf32>
    %c0_22 = arith.constant 0 : index
    %c2 = arith.constant 2 : index
    %c0_23 = arith.constant 0 : index
    %22 = vector.load %arg26[%c0_22, %c2, %c0_23] : memref<16x32x256xbf16, #tpu.memory_space<vmem>>, vector<16x16x256xbf16>
    %23 = vector.shape_cast %22 : vector<16x16x256xbf16> to vector<256x256xbf16>
    %c256 = arith.constant 256 : index
    %c0_24 = arith.constant 0 : index
    %24 = vector.load %arg5[%c256, %c0_24] : memref<3840x64xbf16, #tpu.memory_space<vmem>>, vector<256x64xbf16>
    %cst_25 = arith.constant dense<0.000000e+00> : vector<256x64xf32>
    %25 = tpu.matmul %23, %24, %cst_25 {dimension_numbers = #tpu.dot_dimension_numbers<[1], [0], [0], [1], [0, 0, 1, 1], [], []>} : vector<256x256xbf16>, vector<256x64xbf16>, vector<256x64xf32> -> vector<256x64xf32>
    %26 = arith.addf %21, %25 : vector<256x64xf32>
    %c0_26 = arith.constant 0 : index
    %c3 = arith.constant 3 : index
    %c0_27 = arith.constant 0 : index
    %27 = vector.load %arg26[%c0_26, %c3, %c0_27] : memref<16x32x256xbf16, #tpu.memory_space<vmem>>, vector<16x16x256xbf16>
    %28 = vector.shape_cast %27 : vector<16x16x256xbf16> to vector<256x256xbf16>
    %c512 = arith.constant 512 : index
    %c0_28 = arith.constant 0 : index
    %29 = vector.load %arg5[%c512, %c0_28] : memref<3840x64xbf16, #tpu.memory_space<vmem>>, vector<256x64xbf16>
    %cst_29 = arith.constant dense<0.000000e+00> : vector<256x64xf32>
    %30 = tpu.matmul %28, %29, %cst_29 {dimension_numbers = #tpu.dot_dimension_numbers<[1], [0], [0], [1], [0, 0, 1, 1], [], []>} : vector<256x256xbf16>, vector<256x64xbf16>, vector<256x64xf32> -> vector<256x64xf32>
    %31 = arith.addf %26, %30 : vector<256x64xf32>
    %c0_30 = arith.constant 0 : index
    %c4 = arith.constant 4 : index
    %c0_31 = arith.constant 0 : index
    %32 = vector.load %arg26[%c0_30, %c4, %c0_31] : memref<16x32x256xbf16, #tpu.memory_space<vmem>>, vector<16x16x256xbf16>
    %33 = vector.shape_cast %32 : vector<16x16x256xbf16> to vector<256x256xbf16>
    %c768 = arith.constant 768 : index
    %c0_32 = arith.constant 0 : index
    %34 = vector.load %arg5[%c768, %c0_32] : memref<3840x64xbf16, #tpu.memory_space<vmem>>, vector<256x64xbf16>
    %cst_33 = arith.constant dense<0.000000e+00> : vector<256x64xf32>
    %35 = tpu.matmul %33, %34, %cst_33 {dimension_numbers = #tpu.dot_dimension_numbers<[1], [0], [0], [1], [0, 0, 1, 1], [], []>} : vector<256x256xbf16>, vector<256x64xbf16>, vector<256x64xf32> -> vector<256x64xf32>
    %36 = arith.addf %31, %35 : vector<256x64xf32>
    %c0_34 = arith.constant 0 : index
    %c5 = arith.constant 5 : index
    %c0_35 = arith.constant 0 : index
    %37 = vector.load %arg26[%c0_34, %c5, %c0_35] : memref<16x32x256xbf16, #tpu.memory_space<vmem>>, vector<16x16x256xbf16>
    %38 = vector.shape_cast %37 : vector<16x16x256xbf16> to vector<256x256xbf16>
    %c1024 = arith.constant 1024 : index
    %c0_36 = arith.constant 0 : index
    %39 = vector.load %arg5[%c1024, %c0_36] : memref<3840x64xbf16, #tpu.memory_space<vmem>>, vector<256x64xbf16>
    %cst_37 = arith.constant dense<0.000000e+00> : vector<256x64xf32>
    %40 = tpu.matmul %38, %39, %cst_37 {dimension_numbers = #tpu.dot_dimension_numbers<[1], [0], [0], [1], [0, 0, 1, 1], [], []>} : vector<256x256xbf16>, vector<256x64xbf16>, vector<256x64xf32> -> vector<256x64xf32>
    %41 = arith.addf %36, %40 : vector<256x64xf32>
    %c0_38 = arith.constant 0 : index
    %c6 = arith.constant 6 : index
    %c0_39 = arith.constant 0 : index
    %42 = vector.load %arg26[%c0_38, %c6, %c0_39] : memref<16x32x256xbf16, #tpu.memory_space<vmem>>, vector<16x16x256xbf16>
    %43 = vector.shape_cast %42 : vector<16x16x256xbf16> to vector<256x256xbf16>
    %c1280 = arith.constant 1280 : index
    %c0_40 = arith.constant 0 : index
    %44 = vector.load %arg5[%c1280, %c0_40] : memref<3840x64xbf16, #tpu.memory_space<vmem>>, vector<256x64xbf16>
    %cst_41 = arith.constant dense<0.000000e+00> : vector<256x64xf32>
    %45 = tpu.matmul %43, %44, %cst_41 {dimension_numbers = #tpu.dot_dimension_numbers<[1], [0], [0], [1], [0, 0, 1, 1], [], []>} : vector<256x256xbf16>, vector<256x64xbf16>, vector<256x64xf32> -> vector<256x64xf32>
    %46 = arith.addf %41, %45 : vector<256x64xf32>
    %c0_42 = arith.constant 0 : index
    %c7 = arith.constant 7 : index
    %c0_43 = arith.constant 0 : index
    %47 = vector.load %arg26[%c0_42, %c7, %c0_43] : memref<16x32x256xbf16, #tpu.memory_space<vmem>>, vector<16x16x256xbf16>
    %48 = vector.shape_cast %47 : vector<16x16x256xbf16> to vector<256x256xbf16>
    %c1536 = arith.constant 1536 : index
    %c0_44 = arith.constant 0 : index
    %49 = vector.load %arg5[%c1536, %c0_44] : memref<3840x64xbf16, #tpu.memory_space<vmem>>, vector<256x64xbf16>
    %cst_45 = arith.constant dense<0.000000e+00> : vector<256x64xf32>
    %50 = tpu.matmul %48, %49, %cst_45 {dimension_numbers = #tpu.dot_dimension_numbers<[1], [0], [0], [1], [0, 0, 1, 1], [], []>} : vector<256x256xbf16>, vector<256x64xbf16>, vector<256x64xf32> -> vector<256x64xf32>
    %51 = arith.addf %46, %50 : vector<256x64xf32>
    %c0_46 = arith.constant 0 : index
    %c8_47 = arith.constant 8 : index
    %c0_48 = arith.constant 0 : index
    %52 = vector.load %arg26[%c0_46, %c8_47, %c0_48] : memref<16x32x256xbf16, #tpu.memory_space<vmem>>, vector<16x16x256xbf16>
    %53 = vector.shape_cast %52 : vector<16x16x256xbf16> to vector<256x256xbf16>
    %c1792 = arith.constant 1792 : index
    %c0_49 = arith.constant 0 : index
    %54 = vector.load %arg5[%c1792, %c0_49] : memref<3840x64xbf16, #tpu.memory_space<vmem>>, vector<256x64xbf16>
    %cst_50 = arith.constant dense<0.000000e+00> : vector<256x64xf32>
    %55 = tpu.matmul %53, %54, %cst_50 {dimension_numbers = #tpu.dot_dimension_numbers<[1], [0], [0], [1], [0, 0, 1, 1], [], []>} : vector<256x256xbf16>, vector<256x64xbf16>, vector<256x64xf32> -> vector<256x64xf32>
    %56 = arith.addf %51, %55 : vector<256x64xf32>
    %c0_51 = arith.constant 0 : index
    %c9 = arith.constant 9 : index
    %c0_52 = arith.constant 0 : index
    %57 = vector.load %arg26[%c0_51, %c9, %c0_52] : memref<16x32x256xbf16, #tpu.memory_space<vmem>>, vector<16x16x256xbf16>
    %58 = vector.shape_cast %57 : vector<16x16x256xbf16> to vector<256x256xbf16>
    %c2048 = arith.constant 2048 : index
    %c0_53 = arith.constant 0 : index
    %59 = vector.load %arg5[%c2048, %c0_53] : memref<3840x64xbf16, #tpu.memory_space<vmem>>, vector<256x64xbf16>
    %cst_54 = arith.constant dense<0.000000e+00> : vector<256x64xf32>
    %60 = tpu.matmul %58, %59, %cst_54 {dimension_numbers = #tpu.dot_dimension_numbers<[1], [0], [0], [1], [0, 0, 1, 1], [], []>} : vector<256x256xbf16>, vector<256x64xbf16>, vector<256x64xf32> -> vector<256x64xf32>
    %61 = arith.addf %56, %60 : vector<256x64xf32>
    %c0_55 = arith.constant 0 : index
    %c10 = arith.constant 10 : index
    %c0_56 = arith.constant 0 : index
    %62 = vector.load %arg26[%c0_55, %c10, %c0_56] : memref<16x32x256xbf16, #tpu.memory_space<vmem>>, vector<16x16x256xbf16>
    %63 = vector.shape_cast %62 : vector<16x16x256xbf16> to vector<256x256xbf16>
    %c2304 = arith.constant 2304 : index
    %c0_57 = arith.constant 0 : index
    %64 = vector.load %arg5[%c2304, %c0_57] : memref<3840x64xbf16, #tpu.memory_space<vmem>>, vector<256x64xbf16>
    %cst_58 = arith.constant dense<0.000000e+00> : vector<256x64xf32>
    %65 = tpu.matmul %63, %64, %cst_58 {dimension_numbers = #tpu.dot_dimension_numbers<[1], [0], [0], [1], [0, 0, 1, 1], [], []>} : vector<256x256xbf16>, vector<256x64xbf16>, vector<256x64xf32> -> vector<256x64xf32>
    %66 = arith.addf %61, %65 : vector<256x64xf32>
    %c0_59 = arith.constant 0 : index
    %c11 = arith.constant 11 : index
    %c0_60 = arith.constant 0 : index
    %67 = vector.load %arg26[%c0_59, %c11, %c0_60] : memref<16x32x256xbf16, #tpu.memory_space<vmem>>, vector<16x16x256xbf16>
    %68 = vector.shape_cast %67 : vector<16x16x256xbf16> to vector<256x256xbf16>
    %c2560 = arith.constant 2560 : index
    %c0_61 = arith.constant 0 : index
    %69 = vector.load %arg5[%c2560, %c0_61] : memref<3840x64xbf16, #tpu.memory_space<vmem>>, vector<256x64xbf16>
    %cst_62 = arith.constant dense<0.000000e+00> : vector<256x64xf32>
    %70 = tpu.matmul %68, %69, %cst_62 {dimension_numbers = #tpu.dot_dimension_numbers<[1], [0], [0], [1], [0, 0, 1, 1], [], []>} : vector<256x256xbf16>, vector<256x64xbf16>, vector<256x64xf32> -> vector<256x64xf32>
    %71 = arith.addf %66, %70 : vector<256x64xf32>
    %c0_63 = arith.constant 0 : index
    %c12 = arith.constant 12 : index
    %c0_64 = arith.constant 0 : index
    %72 = vector.load %arg26[%c0_63, %c12, %c0_64] : memref<16x32x256xbf16, #tpu.memory_space<vmem>>, vector<16x16x256xbf16>
    %73 = vector.shape_cast %72 : vector<16x16x256xbf16> to vector<256x256xbf16>
    %c2816 = arith.constant 2816 : index
    %c0_65 = arith.constant 0 : index
    %74 = vector.load %arg5[%c2816, %c0_65] : memref<3840x64xbf16, #tpu.memory_space<vmem>>, vector<256x64xbf16>
    %cst_66 = arith.constant dense<0.000000e+00> : vector<256x64xf32>
    %75 = tpu.matmul %73, %74, %cst_66 {dimension_numbers = #tpu.dot_dimension_numbers<[1], [0], [0], [1], [0, 0, 1, 1], [], []>} : vector<256x256xbf16>, vector<256x64xbf16>, vector<256x64xf32> -> vector<256x64xf32>
    %76 = arith.addf %71, %75 : vector<256x64xf32>
    %c0_67 = arith.constant 0 : index
    %c13 = arith.constant 13 : index
    %c0_68 = arith.constant 0 : index
    %77 = vector.load %arg26[%c0_67, %c13, %c0_68] : memref<16x32x256xbf16, #tpu.memory_space<vmem>>, vector<16x16x256xbf16>
    %78 = vector.shape_cast %77 : vector<16x16x256xbf16> to vector<256x256xbf16>
    %c3072 = arith.constant 3072 : index
    %c0_69 = arith.constant 0 : index
    %79 = vector.load %arg5[%c3072, %c0_69] : memref<3840x64xbf16, #tpu.memory_space<vmem>>, vector<256x64xbf16>
    %cst_70 = arith.constant dense<0.000000e+00> : vector<256x64xf32>
    %80 = tpu.matmul %78, %79, %cst_70 {dimension_numbers = #tpu.dot_dimension_numbers<[1], [0], [0], [1], [0, 0, 1, 1], [], []>} : vector<256x256xbf16>, vector<256x64xbf16>, vector<256x64xf32> -> vector<256x64xf32>
    %81 = arith.addf %76, %80 : vector<256x64xf32>
    %c0_71 = arith.constant 0 : index
    %c14 = arith.constant 14 : index
    %c0_72 = arith.constant 0 : index
    %82 = vector.load %arg26[%c0_71, %c14, %c0_72] : memref<16x32x256xbf16, #tpu.memory_space<vmem>>, vector<16x16x256xbf16>
    %83 = vector.shape_cast %82 : vector<16x16x256xbf16> to vector<256x256xbf16>
    %c3328 = arith.constant 3328 : index
    %c0_73 = arith.constant 0 : index
    %84 = vector.load %arg5[%c3328, %c0_73] : memref<3840x64xbf16, #tpu.memory_space<vmem>>, vector<256x64xbf16>
    %cst_74 = arith.constant dense<0.000000e+00> : vector<256x64xf32>
    %85 = tpu.matmul %83, %84, %cst_74 {dimension_numbers = #tpu.dot_dimension_numbers<[1], [0], [0], [1], [0, 0, 1, 1], [], []>} : vector<256x256xbf16>, vector<256x64xbf16>, vector<256x64xf32> -> vector<256x64xf32>
    %86 = arith.addf %81, %85 : vector<256x64xf32>
    %c0_75 = arith.constant 0 : index
    %c15 = arith.constant 15 : index
    %c0_76 = arith.constant 0 : index
    %87 = vector.load %arg26[%c0_75, %c15, %c0_76] : memref<16x32x256xbf16, #tpu.memory_space<vmem>>, vector<16x16x256xbf16>
    %88 = vector.shape_cast %87 : vector<16x16x256xbf16> to vector<256x256xbf16>
    %c3584 = arith.constant 3584 : index
    %c0_77 = arith.constant 0 : index
    %89 = vector.load %arg5[%c3584, %c0_77] : memref<3840x64xbf16, #tpu.memory_space<vmem>>, vector<256x64xbf16>
    %cst_78 = arith.constant dense<0.000000e+00> : vector<256x64xf32>
    %90 = tpu.matmul %88, %89, %cst_78 {dimension_numbers = #tpu.dot_dimension_numbers<[1], [0], [0], [1], [0, 0, 1, 1], [], []>} : vector<256x256xbf16>, vector<256x64xbf16>, vector<256x64xf32> -> vector<256x64xf32>
    %91 = arith.addf %86, %90 : vector<256x64xf32>
    %c0_79 = arith.constant 0 : index
    %c0_80 = arith.constant 0 : index
    %92 = vector.load %arg6[%c0_79, %c0_80] : memref<1x64xf32, #tpu.memory_space<vmem>>, vector<1x64xf32>
    %93 = vector.broadcast %92 : vector<1x64xf32> to vector<256x64xf32>
    %94 = arith.mulf %91, %93 : vector<256x64xf32>
    %c0_81 = arith.constant 0 : index
    %c0_82 = arith.constant 0 : index
    %95 = vector.load %arg7[%c0_81, %c0_82] : memref<1x64xf32, #tpu.memory_space<vmem>>, vector<1x64xf32>
    %96 = vector.broadcast %95 : vector<1x64xf32> to vector<256x64xf32>
    %97 = arith.addf %94, %96 : vector<256x64xf32>
    %cst_83 = arith.constant 0.000000e+00 : f32
    %98 = vector.broadcast %cst_83 : f32 to vector<256x64xf32>
    %99 = arith.maximumf %97, %98 : vector<256x64xf32>
    %100 = vector.shape_cast %99 : vector<256x64xf32> to vector<16x16x64xf32>
    %cst_84 = arith.constant dense<0xFF800000> : vector<16x64xf32>
    %101 = vector.multi_reduction <maximumf>, %100, %cst_84 [1] : vector<16x16x64xf32> to vector<16x64xf32>
    %c0_85 = arith.constant 0 : index
    %c0_86 = arith.constant 0 : index
    %102 = vector.load %arg8[%c0_85, %c0_86] : memref<16x32xf32, #tpu.memory_space<vmem>>, vector<16x32xf32>
    %c0_87 = arith.constant 0 : index
    %c0_88 = arith.constant 0 : index
    %103 = vector.load %arg9[%c0_87, %c0_88] : memref<1x32xf32, #tpu.memory_space<vmem>>, vector<1x32xf32>
    %104 = vector.broadcast %103 : vector<1x32xf32> to vector<16x32xf32>
    %105 = arith.mulf %102, %104 : vector<16x32xf32>
    %c0_89 = arith.constant 0 : index
    %c0_90 = arith.constant 0 : index
    %106 = vector.load %arg10[%c0_89, %c0_90] : memref<1x32xf32, #tpu.memory_space<vmem>>, vector<1x32xf32>
    %107 = vector.broadcast %106 : vector<1x32xf32> to vector<16x32xf32>
    %108 = arith.addf %105, %107 : vector<16x32xf32>
    %109 = arith.truncf %108 : vector<16x32xf32> to vector<16x32xbf16>
    %c0_91 = arith.constant 0 : index
    %c0_92 = arith.constant 0 : index
    %110 = vector.load %arg11[%c0_91, %c0_92] : memref<32x32xbf16, #tpu.memory_space<vmem>>, vector<32x32xbf16>
    %cst_93 = arith.constant dense<0.000000e+00> : vector<16x32xf32>
    %111 = tpu.matmul %109, %110, %cst_93 {dimension_numbers = #tpu.dot_dimension_numbers<[1], [0], [0], [1], [0, 0, 1, 1], [], []>} : vector<16x32xbf16>, vector<32x32xbf16>, vector<16x32xf32> -> vector<16x32xf32>
    %c0_94 = arith.constant 0 : index
    %c0_95 = arith.constant 0 : index
    %112 = vector.load %arg12[%c0_94, %c0_95] : memref<1x32xf32, #tpu.memory_space<vmem>>, vector<1x32xf32>
    %113 = vector.broadcast %112 : vector<1x32xf32> to vector<16x32xf32>
    %114 = arith.addf %111, %113 : vector<16x32xf32>
    %cst_96 = arith.constant 0.000000e+00 : f32
    %115 = vector.broadcast %cst_96 : f32 to vector<16x32xf32>
    %116 = arith.cmpf ogt, %114, %115 : vector<16x32xf32>
    %cst_97 = arith.constant 0.000000e+00 : f32
    %117 = vector.broadcast %cst_97 : f32 to vector<16x32xf32>
    %118 = arith.minimumf %114, %117 : vector<16x32xf32>
    %119 = math.exp %118 : vector<16x32xf32>
    %cst_98 = arith.constant 1.000000e+00 : f32
    %120 = vector.broadcast %cst_98 : f32 to vector<16x32xf32>
    %121 = arith.subf %119, %120 : vector<16x32xf32>
    %122 = arith.select %116, %114, %121 : vector<16x32xi1>, vector<16x32xf32>
    %c0_99 = arith.constant 0 : index
    %c0_100 = arith.constant 0 : index
    %123 = vector.load %arg13[%c0_99, %c0_100] : memref<1x32xf32, #tpu.memory_space<vmem>>, vector<1x32xf32>
    %124 = vector.broadcast %123 : vector<1x32xf32> to vector<16x32xf32>
    %125 = arith.mulf %122, %124 : vector<16x32xf32>
    %c0_101 = arith.constant 0 : index
    %c0_102 = arith.constant 0 : index
    %126 = vector.load %arg14[%c0_101, %c0_102] : memref<1x32xf32, #tpu.memory_space<vmem>>, vector<1x32xf32>
    %127 = vector.broadcast %126 : vector<1x32xf32> to vector<16x32xf32>
    %128 = arith.addf %125, %127 : vector<16x32xf32>
    %129 = arith.truncf %128 : vector<16x32xf32> to vector<16x32xbf16>
    %c0_103 = arith.constant 0 : index
    %c0_104 = arith.constant 0 : index
    %130 = vector.load %arg15[%c0_103, %c0_104] : memref<32x32xbf16, #tpu.memory_space<vmem>>, vector<32x32xbf16>
    %cst_105 = arith.constant dense<0.000000e+00> : vector<16x32xf32>
    %131 = tpu.matmul %129, %130, %cst_105 {dimension_numbers = #tpu.dot_dimension_numbers<[1], [0], [0], [1], [0, 0, 1, 1], [], []>} : vector<16x32xbf16>, vector<32x32xbf16>, vector<16x32xf32> -> vector<16x32xf32>
    %c0_106 = arith.constant 0 : index
    %c0_107 = arith.constant 0 : index
    %132 = vector.load %arg16[%c0_106, %c0_107] : memref<1x32xf32, #tpu.memory_space<vmem>>, vector<1x32xf32>
    %133 = vector.broadcast %132 : vector<1x32xf32> to vector<16x32xf32>
    %134 = arith.addf %131, %133 : vector<16x32xf32>
    %cst_108 = arith.constant 0.000000e+00 : f32
    %135 = vector.broadcast %cst_108 : f32 to vector<16x32xf32>
    %136 = arith.cmpf ogt, %134, %135 : vector<16x32xf32>
    %cst_109 = arith.constant 0.000000e+00 : f32
    %137 = vector.broadcast %cst_109 : f32 to vector<16x32xf32>
    %138 = arith.minimumf %134, %137 : vector<16x32xf32>
    %139 = math.exp %138 : vector<16x32xf32>
    %cst_110 = arith.constant 1.000000e+00 : f32
    %140 = vector.broadcast %cst_110 : f32 to vector<16x32xf32>
    %141 = arith.subf %139, %140 : vector<16x32xf32>
    %142 = arith.select %136, %134, %141 : vector<16x32xi1>, vector<16x32xf32>
    %c0_111 = arith.constant 0 : index
    %c0_112 = arith.constant 0 : index
    %143 = vector.load %arg17[%c0_111, %c0_112] : memref<1x32xf32, #tpu.memory_space<vmem>>, vector<1x32xf32>
    %144 = vector.broadcast %143 : vector<1x32xf32> to vector<16x32xf32>
    %145 = arith.mulf %142, %144 : vector<16x32xf32>
    %c0_113 = arith.constant 0 : index
    %c0_114 = arith.constant 0 : index
    %146 = vector.load %arg18[%c0_113, %c0_114] : memref<1x32xf32, #tpu.memory_space<vmem>>, vector<1x32xf32>
    %147 = vector.broadcast %146 : vector<1x32xf32> to vector<16x32xf32>
    %148 = arith.addf %145, %147 : vector<16x32xf32>
    %149 = arith.truncf %148 : vector<16x32xf32> to vector<16x32xbf16>
    %c0_115 = arith.constant 0 : index
    %c0_116 = arith.constant 0 : index
    %150 = vector.load %arg19[%c0_115, %c0_116] : memref<32x64xbf16, #tpu.memory_space<vmem>>, vector<32x64xbf16>
    %cst_117 = arith.constant dense<0.000000e+00> : vector<16x64xf32>
    %151 = tpu.matmul %149, %150, %cst_117 {dimension_numbers = #tpu.dot_dimension_numbers<[1], [0], [0], [1], [0, 0, 1, 1], [], []>} : vector<16x32xbf16>, vector<32x64xbf16>, vector<16x64xf32> -> vector<16x64xf32>
    %c0_118 = arith.constant 0 : index
    %c0_119 = arith.constant 0 : index
    %152 = vector.load %arg20[%c0_118, %c0_119] : memref<1x64xf32, #tpu.memory_space<vmem>>, vector<1x64xf32>
    %153 = vector.broadcast %152 : vector<1x64xf32> to vector<16x64xf32>
    %154 = arith.addf %151, %153 : vector<16x64xf32>
    %cst_120 = arith.constant 0.000000e+00 : f32
    %155 = vector.broadcast %cst_120 : f32 to vector<16x64xf32>
    %156 = arith.cmpf ogt, %154, %155 : vector<16x64xf32>
    %cst_121 = arith.constant 0.000000e+00 : f32
    %157 = vector.broadcast %cst_121 : f32 to vector<16x64xf32>
    %158 = arith.minimumf %154, %157 : vector<16x64xf32>
    %159 = math.exp %158 : vector<16x64xf32>
    %cst_122 = arith.constant 1.000000e+00 : f32
    %160 = vector.broadcast %cst_122 : f32 to vector<16x64xf32>
    %161 = arith.subf %159, %160 : vector<16x64xf32>
    %162 = arith.select %156, %154, %161 : vector<16x64xi1>, vector<16x64xf32>
    %163 = arith.addf %101, %162 : vector<16x64xf32>
    %164 = arith.mulf %101, %162 : vector<16x64xf32>
    %165 = arith.addf %163, %164 : vector<16x64xf32>
    %166 = arith.truncf %165 : vector<16x64xf32> to vector<16x64xbf16>
    %c0_123 = arith.constant 0 : index
    %c0_124 = arith.constant 0 : index
    %167 = vector.load %arg21[%c0_123, %c0_124] : memref<64x256xbf16, #tpu.memory_space<vmem>>, vector<64x256xbf16>
    %cst_125 = arith.constant dense<0.000000e+00> : vector<16x256xf32>
    %168 = tpu.matmul %166, %167, %cst_125 {dimension_numbers = #tpu.dot_dimension_numbers<[1], [0], [0], [1], [0, 0, 1, 1], [], []>} : vector<16x64xbf16>, vector<64x256xbf16>, vector<16x256xf32> -> vector<16x256xf32>
    %c0_126 = arith.constant 0 : index
    %c0_127 = arith.constant 0 : index
    %169 = vector.load %arg22[%c0_126, %c0_127] : memref<1x256xf32, #tpu.memory_space<vmem>>, vector<1x256xf32>
    %170 = vector.broadcast %169 : vector<1x256xf32> to vector<16x256xf32>
    %171 = arith.addf %168, %170 : vector<16x256xf32>
    %cst_128 = arith.constant 0.000000e+00 : f32
    %172 = vector.broadcast %cst_128 : f32 to vector<16x256xf32>
    %173 = arith.cmpf ogt, %171, %172 : vector<16x256xf32>
    %cst_129 = arith.constant 0.000000e+00 : f32
    %174 = vector.broadcast %cst_129 : f32 to vector<16x256xf32>
    %175 = arith.minimumf %171, %174 : vector<16x256xf32>
    %176 = math.exp %175 : vector<16x256xf32>
    %cst_130 = arith.constant 1.000000e+00 : f32
    %177 = vector.broadcast %cst_130 : f32 to vector<16x256xf32>
    %178 = arith.subf %176, %177 : vector<16x256xf32>
    %179 = arith.select %173, %171, %178 : vector<16x256xi1>, vector<16x256xf32>
    %180 = arith.truncf %179 : vector<16x256xf32> to vector<16x256xbf16>
    %c0_131 = arith.constant 0 : index
    %c0_132 = arith.constant 0 : index
    %181 = vector.load %arg23[%c0_131, %c0_132] : memref<256x128xbf16, #tpu.memory_space<vmem>>, vector<256x128xbf16>
    %cst_133 = arith.constant dense<0.000000e+00> : vector<16x128xf32>
    %182 = tpu.matmul %180, %181, %cst_133 {dimension_numbers = #tpu.dot_dimension_numbers<[1], [0], [0], [1], [0, 0, 1, 1], [], []>} : vector<16x256xbf16>, vector<256x128xbf16>, vector<16x128xf32> -> vector<16x128xf32>
    %c0_134 = arith.constant 0 : index
    %c0_135 = arith.constant 0 : index
    %183 = vector.load %arg24[%c0_134, %c0_135] : memref<1x128xf32, #tpu.memory_space<vmem>>, vector<1x128xf32>
    %184 = vector.broadcast %183 : vector<1x128xf32> to vector<16x128xf32>
    %185 = arith.addf %182, %184 : vector<16x128xf32>
    %c0_136 = arith.constant 0 : index
    %c0_137 = arith.constant 0 : index
    %186 = vector.load %arg25[%c0_136, %c0_137] : memref<16x128xf32, #tpu.memory_space<vmem>>, vector<16x128xf32>
    tpu.vector_store %arg25[%c0_136, %c0_137], %185 {strides = array<i32>} : memref<16x128xf32, #tpu.memory_space<vmem>>, vector<16x128xf32>,
    return
  }
  func.func @transform_0(%arg0: i32) -> (i32, i32, i32) {
    %c0_i32 = arith.constant 0 : i32
    %c0_i32_0 = arith.constant 0 : i32
    %c0_i32_1 = arith.constant 0 : i32
    return %arg0, %c0_i32, %c0_i32_0 : i32, i32, i32
  }
  func.func @transform_1(%arg0: i32) -> (i32, i32) {
    %c0_i32 = arith.constant 0 : i32
    %c0_i32_0 = arith.constant 0 : i32
    %c0_i32_1 = arith.constant 0 : i32
    return %c0_i32, %c0_i32_0 : i32, i32
  }
  func.func @transform_2(%arg0: i32) -> (i32, i32) {
    %c0_i32 = arith.constant 0 : i32
    %c0_i32_0 = arith.constant 0 : i32
    %c0_i32_1 = arith.constant 0 : i32
    return %c0_i32, %c0_i32_0 : i32, i32
  }
  func.func @transform_3(%arg0: i32) -> (i32, i32) {
    %c0_i32 = arith.constant 0 : i32
    %c0_i32_0 = arith.constant 0 : i32
    %c0_i32_1 = arith.constant 0 : i32
    return %c0_i32, %c0_i32_0 : i32, i32
  }
  func.func @transform_4(%arg0: i32) -> (i32, i32) {
    %c0_i32 = arith.constant 0 : i32
    %c0_i32_0 = arith.constant 0 : i32
    %c0_i32_1 = arith.constant 0 : i32
    return %c0_i32, %c0_i32_0 : i32, i32
  }
  func.func @transform_5(%arg0: i32) -> (i32, i32) {
    %c0_i32 = arith.constant 0 : i32
    %c0_i32_0 = arith.constant 0 : i32
    %c0_i32_1 = arith.constant 0 : i32
    return %c0_i32, %c0_i32_0 : i32, i32
  }
  func.func @transform_6(%arg0: i32) -> (i32, i32) {
    %c0_i32 = arith.constant 0 : i32
    %c0_i32_0 = arith.constant 0 : i32
    %c0_i32_1 = arith.constant 0 : i32
    return %c0_i32, %c0_i32_0 : i32, i32
  }
  func.func @transform_7(%arg0: i32) -> (i32, i32) {
    %c0_i32 = arith.constant 0 : i32
    %c0_i32_0 = arith.constant 0 : i32
    return %arg0, %c0_i32 : i32, i32
  }
  func.func @transform_8(%arg0: i32) -> (i32, i32) {
    %c0_i32 = arith.constant 0 : i32
    %c0_i32_0 = arith.constant 0 : i32
    %c0_i32_1 = arith.constant 0 : i32
    return %c0_i32, %c0_i32_0 : i32, i32
  }
  func.func @transform_9(%arg0: i32) -> (i32, i32) {
    %c0_i32 = arith.constant 0 : i32
    %c0_i32_0 = arith.constant 0 : i32
    %c0_i32_1 = arith.constant 0 : i32
    return %c0_i32, %c0_i32_0 : i32, i32
  }
  func.func @transform_10(%arg0: i32) -> (i32, i32) {
    %c0_i32 = arith.constant 0 : i32
    %c0_i32_0 = arith.constant 0 : i32
    %c0_i32_1 = arith.constant 0 : i32
    return %c0_i32, %c0_i32_0 : i32, i32
  }
  func.func @transform_11(%arg0: i32) -> (i32, i32) {
    %c0_i32 = arith.constant 0 : i32
    %c0_i32_0 = arith.constant 0 : i32
    %c0_i32_1 = arith.constant 0 : i32
    return %c0_i32, %c0_i32_0 : i32, i32
  }
  func.func @transform_12(%arg0: i32) -> (i32, i32) {
    %c0_i32 = arith.constant 0 : i32
    %c0_i32_0 = arith.constant 0 : i32
    %c0_i32_1 = arith.constant 0 : i32
    return %c0_i32, %c0_i32_0 : i32, i32
  }
  func.func @transform_13(%arg0: i32) -> (i32, i32) {
    %c0_i32 = arith.constant 0 : i32
    %c0_i32_0 = arith.constant 0 : i32
    %c0_i32_1 = arith.constant 0 : i32
    return %c0_i32, %c0_i32_0 : i32, i32
  }
  func.func @transform_14(%arg0: i32) -> (i32, i32) {
    %c0_i32 = arith.constant 0 : i32
    %c0_i32_0 = arith.constant 0 : i32
    %c0_i32_1 = arith.constant 0 : i32
    return %c0_i32, %c0_i32_0 : i32, i32
  }
  func.func @transform_15(%arg0: i32) -> (i32, i32) {
    %c0_i32 = arith.constant 0 : i32
    %c0_i32_0 = arith.constant 0 : i32
    %c0_i32_1 = arith.constant 0 : i32
    return %c0_i32, %c0_i32_0 : i32, i32
  }
  func.func @transform_16(%arg0: i32) -> (i32, i32) {
    %c0_i32 = arith.constant 0 : i32
    %c0_i32_0 = arith.constant 0 : i32
    %c0_i32_1 = arith.constant 0 : i32
    return %c0_i32, %c0_i32_0 : i32, i32
  }
  func.func @transform_17(%arg0: i32) -> (i32, i32) {
    %c0_i32 = arith.constant 0 : i32
    %c0_i32_0 = arith.constant 0 : i32
    %c0_i32_1 = arith.constant 0 : i32
    return %c0_i32, %c0_i32_0 : i32, i32
  }
  func.func @transform_18(%arg0: i32) -> (i32, i32) {
    %c0_i32 = arith.constant 0 : i32
    %c0_i32_0 = arith.constant 0 : i32
    %c0_i32_1 = arith.constant 0 : i32
    return %c0_i32, %c0_i32_0 : i32, i32
  }
  func.func @transform_19(%arg0: i32) -> (i32, i32) {
    %c0_i32 = arith.constant 0 : i32
    %c0_i32_0 = arith.constant 0 : i32
    %c0_i32_1 = arith.constant 0 : i32
    return %c0_i32, %c0_i32_0 : i32, i32
  }
  func.func @transform_20(%arg0: i32) -> (i32, i32) {
    %c0_i32 = arith.constant 0 : i32
    %c0_i32_0 = arith.constant 0 : i32
    %c0_i32_1 = arith.constant 0 : i32
    return %c0_i32, %c0_i32_0 : i32, i32
  }
  func.func @transform_21(%arg0: i32) -> (i32, i32) {
    %c0_i32 = arith.constant 0 : i32
    %c0_i32_0 = arith.constant 0 : i32
    %c0_i32_1 = arith.constant 0 : i32
    return %c0_i32, %c0_i32_0 : i32, i32
  }
  func.func @transform_22(%arg0: i32) -> (i32, i32) {
    %c0_i32 = arith.constant 0 : i32
    %c0_i32_0 = arith.constant 0 : i32
    %c0_i32_1 = arith.constant 0 : i32
    return %c0_i32, %c0_i32_0 : i32, i32
  }
  func.func @transform_23(%arg0: i32) -> (i32, i32) {
    %c0_i32 = arith.constant 0 : i32
    %c0_i32_0 = arith.constant 0 : i32
    %c0_i32_1 = arith.constant 0 : i32
    return %c0_i32, %c0_i32_0 : i32, i32
  }
  func.func @transform_24(%arg0: i32) -> (i32, i32) {
    %c0_i32 = arith.constant 0 : i32
    %c0_i32_0 = arith.constant 0 : i32
    return %arg0, %c0_i32 : i32, i32
  }
}

</mosaic_0001>

<llo_original>
// kernel: rna_model_pallas.1
$region0: #{rna_model_pallas.1}
  #allocation0 [shape = 'u32[]', space=smem, size = 0x4, offset = 0x4, fixed_abs, tag = 'smem constant byte address 0x4 - core index']
  #allocation1 [shape = 'u32[144,128]{1,0:T(1,128)}', space=vmem, size = 0x12000, scoped, tag = 'internal scratch']
  #allocation2 [shape = 'bf16[16,32,256]{2,1,0:T(8,128)(2,1)}', space=vmem, size = 0x40000, scoped, tag = 'scratch operand']
  %s0 = inlined_call_operand.vmem [shape: bf16[16,16,128], index: 0, kind: input, shape index: {}]
  %s1 = inlined_call_operand.vmem [shape: bf16[128,256], index: 1, kind: input, shape index: {}]
  %s2 = inlined_call_operand.vmem [shape: f32[1,256], index: 2, kind: input, shape index: {}]
  %s3 = inlined_call_operand.vmem [shape: f32[1,256], index: 3, kind: input, shape index: {}]
  %s4 = inlined_call_operand.vmem [shape: bf16[3840,64], index: 4, kind: input, shape index: {}]
  %s5 = inlined_call_operand.vmem [shape: f32[1,64], index: 5, kind: input, shape index: {}]
  %s6 = inlined_call_operand.vmem [shape: f32[1,64], index: 6, kind: input, shape index: {}]
  %s7 = inlined_call_operand.vmem [shape: f32[16,32], index: 7, kind: input, shape index: {}]
  %s8 = inlined_call_operand.vmem [shape: f32[1,32], index: 8, kind: input, shape index: {}]
  %s9 = inlined_call_operand.vmem [shape: f32[1,32], index: 9, kind: input, shape index: {}]
  %s10 = inlined_call_operand.vmem [shape: bf16[32,32], index: 10, kind: input, shape index: {}]
  %s11 = inlined_call_operand.vmem [shape: f32[1,32], index: 11, kind: input, shape index: {}]
  %s12 = inlined_call_operand.vmem [shape: f32[1,32], index: 12, kind: input, shape index: {}]
  %s13 = inlined_call_operand.vmem [shape: f32[1,32], index: 13, kind: input, shape index: {}]
  %s14 = inlined_call_operand.vmem [shape: bf16[32,32], index: 14, kind: input, shape index: {}]
  %s15 = inlined_call_operand.vmem [shape: f32[1,32], index: 15, kind: input, shape index: {}]
  %s16 = inlined_call_operand.vmem [shape: f32[1,32], index: 16, kind: input, shape index: {}]
  %s17 = inlined_call_operand.vmem [shape: f32[1,32], index: 17, kind: input, shape index: {}]
  %s18 = inlined_call_operand.vmem [shape: bf16[32,64], index: 18, kind: input, shape index: {}]
  %s19 = inlined_call_operand.vmem [shape: f32[1,64], index: 19, kind: input, shape index: {}]
  %s20 = inlined_call_operand.vmem [shape: bf16[64,256], index: 20, kind: input, shape index: {}]
  %s21 = inlined_call_operand.vmem [shape: f32[1,256], index: 21, kind: input, shape index: {}]
  %s22 = inlined_call_operand.vmem [shape: bf16[256,128], index: 22, kind: input, shape index: {}]
  %s23 = inlined_call_operand.vmem [shape: f32[1,128], index: 23, kind: input, shape index: {}]
  %s24 = inlined_call_operand.vmem [shape: f32[16,128], index: 24, kind: output, shape index: {}]
  %s25 = sld [smem:[#allocation0]]
  $region106: #{rna_model_pallas.1} parent=0
    _
  %s27 = ssub.s32 1, %s25
  %s28 = scalar_select 0, %s27, %s25
  // Predicated region
  $region2: #{rna_model_pallas.1} parent=0 // pred_check
    _
  $region3: #{rna_model_pallas.1} parent=0 // pred_check_branch
    %30 = sbr.rel (0) target = $region5
  $region4: #{rna_model_pallas.1} parent=0 // pred_region
    _
  $region5: #{rna_model_pallas.1} parent=0 // pred_fallthru
    _
  // Predicated region
  $region6: #{rna_model_pallas.1} parent=0 // pred_check
    _
  $region7: #{rna_model_pallas.1} parent=0 // pred_check_branch
    %32 = sbr.rel (0) target = $region9
  $region8: #{rna_model_pallas.1} parent=0 // pred_region
    _
  $region9: #{rna_model_pallas.1} parent=0 // pred_fallthru
    _
  // Predicated region
  $region10: #{rna_model_pallas.1} parent=0 // pred_check
    _
  $region11: #{rna_model_pallas.1} parent=0 // pred_check_branch
    %34 = sbr.rel (0) target = $region13
  $region12: #{rna_model_pallas.1} parent=0 // pred_region
    _
  $region13: #{rna_model_pallas.1} parent=0 // pred_fallthru
    _
  // Predicated region
  $region14: #{rna_model_pallas.1} parent=0 // pred_check
    _
  $region15: #{rna_model_pallas.1} parent=0 // pred_check_branch
    %36 = sbr.rel (0) target = $region17
  $region16: #{rna_model_pallas.1} parent=0 // pred_region
    _
  $region17: #{rna_model_pallas.1} parent=0 // pred_fallthru
    _
  // Predicated region
  $region18: #{rna_model_pallas.1} parent=0 // pred_check
    _
  $region19: #{rna_model_pallas.1} parent=0 // pred_check_branch
    %38 = sbr.rel (0) target = $region21
  $region20: #{rna_model_pallas.1} parent=0 // pred_region
    _
  $region21: #{rna_model_pallas.1} parent=0 // pred_fallthru
    _
  // Predicated region
  $region22: #{rna_model_pallas.1} parent=0 // pred_check
    _
  $region23: #{rna_model_pallas.1} parent=0 // pred_check_branch
    %40 = sbr.rel (0) target = $region25
  $region24: #{rna_model_pallas.1} parent=0 // pred_region
    _
  $region25: #{rna_model_pallas.1} parent=0 // pred_fallthru
    _
  // Predicated region
  $region26: #{rna_model_pallas.1} parent=0 // pred_check
    _
  $region27: #{rna_model_pallas.1} parent=0 // pred_check_branch
    %42 = sbr.rel (0) target = $region29
  $region28: #{rna_model_pallas.1} parent=0 // pred_region
    _
  $region29: #{rna_model_pallas.1} parent=0 // pred_fallthru
    _
  // Predicated region
  $region30: #{rna_model_pallas.1} parent=0 // pred_check
    _
  $region31: #{rna_model_pallas.1} parent=0 // pred_check_branch
    %44 = sbr.rel (0) target = $region33
  $region32: #{rna_model_pallas.1} parent=0 // pred_region
    _
  $region33: #{rna_model_pallas.1} parent=0 // pred_fallthru
    _
  // Predicated region
  $region34: #{rna_model_pallas.1} parent=0 // pred_check
    _
  $region35: #{rna_model_pallas.1} parent=0 // pred_check_branch
    %46 = sbr.rel (0) target = $region37
  $region36: #{rna_model_pallas.1} parent=0 // pred_region
    _
  $region37: #{rna_model_pallas.1} parent=0 // pred_fallthru
    _
  // Predicated region
  $region38: #{rna_model_pallas.1} parent=0 // pred_check
    _
  $region39: #{rna_model_pallas.1} parent=0 // pred_check_branch
    %48 = sbr.rel (0) target = $region41
  $region40: #{rna_model_pallas.1} parent=0 // pred_region
    _
  $region41: #{rna_model_pallas.1} parent=0 // pred_fallthru
    _
  // Predicated region
  $region42: #{rna_model_pallas.1} parent=0 // pred_check
    _
  $region43: #{rna_model_pallas.1} parent=0 // pred_check_branch
    %50 = sbr.rel (0) target = $region45
  $region44: #{rna_model_pallas.1} parent=0 // pred_region
    _
  $region45: #{rna_model_pallas.1} parent=0 // pred_fallthru
    _
  // Predicated region
  $region46: #{rna_model_pallas.1} parent=0 // pred_check
    _
  $region47: #{rna_model_pallas.1} parent=0 // pred_check_branch
    %52 = sbr.rel (0) target = $region49
  $region48: #{rna_model_pallas.1} parent=0 // pred_region
    _
  $region49: #{rna_model_pallas.1} parent=0 // pred_fallthru
    _
  // Predicated region
  $region50: #{rna_model_pallas.1} parent=0 // pred_check
    _
  $region51: #{rna_model_pallas.1} parent=0 // pred_check_branch
    %54 = sbr.rel (0) target = $region53
  $region52: #{rna_model_pallas.1} parent=0 // pred_region
    _
  $region53: #{rna_model_pallas.1} parent=0 // pred_fallthru
    _
  // Predicated region
  $region54: #{rna_model_pallas.1} parent=0 // pred_check
    _
  $region55: #{rna_model_pallas.1} parent=0 // pred_check_branch
    %56 = sbr.rel (0) target = $region57
  $region56: #{rna_model_pallas.1} parent=0 // pred_region
    _
  $region57: #{rna_model_pallas.1} parent=0 // pred_fallthru
    _
  // Predicated region
  $region58: #{rna_model_pallas.1} parent=0 // pred_check
    _
  $region59: #{rna_model_pallas.1} parent=0 // pred_check_branch
    %58 = sbr.rel (0) target = $region61
  $region60: #{rna_model_pallas.1} parent=0 // pred_region
    _
  $region61: #{rna_model_pallas.1} parent=0 // pred_fallthru
    _
  // Predicated region
  $region62: #{rna_model_pallas.1} parent=0 // pred_check
    _
  $region63: #{rna_model_pallas.1} parent=0 // pred_check_branch
    %60 = sbr.rel (0) target = $region65
  $region64: #{rna_model_pallas.1} parent=0 // pred_region
    _
  $region65: #{rna_model_pallas.1} parent=0 // pred_fallthru
    _
  // Predicated region
  $region66: #{rna_model_pallas.1} parent=0 // pred_check
    _
  $region67: #{rna_model_pallas.1} parent=0 // pred_check_branch
    %62 = sbr.rel (0) target = $region69
  $region68: #{rna_model_pallas.1} parent=0 // pred_region
    _
  $region69: #{rna_model_pallas.1} parent=0 // pred_fallthru
    _
  // Predicated region
  $region70: #{rna_model_pallas.1} parent=0 // pred_check
    _
  $region71: #{rna_model_pallas.1} parent=0 // pred_check_branch
    %64 = sbr.rel (0) target = $region73
  $region72: #{rna_model_pallas.1} parent=0 // pred_region
    _
  $region73: #{rna_model_pallas.1} parent=0 // pred_fallthru
    _
  // Predicated region
  $region74: #{rna_model_pallas.1} parent=0 // pred_check
    _
  $region75: #{rna_model_pallas.1} parent=0 // pred_check_branch
    %66 = sbr.rel (0) target = $region77
  $region76: #{rna_model_pallas.1} parent=0 // pred_region
    _
  $region77: #{rna_model_pallas.1} parent=0 // pred_fallthru
    _
  // Predicated region
  $region78: #{rna_model_pallas.1} parent=0 // pred_check
    _
  $region79: #{rna_model_pallas.1} parent=0 // pred_check_branch
    %68 = sbr.rel (0) target = $region81
  $region80: #{rna_model_pallas.1} parent=0 // pred_region
    _
  $region81: #{rna_model_pallas.1} parent=0 // pred_fallthru
    _
  // Predicated region
  $region82: #{rna_model_pallas.1} parent=0 // pred_check
    _
  $region83: #{rna_model_pallas.1} parent=0 // pred_check_branch
    %70 = sbr.rel (0) target = $region85
  $region84: #{rna_model_pallas.1} parent=0 // pred_region
    _
  $region85: #{rna_model_pallas.1} parent=0 // pred_fallthru
    _
  // Predicated region
  $region86: #{rna_model_pallas.1} parent=0 // pred_check
    _
  $region87: #{rna_model_pallas.1} parent=0 // pred_check_branch
    %72 = sbr.rel (0) target = $region89
  $region88: #{rna_model_pallas.1} parent=0 // pred_region
    _
  $region89: #{rna_model_pallas.1} parent=0 // pred_fallthru
    _
  // Predicated region
  $region90: #{rna_model_pallas.1} parent=0 // pred_check
    _
  $region91: #{rna_model_pallas.1} parent=0 // pred_check_branch
    %74 = sbr.rel (0) target = $region93
  $region92: #{rna_model_pallas.1} parent=0 // pred_region
    _
  $region93: #{rna_model_pallas.1} parent=0 // pred_fallthru
    _
  // Predicated region
  $region94: #{rna_model_pallas.1} parent=0 // pred_check
    _
  $region95: #{rna_model_pallas.1} parent=0 // pred_check_branch
    %76 = sbr.rel (0) target = $region97
  $region96: #{rna_model_pallas.1} parent=0 // pred_region
    _
  $region97: #{rna_model_pallas.1} parent=0 // pred_fallthru
    _
  %v78 = vld [vmem:[%s0] sm:$0xf]
  %v79 = vld [vmem:[%s0 + $0x4] sm:$0xf]
  %v80 = vld [vmem:[%s0 + $0x8] sm:$0xf]
  %v81 = vld [vmem:[%s0 + $0xc] sm:$0xf]
  %v82 = vld [vmem:[%s0 + $0x10] sm:$0xf]
  %v83 = vld [vmem:[%s0 + $0x14] sm:$0xf]
  %v84 = vld [vmem:[%s0 + $0x18] sm:$0xf]
  %v85 = vld [vmem:[%s0 + $0x1c] sm:$0xf]
  %v86 = vld [vmem:[%s0 + $0x20] sm:$0xf]
  %v87 = vld [vmem:[%s0 + $0x24] sm:$0xf]
  %v88 = vld [vmem:[%s0 + $0x28] sm:$0xf]
  %v89 = vld [vmem:[%s0 + $0x2c] sm:$0xf]
  %v90 = vld [vmem:[%s0 + $0x30] sm:$0xf]
  %v91 = vld [vmem:[%s0 + $0x34] sm:$0xf]
  %v92 = vld [vmem:[%s0 + $0x38] sm:$0xf]
  %v93 = vld [vmem:[%s0 + $0x3c] sm:$0xf]
  %v94 = vld [vmem:[%s0 + $0x40] sm:$0xf]
  %v95 = vld [vmem:[%s0 + $0x44] sm:$0xf]
  %v96 = vld [vmem:[%s0 + $0x48] sm:$0xf]
  %v97 = vld [vmem:[%s0 + $0x4c] sm:$0xf]
  %v98 = vld [vmem:[%s0 + $0x50] sm:$0xf]
  %v99 = vld [vmem:[%s0 + $0x54] sm:$0xf]
  %v100 = vld [vmem:[%s0 + $0x58] sm:$0xf]
  %v101 = vld [vmem:[%s0 + $0x5c] sm:$0xf]
  %v102 = vld [vmem:[%s0 + $0x60] sm:$0xf]
  %v103 = vld [vmem:[%s0 + $0x64] sm:$0xf]
  %v104 = vld [vmem:[%s0 + $0x68] sm:$0xf]
  %v105 = vld [vmem:[%s0 + $0x6c] sm:$0xf]
  %v106 = vld [vmem:[%s0 + $0x70] sm:$0xf]
  %v107 = vld [vmem:[%s0 + $0x74] sm:$0xf]
  %v108 = vld [vmem:[%s0 + $0x78] sm:$0xf]
  %v109 = vld [vmem:[%s0 + $0x7c] sm:$0xf]
  %v110 = vld [vmem:[%s1] sm:$0xff]
  %v111 = vld [vmem:[%s1 + $0x8] sm:$0xff]
  %v112 = vld [vmem:[%s1 + $0x10] sm:$0xff]
  %v113 = vld [vmem:[%s1 + $0x18] sm:$0xff]
  %v114 = vld [vmem:[%s1 + $0x20] sm:$0xff]
  %v115 = vld [vmem:[%s1 + $0x28] sm:$0xff]
  %v116 = vld [vmem:[%s1 + $0x30] sm:$0xff]
  %v117 = vld [vmem:[%s1 + $0x38] sm:$0xff]
  %v118 = vld [vmem:[%s1 + $0x40] sm:$0xff]
  %v119 = vld [vmem:[%s1 + $0x48] sm:$0xff]
  %v120 = vld [vmem:[%s1 + $0x50] sm:$0xff]
  %v121 = vld [vmem:[%s1 + $0x58] sm:$0xff]
  %v122 = vld [vmem:[%s1 + $0x60] sm:$0xff]
  %v123 = vld [vmem:[%s1 + $0x68] sm:$0xff]
  %v124 = vld [vmem:[%s1 + $0x70] sm:$0xff]
  %v125 = vld [vmem:[%s1 + $0x78] sm:$0xff]
  %v158 = vunpack.c.l.b16 %v78
  %v159 = vunpack.c.l.b16 %v79
  %v160 = vunpack.c.l.b16 %v80
  %v161 = vunpack.c.l.b16 %v81
  %v162 = vunpack.c.l.b16 %v82
  %v163 = vunpack.c.l.b16 %v83
  %v164 = vunpack.c.l.b16 %v84
  %v165 = vunpack.c.l.b16 %v85
  %v166 = vunpack.c.l.b16 %v86
  %v167 = vunpack.c.l.b16 %v87
  %v168 = vunpack.c.l.b16 %v88
  %v169 = vunpack.c.l.b16 %v89
  %v170 = vunpack.c.l.b16 %v90
  %v171 = vunpack.c.l.b16 %v91
  %v172 = vunpack.c.l.b16 %v92
  %v173 = vunpack.c.l.b16 %v93
  %v174 = vunpack.c.l.b16 %v94
  %v175 = vunpack.c.l.b16 %v95
  %v176 = vunpack.c.l.b16 %v96
  %v177 = vunpack.c.l.b16 %v97
  %v178 = vunpack.c.l.b16 %v98
  %v179 = vunpack.c.l.b16 %v99
  %v180 = vunpack.c.l.b16 %v100
  %v181 = vunpack.c.l.b16 %v101
  %v182 = vunpack.c.l.b16 %v102
  %v183 = vunpack.c.l.b16 %v103
  %v184 = vunpack.c.l.b16 %v104
  %v185 = vunpack.c.l.b16 %v105
  %v186 = vunpack.c.l.b16 %v106
  %v187 = vunpack.c.l.b16 %v107
  %v188 = vunpack.c.l.b16 %v108
  %v189 = vunpack.c.l.b16 %v109
  %v190 = vpack.c.b16 %v159, %v158
  %v191 = vpack.c.b16 %v161, %v160
  %v192 = vpack.c.b16 %v163, %v162
  %v193 = vpack.c.b16 %v165, %v164
  %v194 = vpack.c.b16 %v167, %v166
  %v195 = vpack.c.b16 %v169, %v168
  %v196 = vpack.c.b16 %v171, %v170
  %v197 = vpack.c.b16 %v173, %v172
  %v198 = vpack.c.b16 %v175, %v174
  %v199 = vpack.c.b16 %v177, %v176
  %v200 = vpack.c.b16 %v179, %v178
  %v201 = vpack.c.b16 %v181, %v180
  %v202 = vpack.c.b16 %v183, %v182
  %v203 = vpack.c.b16 %v185, %v184
  %v204 = vpack.c.b16 %v187, %v186
  %v205 = vpack.c.b16 %v189, %v188
  %v238 = vunpack.c.l.b16 %v110
  %v239 = vunpack.c.h.b16 %v110
  %v240 = vunpack.c.l.b16 %v111
  %v241 = vunpack.c.h.b16 %v111
  %v242 = vunpack.c.l.b16 %v112
  %v243 = vunpack.c.h.b16 %v112
  %v244 = vunpack.c.l.b16 %v113
  %v245 = vunpack.c.h.b16 %v113
  %v246 = vunpack.c.l.b16 %v114
  %v247 = vunpack.c.h.b16 %v114
  %v248 = vunpack.c.l.b16 %v115
  %v249 = vunpack.c.h.b16 %v115
  %v250 = vunpack.c.l.b16 %v116
  %v251 = vunpack.c.h.b16 %v116
  %v252 = vunpack.c.l.b16 %v117
  %v253 = vunpack.c.h.b16 %v117
  %v254 = vunpack.c.l.b16 %v118
  %v255 = vunpack.c.h.b16 %v118
  %v256 = vunpack.c.l.b16 %v119
  %v257 = vunpack.c.h.b16 %v119
  %v258 = vunpack.c.l.b16 %v120
  %v259 = vunpack.c.h.b16 %v120
  %v260 = vunpack.c.l.b16 %v121
  %v261 = vunpack.c.h.b16 %v121
  %v262 = vunpack.c.l.b16 %v122
  %v263 = vunpack.c.h.b16 %v122
  %v264 = vunpack.c.l.b16 %v123
  %v265 = vunpack.c.h.b16 %v123
  %v266 = vunpack.c.l.b16 %v124
  %v267 = vunpack.c.h.b16 %v124
  %v268 = vunpack.c.l.b16 %v125
  %v269 = vunpack.c.h.b16 %v125
  %v270 = vpack.c.b16 %v240, %v238
  %v271 = vpack.c.b16 %v241, %v239
  %v272 = vpack.c.b16 %v244, %v242
  %v273 = vpack.c.b16 %v245, %v243
  %v274 = vpack.c.b16 %v248, %v246
  %v275 = vpack.c.b16 %v249, %v247
  %v276 = vpack.c.b16 %v252, %v250
  %v277 = vpack.c.b16 %v253, %v251
  %v278 = vpack.c.b16 %v256, %v254
  %v279 = vpack.c.b16 %v257, %v255
  %v280 = vpack.c.b16 %v260, %v258
  %v281 = vpack.c.b16 %v261, %v259
  %v282 = vpack.c.b16 %v264, %v262
  %v283 = vpack.c.b16 %v265, %v263
  %v284 = vpack.c.b16 %v268, %v266
  %v285 = vpack.c.b16 %v269, %v267
  %302 = vmatprep.subr.bf16.mxu0 %v285
  %303 = vmatpush1.bf16.msra.mxu0 %v284
  %304 = vmatprep.subr.bf16.mxu0 %v283
  %305 = vmatpush1.bf16.msra.mxu0 %v282
  %306 = vmatprep.subr.bf16.mxu0 %v281
  %307 = vmatpush1.bf16.msra.mxu0 %v280
  %308 = vmatprep.subr.bf16.mxu0 %v279
  %309 = vmatpush1.bf16.msra.mxu0 %v278
  %310 = vmatprep.subr.bf16.mxu0 %v277
  %311 = vmatpush1.bf16.msra.mxu0 %v276
  %312 = vmatprep.subr.bf16.mxu0 %v275
  %313 = vmatpush1.bf16.msra.mxu0 %v274
  %314 = vmatprep.subr.bf16.mxu0 %v273
  %315 = vmatpush1.bf16.msra.mxu0 %v272
  %316 = vmatprep.subr.bf16.mxu0 %v271
  %317 = vmatpush1.bf16.msra.mxu0 %v270
  %318 = vmatprep.subr.bf16.mxu0 0
  %319 = vmatpush2.bf16.msra.mxu0 0
  %320 = vmatprep.subr.bf16.mxu0 0
  %321 = vmatpush2.bf16.msra.mxu0 0
  %322 = vmatprep.subr.bf16.mxu0 0
  %323 = vmatpush2.bf16.msra.mxu0 0
  %324 = vmatprep.subr.bf16.mxu0 0
  %325 = vmatpush2.bf16.msra.mxu0 0
  %326 = vmatprep.subr.bf16.mxu0 0
  %327 = vmatpush2.bf16.msra.mxu0 0
  %328 = vmatprep.subr.bf16.mxu0 0
  %329 = vmatpush2.bf16.msra.mxu0 0
  %330 = vmatprep.subr.bf16.mxu0 0
  %331 = vmatpush2.bf16.msra.mxu0 0
  %332 = vmatprep.subr.bf16.mxu0 0
  %333 = vmatpush2.bf16.msra.mxu0 0
  %334 = vmatprep.mubr.bf16.mxu0 0
  %335 = vmatmul.mubr.bf16.gmra.mxu0 %v190
  %v336 = vpop.f32.mrf.mxu0
  %v337 = vadd.f32 0.0, %v336
  %v338 = vpop.f32.mrf.mxu0
  %v339 = vadd.f32 0.0, %v338
  %v340 = vpop.f32.mrf.mxu0
  %v341 = vadd.f32 0.0, %v340
  %v342 = vpop.f32.mrf.mxu0
  %v343 = vadd.f32 0.0, %v342
  %344 = vmatprep.mubr.bf16.mxu0 0
  %345 = vmatmul.mubr.bf16.gmra.mxu0 %v191
  %v346 = vpop.f32.mrf.mxu0
  %v347 = vadd.f32 0.0, %v346
  %v348 = vpop.f32.mrf.mxu0
  %v349 = vadd.f32 0.0, %v348
  %v350 = vpop.f32.mrf.mxu0
  %v351 = vadd.f32 0.0, %v350
  %v352 = vpop.f32.mrf.mxu0
  %v353 = vadd.f32 0.0, %v352
  %354 = vmatprep.mubr.bf16.mxu0 0
  %355 = vmatmul.mubr.bf16.gmra.mxu0 %v192
  %v356 = vpop.f32.mrf.mxu0
  %v357 = vadd.f32 0.0, %v356
  %v358 = vpop.f32.mrf.mxu0
  %v359 = vadd.f32 0.0, %v358
  %v360 = vpop.f32.mrf.mxu0
  %v361 = vadd.f32 0.0, %v360
  %v362 = vpop.f32.mrf.mxu0
  %v363 = vadd.f32 0.0, %v362
  %364 = vmatprep.mubr.bf16.mxu0 0
  %365 = vmatmul.mubr.bf16.gmra.mxu0 %v193
  %v366 = vpop.f32.mrf.mxu0
  %v367 = vadd.f32 0.0, %v366
  %v368 = vpop.f32.mrf.mxu0
  %v369 = vadd.f32 0.0, %v368
  %v370 = vpop.f32.mrf.mxu0
  %v371 = vadd.f32 0.0, %v370
  %v372 = vpop.f32.mrf.mxu0
  %v373 = vadd.f32 0.0, %v372
  %374 = vmatprep.mubr.bf16.mxu0 0
  %375 = vmatmul.mubr.bf16.gmra.mxu0 %v194
  %v376 = vpop.f32.mrf.mxu0
  %v377 = vadd.f32 0.0, %v376
  %v378 = vpop.f32.mrf.mxu0
  %v379 = vadd.f32 0.0, %v378
  %v380 = vpop.f32.mrf.mxu0
  %v381 = vadd.f32 0.0, %v380
  %v382 = vpop.f32.mrf.mxu0
  %v383 = vadd.f32 0.0, %v382
  %384 = vmatprep.mubr.bf16.mxu0 0
  %385 = vmatmul.mubr.bf16.gmra.mxu0 %v195
  %v386 = vpop.f32.mrf.mxu0
  %v387 = vadd.f32 0.0, %v386
  %v388 = vpop.f32.mrf.mxu0
  %v389 = vadd.f32 0.0, %v388
  %v390 = vpop.f32.mrf.mxu0
  %v391 = vadd.f32 0.0, %v390
  %v392 = vpop.f32.mrf.mxu0
  %v393 = vadd.f32 0.0, %v392
  %394 = vmatprep.mubr.bf16.mxu0 0
  %395 = vmatmul.mubr.bf16.gmra.mxu0 %v196
  %v396 = vpop.f32.mrf.mxu0
  %v397 = vadd.f32 0.0, %v396
  %v398 = vpop.f32.mrf.mxu0
  %v399 = vadd.f32 0.0, %v398
  %v400 = vpop.f32.mrf.mxu0
  %v401 = vadd.f32 0.0, %v400
  %v402 = vpop.f32.mrf.mxu0
  %v403 = vadd.f32 0.0, %v402
  %404 = vmatprep.mubr.bf16.mxu0 0
  %405 = vmatmul.mubr.bf16.gmra.mxu0 %v197
  %v406 = vpop.f32.mrf.mxu0
  %v407 = vadd.f32 0.0, %v406
  %v408 = vpop.f32.mrf.mxu0
  %v409 = vadd.f32 0.0, %v408
  %v410 = vpop.f32.mrf.mxu0
  %v411 = vadd.f32 0.0, %v410
  %v412 = vpop.f32.mrf.mxu0
  %v413 = vadd.f32 0.0, %v412
  %414 = vmatprep.mubr.bf16.mxu0 0
  %415 = vmatmul.mubr.bf16.gmra.mxu0 %v198
  %v416 = vpop.f32.mrf.mxu0
  %v417 = vadd.f32 0.0, %v416
  %v418 = vpop.f32.mrf.mxu0
  %v419 = vadd.f32 0.0, %v418
  %v420 = vpop.f32.mrf.mxu0
  %v421 = vadd.f32 0.0, %v420
  %v422 = vpop.f32.mrf.mxu0
  %v423 = vadd.f32 0.0, %v422
  %424 = vmatprep.mubr.bf16.mxu0 0
  %425 = vmatmul.mubr.bf16.gmra.mxu0 %v199
  %v426 = vpop.f32.mrf.mxu0
  %v427 = vadd.f32 0.0, %v426
  %v428 = vpop.f32.mrf.mxu0
  %v429 = vadd.f32 0.0, %v428
  %v430 = vpop.f32.mrf.mxu0
  %v431 = vadd.f32 0.0, %v430
  %v432 = vpop.f32.mrf.mxu0
  %v433 = vadd.f32 0.0, %v432
  %434 = vmatprep.mubr.bf16.mxu0 0
  %435 = vmatmul.mubr.bf16.gmra.mxu0 %v200
  %v436 = vpop.f32.mrf.mxu0
  %v437 = vadd.f32 0.0, %v436
  %v438 = vpop.f32.mrf.mxu0
  %v439 = vadd.f32 0.0, %v438
  %v440 = vpop.f32.mrf.mxu0
  %v441 = vadd.f32 0.0, %v440
  %v442 = vpop.f32.mrf.mxu0
  %v443 = vadd.f32 0.0, %v442
  %444 = vmatprep.mubr.bf16.mxu0 0
  %445 = vmatmul.mubr.bf16.gmra.mxu0 %v201
  %v446 = vpop.f32.mrf.mxu0
  %v447 = vadd.f32 0.0, %v446
  %v448 = vpop.f32.mrf.mxu0
  %v449 = vadd.f32 0.0, %v448
  %v450 = vpop.f32.mrf.mxu0
  %v451 = vadd.f32 0.0, %v450
  %v452 = vpop.f32.mrf.mxu0
  %v453 = vadd.f32 0.0, %v452
  %454 = vmatprep.mubr.bf16.mxu0 0
  %455 = vmatmul.mubr.bf16.gmra.mxu0 %v202
  %v456 = vpop.f32.mrf.mxu0
  %v457 = vadd.f32 0.0, %v456
  %v458 = vpop.f32.mrf.mxu0
  %v459 = vadd.f32 0.0, %v458
  %v460 = vpop.f32.mrf.mxu0
  %v461 = vadd.f32 0.0, %v460
  %v462 = vpop.f32.mrf.mxu0
  %v463 = vadd.f32 0.0, %v462
  %464 = vmatprep.mubr.bf16.mxu0 0
  %465 = vmatmul.mubr.bf16.gmra.mxu0 %v203
  %v466 = vpop.f32.mrf.mxu0
  %v467 = vadd.f32 0.0, %v466
  %v468 = vpop.f32.mrf.mxu0
  %v469 = vadd.f32 0.0, %v468
  %v470 = vpop.f32.mrf.mxu0
  %v471 = vadd.f32 0.0, %v470
  %v472 = vpop.f32.mrf.mxu0
  %v473 = vadd.f32 0.0, %v472
  %474 = vmatprep.mubr.bf16.mxu0 0
  %475 = vmatmul.mubr.bf16.gmra.mxu0 %v204
  %v476 = vpop.f32.mrf.mxu0
  %v477 = vadd.f32 0.0, %v476
  %v478 = vpop.f32.mrf.mxu0
  %v479 = vadd.f32 0.0, %v478
  %v480 = vpop.f32.mrf.mxu0
  %v481 = vadd.f32 0.0, %v480
  %v482 = vpop.f32.mrf.mxu0
  %v483 = vadd.f32 0.0, %v482
  %484 = vmatprep.mubr.bf16.mxu0 0
  %485 = vmatmul.mubr.bf16.gmra.mxu0 %v205
  %v486 = vpop.f32.mrf.mxu0
  %v487 = vadd.f32 0.0, %v486
  %v488 = vpop.f32.mrf.mxu0
  %v489 = vadd.f32 0.0, %v488
  %v490 = vpop.f32.mrf.mxu0
  %v491 = vadd.f32 0.0, %v490
  %v492 = vpop.f32.mrf.mxu0
  %v493 = vadd.f32 0.0, %v492
  %494 = vdwg.mxu0
  %v495 = vld [vmem:[%s2] sm:$0x3]
  %v497 = vlaneseq
  %v498 = vshrl.u32 %v497, 7
  %v499 = vsub.s32 0, %v498
  %v500 = vrot.slane %v495, %v499
  %v501 = vlaneseq
  %v502 = vshrl.u32 %v501, 7
  %v503 = vsub.s32 1, %v502
  %v504 = vrot.slane %v495, %v503
  %v507 = vmul.f32 %v337, %v500
  %v508 = vmul.f32 %v339, %v504
  %v509 = vmul.f32 %v341, %v500
  %v510 = vmul.f32 %v343, %v504
  %v511 = vmul.f32 %v347, %v500
  %v512 = vmul.f32 %v349, %v504
  %v513 = vmul.f32 %v351, %v500
  %v514 = vmul.f32 %v353, %v504
  %v515 = vmul.f32 %v357, %v500
  %v516 = vmul.f32 %v359, %v504
  %v517 = vmul.f32 %v361, %v500
  %v518 = vmul.f32 %v363, %v504
  %v519 = vmul.f32 %v367, %v500
  %v520 = vmul.f32 %v369, %v504
  %v521 = vmul.f32 %v371, %v500
  %v522 = vmul.f32 %v373, %v504
  %v523 = vmul.f32 %v377, %v500
  %v524 = vmul.f32 %v379, %v504
  %v525 = vmul.f32 %v381, %v500
  %v526 = vmul.f32 %v383, %v504
  %v527 = vmul.f32 %v387, %v500
  %v528 = vmul.f32 %v389, %v504
  %v529 = vmul.f32 %v391, %v500
  %v530 = vmul.f32 %v393, %v504
  %v531 = vmul.f32 %v397, %v500
  %v532 = vmul.f32 %v399, %v504
  %v533 = vmul.f32 %v401, %v500
  %v534 = vmul.f32 %v403, %v504
  %v535 = vmul.f32 %v407, %v500
  %v536 = vmul.f32 %v409, %v504
  %v537 = vmul.f32 %v411, %v500
  %v538 = vmul.f32 %v413, %v504
  %v539 = vmul.f32 %v417, %v500
  %v540 = vmul.f32 %v419, %v504
  %v541 = vmul.f32 %v421, %v500
  %v542 = vmul.f32 %v423, %v504
  %v543 = vmul.f32 %v427, %v500
  %v544 = vmul.f32 %v429, %v504
  %v545 = vmul.f32 %v431, %v500
  %v546 = vmul.f32 %v433, %v504
  %v547 = vmul.f32 %v437, %v500
  %v548 = vmul.f32 %v439, %v504
  %v549 = vmul.f32 %v441, %v500
  %v550 = vmul.f32 %v443, %v504
  %v551 = vmul.f32 %v447, %v500
  %v552 = vmul.f32 %v449, %v504
  %v553 = vmul.f32 %v451, %v500
  %v554 = vmul.f32 %v453, %v504
  %v555 = vmul.f32 %v457, %v500
  %v556 = vmul.f32 %v459, %v504
  %v557 = vmul.f32 %v461, %v500
  %v558 = vmul.f32 %v463, %v504
  %v559 = vmul.f32 %v467, %v500
  %v560 = vmul.f32 %v469, %v504
  %v561 = vmul.f32 %v471, %v500
  %v562 = vmul.f32 %v473, %v504
  %v563 = vmul.f32 %v477, %v500
  %v564 = vmul.f32 %v479, %v504
  %v565 = vmul.f32 %v481, %v500
  %v566 = vmul.f32 %v483, %v504
  %v567 = vmul.f32 %v487, %v500
  %v568 = vmul.f32 %v489, %v504
  %v569 = vmul.f32 %v491, %v500
  %v570 = vmul.f32 %v493, %v504
  %v571 = vld [vmem:[%s3] sm:$0x3]
  %v573 = vlaneseq
  %v574 = vshrl.u32 %v573, 7
  %v575 = vsub.s32 0, %v574
  %v576 = vrot.slane %v571, %v575
  %v577 = vlaneseq
  %v578 = vshrl.u32 %v577, 7
  %v579 = vsub.s32 1, %v578
  %v580 = vrot.slane %v571, %v579
  %v583 = vadd.f32 %v507, %v576
  %v584 = vadd.f32 %v508, %v580
  %v585 = vadd.f32 %v509, %v576
  %v586 = vadd.f32 %v510, %v580
  %v587 = vadd.f32 %v511, %v576
  %v588 = vadd.f32 %v512, %v580
  %v589 = vadd.f32 %v513, %v576
  %v590 = vadd.f32 %v514, %v580
  %v591 = vadd.f32 %v515, %v576
  %v592 = vadd.f32 %v516, %v580
  %v593 = vadd.f32 %v517, %v576
  %v594 = vadd.f32 %v518, %v580
  %v595 = vadd.f32 %v519, %v576
  %v596 = vadd.f32 %v520, %v580
  %v597 = vadd.f32 %v521, %v576
  %v598 = vadd.f32 %v522, %v580
  %v599 = vadd.f32 %v523, %v576
  %v600 = vadd.f32 %v524, %v580
  %v601 = vadd.f32 %v525, %v576
  %v602 = vadd.f32 %v526, %v580
  %v603 = vadd.f32 %v527, %v576
  %v604 = vadd.f32 %v528, %v580
  %v605 = vadd.f32 %v529, %v576
  %v606 = vadd.f32 %v530, %v580
  %v607 = vadd.f32 %v531, %v576
  %v608 = vadd.f32 %v532, %v580
  %v609 = vadd.f32 %v533, %v576
  %v610 = vadd.f32 %v534, %v580
  %v611 = vadd.f32 %v535, %v576
  %v612 = vadd.f32 %v536, %v580
  %v613 = vadd.f32 %v537, %v576
  %v614 = vadd.f32 %v538, %v580
  %v615 = vadd.f32 %v539, %v576
  %v616 = vadd.f32 %v540, %v580
  %v617 = vadd.f32 %v541, %v576
  %v618 = vadd.f32 %v542, %v580
  %v619 = vadd.f32 %v543, %v576
  %v620 = vadd.f32 %v544, %v580
  %v621 = vadd.f32 %v545, %v576
  %v622 = vadd.f32 %v546, %v580
  %v623 = vadd.f32 %v547, %v576
  %v624 = vadd.f32 %v548, %v580
  %v625 = vadd.f32 %v549, %v576
  %v626 = vadd.f32 %v550, %v580
  %v627 = vadd.f32 %v551, %v576
  %v628 = vadd.f32 %v552, %v580
  %v629 = vadd.f32 %v553, %v576
  %v630 = vadd.f32 %v554, %v580
  %v631 = vadd.f32 %v555, %v576
  %v632 = vadd.f32 %v556, %v580
  %v633 = vadd.f32 %v557, %v576
  %v634 = vadd.f32 %v558, %v580
  %v635 = vadd.f32 %v559, %v576
  %v636 = vadd.f32 %v560, %v580
  %v637 = vadd.f32 %v561, %v576
  %v638 = vadd.f32 %v562, %v580
  %v639 = vadd.f32 %v563, %v576
  %v640 = vadd.f32 %v564, %v580
  %v641 = vadd.f32 %v565, %v576
  %v642 = vadd.f32 %v566, %v580
  %v643 = vadd.f32 %v567, %v576
  %v644 = vadd.f32 %v568, %v580
  %v645 = vadd.f32 %v569, %v576
  %v646 = vadd.f32 %v570, %v580
  %v647 = vmax.f32 %v583, 0.0
  %v648 = vmax.f32 %v584, 0.0
  %v649 = vmax.f32 %v585, 0.0
  %v650 = vmax.f32 %v586, 0.0
  %v651 = vmax.f32 %v587, 0.0
  %v652 = vmax.f32 %v588, 0.0
  %v653 = vmax.f32 %v589, 0.0
  %v654 = vmax.f32 %v590, 0.0
  %v655 = vmax.f32 %v591, 0.0
  %v656 = vmax.f32 %v592, 0.0
  %v657 = vmax.f32 %v593, 0.0
  %v658 = vmax.f32 %v594, 0.0
  %v659 = vmax.f32 %v595, 0.0
  %v660 = vmax.f32 %v596, 0.0
  %v661 = vmax.f32 %v597, 0.0
  %v662 = vmax.f32 %v598, 0.0
  %v663 = vmax.f32 %v599, 0.0
  %v664 = vmax.f32 %v600, 0.0
  %v665 = vmax.f32 %v601, 0.0
  %v666 = vmax.f32 %v602, 0.0
  %v667 = vmax.f32 %v603, 0.0
  %v668 = vmax.f32 %v604, 0.0
  %v669 = vmax.f32 %v605, 0.0
  %v670 = vmax.f32 %v606, 0.0
  %v671 = vmax.f32 %v607, 0.0
  %v672 = vmax.f32 %v608, 0.0
  %v673 = vmax.f32 %v609, 0.0
  %v674 = vmax.f32 %v610, 0.0
  %v675 = vmax.f32 %v611, 0.0
  %v676 = vmax.f32 %v612, 0.0
  %v677 = vmax.f32 %v613, 0.0
  %v678 = vmax.f32 %v614, 0.0
  %v679 = vmax.f32 %v615, 0.0
  %v680 = vmax.f32 %v616, 0.0
  %v681 = vmax.f32 %v617, 0.0
  %v682 = vmax.f32 %v618, 0.0
  %v683 = vmax.f32 %v619, 0.0
  %v684 = vmax.f32 %v620, 0.0
  %v685 = vmax.f32 %v621, 0.0
  %v686 = vmax.f32 %v622, 0.0
  %v687 = vmax.f32 %v623, 0.0
  %v688 = vmax.f32 %v624, 0.0
  %v689 = vmax.f32 %v625, 0.0
  %v690 = vmax.f32 %v626, 0.0
  %v691 = vmax.f32 %v627, 0.0
  %v692 = vmax.f32 %v628, 0.0
  %v693 = vmax.f32 %v629, 0.0
  %v694 = vmax.f32 %v630, 0.0
  %v695 = vmax.f32 %v631, 0.0
  %v696 = vmax.f32 %v632, 0.0
  %v697 = vmax.f32 %v633, 0.0
  %v698 = vmax.f32 %v634, 0.0
  %v699 = vmax.f32 %v635, 0.0
  %v700 = vmax.f32 %v636, 0.0
  %v701 = vmax.f32 %v637, 0.0
  %v702 = vmax.f32 %v638, 0.0
  %v703 = vmax.f32 %v639, 0.0
  %v704 = vmax.f32 %v640, 0.0
  %v705 = vmax.f32 %v641, 0.0
  %v706 = vmax.f32 %v642, 0.0
  %v707 = vmax.f32 %v643, 0.0
  %v708 = vmax.f32 %v644, 0.0
  %v709 = vmax.f32 %v645, 0.0
  %v710 = vmax.f32 %v646, 0.0
  %711 = vst [vmem:[#allocation2] sm:$0xff] 0
  %712 = vst [vmem:[#allocation2 + $0x20] sm:$0xff] 0
  %713 = vst [vmem:[#allocation2 + $0x40] sm:$0xff] 0
  %714 = vst [vmem:[#allocation2 + $0x60] sm:$0xff] 0
  %715 = vst [vmem:[#allocation2 + $0x80] sm:$0xff] 0
  %716 = vst [vmem:[#allocation2 + $0xa0] sm:$0xff] 0
  %717 = vst [vmem:[#allocation2 + $0xc0] sm:$0xff] 0
  %718 = vst [vmem:[#allocation2 + $0xe0] sm:$0xff] 0
  %719 = vst [vmem:[#allocation2 + $0x100] sm:$0xff] 0
  %720 = vst [vmem:[#allocation2 + $0x120] sm:$0xff] 0
  %721 = vst [vmem:[#allocation2 + $0x140] sm:$0xff] 0
  %722 = vst [vmem:[#allocation2 + $0x160] sm:$0xff] 0
  %723 = vst [vmem:[#allocation2 + $0x180] sm:$0xff] 0
  %724 = vst [vmem:[#allocation2 + $0x1a0] sm:$0xff] 0
  %725 = vst [vmem:[#allocation2 + $0x1c0] sm:$0xff] 0
  %726 = vst [vmem:[#allocation2 + $0x1e0] sm:$0xff] 0
  %727 = vst [vmem:[#allocation2 + $0x18] sm:$0xff] 0
  %728 = vst [vmem:[#allocation2 + $0x38] sm:$0xff] 0
  %729 = vst [vmem:[#allocation2 + $0x58] sm:$0xff] 0
  %730 = vst [vmem:[#allocation2 + $0x78] sm:$0xff] 0
  %731 = vst [vmem:[#allocation2 + $0x98] sm:$0xff] 0
  %732 = vst [vmem:[#allocation2 + $0xb8] sm:$0xff] 0
  %733 = vst [vmem:[#allocation2 + $0xd8] sm:$0xff] 0
  %734 = vst [vmem:[#allocation2 + $0xf8] sm:$0xff] 0
  %735 = vst [vmem:[#allocation2 + $0x118] sm:$0xff] 0
  %736 = vst [vmem:[#allocation2 + $0x138] sm:$0xff] 0
  %737 = vst [vmem:[#allocation2 + $0x158] sm:$0xff] 0
  %738 = vst [vmem:[#allocation2 + $0x178] sm:$0xff] 0
  %739 = vst [vmem:[#allocation2 + $0x198] sm:$0xff] 0
  %740 = vst [vmem:[#allocation2 + $0x1b8] sm:$0xff] 0
  %741 = vst [vmem:[#allocation2 + $0x1d8] sm:$0xff] 0
  %742 = vst [vmem:[#allocation2 + $0x1f8] sm:$0xff] 0
  %v743 = vpack.c.bf16 %v649, %v647
  %v744 = vpack.c.bf16 %v650, %v648
  %v745 = vpack.c.bf16 %v653, %v651
  %v746 = vpack.c.bf16 %v654, %v652
  %v747 = vpack.c.bf16 %v657, %v655
  %v748 = vpack.c.bf16 %v658, %v656
  %v749 = vpack.c.bf16 %v661, %v659
  %v750 = vpack.c.bf16 %v662, %v660
  %v751 = vpack.c.bf16 %v665, %v663
  %v752 = vpack.c.bf16 %v666, %v664
  %v753 = vpack.c.bf16 %v669, %v667
  %v754 = vpack.c.bf16 %v670, %v668
  %v755 = vpack.c.bf16 %v673, %v671
  %v756 = vpack.c.bf16 %v674, %v672
  %v757 = vpack.c.bf16 %v677, %v675
  %v758 = vpack.c.bf16 %v678, %v676
  %v759 = vpack.c.bf16 %v681, %v679
  %v760 = vpack.c.bf16 %v682, %v680
  %v761 = vpack.c.bf16 %v685, %v683
  %v762 = vpack.c.bf16 %v686, %v684
  %v763 = vpack.c.bf16 %v689, %v687
  %v764 = vpack.c.bf16 %v690, %v688
  %v765 = vpack.c.bf16 %v693, %v691
  %v766 = vpack.c.bf16 %v694, %v692
  %v767 = vpack.c.bf16 %v697, %v695
  %v768 = vpack.c.bf16 %v698, %v696
  %v769 = vpack.c.bf16 %v701, %v699
  %v770 = vpack.c.bf16 %v702, %v700
  %v771 = vpack.c.bf16 %v705, %v703
  %v772 = vpack.c.bf16 %v706, %v704
  %v773 = vpack.c.bf16 %v709, %v707
  %v774 = vpack.c.bf16 %v710, %v708
  %v807 = vunpack.c.l.b16 %v743
  %v808 = vunpack.c.l.b16 %v744
  %v809 = vunpack.c.h.b16 %v743
  %v810 = vunpack.c.h.b16 %v744
  %v811 = vunpack.c.l.b16 %v745
  %v812 = vunpack.c.l.b16 %v746
  %v813 = vunpack.c.h.b16 %v745
  %v814 = vunpack.c.h.b16 %v746
  %v815 = vunpack.c.l.b16 %v747
  %v816 = vunpack.c.l.b16 %v748
  %v817 = vunpack.c.h.b16 %v747
  %v818 = vunpack.c.h.b16 %v748
  %v819 = vunpack.c.l.b16 %v749
  %v820 = vunpack.c.l.b16 %v750
  %v821 = vunpack.c.h.b16 %v749
  %v822 = vunpack.c.h.b16 %v750
  %v823 = vunpack.c.l.b16 %v751
  %v824 = vunpack.c.l.b16 %v752
  %v825 = vunpack.c.h.b16 %v751
  %v826 = vunpack.c.h.b16 %v752
  %v827 = vunpack.c.l.b16 %v753
  %v828 = vunpack.c.l.b16 %v754
  %v829 = vunpack.c.h.b16 %v753
  %v830 = vunpack.c.h.b16 %v754
  %v831 = vunpack.c.l.b16 %v755
  %v832 = vunpack.c.l.b16 %v756
  %v833 = vunpack.c.h.b16 %v755
  %v834 = vunpack.c.h.b16 %v756
  %v835 = vunpack.c.l.b16 %v757
  %v836 = vunpack.c.l.b16 %v758
  %v837 = vunpack.c.h.b16 %v757
  %v838 = vunpack.c.h.b16 %v758
  %v839 = vunpack.c.l.b16 %v759
  %v840 = vunpack.c.l.b16 %v760
  %v841 = vunpack.c.h.b16 %v759
  %v842 = vunpack.c.h.b16 %v760
  %v843 = vunpack.c.l.b16 %v761
  %v844 = vunpack.c.l.b16 %v762
  %v845 = vunpack.c.h.b16 %v761
  %v846 = vunpack.c.h.b16 %v762
  %v847 = vunpack.c.l.b16 %v763
  %v848 = vunpack.c.l.b16 %v764
  %v849 = vunpack.c.h.b16 %v763
  %v850 = vunpack.c.h.b16 %v764
  %v851 = vunpack.c.l.b16 %v765
  %v852 = vunpack.c.l.b16 %v766
  %v853 = vunpack.c.h.b16 %v765
  %v854 = vunpack.c.h.b16 %v766
  %v855 = vunpack.c.l.b16 %v767
  %v856 = vunpack.c.l.b16 %v768
  %v857 = vunpack.c.h.b16 %v767
  %v858 = vunpack.c.h.b16 %v768
  %v859 = vunpack.c.l.b16 %v769
  %v860 = vunpack.c.l.b16 %v770
  %v861 = vunpack.c.h.b16 %v769
  %v862 = vunpack.c.h.b16 %v770
  %v863 = vunpack.c.l.b16 %v771
  %v864 = vunpack.c.l.b16 %v772
  %v865 = vunpack.c.h.b16 %v771
  %v866 = vunpack.c.h.b16 %v772
  %v867 = vunpack.c.l.b16 %v773
  %v868 = vunpack.c.l.b16 %v774
  %v869 = vunpack.c.h.b16 %v773
  %v870 = vunpack.c.h.b16 %v774
  %v871 = vpack.c.b16 %v808, %v807
  %v872 = vpack.c.b16 %v810, %v809
  %v873 = vpack.c.b16 %v812, %v811
  %v874 = vpack.c.b16 %v814, %v813
  %v875 = vpack.c.b16 %v816, %v815
  %v876 = vpack.c.b16 %v818, %v817
  %v877 = vpack.c.b16 %v820, %v819
  %v878 = vpack.c.b16 %v822, %v821
  %v879 = vpack.c.b16 %v824, %v823
  %v880 = vpack.c.b16 %v826, %v825
  %v881 = vpack.c.b16 %v828, %v827
  %v882 = vpack.c.b16 %v830, %v829
  %v883 = vpack.c.b16 %v832, %v831
  %v884 = vpack.c.b16 %v834, %v833
  %v885 = vpack.c.b16 %v836, %v835
  %v886 = vpack.c.b16 %v838, %v837
  %v887 = vpack.c.b16 %v840, %v839
  %v888 = vpack.c.b16 %v842, %v841
  %v889 = vpack.c.b16 %v844, %v843
  %v890 = vpack.c.b16 %v846, %v845
  %v891 = vpack.c.b16 %v848, %v847
  %v892 = vpack.c.b16 %v850, %v849
  %v893 = vpack.c.b16 %v852, %v851
  %v894 = vpack.c.b16 %v854, %v853
  %v895 = vpack.c.b16 %v856, %v855
  %v896 = vpack.c.b16 %v858, %v857
  %v897 = vpack.c.b16 %v860, %v859
  %v898 = vpack.c.b16 %v862, %v861
  %v899 = vpack.c.b16 %v864, %v863
  %v900 = vpack.c.b16 %v866, %v865
  %v901 = vpack.c.b16 %v868, %v867
  %v902 = vpack.c.b16 %v870, %v869
  %935 = vst [vmem:[#allocation2 + $0x8] sm:$0xff] %v871
  %936 = vst [vmem:[#allocation2 + $0x10] sm:$0xff] %v872
  %937 = vst [vmem:[#allocation2 + $0x28] sm:$0xff] %v873
  %938 = vst [vmem:[#allocation2 + $0x30] sm:$0xff] %v874
  %939 = vst [vmem:[#allocation2 + $0x48] sm:$0xff] %v875
  %940 = vst [vmem:[#allocation2 + $0x50] sm:$0xff] %v876
  %941 = vst [vmem:[#allocation2 + $0x68] sm:$0xff] %v877
  %942 = vst [vmem:[#allocation2 + $0x70] sm:$0xff] %v878
  %943 = vst [vmem:[#allocation2 + $0x88] sm:$0xff] %v879
  %944 = vst [vmem:[#allocation2 + $0x90] sm:$0xff] %v880
  %945 = vst [vmem:[#allocation2 + $0xa8] sm:$0xff] %v881
  %946 = vst [vmem:[#allocation2 + $0xb0] sm:$0xff] %v882
  %947 = vst [vmem:[#allocation2 + $0xc8] sm:$0xff] %v883
  %948 = vst [vmem:[#allocation2 + $0xd0] sm:$0xff] %v884
  %949 = vst [vmem:[#allocation2 + $0xe8] sm:$0xff] %v885
  %950 = vst [vmem:[#allocation2 + $0xf0] sm:$0xff] %v886
  %951 = vst [vmem:[#allocation2 + $0x108] sm:$0xff] %v887
  %952 = vst [vmem:[#allocation2 + $0x110] sm:$0xff] %v888
  %953 = vst [vmem:[#allocation2 + $0x128] sm:$0xff] %v889
  %954 = vst [vmem:[#allocation2 + $0x130] sm:$0xff] %v890
  %955 = vst [vmem:[#allocation2 + $0x148] sm:$0xff] %v891
  %956 = vst [vmem:[#allocation2 + $0x150] sm:$0xff] %v892
  %957 = vst [vmem:[#allocation2 + $0x168] sm:$0xff] %v893
  %958 = vst [vmem:[#allocation2 + $0x170] sm:$0xff] %v894
  %959 = vst [vmem:[#allocation2 + $0x188] sm:$0xff] %v895
  %960 = vst [vmem:[#allocation2 + $0x190] sm:$0xff] %v896
  %961 = vst [vmem:[#allocation2 + $0x1a8] sm:$0xff] %v897
  %962 = vst [vmem:[#allocation2 + $0x1b0] sm:$0xff] %v898
  %963 = vst [vmem:[#allocation2 + $0x1c8] sm:$0xff] %v899
  %964 = vst [vmem:[#allocation2 + $0x1d0] sm:$0xff] %v900
  %965 = vst [vmem:[#allocation2 + $0x1e8] sm:$0xff] %v901
  %966 = vst [vmem:[#allocation2 + $0x1f0] sm:$0xff] %v902
  %v967 = vld [vmem:[#allocation2] sm:$0xff]
  %v968 = vld [vmem:[#allocation2 + $0x8] sm:$0xff]
  %v969 = vld [vmem:[#allocation2 + $0x10] sm:$0x11]
  %v970 = vld [vmem:[#allocation2 + $0x20] sm:$0xff]
  %v971 = vld [vmem:[#allocation2 + $0x28] sm:$0xff]
  %v972 = vld [vmem:[#allocation2 + $0x30] sm:$0x11]
  %v973 = vld [vmem:[#allocation2 + $0x40] sm:$0xff]
  %v974 = vld [vmem:[#allocation2 + $0x48] sm:$0xff]
  %v975 = vld [vmem:[#allocation2 + $0x50] sm:$0x11]
  %v976 = vld [vmem:[#allocation2 + $0x60] sm:$0xff]
  %v977 = vld [vmem:[#allocation2 + $0x68] sm:$0xff]
  %v978 = vld [vmem:[#allocation2 + $0x70] sm:$0x11]
  %v979 = vld [vmem:[#allocation2 + $0x80] sm:$0xff]
  %v980 = vld [vmem:[#allocation2 + $0x88] sm:$0xff]
  %v981 = vld [vmem:[#allocation2 + $0x90] sm:$0x11]
  %v982 = vld [vmem:[#allocation2 + $0xa0] sm:$0xff]
  %v983 = vld [vmem:[#allocation2 + $0xa8] sm:$0xff]
  %v984 = vld [vmem:[#allocation2 + $0xb0] sm:$0x11]
  %v985 = vld [vmem:[#allocation2 + $0xc0] sm:$0xff]
  %v986 = vld [vmem:[#allocation2 + $0xc8] sm:$0xff]
  %v987 = vld [vmem:[#allocation2 + $0xd0] sm:$0x11]
  %v988 = vld [vmem:[#allocation2 + $0xe0] sm:$0xff]
  %v989 = vld [vmem:[#allocation2 + $0xe8] sm:$0xff]
  %v990 = vld [vmem:[#allocation2 + $0xf0] sm:$0x11]
  %v991 = vld [vmem:[#allocation2 + $0x100] sm:$0xff]
  %v992 = vld [vmem:[#allocation2 + $0x108] sm:$0xff]
  %v993 = vld [vmem:[#allocation2 + $0x110] sm:$0x11]
  %v994 = vld [vmem:[#allocation2 + $0x120] sm:$0xff]
  %v995 = vld [vmem:[#allocation2 + $0x128] sm:$0xff]
  %v996 = vld [vmem:[#allocation2 + $0x130] sm:$0x11]
  %v997 = vld [vmem:[#allocation2 + $0x140] sm:$0xff]
  %v998 = vld [vmem:[#allocation2 + $0x148] sm:$0xff]
  %v999 = vld [vmem:[#allocation2 + $0x150] sm:$0x11]
  %v1000 = vld [vmem:[#allocation2 + $0x160] sm:$0xff]
  %v1001 = vld [vmem:[#allocation2 + $0x168] sm:$0xff]
  %v1002 = vld [vmem:[#allocation2 + $0x170] sm:$0x11]
  %v1003 = vld [vmem:[#allocation2 + $0x180] sm:$0xff]
  %v1004 = vld [vmem:[#allocation2 + $0x188] sm:$0xff]
  %v1005 = vld [vmem:[#allocation2 + $0x190] sm:$0x11]
  %v1006 = vld [vmem:[#allocation2 + $0x1a0] sm:$0xff]
  %v1007 = vld [vmem:[#allocation2 + $0x1a8] sm:$0xff]
  %v1008 = vld [vmem:[#allocation2 + $0x1b0] sm:$0x11]
  %v1009 = vld [vmem:[#allocation2 + $0x1c0] sm:$0xff]
  %v1010 = vld [vmem:[#allocation2 + $0x1c8] sm:$0xff]
  %v1011 = vld [vmem:[#allocation2 + $0x1d0] sm:$0x11]
  %v1012 = vld [vmem:[#allocation2 + $0x1e0] sm:$0xff]
  %v1013 = vld [vmem:[#allocation2 + $0x1e8] sm:$0xff]
  %v1014 = vld [vmem:[#allocation2 + $0x1f0] sm:$0x11]
  %vm1015 = vsmask.f32 3328
  %vm1016 = vsmask.f32 7440
  %vm1017 = vmor %vm1015, %vm1016
  %v1019 = vshrl.u32 %v967, 16
  %v1021 = vrot.slane %v1019, 4
  %v1022 = vshll.u32 %v967, 16
  %v1024 = vrot.slane %v1022, 5
  %v1025 = vor.u32 %v1021, %v1024
  %v1026 = vrot.slane %v1025, 4
  %v1028 = vshll.u32 %v968, 16
  %v1030 = vrot.slane %v1028, 5
  %v1031 = vsel %vm1017, %v1026, %v1030
  %v1032 = vshrl.u32 %v968, 16
  %v1034 = vrot.slane %v1032, 4
  %v1035 = vor.u32 %v1034, %v1030
  %v1036 = vrot.slane %v1035, 4
  %v1038 = vshll.u32 %v969, 16
  %v1040 = vrot.slane %v1038, 5
  %v1041 = vsel %vm1017, %v1036, %v1040
  %v1043 = vshrl.u32 %v970, 16
  %v1045 = vrot.slane %v1043, 4
  %v1046 = vshll.u32 %v970, 16
  %v1048 = vrot.slane %v1046, 5
  %v1049 = vor.u32 %v1045, %v1048
  %v1050 = vrot.slane %v1049, 4
  %v1052 = vshll.u32 %v971, 16
  %v1054 = vrot.slane %v1052, 5
  %v1055 = vsel %vm1017, %v1050, %v1054
  %v1056 = vshrl.u32 %v971, 16
  %v1058 = vrot.slane %v1056, 4
  %v1059 = vor.u32 %v1058, %v1054
  %v1060 = vrot.slane %v1059, 4
  %v1062 = vshll.u32 %v972, 16
  %v1064 = vrot.slane %v1062, 5
  %v1065 = vsel %vm1017, %v1060, %v1064
  %v1067 = vshrl.u32 %v973, 16
  %v1069 = vrot.slane %v1067, 4
  %v1070 = vshll.u32 %v973, 16
  %v1072 = vrot.slane %v1070, 5
  %v1073 = vor.u32 %v1069, %v1072
  %v1074 = vrot.slane %v1073, 4
  %v1076 = vshll.u32 %v974, 16
  %v1078 = vrot.slane %v1076, 5
  %v1079 = vsel %vm1017, %v1074, %v1078
  %v1080 = vshrl.u32 %v974, 16
  %v1082 = vrot.slane %v1080, 4
  %v1083 = vor.u32 %v1082, %v1078
  %v1084 = vrot.slane %v1083, 4
  %v1086 = vshll.u32 %v975, 16
  %v1088 = vrot.slane %v1086, 5
  %v1089 = vsel %vm1017, %v1084, %v1088
  %v1091 = vshrl.u32 %v976, 16
  %v1093 = vrot.slane %v1091, 4
  %v1094 = vshll.u32 %v976, 16
  %v1096 = vrot.slane %v1094, 5
  %v1097 = vor.u32 %v1093, %v1096
  %v1098 = vrot.slane %v1097, 4
  %v1100 = vshll.u32 %v977, 16
  %v1102 = vrot.slane %v1100, 5
  %v1103 = vsel %vm1017, %v1098, %v1102
  %v1104 = vshrl.u32 %v977, 16
  %v1106 = vrot.slane %v1104, 4
  %v1107 = vor.u32 %v1106, %v1102
  %v1108 = vrot.slane %v1107, 4
  %v1110 = vshll.u32 %v978, 16
  %v1112 = vrot.slane %v1110, 5
  %v1113 = vsel %vm1017, %v1108, %v1112
  %v1115 = vshrl.u32 %v979, 16
  %v1117 = vrot.slane %v1115, 4
  %v1118 = vshll.u32 %v979, 16
  %v1120 = vrot.slane %v1118, 5
  %v1121 = vor.u32 %v1117, %v1120
  %v1122 = vrot.slane %v1121, 4
  %v1124 = vshll.u32 %v980, 16
  %v1126 = vrot.slane %v1124, 5
  %v1127 = vsel %vm1017, %v1122, %v1126
  %v1128 = vshrl.u32 %v980, 16
  %v1130 = vrot.slane %v1128, 4
  %v1131 = vor.u32 %v1130, %v1126
  %v1132 = vrot.slane %v1131, 4
  %v1134 = vshll.u32 %v981, 16
  %v1136 = vrot.slane %v1134, 5
  %v1137 = vsel %vm1017, %v1132, %v1136
  %v1139 = vshrl.u32 %v982, 16
  %v1141 = vrot.slane %v1139, 4
  %v1142 = vshll.u32 %v982, 16
  %v1144 = vrot.slane %v1142, 5
  %v1145 = vor.u32 %v1141, %v1144
  %v1146 = vrot.slane %v1145, 4
  %v1148 = vshll.u32 %v983, 16
  %v1150 = vrot.slane %v1148, 5
  %v1151 = vsel %vm1017, %v1146, %v1150
  %v1152 = vshrl.u32 %v983, 16
  %v1154 = vrot.slane %v1152, 4
  %v1155 = vor.u32 %v1154, %v1150
  %v1156 = vrot.slane %v1155, 4
  %v1158 = vshll.u32 %v984, 16
  %v1160 = vrot.slane %v1158, 5
  %v1161 = vsel %vm1017, %v1156, %v1160
  %v1163 = vshrl.u32 %v985, 16
  %v1165 = vrot.slane %v1163, 4
  %v1166 = vshll.u32 %v985, 16
  %v1168 = vrot.slane %v1166, 5
  %v1169 = vor.u32 %v1165, %v1168
  %v1170 = vrot.slane %v1169, 4
  %v1172 = vshll.u32 %v986, 16
  %v1174 = vrot.slane %v1172, 5
  %v1175 = vsel %vm1017, %v1170, %v1174
  %v1176 = vshrl.u32 %v986, 16
  %v1178 = vrot.slane %v1176, 4
  %v1179 = vor.u32 %v1178, %v1174
  %v1180 = vrot.slane %v1179, 4
  %v1182 = vshll.u32 %v987, 16
  %v1184 = vrot.slane %v1182, 5
  %v1185 = vsel %vm1017, %v1180, %v1184
  %v1187 = vshrl.u32 %v988, 16
  %v1189 = vrot.slane %v1187, 4
  %v1190 = vshll.u32 %v988, 16
  %v1192 = vrot.slane %v1190, 5
  %v1193 = vor.u32 %v1189, %v1192
  %v1194 = vrot.slane %v1193, 4
  %v1196 = vshll.u32 %v989, 16
  %v1198 = vrot.slane %v1196, 5
  %v1199 = vsel %vm1017, %v1194, %v1198
  %v1200 = vshrl.u32 %v989, 16
  %v1202 = vrot.slane %v1200, 4
  %v1203 = vor.u32 %v1202, %v1198
  %v1204 = vrot.slane %v1203, 4
  %v1206 = vshll.u32 %v990, 16
  %v1208 = vrot.slane %v1206, 5
  %v1209 = vsel %vm1017, %v1204, %v1208
  %v1211 = vshrl.u32 %v991, 16
  %v1213 = vrot.slane %v1211, 4
  %v1214 = vshll.u32 %v991, 16
  %v1216 = vrot.slane %v1214, 5
  %v1217 = vor.u32 %v1213, %v1216
  %v1218 = vrot.slane %v1217, 4
  %v1220 = vshll.u32 %v992, 16
  %v1222 = vrot.slane %v1220, 5
  %v1223 = vsel %vm1017, %v1218, %v1222
  %v1224 = vshrl.u32 %v992, 16
  %v1226 = vrot.slane %v1224, 4
  %v1227 = vor.u32 %v1226, %v1222
  %v1228 = vrot.slane %v1227, 4
  %v1230 = vshll.u32 %v993, 16
  %v1232 = vrot.slane %v1230, 5
  %v1233 = vsel %vm1017, %v1228, %v1232
  %v1235 = vshrl.u32 %v994, 16
  %v1237 = vrot.slane %v1235, 4
  %v1238 = vshll.u32 %v994, 16
  %v1240 = vrot.slane %v1238, 5
  %v1241 = vor.u32 %v1237, %v1240
  %v1242 = vrot.slane %v1241, 4
  %v1244 = vshll.u32 %v995, 16
  %v1246 = vrot.slane %v1244, 5
  %v1247 = vsel %vm1017, %v1242, %v1246
  %v1248 = vshrl.u32 %v995, 16
  %v1250 = vrot.slane %v1248, 4
  %v1251 = vor.u32 %v1250, %v1246
  %v1252 = vrot.slane %v1251, 4
  %v1254 = vshll.u32 %v996, 16
  %v1256 = vrot.slane %v1254, 5
  %v1257 = vsel %vm1017, %v1252, %v1256
  %v1259 = vshrl.u32 %v997, 16
  %v1261 = vrot.slane %v1259, 4
  %v1262 = vshll.u32 %v997, 16
  %v1264 = vrot.slane %v1262, 5
  %v1265 = vor.u32 %v1261, %v1264
  %v1266 = vrot.slane %v1265, 4
  %v1268 = vshll.u32 %v998, 16
  %v1270 = vrot.slane %v1268, 5
  %v1271 = vsel %vm1017, %v1266, %v1270
  %v1272 = vshrl.u32 %v998, 16
  %v1274 = vrot.slane %v1272, 4
  %v1275 = vor.u32 %v1274, %v1270
  %v1276 = vrot.slane %v1275, 4
  %v1278 = vshll.u32 %v999, 16
  %v1280 = vrot.slane %v1278, 5
  %v1281 = vsel %vm1017, %v1276, %v1280
  %v1283 = vshrl.u32 %v1000, 16
  %v1285 = vrot.slane %v1283, 4
  %v1286 = vshll.u32 %v1000, 16
  %v1288 = vrot.slane %v1286, 5
  %v1289 = vor.u32 %v1285, %v1288
  %v1290 = vrot.slane %v1289, 4
  %v1292 = vshll.u32 %v1001, 16
  %v1294 = vrot.slane %v1292, 5
  %v1295 = vsel %vm1017, %v1290, %v1294
  %v1296 = vshrl.u32 %v1001, 16
  %v1298 = vrot.slane %v1296, 4
  %v1299 = vor.u32 %v1298, %v1294
  %v1300 = vrot.slane %v1299, 4
  %v1302 = vshll.u32 %v1002, 16
  %v1304 = vrot.slane %v1302, 5
  %v1305 = vsel %vm1017, %v1300, %v1304
  %v1307 = vshrl.u32 %v1003, 16
  %v1309 = vrot.slane %v1307, 4
  %v1310 = vshll.u32 %v1003, 16
  %v1312 = vrot.slane %v1310, 5
  %v1313 = vor.u32 %v1309, %v1312
  %v1314 = vrot.slane %v1313, 4
  %v1316 = vshll.u32 %v1004, 16
  %v1318 = vrot.slane %v1316, 5
  %v1319 = vsel %vm1017, %v1314, %v1318
  %v1320 = vshrl.u32 %v1004, 16
  %v1322 = vrot.slane %v1320, 4
  %v1323 = vor.u32 %v1322, %v1318
  %v1324 = vrot.slane %v1323, 4
  %v1326 = vshll.u32 %v1005, 16
  %v1328 = vrot.slane %v1326, 5
  %v1329 = vsel %vm1017, %v1324, %v1328
  %v1331 = vshrl.u32 %v1006, 16
  %v1333 = vrot.slane %v1331, 4
  %v1334 = vshll.u32 %v1006, 16
  %v1336 = vrot.slane %v1334, 5
  %v1337 = vor.u32 %v1333, %v1336
  %v1338 = vrot.slane %v1337, 4
  %v1340 = vshll.u32 %v1007, 16
  %v1342 = vrot.slane %v1340, 5
  %v1343 = vsel %vm1017, %v1338, %v1342
  %v1344 = vshrl.u32 %v1007, 16
  %v1346 = vrot.slane %v1344, 4
  %v1347 = vor.u32 %v1346, %v1342
  %v1348 = vrot.slane %v1347, 4
  %v1350 = vshll.u32 %v1008, 16
  %v1352 = vrot.slane %v1350, 5
  %v1353 = vsel %vm1017, %v1348, %v1352
  %v1355 = vshrl.u32 %v1009, 16
  %v1357 = vrot.slane %v1355, 4
  %v1358 = vshll.u32 %v1009, 16
  %v1360 = vrot.slane %v1358, 5
  %v1361 = vor.u32 %v1357, %v1360
  %v1362 = vrot.slane %v1361, 4
  %v1364 = vshll.u32 %v1010, 16
  %v1366 = vrot.slane %v1364, 5
  %v1367 = vsel %vm1017, %v1362, %v1366
  %v1368 = vshrl.u32 %v1010, 16
  %v1370 = vrot.slane %v1368, 4
  %v1371 = vor.u32 %v1370, %v1366
  %v1372 = vrot.slane %v1371, 4
  %v1374 = vshll.u32 %v1011, 16
  %v1376 = vrot.slane %v1374, 5
  %v1377 = vsel %vm1017, %v1372, %v1376
  %v1379 = vshrl.u32 %v1012, 16
  %v1381 = vrot.slane %v1379, 4
  %v1382 = vshll.u32 %v1012, 16
  %v1384 = vrot.slane %v1382, 5
  %v1385 = vor.u32 %v1381, %v1384
  %v1386 = vrot.slane %v1385, 4
  %v1388 = vshll.u32 %v1013, 16
  %v1390 = vrot.slane %v1388, 5
  %v1391 = vsel %vm1017, %v1386, %v1390
  %v1392 = vshrl.u32 %v1013, 16
  %v1394 = vrot.slane %v1392, 4
  %v1395 = vor.u32 %v1394, %v1390
  %v1396 = vrot.slane %v1395, 4
  %v1398 = vshll.u32 %v1014, 16
  %v1400 = vrot.slane %v1398, 5
  %v1401 = vsel %vm1017, %v1396, %v1400
  %v1402 = vld [vmem:[%s4] sm:$0xf]
  %v1403 = vld [vmem:[%s4 + $0x4] sm:$0xf]
  %v1404 = vld [vmem:[%s4 + $0x8] sm:$0xf]
  %v1405 = vld [vmem:[%s4 + $0xc] sm:$0xf]
  %v1406 = vld [vmem:[%s4 + $0x10] sm:$0xf]
  %v1407 = vld [vmem:[%s4 + $0x14] sm:$0xf]
  %v1408 = vld [vmem:[%s4 + $0x18] sm:$0xf]
  %v1409 = vld [vmem:[%s4 + $0x1c] sm:$0xf]
  %v1410 = vld [vmem:[%s4 + $0x20] sm:$0xf]
  %v1411 = vld [vmem:[%s4 + $0x24] sm:$0xf]
  %v1412 = vld [vmem:[%s4 + $0x28] sm:$0xf]
  %v1413 = vld [vmem:[%s4 + $0x2c] sm:$0xf]
  %v1414 = vld [vmem:[%s4 + $0x30] sm:$0xf]
  %v1415 = vld [vmem:[%s4 + $0x34] sm:$0xf]
  %v1416 = vld [vmem:[%s4 + $0x38] sm:$0xf]
  %v1417 = vld [vmem:[%s4 + $0x3c] sm:$0xf]
  %v1418 = vld [vmem:[%s4 + $0x40] sm:$0xf]
  %v1419 = vld [vmem:[%s4 + $0x44] sm:$0xf]
  %v1420 = vld [vmem:[%s4 + $0x48] sm:$0xf]
  %v1421 = vld [vmem:[%s4 + $0x4c] sm:$0xf]
  %v1422 = vld [vmem:[%s4 + $0x50] sm:$0xf]
  %v1423 = vld [vmem:[%s4 + $0x54] sm:$0xf]
  %v1424 = vld [vmem:[%s4 + $0x58] sm:$0xf]
  %v1425 = vld [vmem:[%s4 + $0x5c] sm:$0xf]
  %v1426 = vld [vmem:[%s4 + $0x60] sm:$0xf]
  %v1427 = vld [vmem:[%s4 + $0x64] sm:$0xf]
  %v1428 = vld [vmem:[%s4 + $0x68] sm:$0xf]
  %v1429 = vld [vmem:[%s4 + $0x6c] sm:$0xf]
  %v1430 = vld [vmem:[%s4 + $0x70] sm:$0xf]
  %v1431 = vld [vmem:[%s4 + $0x74] sm:$0xf]
  %v1432 = vld [vmem:[%s4 + $0x78] sm:$0xf]
  %v1433 = vld [vmem:[%s4 + $0x7c] sm:$0xf]
  %v1434 = vld [vmem:[#allocation2] sm:$0xee]
  %v1435 = vld [vmem:[#allocation2 + $0x20] sm:$0xee]
  %v1436 = vld [vmem:[#allocation2 + $0x40] sm:$0xee]
  %v1437 = vld [vmem:[#allocation2 + $0x60] sm:$0xee]
  %v1438 = vld [vmem:[#allocation2 + $0x80] sm:$0xee]
  %v1439 = vld [vmem:[#allocation2 + $0xa0] sm:$0xee]
  %v1440 = vld [vmem:[#allocation2 + $0xc0] sm:$0xee]
  %v1441 = vld [vmem:[#allocation2 + $0xe0] sm:$0xee]
  %v1442 = vld [vmem:[#allocation2 + $0x100] sm:$0xee]
  %v1443 = vld [vmem:[#allocation2 + $0x120] sm:$0xee]
  %v1444 = vld [vmem:[#allocation2 + $0x140] sm:$0xee]
  %v1445 = vld [vmem:[#allocation2 + $0x160] sm:$0xee]
  %v1446 = vld [vmem:[#allocation2 + $0x180] sm:$0xee]
  %v1447 = vld [vmem:[#allocation2 + $0x1a0] sm:$0xee]
  %v1448 = vld [vmem:[#allocation2 + $0x1c0] sm:$0xee]
  %v1449 = vld [vmem:[#allocation2 + $0x1e0] sm:$0xee]
  %vm1498 = vcmask 1042432
  %vm1499 = vcmask 1046532
  %vm1500 = vmor %vm1498, %vm1499
  %v1501 = vrot.slane %v1434, 5
  %v1502 = vrot.slane %v1501, 4
  %v1503 = vrot.slane %v968, 5
  %v1504 = vsel %vm1500, %v1502, %v1503
  %v1505 = vrot.slane %v1503, 4
  %v1506 = vrot.slane %v969, 5
  %v1507 = vsel %vm1500, %v1505, %v1506
  %v1508 = vrot.slane %v1435, 5
  %v1509 = vrot.slane %v1508, 4
  %v1510 = vrot.slane %v971, 5
  %v1511 = vsel %vm1500, %v1509, %v1510
  %v1512 = vrot.slane %v1510, 4
  %v1513 = vrot.slane %v972, 5
  %v1514 = vsel %vm1500, %v1512, %v1513
  %v1515 = vrot.slane %v1436, 5
  %v1516 = vrot.slane %v1515, 4
  %v1517 = vrot.slane %v974, 5
  %v1518 = vsel %vm1500, %v1516, %v1517
  %v1519 = vrot.slane %v1517, 4
  %v1520 = vrot.slane %v975, 5
  %v1521 = vsel %vm1500, %v1519, %v1520
  %v1522 = vrot.slane %v1437, 5
  %v1523 = vrot.slane %v1522, 4
  %v1524 = vrot.slane %v977, 5
  %v1525 = vsel %vm1500, %v1523, %v1524
  %v1526 = vrot.slane %v1524, 4
  %v1527 = vrot.slane %v978, 5
  %v1528 = vsel %vm1500, %v1526, %v1527
  %v1529 = vrot.slane %v1438, 5
  %v1530 = vrot.slane %v1529, 4
  %v1531 = vrot.slane %v980, 5
  %v1532 = vsel %vm1500, %v1530, %v1531
  %v1533 = vrot.slane %v1531, 4
  %v1534 = vrot.slane %v981, 5
  %v1535 = vsel %vm1500, %v1533, %v1534
  %v1536 = vrot.slane %v1439, 5
  %v1537 = vrot.slane %v1536, 4
  %v1538 = vrot.slane %v983, 5
  %v1539 = vsel %vm1500, %v1537, %v1538
  %v1540 = vrot.slane %v1538, 4
  %v1541 = vrot.slane %v984, 5
  %v1542 = vsel %vm1500, %v1540, %v1541
  %v1543 = vrot.slane %v1440, 5
  %v1544 = vrot.slane %v1543, 4
  %v1545 = vrot.slane %v986, 5
  %v1546 = vsel %vm1500, %v1544, %v1545
  %v1547 = vrot.slane %v1545, 4
  %v1548 = vrot.slane %v987, 5
  %v1549 = vsel %vm1500, %v1547, %v1548
  %v1550 = vrot.slane %v1441, 5
  %v1551 = vrot.slane %v1550, 4
  %v1552 = vrot.slane %v989, 5
  %v1553 = vsel %vm1500, %v1551, %v1552
  %v1554 = vrot.slane %v1552, 4
  %v1555 = vrot.slane %v990, 5
  %v1556 = vsel %vm1500, %v1554, %v1555
  %v1557 = vrot.slane %v1442, 5
  %v1558 = vrot.slane %v1557, 4
  %v1559 = vrot.slane %v992, 5
  %v1560 = vsel %vm1500, %v1558, %v1559
  %v1561 = vrot.slane %v1559, 4
  %v1562 = vrot.slane %v993, 5
  %v1563 = vsel %vm1500, %v1561, %v1562
  %v1564 = vrot.slane %v1443, 5
  %v1565 = vrot.slane %v1564, 4
  %v1566 = vrot.slane %v995, 5
  %v1567 = vsel %vm1500, %v1565, %v1566
  %v1568 = vrot.slane %v1566, 4
  %v1569 = vrot.slane %v996, 5
  %v1570 = vsel %vm1500, %v1568, %v1569
  %v1571 = vrot.slane %v1444, 5
  %v1572 = vrot.slane %v1571, 4
  %v1573 = vrot.slane %v998, 5
  %v1574 = vsel %vm1500, %v1572, %v1573
  %v1575 = vrot.slane %v1573, 4
  %v1576 = vrot.slane %v999, 5
  %v1577 = vsel %vm1500, %v1575, %v1576
  %v1578 = vrot.slane %v1445, 5
  %v1579 = vrot.slane %v1578, 4
  %v1580 = vrot.slane %v1001, 5
  %v1581 = vsel %vm1500, %v1579, %v1580
  %v1582 = vrot.slane %v1580, 4
  %v1583 = vrot.slane %v1002, 5
  %v1584 = vsel %vm1500, %v1582, %v1583
  %v1585 = vrot.slane %v1446, 5
  %v1586 = vrot.slane %v1585, 4
  %v1587 = vrot.slane %v1004, 5
  %v1588 = vsel %vm1500, %v1586, %v1587
  %v1589 = vrot.slane %v1587, 4
  %v1590 = vrot.slane %v1005, 5
  %v1591 = vsel %vm1500, %v1589, %v1590
  %v1592 = vrot.slane %v1447, 5
  %v1593 = vrot.slane %v1592, 4
  %v1594 = vrot.slane %v1007, 5
  %v1595 = vsel %vm1500, %v1593, %v1594
  %v1596 = vrot.slane %v1594, 4
  %v1597 = vrot.slane %v1008, 5
  %v1598 = vsel %vm1500, %v1596, %v1597
  %v1599 = vrot.slane %v1448, 5
  %v1600 = vrot.slane %v1599, 4
  %v1601 = vrot.slane %v1010, 5
  %v1602 = vsel %vm1500, %v1600, %v1601
  %v1603 = vrot.slane %v1601, 4
  %v1604 = vrot.slane %v1011, 5
  %v1605 = vsel %vm1500, %v1603, %v1604
  %v1606 = vrot.slane %v1449, 5
  %v1607 = vrot.slane %v1606, 4
  %v1608 = vrot.slane %v1013, 5
  %v1609 = vsel %vm1500, %v1607, %v1608
  %v1610 = vrot.slane %v1608, 4
  %v1611 = vrot.slane %v1014, 5
  %v1612 = vsel %vm1500, %v1610, %v1611
  %v1613 = vld [vmem:[%s4 + $0x80] sm:$0xf]
  %v1614 = vld [vmem:[%s4 + $0x84] sm:$0xf]
  %v1615 = vld [vmem:[%s4 + $0x88] sm:$0xf]
  %v1616 = vld [vmem:[%s4 + $0x8c] sm:$0xf]
  %v1617 = vld [vmem:[%s4 + $0x90] sm:$0xf]
  %v1618 = vld [vmem:[%s4 + $0x94] sm:$0xf]
  %v1619 = vld [vmem:[%s4 + $0x98] sm:$0xf]
  %v1620 = vld [vmem:[%s4 + $0x9c] sm:$0xf]
  %v1621 = vld [vmem:[%s4 + $0xa0] sm:$0xf]
  %v1622 = vld [vmem:[%s4 + $0xa4] sm:$0xf]
  %v1623 = vld [vmem:[%s4 + $0xa8] sm:$0xf]
  %v1624 = vld [vmem:[%s4 + $0xac] sm:$0xf]
  %v1625 = vld [vmem:[%s4 + $0xb0] sm:$0xf]
  %v1626 = vld [vmem:[%s4 + $0xb4] sm:$0xf]
  %v1627 = vld [vmem:[%s4 + $0xb8] sm:$0xf]
  %v1628 = vld [vmem:[%s4 + $0xbc] sm:$0xf]
  %v1629 = vld [vmem:[%s4 + $0xc0] sm:$0xf]
  %v1630 = vld [vmem:[%s4 + $0xc4] sm:$0xf]
  %v1631 = vld [vmem:[%s4 + $0xc8] sm:$0xf]
  %v1632 = vld [vmem:[%s4 + $0xcc] sm:$0xf]
  %v1633 = vld [vmem:[%s4 + $0xd0] sm:$0xf]
  %v1634 = vld [vmem:[%s4 + $0xd4] sm:$0xf]
  %v1635 = vld [vmem:[%s4 + $0xd8] sm:$0xf]
  %v1636 = vld [vmem:[%s4 + $0xdc] sm:$0xf]
  %v1637 = vld [vmem:[%s4 + $0xe0] sm:$0xf]
  %v1638 = vld [vmem:[%s4 + $0xe4] sm:$0xf]
  %v1639 = vld [vmem:[%s4 + $0xe8] sm:$0xf]
  %v1640 = vld [vmem:[%s4 + $0xec] sm:$0xf]
  %v1641 = vld [vmem:[%s4 + $0xf0] sm:$0xf]
  %v1642 = vld [vmem:[%s4 + $0xf4] sm:$0xf]
  %v1643 = vld [vmem:[%s4 + $0xf8] sm:$0xf]
  %v1644 = vld [vmem:[%s4 + $0xfc] sm:$0xf]
  %v1645 = vunpack.c.l.b16 %v1504
  %v1646 = vunpack.c.h.b16 %v1504
  %v1647 = vunpack.c.l.b16 %v1507
  %v1648 = vunpack.c.h.b16 %v1507
  %v1649 = vunpack.c.l.b16 %v1511
  %v1650 = vunpack.c.h.b16 %v1511
  %v1651 = vunpack.c.l.b16 %v1514
  %v1652 = vunpack.c.h.b16 %v1514
  %v1653 = vunpack.c.l.b16 %v1518
  %v1654 = vunpack.c.h.b16 %v1518
  %v1655 = vunpack.c.l.b16 %v1521
  %v1656 = vunpack.c.h.b16 %v1521
  %v1657 = vunpack.c.l.b16 %v1525
  %v1658 = vunpack.c.h.b16 %v1525
  %v1659 = vunpack.c.l.b16 %v1528
  %v1660 = vunpack.c.h.b16 %v1528
  %v1661 = vunpack.c.l.b16 %v1532
  %v1662 = vunpack.c.h.b16 %v1532
  %v1663 = vunpack.c.l.b16 %v1535
  %v1664 = vunpack.c.h.b16 %v1535
  %v1665 = vunpack.c.l.b16 %v1539
  %v1666 = vunpack.c.h.b16 %v1539
  %v1667 = vunpack.c.l.b16 %v1542
  %v1668 = vunpack.c.h.b16 %v1542
  %v1669 = vunpack.c.l.b16 %v1546
  %v1670 = vunpack.c.h.b16 %v1546
  %v1671 = vunpack.c.l.b16 %v1549
  %v1672 = vunpack.c.h.b16 %v1549
  %v1673 = vunpack.c.l.b16 %v1553
  %v1674 = vunpack.c.h.b16 %v1553
  %v1675 = vunpack.c.l.b16 %v1556
  %v1676 = vunpack.c.h.b16 %v1556
  %v1677 = vunpack.c.l.b16 %v1560
  %v1678 = vunpack.c.h.b16 %v1560
  %v1679 = vunpack.c.l.b16 %v1563
  %v1680 = vunpack.c.h.b16 %v1563
  %v1681 = vunpack.c.l.b16 %v1567
  %v1682 = vunpack.c.h.b16 %v1567
  %v1683 = vunpack.c.l.b16 %v1570
  %v1684 = vunpack.c.h.b16 %v1570
  %v1685 = vunpack.c.l.b16 %v1574
  %v1686 = vunpack.c.h.b16 %v1574
  %v1687 = vunpack.c.l.b16 %v1577
  %v1688 = vunpack.c.h.b16 %v1577
  %v1689 = vunpack.c.l.b16 %v1581
  %v1690 = vunpack.c.h.b16 %v1581
  %v1691 = vunpack.c.l.b16 %v1584
  %v1692 = vunpack.c.h.b16 %v1584
  %v1693 = vunpack.c.l.b16 %v1588
  %v1694 = vunpack.c.h.b16 %v1588
  %v1695 = vunpack.c.l.b16 %v1591
  %v1696 = vunpack.c.h.b16 %v1591
  %v1697 = vunpack.c.l.b16 %v1595
  %v1698 = vunpack.c.h.b16 %v1595
  %v1699 = vunpack.c.l.b16 %v1598
  %v1700 = vunpack.c.h.b16 %v1598
  %v1701 = vunpack.c.l.b16 %v1602
  %v1702 = vunpack.c.h.b16 %v1602
  %v1703 = vunpack.c.l.b16 %v1605
  %v1704 = vunpack.c.h.b16 %v1605
  %v1705 = vunpack.c.l.b16 %v1609
  %v1706 = vunpack.c.h.b16 %v1609
  %v1707 = vunpack.c.l.b16 %v1612
  %v1708 = vunpack.c.h.b16 %v1612
  %v1709 = vpack.c.b16 %v1647, %v1645
  %v1710 = vpack.c.b16 %v1648, %v1646
  %v1711 = vpack.c.b16 %v1651, %v1649
  %v1712 = vpack.c.b16 %v1652, %v1650
  %v1713 = vpack.c.b16 %v1655, %v1653
  %v1714 = vpack.c.b16 %v1656, %v1654
  %v1715 = vpack.c.b16 %v1659, %v1657
  %v1716 = vpack.c.b16 %v1660, %v1658
  %v1717 = vpack.c.b16 %v1663, %v1661
  %v1718 = vpack.c.b16 %v1664, %v1662
  %v1719 = vpack.c.b16 %v1667, %v1665
  %v1720 = vpack.c.b16 %v1668, %v1666
  %v1721 = vpack.c.b16 %v1671, %v1669
  %v1722 = vpack.c.b16 %v1672, %v1670
  %v1723 = vpack.c.b16 %v1675, %v1673
  %v1724 = vpack.c.b16 %v1676, %v1674
  %v1725 = vpack.c.b16 %v1679, %v1677
  %v1726 = vpack.c.b16 %v1680, %v1678
  %v1727 = vpack.c.b16 %v1683, %v1681
  %v1728 = vpack.c.b16 %v1684, %v1682
  %v1729 = vpack.c.b16 %v1687, %v1685
  %v1730 = vpack.c.b16 %v1688, %v1686
  %v1731 = vpack.c.b16 %v1691, %v1689
  %v1732 = vpack.c.b16 %v1692, %v1690
  %v1733 = vpack.c.b16 %v1695, %v1693
  %v1734 = vpack.c.b16 %v1696, %v1694
  %v1735 = vpack.c.b16 %v1699, %v1697
  %v1736 = vpack.c.b16 %v1700, %v1698
  %v1737 = vpack.c.b16 %v1703, %v1701
  %v1738 = vpack.c.b16 %v1704, %v1702
  %v1739 = vpack.c.b16 %v1707, %v1705
  %v1740 = vpack.c.b16 %v1708, %v1706
  %v1805 = vunpack.c.l.b16 %v1613
  %v1806 = vunpack.c.l.b16 %v1614
  %v1807 = vunpack.c.l.b16 %v1615
  %v1808 = vunpack.c.l.b16 %v1616
  %v1809 = vunpack.c.l.b16 %v1617
  %v1810 = vunpack.c.l.b16 %v1618
  %v1811 = vunpack.c.l.b16 %v1619
  %v1812 = vunpack.c.l.b16 %v1620
  %v1813 = vunpack.c.l.b16 %v1621
  %v1814 = vunpack.c.l.b16 %v1622
  %v1815 = vunpack.c.l.b16 %v1623
  %v1816 = vunpack.c.l.b16 %v1624
  %v1817 = vunpack.c.l.b16 %v1625
  %v1818 = vunpack.c.l.b16 %v1626
  %v1819 = vunpack.c.l.b16 %v1627
  %v1820 = vunpack.c.l.b16 %v1628
  %v1821 = vunpack.c.l.b16 %v1629
  %v1822 = vunpack.c.l.b16 %v1630
  %v1823 = vunpack.c.l.b16 %v1631
  %v1824 = vunpack.c.l.b16 %v1632
  %v1825 = vunpack.c.l.b16 %v1633
  %v1826 = vunpack.c.l.b16 %v1634
  %v1827 = vunpack.c.l.b16 %v1635
  %v1828 = vunpack.c.l.b16 %v1636
  %v1829 = vunpack.c.l.b16 %v1637
  %v1830 = vunpack.c.l.b16 %v1638
  %v1831 = vunpack.c.l.b16 %v1639
  %v1832 = vunpack.c.l.b16 %v1640
  %v1833 = vunpack.c.l.b16 %v1641
  %v1834 = vunpack.c.l.b16 %v1642
  %v1835 = vunpack.c.l.b16 %v1643
  %v1836 = vunpack.c.l.b16 %v1644
  %v1837 = vpack.c.b16 %v1806, %v1805
  %v1838 = vpack.c.b16 %v1808, %v1807
  %v1839 = vpack.c.b16 %v1810, %v1809
  %v1840 = vpack.c.b16 %v1812, %v1811
  %v1841 = vpack.c.b16 %v1814, %v1813
  %v1842 = vpack.c.b16 %v1816, %v1815
  %v1843 = vpack.c.b16 %v1818, %v1817
  %v1844 = vpack.c.b16 %v1820, %v1819
  %v1845 = vpack.c.b16 %v1822, %v1821
  %v1846 = vpack.c.b16 %v1824, %v1823
  %v1847 = vpack.c.b16 %v1826, %v1825
  %v1848 = vpack.c.b16 %v1828, %v1827
  %v1849 = vpack.c.b16 %v1830, %v1829
  %v1850 = vpack.c.b16 %v1832, %v1831
  %v1851 = vpack.c.b16 %v1834, %v1833
  %v1852 = vpack.c.b16 %v1836, %v1835
  %1869 = vmatprep.subr.bf16.mxu0 0
  %1870 = vmatpush1.bf16.msra.mxu0 %v1844
  %1871 = vmatprep.subr.bf16.mxu0 0
  %1872 = vmatpush1.bf16.msra.mxu0 %v1843
  %1873 = vmatprep.subr.bf16.mxu0 0
  %1874 = vmatpush1.bf16.msra.mxu0 %v1842
  %1875 = vmatprep.subr.bf16.mxu0 0
  %1876 = vmatpush1.bf16.msra.mxu0 %v1841
  %1877 = vmatprep.subr.bf16.mxu0 0
  %1878 = vmatpush1.bf16.msra.mxu0 %v1840
  %1879 = vmatprep.subr.bf16.mxu0 0
  %1880 = vmatpush1.bf16.msra.mxu0 %v1839
  %1881 = vmatprep.subr.bf16.mxu0 0
  %1882 = vmatpush1.bf16.msra.mxu0 %v1838
  %1883 = vmatprep.subr.bf16.mxu0 0
  %1884 = vmatpush1.bf16.msra.mxu0 %v1837
  %1885 = vmatprep.subr.bf16.mxu0 0
  %1886 = vmatpush2.bf16.msra.mxu0 %v1852
  %1887 = vmatprep.subr.bf16.mxu0 0
  %1888 = vmatpush2.bf16.msra.mxu0 %v1851
  %1889 = vmatprep.subr.bf16.mxu0 0
  %1890 = vmatpush2.bf16.msra.mxu0 %v1850
  %1891 = vmatprep.subr.bf16.mxu0 0
  %1892 = vmatpush2.bf16.msra.mxu0 %v1849
  %1893 = vmatprep.subr.bf16.mxu0 0
  %1894 = vmatpush2.bf16.msra.mxu0 %v1848
  %1895 = vmatprep.subr.bf16.mxu0 0
  %1896 = vmatpush2.bf16.msra.mxu0 %v1847
  %1897 = vmatprep.subr.bf16.mxu0 0
  %1898 = vmatpush2.bf16.msra.mxu0 %v1846
  %1899 = vmatprep.subr.bf16.mxu0 0
  %1900 = vmatpush2.bf16.msra.mxu0 %v1845
  %1901 = vmatprep.mubr.bf16.mxu0 %v1710
  %1902 = vmatmul.mubr.bf16.gmra.mxu0 %v1709
  %v1903 = vpop.f32.mrf.mxu0
  %v1904 = vadd.f32 0.0, %v1903
  %v1905 = vpop.f32.mrf.mxu0
  %v1906 = vpop.f32.mrf.mxu0
  %v1907 = vadd.f32 0.0, %v1906
  %v1908 = vpop.f32.mrf.mxu0
  %1909 = vmatprep.mubr.bf16.mxu0 %v1712
  %1910 = vmatmul.mubr.bf16.gmra.mxu0 %v1711
  %v1911 = vpop.f32.mrf.mxu0
  %v1912 = vadd.f32 0.0, %v1911
  %v1913 = vpop.f32.mrf.mxu0
  %v1914 = vpop.f32.mrf.mxu0
  %v1915 = vadd.f32 0.0, %v1914
  %v1916 = vpop.f32.mrf.mxu0
  %1917 = vmatprep.mubr.bf16.mxu0 %v1714
  %1918 = vmatmul.mubr.bf16.gmra.mxu0 %v1713
  %v1919 = vpop.f32.mrf.mxu0
  %v1920 = vadd.f32 0.0, %v1919
  %v1921 = vpop.f32.mrf.mxu0
  %v1922 = vpop.f32.mrf.mxu0
  %v1923 = vadd.f32 0.0, %v1922
  %v1924 = vpop.f32.mrf.mxu0
  %1925 = vmatprep.mubr.bf16.mxu0 %v1716
  %1926 = vmatmul.mubr.bf16.gmra.mxu0 %v1715
  %v1927 = vpop.f32.mrf.mxu0
  %v1928 = vadd.f32 0.0, %v1927
  %v1929 = vpop.f32.mrf.mxu0
  %v1930 = vpop.f32.mrf.mxu0
  %v1931 = vadd.f32 0.0, %v1930
  %v1932 = vpop.f32.mrf.mxu0
  %1933 = vmatprep.mubr.bf16.mxu0 %v1718
  %1934 = vmatmul.mubr.bf16.gmra.mxu0 %v1717
  %v1935 = vpop.f32.mrf.mxu0
  %v1936 = vadd.f32 0.0, %v1935
  %v1937 = vpop.f32.mrf.mxu0
  %v1938 = vpop.f32.mrf.mxu0
  %v1939 = vadd.f32 0.0, %v1938
  %v1940 = vpop.f32.mrf.mxu0
  %1941 = vmatprep.mubr.bf16.mxu0 %v1720
  %1942 = vmatmul.mubr.bf16.gmra.mxu0 %v1719
  %v1943 = vpop.f32.mrf.mxu0
  %v1944 = vadd.f32 0.0, %v1943
  %v1945 = vpop.f32.mrf.mxu0
  %v1946 = vpop.f32.mrf.mxu0
  %v1947 = vadd.f32 0.0, %v1946
  %v1948 = vpop.f32.mrf.mxu0
  %1949 = vmatprep.mubr.bf16.mxu0 %v1722
  %1950 = vmatmul.mubr.bf16.gmra.mxu0 %v1721
  %v1951 = vpop.f32.mrf.mxu0
  %v1952 = vadd.f32 0.0, %v1951
  %v1953 = vpop.f32.mrf.mxu0
  %v1954 = vpop.f32.mrf.mxu0
  %v1955 = vadd.f32 0.0, %v1954
  %v1956 = vpop.f32.mrf.mxu0
  %1957 = vmatprep.mubr.bf16.mxu0 %v1724
  %1958 = vmatmul.mubr.bf16.gmra.mxu0 %v1723
  %v1959 = vpop.f32.mrf.mxu0
  %v1960 = vadd.f32 0.0, %v1959
  %v1961 = vpop.f32.mrf.mxu0
  %v1962 = vpop.f32.mrf.mxu0
  %v1963 = vadd.f32 0.0, %v1962
  %v1964 = vpop.f32.mrf.mxu0
  %1965 = vmatprep.mubr.bf16.mxu0 %v1726
  %1966 = vmatmul.mubr.bf16.gmra.mxu0 %v1725
  %v1967 = vpop.f32.mrf.mxu0
  %v1968 = vadd.f32 0.0, %v1967
  %v1969 = vpop.f32.mrf.mxu0
  %v1970 = vpop.f32.mrf.mxu0
  %v1971 = vadd.f32 0.0, %v1970
  %v1972 = vpop.f32.mrf.mxu0
  %1973 = vmatprep.mubr.bf16.mxu0 %v1728
  %1974 = vmatmul.mubr.bf16.gmra.mxu0 %v1727
  %v1975 = vpop.f32.mrf.mxu0
  %v1976 = vadd.f32 0.0, %v1975
  %v1977 = vpop.f32.mrf.mxu0
  %v1978 = vpop.f32.mrf.mxu0
  %v1979 = vadd.f32 0.0, %v1978
  %v1980 = vpop.f32.mrf.mxu0
  %1981 = vmatprep.mubr.bf16.mxu0 %v1730
  %1982 = vmatmul.mubr.bf16.gmra.mxu0 %v1729
  %v1983 = vpop.f32.mrf.mxu0
  %v1984 = vadd.f32 0.0, %v1983
  %v1985 = vpop.f32.mrf.mxu0
  %v1986 = vpop.f32.mrf.mxu0
  %v1987 = vadd.f32 0.0, %v1986
  %v1988 = vpop.f32.mrf.mxu0
  %1989 = vmatprep.mubr.bf16.mxu0 %v1732
  %1990 = vmatmul.mubr.bf16.gmra.mxu0 %v1731
  %v1991 = vpop.f32.mrf.mxu0
  %v1992 = vadd.f32 0.0, %v1991
  %v1993 = vpop.f32.mrf.mxu0
  %v1994 = vpop.f32.mrf.mxu0
  %v1995 = vadd.f32 0.0, %v1994
  %v1996 = vpop.f32.mrf.mxu0
  %1997 = vmatprep.mubr.bf16.mxu0 %v1734
  %1998 = vmatmul.mubr.bf16.gmra.mxu0 %v1733
  %v1999 = vpop.f32.mrf.mxu0
  %v2000 = vadd.f32 0.0, %v1999
  %v2001 = vpop.f32.mrf.mxu0
  %v2002 = vpop.f32.mrf.mxu0
  %v2003 = vadd.f32 0.0, %v2002
  %v2004 = vpop.f32.mrf.mxu0
  %2005 = vmatprep.mubr.bf16.mxu0 %v1736
  %2006 = vmatmul.mubr.bf16.gmra.mxu0 %v1735
  %v2007 = vpop.f32.mrf.mxu0
  %v2008 = vadd.f32 0.0, %v2007
  %v2009 = vpop.f32.mrf.mxu0
  %v2010 = vpop.f32.mrf.mxu0
  %v2011 = vadd.f32 0.0, %v2010
  %v2012 = vpop.f32.mrf.mxu0
  %2013 = vmatprep.mubr.bf16.mxu0 %v1738
  %2014 = vmatmul.mubr.bf16.gmra.mxu0 %v1737
  %v2015 = vpop.f32.mrf.mxu0
  %v2016 = vadd.f32 0.0, %v2015
  %v2017 = vpop.f32.mrf.mxu0
  %v2018 = vpop.f32.mrf.mxu0
  %v2019 = vadd.f32 0.0, %v2018
  %v2020 = vpop.f32.mrf.mxu0
  %2021 = vmatprep.mubr.bf16.mxu0 %v1740
  %2022 = vmatmul.mubr.bf16.gmra.mxu0 %v1739
  %v2023 = vpop.f32.mrf.mxu0
  %v2024 = vadd.f32 0.0, %v2023
  %v2025 = vpop.f32.mrf.mxu0
  %v2026 = vpop.f32.mrf.mxu0
  %v2027 = vadd.f32 0.0, %v2026
  %v2028 = vpop.f32.mrf.mxu0
  %2029 = vdwg.mxu0
  %v2030 = vunpack.c.l.b16 %v1031
  %v2031 = vunpack.c.h.b16 %v1031
  %v2032 = vunpack.c.l.b16 %v1041
  %v2033 = vunpack.c.h.b16 %v1041
  %v2034 = vunpack.c.l.b16 %v1055
  %v2035 = vunpack.c.h.b16 %v1055
  %v2036 = vunpack.c.l.b16 %v1065
  %v2037 = vunpack.c.h.b16 %v1065
  %v2038 = vunpack.c.l.b16 %v1079
  %v2039 = vunpack.c.h.b16 %v1079
  %v2040 = vunpack.c.l.b16 %v1089
  %v2041 = vunpack.c.h.b16 %v1089
  %v2042 = vunpack.c.l.b16 %v1103
  %v2043 = vunpack.c.h.b16 %v1103
  %v2044 = vunpack.c.l.b16 %v1113
  %v2045 = vunpack.c.h.b16 %v1113
  %v2046 = vunpack.c.l.b16 %v1127
  %v2047 = vunpack.c.h.b16 %v1127
  %v2048 = vunpack.c.l.b16 %v1137
  %v2049 = vunpack.c.h.b16 %v1137
  %v2050 = vunpack.c.l.b16 %v1151
  %v2051 = vunpack.c.h.b16 %v1151
  %v2052 = vunpack.c.l.b16 %v1161
  %v2053 = vunpack.c.h.b16 %v1161
  %v2054 = vunpack.c.l.b16 %v1175
  %v2055 = vunpack.c.h.b16 %v1175
  %v2056 = vunpack.c.l.b16 %v1185
  %v2057 = vunpack.c.h.b16 %v1185
  %v2058 = vunpack.c.l.b16 %v1199
  %v2059 = vunpack.c.h.b16 %v1199
  %v2060 = vunpack.c.l.b16 %v1209
  %v2061 = vunpack.c.h.b16 %v1209
  %v2062 = vunpack.c.l.b16 %v1223
  %v2063 = vunpack.c.h.b16 %v1223
  %v2064 = vunpack.c.l.b16 %v1233
  %v2065 = vunpack.c.h.b16 %v1233
  %v2066 = vunpack.c.l.b16 %v1247
  %v2067 = vunpack.c.h.b16 %v1247
  %v2068 = vunpack.c.l.b16 %v1257
  %v2069 = vunpack.c.h.b16 %v1257
  %v2070 = vunpack.c.l.b16 %v1271
  %v2071 = vunpack.c.h.b16 %v1271
  %v2072 = vunpack.c.l.b16 %v1281
  %v2073 = vunpack.c.h.b16 %v1281
  %v2074 = vunpack.c.l.b16 %v1295
  %v2075 = vunpack.c.h.b16 %v1295
  %v2076 = vunpack.c.l.b16 %v1305
  %v2077 = vunpack.c.h.b16 %v1305
  %v2078 = vunpack.c.l.b16 %v1319
  %v2079 = vunpack.c.h.b16 %v1319
  %v2080 = vunpack.c.l.b16 %v1329
  %v2081 = vunpack.c.h.b16 %v1329
  %v2082 = vunpack.c.l.b16 %v1343
  %v2083 = vunpack.c.h.b16 %v1343
  %v2084 = vunpack.c.l.b16 %v1353
  %v2085 = vunpack.c.h.b16 %v1353
  %v2086 = vunpack.c.l.b16 %v1367
  %v2087 = vunpack.c.h.b16 %v1367
  %v2088 = vunpack.c.l.b16 %v1377
  %v2089 = vunpack.c.h.b16 %v1377
  %v2090 = vunpack.c.l.b16 %v1391
  %v2091 = vunpack.c.h.b16 %v1391
  %v2092 = vunpack.c.l.b16 %v1401
  %v2093 = vunpack.c.h.b16 %v1401
  %v2094 = vpack.c.b16 %v2032, %v2030
  %v2095 = vpack.c.b16 %v2033, %v2031
  %v2096 = vpack.c.b16 %v2036, %v2034
  %v2097 = vpack.c.b16 %v2037, %v2035
  %v2098 = vpack.c.b16 %v2040, %v2038
  %v2099 = vpack.c.b16 %v2041, %v2039
  %v2100 = vpack.c.b16 %v2044, %v2042
  %v2101 = vpack.c.b16 %v2045, %v2043
  %v2102 = vpack.c.b16 %v2048, %v2046
  %v2103 = vpack.c.b16 %v2049, %v2047
  %v2104 = vpack.c.b16 %v2052, %v2050
  %v2105 = vpack.c.b16 %v2053, %v2051
  %v2106 = vpack.c.b16 %v2056, %v2054
  %v2107 = vpack.c.b16 %v2057, %v2055
  %v2108 = vpack.c.b16 %v2060, %v2058
  %v2109 = vpack.c.b16 %v2061, %v2059
  %v2110 = vpack.c.b16 %v2064, %v2062
  %v2111 = vpack.c.b16 %v2065, %v2063
  %v2112 = vpack.c.b16 %v2068, %v2066
  %v2113 = vpack.c.b16 %v2069, %v2067
  %v2114 = vpack.c.b16 %v2072, %v2070
  %v2115 = vpack.c.b16 %v2073, %v2071
  %v2116 = vpack.c.b16 %v2076, %v2074
  %v2117 = vpack.c.b16 %v2077, %v2075
  %v2118 = vpack.c.b16 %v2080, %v2078
  %v2119 = vpack.c.b16 %v2081, %v2079
  %v2120 = vpack.c.b16 %v2084, %v2082
  %v2121 = vpack.c.b16 %v2085, %v2083
  %v2122 = vpack.c.b16 %v2088, %v2086
  %v2123 = vpack.c.b16 %v2089, %v2087
  %v2124 = vpack.c.b16 %v2092, %v2090
  %v2125 = vpack.c.b16 %v2093, %v2091
  %v2190 = vunpack.c.l.b16 %v1402
  %v2191 = vunpack.c.l.b16 %v1403
  %v2192 = vunpack.c.l.b16 %v1404
  %v2193 = vunpack.c.l.b16 %v1405
  %v2194 = vunpack.c.l.b16 %v1406
  %v2195 = vunpack.c.l.b16 %v1407
  %v2196 = vunpack.c.l.b16 %v1408
  %v2197 = vunpack.c.l.b16 %v1409
  %v2198 = vunpack.c.l.b16 %v1410
  %v2199 = vunpack.c.l.b16 %v1411
  %v2200 = vunpack.c.l.b16 %v1412
  %v2201 = vunpack.c.l.b16 %v1413
  %v2202 = vunpack.c.l.b16 %v1414
  %v2203 = vunpack.c.l.b16 %v1415
  %v2204 = vunpack.c.l.b16 %v1416
  %v2205 = vunpack.c.l.b16 %v1417
  %v2206 = vunpack.c.l.b16 %v1418
  %v2207 = vunpack.c.l.b16 %v1419
  %v2208 = vunpack.c.l.b16 %v1420
  %v2209 = vunpack.c.l.b16 %v1421
  %v2210 = vunpack.c.l.b16 %v1422
  %v2211 = vunpack.c.l.b16 %v1423
  %v2212 = vunpack.c.l.b16 %v1424
  %v2213 = vunpack.c.l.b16 %v1425
  %v2214 = vunpack.c.l.b16 %v1426
  %v2215 = vunpack.c.l.b16 %v1427
  %v2216 = vunpack.c.l.b16 %v1428
  %v2217 = vunpack.c.l.b16 %v1429
  %v2218 = vunpack.c.l.b16 %v1430
  %v2219 = vunpack.c.l.b16 %v1431
  %v2220 = vunpack.c.l.b16 %v1432
  %v2221 = vunpack.c.l.b16 %v1433
  %v2222 = vpack.c.b16 %v2191, %v2190
  %v2223 = vpack.c.b16 %v2193, %v2192
  %v2224 = vpack.c.b16 %v2195, %v2194
  %v2225 = vpack.c.b16 %v2197, %v2196
  %v2226 = vpack.c.b16 %v2199, %v2198
  %v2227 = vpack.c.b16 %v2201, %v2200
  %v2228 = vpack.c.b16 %v2203, %v2202
  %v2229 = vpack.c.b16 %v2205, %v2204
  %v2230 = vpack.c.b16 %v2207, %v2206
  %v2231 = vpack.c.b16 %v2209, %v2208
  %v2232 = vpack.c.b16 %v2211, %v2210
  %v2233 = vpack.c.b16 %v2213, %v2212
  %v2234 = vpack.c.b16 %v2215, %v2214
  %v2235 = vpack.c.b16 %v2217, %v2216
  %v2236 = vpack.c.b16 %v2219, %v2218
  %v2237 = vpack.c.b16 %v2221, %v2220
  %2254 = vmatprep.subr.bf16.mxu0 0
  %2255 = vmatpush1.bf16.msra.mxu0 %v2229
  %2256 = vmatprep.subr.bf16.mxu0 0
  %2257 = vmatpush1.bf16.msra.mxu0 %v2228
  %2258 = vmatprep.subr.bf16.mxu0 0
  %2259 = vmatpush1.bf16.msra.mxu0 %v2227
  %2260 = vmatprep.subr.bf16.mxu0 0
  %2261 = vmatpush1.bf16.msra.mxu0 %v2226
  %2262 = vmatprep.subr.bf16.mxu0 0
  %2263 = vmatpush1.bf16.msra.mxu0 %v2225
  %2264 = vmatprep.subr.bf16.mxu0 0
  %2265 = vmatpush1.bf16.msra.mxu0 %v2224
  %2266 = vmatprep.subr.bf16.mxu0 0
  %2267 = vmatpush1.bf16.msra.mxu0 %v2223
  %2268 = vmatprep.subr.bf16.mxu0 0
  %2269 = vmatpush1.bf16.msra.mxu0 %v2222
  %2270 = vmatprep.subr.bf16.mxu0 0
  %2271 = vmatpush2.bf16.msra.mxu0 %v2237
  %2272 = vmatprep.subr.bf16.mxu0 0
  %2273 = vmatpush2.bf16.msra.mxu0 %v2236
  %2274 = vmatprep.subr.bf16.mxu0 0
  %2275 = vmatpush2.bf16.msra.mxu0 %v2235
  %2276 = vmatprep.subr.bf16.mxu0 0
  %2277 = vmatpush2.bf16.msra.mxu0 %v2234
  %2278 = vmatprep.subr.bf16.mxu0 0
  %2279 = vmatpush2.bf16.msra.mxu0 %v2233
  %2280 = vmatprep.subr.bf16.mxu0 0
  %2281 = vmatpush2.bf16.msra.mxu0 %v2232
  %2282 = vmatprep.subr.bf16.mxu0 0
  %2283 = vmatpush2.bf16.msra.mxu0 %v2231
  %2284 = vmatprep.subr.bf16.mxu0 0
  %2285 = vmatpush2.bf16.msra.mxu0 %v2230
  %2286 = vmatprep.mubr.bf16.mxu0 %v2095
  %2287 = vmatmul.mubr.bf16.gmra.mxu0 %v2094
  %v2288 = vpop.f32.mrf.mxu0
  %v2289 = vadd.f32 %v1904, %v2288
  %v2290 = vpop.f32.mrf.mxu0
  %v2291 = vpop.f32.mrf.mxu0
  %v2292 = vadd.f32 %v1907, %v2291
  %v2293 = vpop.f32.mrf.mxu0
  %2294 = vmatprep.mubr.bf16.mxu0 %v2097
  %2295 = vmatmul.mubr.bf16.gmra.mxu0 %v2096
  %v2296 = vpop.f32.mrf.mxu0
  %v2297 = vadd.f32 %v1912, %v2296
  %v2298 = vpop.f32.mrf.mxu0
  %v2299 = vpop.f32.mrf.mxu0
  %v2300 = vadd.f32 %v1915, %v2299
  %v2301 = vpop.f32.mrf.mxu0
  %2302 = vmatprep.mubr.bf16.mxu0 %v2099
  %2303 = vmatmul.mubr.bf16.gmra.mxu0 %v2098
  %v2304 = vpop.f32.mrf.mxu0
  %v2305 = vadd.f32 %v1920, %v2304
  %v2306 = vpop.f32.mrf.mxu0
  %v2307 = vpop.f32.mrf.mxu0
  %v2308 = vadd.f32 %v1923, %v2307
  %v2309 = vpop.f32.mrf.mxu0
  %2310 = vmatprep.mubr.bf16.mxu0 %v2101
  %2311 = vmatmul.mubr.bf16.gmra.mxu0 %v2100
  %v2312 = vpop.f32.mrf.mxu0
  %v2313 = vadd.f32 %v1928, %v2312
  %v2314 = vpop.f32.mrf.mxu0
  %v2315 = vpop.f32.mrf.mxu0
  %v2316 = vadd.f32 %v1931, %v2315
  %v2317 = vpop.f32.mrf.mxu0
  %2318 = vmatprep.mubr.bf16.mxu0 %v2103
  %2319 = vmatmul.mubr.bf16.gmra.mxu0 %v2102
  %v2320 = vpop.f32.mrf.mxu0
  %v2321 = vadd.f32 %v1936, %v2320
  %v2322 = vpop.f32.mrf.mxu0
  %v2323 = vpop.f32.mrf.mxu0
  %v2324 = vadd.f32 %v1939, %v2323
  %v2325 = vpop.f32.mrf.mxu0
  %2326 = vmatprep.mubr.bf16.mxu0 %v2105
  %2327 = vmatmul.mubr.bf16.gmra.mxu0 %v2104
  %v2328 = vpop.f32.mrf.mxu0
  %v2329 = vadd.f32 %v1944, %v2328
  %v2330 = vpop.f32.mrf.mxu0
  %v2331 = vpop.f32.mrf.mxu0
  %v2332 = vadd.f32 %v1947, %v2331
  %v2333 = vpop.f32.mrf.mxu0
  %2334 = vmatprep.mubr.bf16.mxu0 %v2107
  %2335 = vmatmul.mubr.bf16.gmra.mxu0 %v2106
  %v2336 = vpop.f32.mrf.mxu0
  %v2337 = vadd.f32 %v1952, %v2336
  %v2338 = vpop.f32.mrf.mxu0
  %v2339 = vpop.f32.mrf.mxu0
  %v2340 = vadd.f32 %v1955, %v2339
  %v2341 = vpop.f32.mrf.mxu0
  %2342 = vmatprep.mubr.bf16.mxu0 %v2109
  %2343 = vmatmul.mubr.bf16.gmra.mxu0 %v2108
  %v2344 = vpop.f32.mrf.mxu0
  %v2345 = vadd.f32 %v1960, %v2344
  %v2346 = vpop.f32.mrf.mxu0
  %v2347 = vpop.f32.mrf.mxu0
  %v2348 = vadd.f32 %v1963, %v2347
  %v2349 = vpop.f32.mrf.mxu0
  %2350 = vmatprep.mubr.bf16.mxu0 %v2111
  %2351 = vmatmul.mubr.bf16.gmra.mxu0 %v2110
  %v2352 = vpop.f32.mrf.mxu0
  %v2353 = vadd.f32 %v1968, %v2352
  %v2354 = vpop.f32.mrf.mxu0
  %v2355 = vpop.f32.mrf.mxu0
  %v2356 = vadd.f32 %v1971, %v2355
  %v2357 = vpop.f32.mrf.mxu0
  %2358 = vmatprep.mubr.bf16.mxu0 %v2113
  %2359 = vmatmul.mubr.bf16.gmra.mxu0 %v2112
  %v2360 = vpop.f32.mrf.mxu0
  %v2361 = vadd.f32 %v1976, %v2360
  %v2362 = vpop.f32.mrf.mxu0
  %v2363 = vpop.f32.mrf.mxu0
  %v2364 = vadd.f32 %v1979, %v2363
  %v2365 = vpop.f32.mrf.mxu0
  %2366 = vmatprep.mubr.bf16.mxu0 %v2115
  %2367 = vmatmul.mubr.bf16.gmra.mxu0 %v2114
  %v2368 = vpop.f32.mrf.mxu0
  %v2369 = vadd.f32 %v1984, %v2368
  %v2370 = vpop.f32.mrf.mxu0
  %v2371 = vpop.f32.mrf.mxu0
  %v2372 = vadd.f32 %v1987, %v2371
  %v2373 = vpop.f32.mrf.mxu0
  %2374 = vmatprep.mubr.bf16.mxu0 %v2117
  %2375 = vmatmul.mubr.bf16.gmra.mxu0 %v2116
  %v2376 = vpop.f32.mrf.mxu0
  %v2377 = vadd.f32 %v1992, %v2376
  %v2378 = vpop.f32.mrf.mxu0
  %v2379 = vpop.f32.mrf.mxu0
  %v2380 = vadd.f32 %v1995, %v2379
  %v2381 = vpop.f32.mrf.mxu0
  %2382 = vmatprep.mubr.bf16.mxu0 %v2119
  %2383 = vmatmul.mubr.bf16.gmra.mxu0 %v2118
  %v2384 = vpop.f32.mrf.mxu0
  %v2385 = vadd.f32 %v2000, %v2384
  %v2386 = vpop.f32.mrf.mxu0
  %v2387 = vpop.f32.mrf.mxu0
  %v2388 = vadd.f32 %v2003, %v2387
  %v2389 = vpop.f32.mrf.mxu0
  %2390 = vmatprep.mubr.bf16.mxu0 %v2121
  %2391 = vmatmul.mubr.bf16.gmra.mxu0 %v2120
  %v2392 = vpop.f32.mrf.mxu0
  %v2393 = vadd.f32 %v2008, %v2392
  %v2394 = vpop.f32.mrf.mxu0
  %v2395 = vpop.f32.mrf.mxu0
  %v2396 = vadd.f32 %v2011, %v2395
  %v2397 = vpop.f32.mrf.mxu0
  %2398 = vmatprep.mubr.bf16.mxu0 %v2123
  %2399 = vmatmul.mubr.bf16.gmra.mxu0 %v2122
  %v2400 = vpop.f32.mrf.mxu0
  %v2401 = vadd.f32 %v2016, %v2400
  %v2402 = vpop.f32.mrf.mxu0
  %v2403 = vpop.f32.mrf.mxu0
  %v2404 = vadd.f32 %v2019, %v2403
  %v2405 = vpop.f32.mrf.mxu0
  %2406 = vmatprep.mubr.bf16.mxu0 %v2125
  %2407 = vmatmul.mubr.bf16.gmra.mxu0 %v2124
  %v2408 = vpop.f32.mrf.mxu0
  %v2409 = vadd.f32 %v2024, %v2408
  %v2410 = vpop.f32.mrf.mxu0
  %v2411 = vpop.f32.mrf.mxu0
  %v2412 = vadd.f32 %v2027, %v2411
  %v2413 = vpop.f32.mrf.mxu0
  %2414 = vdwg.mxu0
  %v2415 = vld [vmem:[#allocation2 + $0x10] sm:$0x33]
  %v2416 = vld [vmem:[#allocation2 + $0x30] sm:$0x33]
  %v2417 = vld [vmem:[#allocation2 + $0x50] sm:$0x33]
  %v2418 = vld [vmem:[#allocation2 + $0x70] sm:$0x33]
  %v2419 = vld [vmem:[#allocation2 + $0x90] sm:$0x33]
  %v2420 = vld [vmem:[#allocation2 + $0xb0] sm:$0x33]
  %v2421 = vld [vmem:[#allocation2 + $0xd0] sm:$0x33]
  %v2422 = vld [vmem:[#allocation2 + $0xf0] sm:$0x33]
  %v2423 = vld [vmem:[#allocation2 + $0x110] sm:$0x33]
  %v2424 = vld [vmem:[#allocation2 + $0x130] sm:$0x33]
  %v2425 = vld [vmem:[#allocation2 + $0x150] sm:$0x33]
  %v2426 = vld [vmem:[#allocation2 + $0x170] sm:$0x33]
  %v2427 = vld [vmem:[#allocation2 + $0x190] sm:$0x33]
  %v2428 = vld [vmem:[#allocation2 + $0x1b0] sm:$0x33]
  %v2429 = vld [vmem:[#allocation2 + $0x1d0] sm:$0x33]
  %v2430 = vld [vmem:[#allocation2 + $0x1f0] sm:$0x33]
  %vm2431 = vsmask.f32 2304
  %vm2432 = vsmask.f32 6416
  %vm2433 = vmor %vm2431, %vm2432
  %v2435 = vshrl.u32 %v1434, 16
  %v2437 = vrot.slane %v2435, 5
  %v2438 = vshll.u32 %v1434, 16
  %v2440 = vrot.slane %v2438, 6
  %v2441 = vor.u32 %v2437, %v2440
  %v2442 = vrot.slane %v2441, 4
  %v2443 = vrot.slane %v1032, 5
  %v2444 = vrot.slane %v1028, 6
  %v2445 = vor.u32 %v2443, %v2444
  %v2446 = vsel %vm2433, %v2442, %v2445
  %v2447 = vrot.slane %v2445, 4
  %v2449 = vshrl.u32 %v2415, 16
  %v2451 = vrot.slane %v2449, 5
  %v2452 = vshll.u32 %v2415, 16
  %v2454 = vrot.slane %v2452, 6
  %v2455 = vor.u32 %v2451, %v2454
  %v2456 = vsel %vm2433, %v2447, %v2455
  %v2458 = vshrl.u32 %v1435, 16
  %v2460 = vrot.slane %v2458, 5
  %v2461 = vshll.u32 %v1435, 16
  %v2463 = vrot.slane %v2461, 6
  %v2464 = vor.u32 %v2460, %v2463
  %v2465 = vrot.slane %v2464, 4
  %v2466 = vrot.slane %v1056, 5
  %v2467 = vrot.slane %v1052, 6
  %v2468 = vor.u32 %v2466, %v2467
  %v2469 = vsel %vm2433, %v2465, %v2468
  %v2470 = vrot.slane %v2468, 4
  %v2472 = vshrl.u32 %v2416, 16
  %v2474 = vrot.slane %v2472, 5
  %v2475 = vshll.u32 %v2416, 16
  %v2477 = vrot.slane %v2475, 6
  %v2478 = vor.u32 %v2474, %v2477
  %v2479 = vsel %vm2433, %v2470, %v2478
  %v2481 = vshrl.u32 %v1436, 16
  %v2483 = vrot.slane %v2481, 5
  %v2484 = vshll.u32 %v1436, 16
  %v2486 = vrot.slane %v2484, 6
  %v2487 = vor.u32 %v2483, %v2486
  %v2488 = vrot.slane %v2487, 4
  %v2489 = vrot.slane %v1080, 5
  %v2490 = vrot.slane %v1076, 6
  %v2491 = vor.u32 %v2489, %v2490
  %v2492 = vsel %vm2433, %v2488, %v2491
  %v2493 = vrot.slane %v2491, 4
  %v2495 = vshrl.u32 %v2417, 16
  %v2497 = vrot.slane %v2495, 5
  %v2498 = vshll.u32 %v2417, 16
  %v2500 = vrot.slane %v2498, 6
  %v2501 = vor.u32 %v2497, %v2500
  %v2502 = vsel %vm2433, %v2493, %v2501
  %v2504 = vshrl.u32 %v1437, 16
  %v2506 = vrot.slane %v2504, 5
  %v2507 = vshll.u32 %v1437, 16
  %v2509 = vrot.slane %v2507, 6
  %v2510 = vor.u32 %v2506, %v2509
  %v2511 = vrot.slane %v2510, 4
  %v2512 = vrot.slane %v1104, 5
  %v2513 = vrot.slane %v1100, 6
  %v2514 = vor.u32 %v2512, %v2513
  %v2515 = vsel %vm2433, %v2511, %v2514
  %v2516 = vrot.slane %v2514, 4
  %v2518 = vshrl.u32 %v2418, 16
  %v2520 = vrot.slane %v2518, 5
  %v2521 = vshll.u32 %v2418, 16
  %v2523 = vrot.slane %v2521, 6
  %v2524 = vor.u32 %v2520, %v2523
  %v2525 = vsel %vm2433, %v2516, %v2524
  %v2527 = vshrl.u32 %v1438, 16
  %v2529 = vrot.slane %v2527, 5
  %v2530 = vshll.u32 %v1438, 16
  %v2532 = vrot.slane %v2530, 6
  %v2533 = vor.u32 %v2529, %v2532
  %v2534 = vrot.slane %v2533, 4
  %v2535 = vrot.slane %v1128, 5
  %v2536 = vrot.slane %v1124, 6
  %v2537 = vor.u32 %v2535, %v2536
  %v2538 = vsel %vm2433, %v2534, %v2537
  %v2539 = vrot.slane %v2537, 4
  %v2541 = vshrl.u32 %v2419, 16
  %v2543 = vrot.slane %v2541, 5
  %v2544 = vshll.u32 %v2419, 16
  %v2546 = vrot.slane %v2544, 6
  %v2547 = vor.u32 %v2543, %v2546
  %v2548 = vsel %vm2433, %v2539, %v2547
  %v2550 = vshrl.u32 %v1439, 16
  %v2552 = vrot.slane %v2550, 5
  %v2553 = vshll.u32 %v1439, 16
  %v2555 = vrot.slane %v2553, 6
  %v2556 = vor.u32 %v2552, %v2555
  %v2557 = vrot.slane %v2556, 4
  %v2558 = vrot.slane %v1152, 5
  %v2559 = vrot.slane %v1148, 6
  %v2560 = vor.u32 %v2558, %v2559
  %v2561 = vsel %vm2433, %v2557, %v2560
  %v2562 = vrot.slane %v2560, 4
  %v2564 = vshrl.u32 %v2420, 16
  %v2566 = vrot.slane %v2564, 5
  %v2567 = vshll.u32 %v2420, 16
  %v2569 = vrot.slane %v2567, 6
  %v2570 = vor.u32 %v2566, %v2569
  %v2571 = vsel %vm2433, %v2562, %v2570
  %v2573 = vshrl.u32 %v1440, 16
  %v2575 = vrot.slane %v2573, 5
  %v2576 = vshll.u32 %v1440, 16
  %v2578 = vrot.slane %v2576, 6
  %v2579 = vor.u32 %v2575, %v2578
  %v2580 = vrot.slane %v2579, 4
  %v2581 = vrot.slane %v1176, 5
  %v2582 = vrot.slane %v1172, 6
  %v2583 = vor.u32 %v2581, %v2582
  %v2584 = vsel %vm2433, %v2580, %v2583
  %v2585 = vrot.slane %v2583, 4
  %v2587 = vshrl.u32 %v2421, 16
  %v2589 = vrot.slane %v2587, 5
  %v2590 = vshll.u32 %v2421, 16
  %v2592 = vrot.slane %v2590, 6
  %v2593 = vor.u32 %v2589, %v2592
  %v2594 = vsel %vm2433, %v2585, %v2593
  %v2596 = vshrl.u32 %v1441, 16
  %v2598 = vrot.slane %v2596, 5
  %v2599 = vshll.u32 %v1441, 16
  %v2601 = vrot.slane %v2599, 6
  %v2602 = vor.u32 %v2598, %v2601
  %v2603 = vrot.slane %v2602, 4
  %v2604 = vrot.slane %v1200, 5
  %v2605 = vrot.slane %v1196, 6
  %v2606 = vor.u32 %v2604, %v2605
  %v2607 = vsel %vm2433, %v2603, %v2606
  %v2608 = vrot.slane %v2606, 4
  %v2610 = vshrl.u32 %v2422, 16
  %v2612 = vrot.slane %v2610, 5
  %v2613 = vshll.u32 %v2422, 16
  %v2615 = vrot.slane %v2613, 6
  %v2616 = vor.u32 %v2612, %v2615
  %v2617 = vsel %vm2433, %v2608, %v2616
  %v2619 = vshrl.u32 %v1442, 16
  %v2621 = vrot.slane %v2619, 5
  %v2622 = vshll.u32 %v1442, 16
  %v2624 = vrot.slane %v2622, 6
  %v2625 = vor.u32 %v2621, %v2624
  %v2626 = vrot.slane %v2625, 4
  %v2627 = vrot.slane %v1224, 5
  %v2628 = vrot.slane %v1220, 6
  %v2629 = vor.u32 %v2627, %v2628
  %v2630 = vsel %vm2433, %v2626, %v2629
  %v2631 = vrot.slane %v2629, 4
  %v2633 = vshrl.u32 %v2423, 16
  %v2635 = vrot.slane %v2633, 5
  %v2636 = vshll.u32 %v2423, 16
  %v2638 = vrot.slane %v2636, 6
  %v2639 = vor.u32 %v2635, %v2638
  %v2640 = vsel %vm2433, %v2631, %v2639
  %v2642 = vshrl.u32 %v1443, 16
  %v2644 = vrot.slane %v2642, 5
  %v2645 = vshll.u32 %v1443, 16
  %v2647 = vrot.slane %v2645, 6
  %v2648 = vor.u32 %v2644, %v2647
  %v2649 = vrot.slane %v2648, 4
  %v2650 = vrot.slane %v1248, 5
  %v2651 = vrot.slane %v1244, 6
  %v2652 = vor.u32 %v2650, %v2651
  %v2653 = vsel %vm2433, %v2649, %v2652
  %v2654 = vrot.slane %v2652, 4
  %v2656 = vshrl.u32 %v2424, 16
  %v2658 = vrot.slane %v2656, 5
  %v2659 = vshll.u32 %v2424, 16
  %v2661 = vrot.slane %v2659, 6
  %v2662 = vor.u32 %v2658, %v2661
  %v2663 = vsel %vm2433, %v2654, %v2662
  %v2665 = vshrl.u32 %v1444, 16
  %v2667 = vrot.slane %v2665, 5
  %v2668 = vshll.u32 %v1444, 16
  %v2670 = vrot.slane %v2668, 6
  %v2671 = vor.u32 %v2667, %v2670
  %v2672 = vrot.slane %v2671, 4
  %v2673 = vrot.slane %v1272, 5
  %v2674 = vrot.slane %v1268, 6
  %v2675 = vor.u32 %v2673, %v2674
  %v2676 = vsel %vm2433, %v2672, %v2675
  %v2677 = vrot.slane %v2675, 4
  %v2679 = vshrl.u32 %v2425, 16
  %v2681 = vrot.slane %v2679, 5
  %v2682 = vshll.u32 %v2425, 16
  %v2684 = vrot.slane %v2682, 6
  %v2685 = vor.u32 %v2681, %v2684
  %v2686 = vsel %vm2433, %v2677, %v2685
  %v2688 = vshrl.u32 %v1445, 16
  %v2690 = vrot.slane %v2688, 5
  %v2691 = vshll.u32 %v1445, 16
  %v2693 = vrot.slane %v2691, 6
  %v2694 = vor.u32 %v2690, %v2693
  %v2695 = vrot.slane %v2694, 4
  %v2696 = vrot.slane %v1296, 5
  %v2697 = vrot.slane %v1292, 6
  %v2698 = vor.u32 %v2696, %v2697
  %v2699 = vsel %vm2433, %v2695, %v2698
  %v2700 = vrot.slane %v2698, 4
  %v2702 = vshrl.u32 %v2426, 16
  %v2704 = vrot.slane %v2702, 5
  %v2705 = vshll.u32 %v2426, 16
  %v2707 = vrot.slane %v2705, 6
  %v2708 = vor.u32 %v2704, %v2707
  %v2709 = vsel %vm2433, %v2700, %v2708
  %v2711 = vshrl.u32 %v1446, 16
  %v2713 = vrot.slane %v2711, 5
  %v2714 = vshll.u32 %v1446, 16
  %v2716 = vrot.slane %v2714, 6
  %v2717 = vor.u32 %v2713, %v2716
  %v2718 = vrot.slane %v2717, 4
  %v2719 = vrot.slane %v1320, 5
  %v2720 = vrot.slane %v1316, 6
  %v2721 = vor.u32 %v2719, %v2720
  %v2722 = vsel %vm2433, %v2718, %v2721
  %v2723 = vrot.slane %v2721, 4
  %v2725 = vshrl.u32 %v2427, 16
  %v2727 = vrot.slane %v2725, 5
  %v2728 = vshll.u32 %v2427, 16
  %v2730 = vrot.slane %v2728, 6
  %v2731 = vor.u32 %v2727, %v2730
  %v2732 = vsel %vm2433, %v2723, %v2731
  %v2734 = vshrl.u32 %v1447, 16
  %v2736 = vrot.slane %v2734, 5
  %v2737 = vshll.u32 %v1447, 16
  %v2739 = vrot.slane %v2737, 6
  %v2740 = vor.u32 %v2736, %v2739
  %v2741 = vrot.slane %v2740, 4
  %v2742 = vrot.slane %v1344, 5
  %v2743 = vrot.slane %v1340, 6
  %v2744 = vor.u32 %v2742, %v2743
  %v2745 = vsel %vm2433, %v2741, %v2744
  %v2746 = vrot.slane %v2744, 4
  %v2748 = vshrl.u32 %v2428, 16
  %v2750 = vrot.slane %v2748, 5
  %v2751 = vshll.u32 %v2428, 16
  %v2753 = vrot.slane %v2751, 6
  %v2754 = vor.u32 %v2750, %v2753
  %v2755 = vsel %vm2433, %v2746, %v2754
  %v2757 = vshrl.u32 %v1448, 16
  %v2759 = vrot.slane %v2757, 5
  %v2760 = vshll.u32 %v1448, 16
  %v2762 = vrot.slane %v2760, 6
  %v2763 = vor.u32 %v2759, %v2762
  %v2764 = vrot.slane %v2763, 4
  %v2765 = vrot.slane %v1368, 5
  %v2766 = vrot.slane %v1364, 6
  %v2767 = vor.u32 %v2765, %v2766
  %v2768 = vsel %vm2433, %v2764, %v2767
  %v2769 = vrot.slane %v2767, 4
  %v2771 = vshrl.u32 %v2429, 16
  %v2773 = vrot.slane %v2771, 5
  %v2774 = vshll.u32 %v2429, 16
  %v2776 = vrot.slane %v2774, 6
  %v2777 = vor.u32 %v2773, %v2776
  %v2778 = vsel %vm2433, %v2769, %v2777
  %v2780 = vshrl.u32 %v1449, 16
  %v2782 = vrot.slane %v2780, 5
  %v2783 = vshll.u32 %v1449, 16
  %v2785 = vrot.slane %v2783, 6
  %v2786 = vor.u32 %v2782, %v2785
  %v2787 = vrot.slane %v2786, 4
  %v2788 = vrot.slane %v1392, 5
  %v2789 = vrot.slane %v1388, 6
  %v2790 = vor.u32 %v2788, %v2789
  %v2791 = vsel %vm2433, %v2787, %v2790
  %v2792 = vrot.slane %v2790, 4
  %v2794 = vshrl.u32 %v2430, 16
  %v2796 = vrot.slane %v2794, 5
  %v2797 = vshll.u32 %v2430, 16
  %v2799 = vrot.slane %v2797, 6
  %v2800 = vor.u32 %v2796, %v2799
  %v2801 = vsel %vm2433, %v2792, %v2800
  %v2802 = vld [vmem:[%s4 + $0x100] sm:$0xf]
  %v2803 = vld [vmem:[%s4 + $0x104] sm:$0xf]
  %v2804 = vld [vmem:[%s4 + $0x108] sm:$0xf]
  %v2805 = vld [vmem:[%s4 + $0x10c] sm:$0xf]
  %v2806 = vld [vmem:[%s4 + $0x110] sm:$0xf]
  %v2807 = vld [vmem:[%s4 + $0x114] sm:$0xf]
  %v2808 = vld [vmem:[%s4 + $0x118] sm:$0xf]
  %v2809 = vld [vmem:[%s4 + $0x11c] sm:$0xf]
  %v2810 = vld [vmem:[%s4 + $0x120] sm:$0xf]
  %v2811 = vld [vmem:[%s4 + $0x124] sm:$0xf]
  %v2812 = vld [vmem:[%s4 + $0x128] sm:$0xf]
  %v2813 = vld [vmem:[%s4 + $0x12c] sm:$0xf]
  %v2814 = vld [vmem:[%s4 + $0x130] sm:$0xf]
  %v2815 = vld [vmem:[%s4 + $0x134] sm:$0xf]
  %v2816 = vld [vmem:[%s4 + $0x138] sm:$0xf]
  %v2817 = vld [vmem:[%s4 + $0x13c] sm:$0xf]
  %v2818 = vld [vmem:[%s4 + $0x140] sm:$0xf]
  %v2819 = vld [vmem:[%s4 + $0x144] sm:$0xf]
  %v2820 = vld [vmem:[%s4 + $0x148] sm:$0xf]
  %v2821 = vld [vmem:[%s4 + $0x14c] sm:$0xf]
  %v2822 = vld [vmem:[%s4 + $0x150] sm:$0xf]
  %v2823 = vld [vmem:[%s4 + $0x154] sm:$0xf]
  %v2824 = vld [vmem:[%s4 + $0x158] sm:$0xf]
  %v2825 = vld [vmem:[%s4 + $0x15c] sm:$0xf]
  %v2826 = vld [vmem:[%s4 + $0x160] sm:$0xf]
  %v2827 = vld [vmem:[%s4 + $0x164] sm:$0xf]
  %v2828 = vld [vmem:[%s4 + $0x168] sm:$0xf]
  %v2829 = vld [vmem:[%s4 + $0x16c] sm:$0xf]
  %v2830 = vld [vmem:[%s4 + $0x170] sm:$0xf]
  %v2831 = vld [vmem:[%s4 + $0x174] sm:$0xf]
  %v2832 = vld [vmem:[%s4 + $0x178] sm:$0xf]
  %v2833 = vld [vmem:[%s4 + $0x17c] sm:$0xf]
  %v2834 = vunpack.c.l.b16 %v2446
  %v2835 = vunpack.c.h.b16 %v2446
  %v2836 = vunpack.c.l.b16 %v2456
  %v2837 = vunpack.c.h.b16 %v2456
  %v2838 = vunpack.c.l.b16 %v2469
  %v2839 = vunpack.c.h.b16 %v2469
  %v2840 = vunpack.c.l.b16 %v2479
  %v2841 = vunpack.c.h.b16 %v2479
  %v2842 = vunpack.c.l.b16 %v2492
  %v2843 = vunpack.c.h.b16 %v2492
  %v2844 = vunpack.c.l.b16 %v2502
  %v2845 = vunpack.c.h.b16 %v2502
  %v2846 = vunpack.c.l.b16 %v2515
  %v2847 = vunpack.c.h.b16 %v2515
  %v2848 = vunpack.c.l.b16 %v2525
  %v2849 = vunpack.c.h.b16 %v2525
  %v2850 = vunpack.c.l.b16 %v2538
  %v2851 = vunpack.c.h.b16 %v2538
  %v2852 = vunpack.c.l.b16 %v2548
  %v2853 = vunpack.c.h.b16 %v2548
  %v2854 = vunpack.c.l.b16 %v2561
  %v2855 = vunpack.c.h.b16 %v2561
  %v2856 = vunpack.c.l.b16 %v2571
  %v2857 = vunpack.c.h.b16 %v2571
  %v2858 = vunpack.c.l.b16 %v2584
  %v2859 = vunpack.c.h.b16 %v2584
  %v2860 = vunpack.c.l.b16 %v2594
  %v2861 = vunpack.c.h.b16 %v2594
  %v2862 = vunpack.c.l.b16 %v2607
  %v2863 = vunpack.c.h.b16 %v2607
  %v2864 = vunpack.c.l.b16 %v2617
  %v2865 = vunpack.c.h.b16 %v2617
  %v2866 = vunpack.c.l.b16 %v2630
  %v2867 = vunpack.c.h.b16 %v2630
  %v2868 = vunpack.c.l.b16 %v2640
  %v2869 = vunpack.c.h.b16 %v2640
  %v2870 = vunpack.c.l.b16 %v2653
  %v2871 = vunpack.c.h.b16 %v2653
  %v2872 = vunpack.c.l.b16 %v2663
  %v2873 = vunpack.c.h.b16 %v2663
  %v2874 = vunpack.c.l.b16 %v2676
  %v2875 = vunpack.c.h.b16 %v2676
  %v2876 = vunpack.c.l.b16 %v2686
  %v2877 = vunpack.c.h.b16 %v2686
  %v2878 = vunpack.c.l.b16 %v2699
  %v2879 = vunpack.c.h.b16 %v2699
  %v2880 = vunpack.c.l.b16 %v2709
  %v2881 = vunpack.c.h.b16 %v2709
  %v2882 = vunpack.c.l.b16 %v2722
  %v2883 = vunpack.c.h.b16 %v2722
  %v2884 = vunpack.c.l.b16 %v2732
  %v2885 = vunpack.c.h.b16 %v2732
  %v2886 = vunpack.c.l.b16 %v2745
  %v2887 = vunpack.c.h.b16 %v2745
  %v2888 = vunpack.c.l.b16 %v2755
  %v2889 = vunpack.c.h.b16 %v2755
  %v2890 = vunpack.c.l.b16 %v2768
  %v2891 = vunpack.c.h.b16 %v2768
  %v2892 = vunpack.c.l.b16 %v2778
  %v2893 = vunpack.c.h.b16 %v2778
  %v2894 = vunpack.c.l.b16 %v2791
  %v2895 = vunpack.c.h.b16 %v2791
  %v2896 = vunpack.c.l.b16 %v2801
  %v2897 = vunpack.c.h.b16 %v2801
  %v2898 = vpack.c.b16 %v2836, %v2834
  %v2899 = vpack.c.b16 %v2837, %v2835
  %v2900 = vpack.c.b16 %v2840, %v2838
  %v2901 = vpack.c.b16 %v2841, %v2839
  %v2902 = vpack.c.b16 %v2844, %v2842
  %v2903 = vpack.c.b16 %v2845, %v2843
  %v2904 = vpack.c.b16 %v2848, %v2846
  %v2905 = vpack.c.b16 %v2849, %v2847
  %v2906 = vpack.c.b16 %v2852, %v2850
  %v2907 = vpack.c.b16 %v2853, %v2851
  %v2908 = vpack.c.b16 %v2856, %v2854
  %v2909 = vpack.c.b16 %v2857, %v2855
  %v2910 = vpack.c.b16 %v2860, %v2858
  %v2911 = vpack.c.b16 %v2861, %v2859
  %v2912 = vpack.c.b16 %v2864, %v2862
  %v2913 = vpack.c.b16 %v2865, %v2863
  %v2914 = vpack.c.b16 %v2868, %v2866
  %v2915 = vpack.c.b16 %v2869, %v2867
  %v2916 = vpack.c.b16 %v2872, %v2870
  %v2917 = vpack.c.b16 %v2873, %v2871
  %v2918 = vpack.c.b16 %v2876, %v2874
  %v2919 = vpack.c.b16 %v2877, %v2875
  %v2920 = vpack.c.b16 %v2880, %v2878
  %v2921 = vpack.c.b16 %v2881, %v2879
  %v2922 = vpack.c.b16 %v2884, %v2882
  %v2923 = vpack.c.b16 %v2885, %v2883
  %v2924 = vpack.c.b16 %v2888, %v2886
  %v2925 = vpack.c.b16 %v2889, %v2887
  %v2926 = vpack.c.b16 %v2892, %v2890
  %v2927 = vpack.c.b16 %v2893, %v2891
  %v2928 = vpack.c.b16 %v2896, %v2894
  %v2929 = vpack.c.b16 %v2897, %v2895
  %v2994 = vunpack.c.l.b16 %v2802
  %v2995 = vunpack.c.l.b16 %v2803
  %v2996 = vunpack.c.l.b16 %v2804
  %v2997 = vunpack.c.l.b16 %v2805
  %v2998 = vunpack.c.l.b16 %v2806
  %v2999 = vunpack.c.l.b16 %v2807
  %v3000 = vunpack.c.l.b16 %v2808
  %v3001 = vunpack.c.l.b16 %v2809
  %v3002 = vunpack.c.l.b16 %v2810
  %v3003 = vunpack.c.l.b16 %v2811
  %v3004 = vunpack.c.l.b16 %v2812
  %v3005 = vunpack.c.l.b16 %v2813
  %v3006 = vunpack.c.l.b16 %v2814
  %v3007 = vunpack.c.l.b16 %v2815
  %v3008 = vunpack.c.l.b16 %v2816
  %v3009 = vunpack.c.l.b16 %v2817
  %v3010 = vunpack.c.l.b16 %v2818
  %v3011 = vunpack.c.l.b16 %v2819
  %v3012 = vunpack.c.l.b16 %v2820
  %v3013 = vunpack.c.l.b16 %v2821
  %v3014 = vunpack.c.l.b16 %v2822
  %v3015 = vunpack.c.l.b16 %v2823
  %v3016 = vunpack.c.l.b16 %v2824
  %v3017 = vunpack.c.l.b16 %v2825
  %v3018 = vunpack.c.l.b16 %v2826
  %v3019 = vunpack.c.l.b16 %v2827
  %v3020 = vunpack.c.l.b16 %v2828
  %v3021 = vunpack.c.l.b16 %v2829
  %v3022 = vunpack.c.l.b16 %v2830
  %v3023 = vunpack.c.l.b16 %v2831
  %v3024 = vunpack.c.l.b16 %v2832
  %v3025 = vunpack.c.l.b16 %v2833
  %v3026 = vpack.c.b16 %v2995, %v2994
  %v3027 = vpack.c.b16 %v2997, %v2996
  %v3028 = vpack.c.b16 %v2999, %v2998
  %v3029 = vpack.c.b16 %v3001, %v3000
  %v3030 = vpack.c.b16 %v3003, %v3002
  %v3031 = vpack.c.b16 %v3005, %v3004
  %v3032 = vpack.c.b16 %v3007, %v3006
  %v3033 = vpack.c.b16 %v3009, %v3008
  %v3034 = vpack.c.b16 %v3011, %v3010
  %v3035 = vpack.c.b16 %v3013, %v3012
  %v3036 = vpack.c.b16 %v3015, %v3014
  %v3037 = vpack.c.b16 %v3017, %v3016
  %v3038 = vpack.c.b16 %v3019, %v3018
  %v3039 = vpack.c.b16 %v3021, %v3020
  %v3040 = vpack.c.b16 %v3023, %v3022
  %v3041 = vpack.c.b16 %v3025, %v3024
  %3058 = vmatprep.subr.bf16.mxu0 0
  %3059 = vmatpush1.bf16.msra.mxu0 %v3033
  %3060 = vmatprep.subr.bf16.mxu0 0
  %3061 = vmatpush1.bf16.msra.mxu0 %v3032
  %3062 = vmatprep.subr.bf16.mxu0 0
  %3063 = vmatpush1.bf16.msra.mxu0 %v3031
  %3064 = vmatprep.subr.bf16.mxu0 0
  %3065 = vmatpush1.bf16.msra.mxu0 %v3030
  %3066 = vmatprep.subr.bf16.mxu0 0
  %3067 = vmatpush1.bf16.msra.mxu0 %v3029
  %3068 = vmatprep.subr.bf16.mxu0 0
  %3069 = vmatpush1.bf16.msra.mxu0 %v3028
  %3070 = vmatprep.subr.bf16.mxu0 0
  %3071 = vmatpush1.bf16.msra.mxu0 %v3027
  %3072 = vmatprep.subr.bf16.mxu0 0
  %3073 = vmatpush1.bf16.msra.mxu0 %v3026
  %3074 = vmatprep.subr.bf16.mxu0 0
  %3075 = vmatpush2.bf16.msra.mxu0 %v3041
  %3076 = vmatprep.subr.bf16.mxu0 0
  %3077 = vmatpush2.bf16.msra.mxu0 %v3040
  %3078 = vmatprep.subr.bf16.mxu0 0
  %3079 = vmatpush2.bf16.msra.mxu0 %v3039
  %3080 = vmatprep.subr.bf16.mxu0 0
  %3081 = vmatpush2.bf16.msra.mxu0 %v3038
  %3082 = vmatprep.subr.bf16.mxu0 0
  %3083 = vmatpush2.bf16.msra.mxu0 %v3037
  %3084 = vmatprep.subr.bf16.mxu0 0
  %3085 = vmatpush2.bf16.msra.mxu0 %v3036
  %3086 = vmatprep.subr.bf16.mxu0 0
  %3087 = vmatpush2.bf16.msra.mxu0 %v3035
  %3088 = vmatprep.subr.bf16.mxu0 0
  %3089 = vmatpush2.bf16.msra.mxu0 %v3034
  %3090 = vmatprep.mubr.bf16.mxu0 %v2899
  %3091 = vmatmul.mubr.bf16.gmra.mxu0 %v2898
  %v3092 = vpop.f32.mrf.mxu0
  %v3093 = vadd.f32 0.0, %v3092
  %v3094 = vpop.f32.mrf.mxu0
  %v3095 = vpop.f32.mrf.mxu0
  %v3096 = vadd.f32 0.0, %v3095
  %v3097 = vpop.f32.mrf.mxu0
  %3098 = vmatprep.mubr.bf16.mxu0 %v2901
  %3099 = vmatmul.mubr.bf16.gmra.mxu0 %v2900
  %v3100 = vpop.f32.mrf.mxu0
  %v3101 = vadd.f32 0.0, %v3100
  %v3102 = vpop.f32.mrf.mxu0
  %v3103 = vpop.f32.mrf.mxu0
  %v3104 = vadd.f32 0.0, %v3103
  %v3105 = vpop.f32.mrf.mxu0
  %3106 = vmatprep.mubr.bf16.mxu0 %v2903
  %3107 = vmatmul.mubr.bf16.gmra.mxu0 %v2902
  %v3108 = vpop.f32.mrf.mxu0
  %v3109 = vadd.f32 0.0, %v3108
  %v3110 = vpop.f32.mrf.mxu0
  %v3111 = vpop.f32.mrf.mxu0
  %v3112 = vadd.f32 0.0, %v3111
  %v3113 = vpop.f32.mrf.mxu0
  %3114 = vmatprep.mubr.bf16.mxu0 %v2905
  %3115 = vmatmul.mubr.bf16.gmra.mxu0 %v2904
  %v3116 = vpop.f32.mrf.mxu0
  %v3117 = vadd.f32 0.0, %v3116
  %v3118 = vpop.f32.mrf.mxu0
  %v3119 = vpop.f32.mrf.mxu0
  %v3120 = vadd.f32 0.0, %v3119
  %v3121 = vpop.f32.mrf.mxu0
  %3122 = vmatprep.mubr.bf16.mxu0 %v2907
  %3123 = vmatmul.mubr.bf16.gmra.mxu0 %v2906
  %v3124 = vpop.f32.mrf.mxu0
  %v3125 = vadd.f32 0.0, %v3124
  %v3126 = vpop.f32.mrf.mxu0
  %v3127 = vpop.f32.mrf.mxu0
  %v3128 = vadd.f32 0.0, %v3127
  %v3129 = vpop.f32.mrf.mxu0
  %3130 = vmatprep.mubr.bf16.mxu0 %v2909
  %3131 = vmatmul.mubr.bf16.gmra.mxu0 %v2908
  %v3132 = vpop.f32.mrf.mxu0
  %v3133 = vadd.f32 0.0, %v3132
  %v3134 = vpop.f32.mrf.mxu0
  %v3135 = vpop.f32.mrf.mxu0
  %v3136 = vadd.f32 0.0, %v3135
  %v3137 = vpop.f32.mrf.mxu0
  %3138 = vmatprep.mubr.bf16.mxu0 %v2911
  %3139 = vmatmul.mubr.bf16.gmra.mxu0 %v2910
  %v3140 = vpop.f32.mrf.mxu0
  %v3141 = vadd.f32 0.0, %v3140
  %v3142 = vpop.f32.mrf.mxu0
  %v3143 = vpop.f32.mrf.mxu0
  %v3144 = vadd.f32 0.0, %v3143
  %v3145 = vpop.f32.mrf.mxu0
  %3146 = vmatprep.mubr.bf16.mxu0 %v2913
  %3147 = vmatmul.mubr.bf16.gmra.mxu0 %v2912
  %v3148 = vpop.f32.mrf.mxu0
  %v3149 = vadd.f32 0.0, %v3148
  %v3150 = vpop.f32.mrf.mxu0
  %v3151 = vpop.f32.mrf.mxu0
  %v3152 = vadd.f32 0.0, %v3151
  %v3153 = vpop.f32.mrf.mxu0
  %3154 = vmatprep.mubr.bf16.mxu0 %v2915
  %3155 = vmatmul.mubr.bf16.gmra.mxu0 %v2914
  %v3156 = vpop.f32.mrf.mxu0
  %v3157 = vadd.f32 0.0, %v3156
  %v3158 = vpop.f32.mrf.mxu0
  %v3159 = vpop.f32.mrf.mxu0
  %v3160 = vadd.f32 0.0, %v3159
  %v3161 = vpop.f32.mrf.mxu0
  %3162 = vmatprep.mubr.bf16.mxu0 %v2917
  %3163 = vmatmul.mubr.bf16.gmra.mxu0 %v2916
  %v3164 = vpop.f32.mrf.mxu0
  %v3165 = vadd.f32 0.0, %v3164
  %v3166 = vpop.f32.mrf.mxu0
  %v3167 = vpop.f32.mrf.mxu0
  %v3168 = vadd.f32 0.0, %v3167
  %v3169 = vpop.f32.mrf.mxu0
  %3170 = vmatprep.mubr.bf16.mxu0 %v2919
  %3171 = vmatmul.mubr.bf16.gmra.mxu0 %v2918
  %v3172 = vpop.f32.mrf.mxu0
  %v3173 = vadd.f32 0.0, %v3172
  %v3174 = vpop.f32.mrf.mxu0
  %v3175 = vpop.f32.mrf.mxu0
  %v3176 = vadd.f32 0.0, %v3175
  %v3177 = vpop.f32.mrf.mxu0
  %3178 = vmatprep.mubr.bf16.mxu0 %v2921
  %3179 = vmatmul.mubr.bf16.gmra.mxu0 %v2920
  %v3180 = vpop.f32.mrf.mxu0
  %v3181 = vadd.f32 0.0, %v3180
  %v3182 = vpop.f32.mrf.mxu0
  %v3183 = vpop.f32.mrf.mxu0
  %v3184 = vadd.f32 0.0, %v3183
  %v3185 = vpop.f32.mrf.mxu0
  %3186 = vmatprep.mubr.bf16.mxu0 %v2923
  %3187 = vmatmul.mubr.bf16.gmra.mxu0 %v2922
  %v3188 = vpop.f32.mrf.mxu0
  %v3189 = vadd.f32 0.0, %v3188
  %v3190 = vpop.f32.mrf.mxu0
  %v3191 = vpop.f32.mrf.mxu0
  %v3192 = vadd.f32 0.0, %v3191
  %v3193 = vpop.f32.mrf.mxu0
  %3194 = vmatprep.mubr.bf16.mxu0 %v2925
  %3195 = vmatmul.mubr.bf16.gmra.mxu0 %v2924
  %v3196 = vpop.f32.mrf.mxu0
  %v3197 = vadd.f32 0.0, %v3196
  %v3198 = vpop.f32.mrf.mxu0
  %v3199 = vpop.f32.mrf.mxu0
  %v3200 = vadd.f32 0.0, %v3199
  %v3201 = vpop.f32.mrf.mxu0
  %3202 = vmatprep.mubr.bf16.mxu0 %v2927
  %3203 = vmatmul.mubr.bf16.gmra.mxu0 %v2926
  %v3204 = vpop.f32.mrf.mxu0
  %v3205 = vadd.f32 0.0, %v3204
  %v3206 = vpop.f32.mrf.mxu0
  %v3207 = vpop.f32.mrf.mxu0
  %v3208 = vadd.f32 0.0, %v3207
  %v3209 = vpop.f32.mrf.mxu0
  %3210 = vmatprep.mubr.bf16.mxu0 %v2929
  %3211 = vmatmul.mubr.bf16.gmra.mxu0 %v2928
  %v3212 = vpop.f32.mrf.mxu0
  %v3213 = vadd.f32 0.0, %v3212
  %v3214 = vpop.f32.mrf.mxu0
  %v3215 = vpop.f32.mrf.mxu0
  %v3216 = vadd.f32 0.0, %v3215
  %v3217 = vpop.f32.mrf.mxu0
  %3218 = vdwg.mxu0
  %v3219 = vadd.f32 %v2289, %v3093
  %v3220 = vadd.f32 %v2292, %v3096
  %v3221 = vadd.f32 %v2297, %v3101
  %v3222 = vadd.f32 %v2300, %v3104
  %v3223 = vadd.f32 %v2305, %v3109
  %v3224 = vadd.f32 %v2308, %v3112
  %v3225 = vadd.f32 %v2313, %v3117
  %v3226 = vadd.f32 %v2316, %v3120
  %v3227 = vadd.f32 %v2321, %v3125
  %v3228 = vadd.f32 %v2324, %v3128
  %v3229 = vadd.f32 %v2329, %v3133
  %v3230 = vadd.f32 %v2332, %v3136
  %v3231 = vadd.f32 %v2337, %v3141
  %v3232 = vadd.f32 %v2340, %v3144
  %v3233 = vadd.f32 %v2345, %v3149
  %v3234 = vadd.f32 %v2348, %v3152
  %v3235 = vadd.f32 %v2353, %v3157
  %v3236 = vadd.f32 %v2356, %v3160
  %v3237 = vadd.f32 %v2361, %v3165
  %v3238 = vadd.f32 %v2364, %v3168
  %v3239 = vadd.f32 %v2369, %v3173
  %v3240 = vadd.f32 %v2372, %v3176
  %v3241 = vadd.f32 %v2377, %v3181
  %v3242 = vadd.f32 %v2380, %v3184
  %v3243 = vadd.f32 %v2385, %v3189
  %v3244 = vadd.f32 %v2388, %v3192
  %v3245 = vadd.f32 %v2393, %v3197
  %v3246 = vadd.f32 %v2396, %v3200
  %v3247 = vadd.f32 %v2401, %v3205
  %v3248 = vadd.f32 %v2404, %v3208
  %v3249 = vadd.f32 %v2409, %v3213
  %v3250 = vadd.f32 %v2412, %v3216
  %v3251 = vld [vmem:[#allocation2] sm:$0xcc]
  %v3252 = vld [vmem:[#allocation2 + $0x20] sm:$0xcc]
  %v3253 = vld [vmem:[#allocation2 + $0x40] sm:$0xcc]
  %v3254 = vld [vmem:[#allocation2 + $0x60] sm:$0xcc]
  %v3255 = vld [vmem:[#allocation2 + $0x80] sm:$0xcc]
  %v3256 = vld [vmem:[#allocation2 + $0xa0] sm:$0xcc]
  %v3257 = vld [vmem:[#allocation2 + $0xc0] sm:$0xcc]
  %v3258 = vld [vmem:[#allocation2 + $0xe0] sm:$0xcc]
  %v3259 = vld [vmem:[#allocation2 + $0x100] sm:$0xcc]
  %v3260 = vld [vmem:[#allocation2 + $0x120] sm:$0xcc]
  %v3261 = vld [vmem:[#allocation2 + $0x140] sm:$0xcc]
  %v3262 = vld [vmem:[#allocation2 + $0x160] sm:$0xcc]
  %v3263 = vld [vmem:[#allocation2 + $0x180] sm:$0xcc]
  %v3264 = vld [vmem:[#allocation2 + $0x1a0] sm:$0xcc]
  %v3265 = vld [vmem:[#allocation2 + $0x1c0] sm:$0xcc]
  %v3266 = vld [vmem:[#allocation2 + $0x1e0] sm:$0xcc]
  %vm3299 = vcmask 1041408
  %vm3300 = vcmask 1045508
  %vm3301 = vmor %vm3299, %vm3300
  %v3302 = vrot.slane %v3251, 6
  %v3303 = vrot.slane %v3302, 4
  %v3304 = vrot.slane %v968, 6
  %v3305 = vsel %vm3301, %v3303, %v3304
  %v3306 = vrot.slane %v3304, 4
  %v3307 = vrot.slane %v2415, 6
  %v3308 = vsel %vm3301, %v3306, %v3307
  %v3309 = vrot.slane %v3252, 6
  %v3310 = vrot.slane %v3309, 4
  %v3311 = vrot.slane %v971, 6
  %v3312 = vsel %vm3301, %v3310, %v3311
  %v3313 = vrot.slane %v3311, 4
  %v3314 = vrot.slane %v2416, 6
  %v3315 = vsel %vm3301, %v3313, %v3314
  %v3316 = vrot.slane %v3253, 6
  %v3317 = vrot.slane %v3316, 4
  %v3318 = vrot.slane %v974, 6
  %v3319 = vsel %vm3301, %v3317, %v3318
  %v3320 = vrot.slane %v3318, 4
  %v3321 = vrot.slane %v2417, 6
  %v3322 = vsel %vm3301, %v3320, %v3321
  %v3323 = vrot.slane %v3254, 6
  %v3324 = vrot.slane %v3323, 4
  %v3325 = vrot.slane %v977, 6
  %v3326 = vsel %vm3301, %v3324, %v3325
  %v3327 = vrot.slane %v3325, 4
  %v3328 = vrot.slane %v2418, 6
  %v3329 = vsel %vm3301, %v3327, %v3328
  %v3330 = vrot.slane %v3255, 6
  %v3331 = vrot.slane %v3330, 4
  %v3332 = vrot.slane %v980, 6
  %v3333 = vsel %vm3301, %v3331, %v3332
  %v3334 = vrot.slane %v3332, 4
  %v3335 = vrot.slane %v2419, 6
  %v3336 = vsel %vm3301, %v3334, %v3335
  %v3337 = vrot.slane %v3256, 6
  %v3338 = vrot.slane %v3337, 4
  %v3339 = vrot.slane %v983, 6
  %v3340 = vsel %vm3301, %v3338, %v3339
  %v3341 = vrot.slane %v3339, 4
  %v3342 = vrot.slane %v2420, 6
  %v3343 = vsel %vm3301, %v3341, %v3342
  %v3344 = vrot.slane %v3257, 6
  %v3345 = vrot.slane %v3344, 4
  %v3346 = vrot.slane %v986, 6
  %v3347 = vsel %vm3301, %v3345, %v3346
  %v3348 = vrot.slane %v3346, 4
  %v3349 = vrot.slane %v2421, 6
  %v3350 = vsel %vm3301, %v3348, %v3349
  %v3351 = vrot.slane %v3258, 6
  %v3352 = vrot.slane %v3351, 4
  %v3353 = vrot.slane %v989, 6
  %v3354 = vsel %vm3301, %v3352, %v3353
  %v3355 = vrot.slane %v3353, 4
  %v3356 = vrot.slane %v2422, 6
  %v3357 = vsel %vm3301, %v3355, %v3356
  %v3358 = vrot.slane %v3259, 6
  %v3359 = vrot.slane %v3358, 4
  %v3360 = vrot.slane %v992, 6
  %v3361 = vsel %vm3301, %v3359, %v3360
  %v3362 = vrot.slane %v3360, 4
  %v3363 = vrot.slane %v2423, 6
  %v3364 = vsel %vm3301, %v3362, %v3363
  %v3365 = vrot.slane %v3260, 6
  %v3366 = vrot.slane %v3365, 4
  %v3367 = vrot.slane %v995, 6
  %v3368 = vsel %vm3301, %v3366, %v3367
  %v3369 = vrot.slane %v3367, 4
  %v3370 = vrot.slane %v2424, 6
  %v3371 = vsel %vm3301, %v3369, %v3370
  %v3372 = vrot.slane %v3261, 6
  %v3373 = vrot.slane %v3372, 4
  %v3374 = vrot.slane %v998, 6
  %v3375 = vsel %vm3301, %v3373, %v3374
  %v3376 = vrot.slane %v3374, 4
  %v3377 = vrot.slane %v2425, 6
  %v3378 = vsel %vm3301, %v3376, %v3377
  %v3379 = vrot.slane %v3262, 6
  %v3380 = vrot.slane %v3379, 4
  %v3381 = vrot.slane %v1001, 6
  %v3382 = vsel %vm3301, %v3380, %v3381
  %v3383 = vrot.slane %v3381, 4
  %v3384 = vrot.slane %v2426, 6
  %v3385 = vsel %vm3301, %v3383, %v3384
  %v3386 = vrot.slane %v3263, 6
  %v3387 = vrot.slane %v3386, 4
  %v3388 = vrot.slane %v1004, 6
  %v3389 = vsel %vm3301, %v3387, %v3388
  %v3390 = vrot.slane %v3388, 4
  %v3391 = vrot.slane %v2427, 6
  %v3392 = vsel %vm3301, %v3390, %v3391
  %v3393 = vrot.slane %v3264, 6
  %v3394 = vrot.slane %v3393, 4
  %v3395 = vrot.slane %v1007, 6
  %v3396 = vsel %vm3301, %v3394, %v3395
  %v3397 = vrot.slane %v3395, 4
  %v3398 = vrot.slane %v2428, 6
  %v3399 = vsel %vm3301, %v3397, %v3398
  %v3400 = vrot.slane %v3265, 6
  %v3401 = vrot.slane %v3400, 4
  %v3402 = vrot.slane %v1010, 6
  %v3403 = vsel %vm3301, %v3401, %v3402
  %v3404 = vrot.slane %v3402, 4
  %v3405 = vrot.slane %v2429, 6
  %v3406 = vsel %vm3301, %v3404, %v3405
  %v3407 = vrot.slane %v3266, 6
  %v3408 = vrot.slane %v3407, 4
  %v3409 = vrot.slane %v1013, 6
  %v3410 = vsel %vm3301, %v3408, %v3409
  %v3411 = vrot.slane %v3409, 4
  %v3412 = vrot.slane %v2430, 6
  %v3413 = vsel %vm3301, %v3411, %v3412
  %v3414 = vld [vmem:[%s4 + $0x180] sm:$0xf]
  %v3415 = vld [vmem:[%s4 + $0x184] sm:$0xf]
  %v3416 = vld [vmem:[%s4 + $0x188] sm:$0xf]
  %v3417 = vld [vmem:[%s4 + $0x18c] sm:$0xf]
  %v3418 = vld [vmem:[%s4 + $0x190] sm:$0xf]
  %v3419 = vld [vmem:[%s4 + $0x194] sm:$0xf]
  %v3420 = vld [vmem:[%s4 + $0x198] sm:$0xf]
  %v3421 = vld [vmem:[%s4 + $0x19c] sm:$0xf]
  %v3422 = vld [vmem:[%s4 + $0x1a0] sm:$0xf]
  %v3423 = vld [vmem:[%s4 + $0x1a4] sm:$0xf]
  %v3424 = vld [vmem:[%s4 + $0x1a8] sm:$0xf]
  %v3425 = vld [vmem:[%s4 + $0x1ac] sm:$0xf]
  %v3426 = vld [vmem:[%s4 + $0x1b0] sm:$0xf]
  %v3427 = vld [vmem:[%s4 + $0x1b4] sm:$0xf]
  %v3428 = vld [vmem:[%s4 + $0x1b8] sm:$0xf]
  %v3429 = vld [vmem:[%s4 + $0x1bc] sm:$0xf]
  %v3430 = vld [vmem:[%s4 + $0x1c0] sm:$0xf]
  %v3431 = vld [vmem:[%s4 + $0x1c4] sm:$0xf]
  %v3432 = vld [vmem:[%s4 + $0x1c8] sm:$0xf]
  %v3433 = vld [vmem:[%s4 + $0x1cc] sm:$0xf]
  %v3434 = vld [vmem:[%s4 + $0x1d0] sm:$0xf]
  %v3435 = vld [vmem:[%s4 + $0x1d4] sm:$0xf]
  %v3436 = vld [vmem:[%s4 + $0x1d8] sm:$0xf]
  %v3437 = vld [vmem:[%s4 + $0x1dc] sm:$0xf]
  %v3438 = vld [vmem:[%s4 + $0x1e0] sm:$0xf]
  %v3439 = vld [vmem:[%s4 + $0x1e4] sm:$0xf]
  %v3440 = vld [vmem:[%s4 + $0x1e8] sm:$0xf]
  %v3441 = vld [vmem:[%s4 + $0x1ec] sm:$0xf]
  %v3442 = vld [vmem:[%s4 + $0x1f0] sm:$0xf]
  %v3443 = vld [vmem:[%s4 + $0x1f4] sm:$0xf]
  %v3444 = vld [vmem:[%s4 + $0x1f8] sm:$0xf]
  %v3445 = vld [vmem:[%s4 + $0x1fc] sm:$0xf]
  %v3446 = vunpack.c.l.b16 %v3305
  %v3447 = vunpack.c.h.b16 %v3305
  %v3448 = vunpack.c.l.b16 %v3308
  %v3449 = vunpack.c.h.b16 %v3308
  %v3450 = vunpack.c.l.b16 %v3312
  %v3451 = vunpack.c.h.b16 %v3312
  %v3452 = vunpack.c.l.b16 %v3315
  %v3453 = vunpack.c.h.b16 %v3315
  %v3454 = vunpack.c.l.b16 %v3319
  %v3455 = vunpack.c.h.b16 %v3319
  %v3456 = vunpack.c.l.b16 %v3322
  %v3457 = vunpack.c.h.b16 %v3322
  %v3458 = vunpack.c.l.b16 %v3326
  %v3459 = vunpack.c.h.b16 %v3326
  %v3460 = vunpack.c.l.b16 %v3329
  %v3461 = vunpack.c.h.b16 %v3329
  %v3462 = vunpack.c.l.b16 %v3333
  %v3463 = vunpack.c.h.b16 %v3333
  %v3464 = vunpack.c.l.b16 %v3336
  %v3465 = vunpack.c.h.b16 %v3336
  %v3466 = vunpack.c.l.b16 %v3340
  %v3467 = vunpack.c.h.b16 %v3340
  %v3468 = vunpack.c.l.b16 %v3343
  %v3469 = vunpack.c.h.b16 %v3343
  %v3470 = vunpack.c.l.b16 %v3347
  %v3471 = vunpack.c.h.b16 %v3347
  %v3472 = vunpack.c.l.b16 %v3350
  %v3473 = vunpack.c.h.b16 %v3350
  %v3474 = vunpack.c.l.b16 %v3354
  %v3475 = vunpack.c.h.b16 %v3354
  %v3476 = vunpack.c.l.b16 %v3357
  %v3477 = vunpack.c.h.b16 %v3357
  %v3478 = vunpack.c.l.b16 %v3361
  %v3479 = vunpack.c.h.b16 %v3361
  %v3480 = vunpack.c.l.b16 %v3364
  %v3481 = vunpack.c.h.b16 %v3364
  %v3482 = vunpack.c.l.b16 %v3368
  %v3483 = vunpack.c.h.b16 %v3368
  %v3484 = vunpack.c.l.b16 %v3371
  %v3485 = vunpack.c.h.b16 %v3371
  %v3486 = vunpack.c.l.b16 %v3375
  %v3487 = vunpack.c.h.b16 %v3375
  %v3488 = vunpack.c.l.b16 %v3378
  %v3489 = vunpack.c.h.b16 %v3378
  %v3490 = vunpack.c.l.b16 %v3382
  %v3491 = vunpack.c.h.b16 %v3382
  %v3492 = vunpack.c.l.b16 %v3385
  %v3493 = vunpack.c.h.b16 %v3385
  %v3494 = vunpack.c.l.b16 %v3389
  %v3495 = vunpack.c.h.b16 %v3389
  %v3496 = vunpack.c.l.b16 %v3392
  %v3497 = vunpack.c.h.b16 %v3392
  %v3498 = vunpack.c.l.b16 %v3396
  %v3499 = vunpack.c.h.b16 %v3396
  %v3500 = vunpack.c.l.b16 %v3399
  %v3501 = vunpack.c.h.b16 %v3399
  %v3502 = vunpack.c.l.b16 %v3403
  %v3503 = vunpack.c.h.b16 %v3403
  %v3504 = vunpack.c.l.b16 %v3406
  %v3505 = vunpack.c.h.b16 %v3406
  %v3506 = vunpack.c.l.b16 %v3410
  %v3507 = vunpack.c.h.b16 %v3410
  %v3508 = vunpack.c.l.b16 %v3413
  %v3509 = vunpack.c.h.b16 %v3413
  %v3510 = vpack.c.b16 %v3448, %v3446
  %v3511 = vpack.c.b16 %v3449, %v3447
  %v3512 = vpack.c.b16 %v3452, %v3450
  %v3513 = vpack.c.b16 %v3453, %v3451
  %v3514 = vpack.c.b16 %v3456, %v3454
  %v3515 = vpack.c.b16 %v3457, %v3455
  %v3516 = vpack.c.b16 %v3460, %v3458
  %v3517 = vpack.c.b16 %v3461, %v3459
  %v3518 = vpack.c.b16 %v3464, %v3462
  %v3519 = vpack.c.b16 %v3465, %v3463
  %v3520 = vpack.c.b16 %v3468, %v3466
  %v3521 = vpack.c.b16 %v3469, %v3467
  %v3522 = vpack.c.b16 %v3472, %v3470
  %v3523 = vpack.c.b16 %v3473, %v3471
  %v3524 = vpack.c.b16 %v3476, %v3474
  %v3525 = vpack.c.b16 %v3477, %v3475
  %v3526 = vpack.c.b16 %v3480, %v3478
  %v3527 = vpack.c.b16 %v3481, %v3479
  %v3528 = vpack.c.b16 %v3484, %v3482
  %v3529 = vpack.c.b16 %v3485, %v3483
  %v3530 = vpack.c.b16 %v3488, %v3486
  %v3531 = vpack.c.b16 %v3489, %v3487
  %v3532 = vpack.c.b16 %v3492, %v3490
  %v3533 = vpack.c.b16 %v3493, %v3491
  %v3534 = vpack.c.b16 %v3496, %v3494
  %v3535 = vpack.c.b16 %v3497, %v3495
  %v3536 = vpack.c.b16 %v3500, %v3498
  %v3537 = vpack.c.b16 %v3501, %v3499
  %v3538 = vpack.c.b16 %v3504, %v3502
  %v3539 = vpack.c.b16 %v3505, %v3503
  %v3540 = vpack.c.b16 %v3508, %v3506
  %v3541 = vpack.c.b16 %v3509, %v3507
  %v3606 = vunpack.c.l.b16 %v3414
  %v3607 = vunpack.c.l.b16 %v3415
  %v3608 = vunpack.c.l.b16 %v3416
  %v3609 = vunpack.c.l.b16 %v3417
  %v3610 = vunpack.c.l.b16 %v3418
  %v3611 = vunpack.c.l.b16 %v3419
  %v3612 = vunpack.c.l.b16 %v3420
  %v3613 = vunpack.c.l.b16 %v3421
  %v3614 = vunpack.c.l.b16 %v3422
  %v3615 = vunpack.c.l.b16 %v3423
  %v3616 = vunpack.c.l.b16 %v3424
  %v3617 = vunpack.c.l.b16 %v3425
  %v3618 = vunpack.c.l.b16 %v3426
  %v3619 = vunpack.c.l.b16 %v3427
  %v3620 = vunpack.c.l.b16 %v3428
  %v3621 = vunpack.c.l.b16 %v3429
  %v3622 = vunpack.c.l.b16 %v3430
  %v3623 = vunpack.c.l.b16 %v3431
  %v3624 = vunpack.c.l.b16 %v3432
  %v3625 = vunpack.c.l.b16 %v3433
  %v3626 = vunpack.c.l.b16 %v3434
  %v3627 = vunpack.c.l.b16 %v3435
  %v3628 = vunpack.c.l.b16 %v3436
  %v3629 = vunpack.c.l.b16 %v3437
  %v3630 = vunpack.c.l.b16 %v3438
  %v3631 = vunpack.c.l.b16 %v3439
  %v3632 = vunpack.c.l.b16 %v3440
  %v3633 = vunpack.c.l.b16 %v3441
  %v3634 = vunpack.c.l.b16 %v3442
  %v3635 = vunpack.c.l.b16 %v3443
  %v3636 = vunpack.c.l.b16 %v3444
  %v3637 = vunpack.c.l.b16 %v3445
  %v3638 = vpack.c.b16 %v3607, %v3606
  %v3639 = vpack.c.b16 %v3609, %v3608
  %v3640 = vpack.c.b16 %v3611, %v3610
  %v3641 = vpack.c.b16 %v3613, %v3612
  %v3642 = vpack.c.b16 %v3615, %v3614
  %v3643 = vpack.c.b16 %v3617, %v3616
  %v3644 = vpack.c.b16 %v3619, %v3618
  %v3645 = vpack.c.b16 %v3621, %v3620
  %v3646 = vpack.c.b16 %v3623, %v3622
  %v3647 = vpack.c.b16 %v3625, %v3624
  %v3648 = vpack.c.b16 %v3627, %v3626
  %v3649 = vpack.c.b16 %v3629, %v3628
  %v3650 = vpack.c.b16 %v3631, %v3630
  %v3651 = vpack.c.b16 %v3633, %v3632
  %v3652 = vpack.c.b16 %v3635, %v3634
  %v3653 = vpack.c.b16 %v3637, %v3636
  %3670 = vmatprep.subr.bf16.mxu0 0
  %3671 = vmatpush1.bf16.msra.mxu0 %v3645
  %3672 = vmatprep.subr.bf16.mxu0 0
  %3673 = vmatpush1.bf16.msra.mxu0 %v3644
  %3674 = vmatprep.subr.bf16.mxu0 0
  %3675 = vmatpush1.bf16.msra.mxu0 %v3643
  %3676 = vmatprep.subr.bf16.mxu0 0
  %3677 = vmatpush1.bf16.msra.mxu0 %v3642
  %3678 = vmatprep.subr.bf16.mxu0 0
  %3679 = vmatpush1.bf16.msra.mxu0 %v3641
  %3680 = vmatprep.subr.bf16.mxu0 0
  %3681 = vmatpush1.bf16.msra.mxu0 %v3640
  %3682 = vmatprep.subr.bf16.mxu0 0
  %3683 = vmatpush1.bf16.msra.mxu0 %v3639
  %3684 = vmatprep.subr.bf16.mxu0 0
  %3685 = vmatpush1.bf16.msra.mxu0 %v3638
  %3686 = vmatprep.subr.bf16.mxu0 0
  %3687 = vmatpush2.bf16.msra.mxu0 %v3653
  %3688 = vmatprep.subr.bf16.mxu0 0
  %3689 = vmatpush2.bf16.msra.mxu0 %v3652
  %3690 = vmatprep.subr.bf16.mxu0 0
  %3691 = vmatpush2.bf16.msra.mxu0 %v3651
  %3692 = vmatprep.subr.bf16.mxu0 0
  %3693 = vmatpush2.bf16.msra.mxu0 %v3650
  %3694 = vmatprep.subr.bf16.mxu0 0
  %3695 = vmatpush2.bf16.msra.mxu0 %v3649
  %3696 = vmatprep.subr.bf16.mxu0 0
  %3697 = vmatpush2.bf16.msra.mxu0 %v3648
  %3698 = vmatprep.subr.bf16.mxu0 0
  %3699 = vmatpush2.bf16.msra.mxu0 %v3647
  %3700 = vmatprep.subr.bf16.mxu0 0
  %3701 = vmatpush2.bf16.msra.mxu0 %v3646
  %3702 = vmatprep.mubr.bf16.mxu0 %v3511
  %3703 = vmatmul.mubr.bf16.gmra.mxu0 %v3510
  %v3704 = vpop.f32.mrf.mxu0
  %v3705 = vadd.f32 0.0, %v3704
  %v3706 = vpop.f32.mrf.mxu0
  %v3707 = vpop.f32.mrf.mxu0
  %v3708 = vadd.f32 0.0, %v3707
  %v3709 = vpop.f32.mrf.mxu0
  %3710 = vmatprep.mubr.bf16.mxu0 %v3513
  %3711 = vmatmul.mubr.bf16.gmra.mxu0 %v3512
  %v3712 = vpop.f32.mrf.mxu0
  %v3713 = vadd.f32 0.0, %v3712
  %v3714 = vpop.f32.mrf.mxu0
  %v3715 = vpop.f32.mrf.mxu0
  %v3716 = vadd.f32 0.0, %v3715
  %v3717 = vpop.f32.mrf.mxu0
  %3718 = vmatprep.mubr.bf16.mxu0 %v3515
  %3719 = vmatmul.mubr.bf16.gmra.mxu0 %v3514
  %v3720 = vpop.f32.mrf.mxu0
  %v3721 = vadd.f32 0.0, %v3720
  %v3722 = vpop.f32.mrf.mxu0
  %v3723 = vpop.f32.mrf.mxu0
  %v3724 = vadd.f32 0.0, %v3723
  %v3725 = vpop.f32.mrf.mxu0
  %3726 = vmatprep.mubr.bf16.mxu0 %v3517
  %3727 = vmatmul.mubr.bf16.gmra.mxu0 %v3516
  %v3728 = vpop.f32.mrf.mxu0
  %v3729 = vadd.f32 0.0, %v3728
  %v3730 = vpop.f32.mrf.mxu0
  %v3731 = vpop.f32.mrf.mxu0
  %v3732 = vadd.f32 0.0, %v3731
  %v3733 = vpop.f32.mrf.mxu0
  %3734 = vmatprep.mubr.bf16.mxu0 %v3519
  %3735 = vmatmul.mubr.bf16.gmra.mxu0 %v3518
  %v3736 = vpop.f32.mrf.mxu0
  %v3737 = vadd.f32 0.0, %v3736
  %v3738 = vpop.f32.mrf.mxu0
  %v3739 = vpop.f32.mrf.mxu0
  %v3740 = vadd.f32 0.0, %v3739
  %v3741 = vpop.f32.mrf.mxu0
  %3742 = vmatprep.mubr.bf16.mxu0 %v3521
  %3743 = vmatmul.mubr.bf16.gmra.mxu0 %v3520
  %v3744 = vpop.f32.mrf.mxu0
  %v3745 = vadd.f32 0.0, %v3744
  %v3746 = vpop.f32.mrf.mxu0
  %v3747 = vpop.f32.mrf.mxu0
  %v3748 = vadd.f32 0.0, %v3747
  %v3749 = vpop.f32.mrf.mxu0
  %3750 = vmatprep.mubr.bf16.mxu0 %v3523
  %3751 = vmatmul.mubr.bf16.gmra.mxu0 %v3522
  %v3752 = vpop.f32.mrf.mxu0
  %v3753 = vadd.f32 0.0, %v3752
  %v3754 = vpop.f32.mrf.mxu0
  %v3755 = vpop.f32.mrf.mxu0
  %v3756 = vadd.f32 0.0, %v3755
  %v3757 = vpop.f32.mrf.mxu0
  %3758 = vmatprep.mubr.bf16.mxu0 %v3525
  %3759 = vmatmul.mubr.bf16.gmra.mxu0 %v3524
  %v3760 = vpop.f32.mrf.mxu0
  %v3761 = vadd.f32 0.0, %v3760
  %v3762 = vpop.f32.mrf.mxu0
  %v3763 = vpop.f32.mrf.mxu0
  %v3764 = vadd.f32 0.0, %v3763
  %v3765 = vpop.f32.mrf.mxu0
  %3766 = vmatprep.mubr.bf16.mxu0 %v3527
  %3767 = vmatmul.mubr.bf16.gmra.mxu0 %v3526
  %v3768 = vpop.f32.mrf.mxu0
  %v3769 = vadd.f32 0.0, %v3768
  %v3770 = vpop.f32.mrf.mxu0
  %v3771 = vpop.f32.mrf.mxu0
  %v3772 = vadd.f32 0.0, %v3771
  %v3773 = vpop.f32.mrf.mxu0
  %3774 = vmatprep.mubr.bf16.mxu0 %v3529
  %3775 = vmatmul.mubr.bf16.gmra.mxu0 %v3528
  %v3776 = vpop.f32.mrf.mxu0
  %v3777 = vadd.f32 0.0, %v3776
  %v3778 = vpop.f32.mrf.mxu0
  %v3779 = vpop.f32.mrf.mxu0
  %v3780 = vadd.f32 0.0, %v3779
  %v3781 = vpop.f32.mrf.mxu0
  %3782 = vmatprep.mubr.bf16.mxu0 %v3531
  %3783 = vmatmul.mubr.bf16.gmra.mxu0 %v3530
  %v3784 = vpop.f32.mrf.mxu0
  %v3785 = vadd.f32 0.0, %v3784
  %v3786 = vpop.f32.mrf.mxu0
  %v3787 = vpop.f32.mrf.mxu0
  %v3788 = vadd.f32 0.0, %v3787
  %v3789 = vpop.f32.mrf.mxu0
  %3790 = vmatprep.mubr.bf16.mxu0 %v3533
  %3791 = vmatmul.mubr.bf16.gmra.mxu0 %v3532
  %v3792 = vpop.f32.mrf.mxu0
  %v3793 = vadd.f32 0.0, %v3792
  %v3794 = vpop.f32.mrf.mxu0
  %v3795 = vpop.f32.mrf.mxu0
  %v3796 = vadd.f32 0.0, %v3795
  %v3797 = vpop.f32.mrf.mxu0
  %3798 = vmatprep.mubr.bf16.mxu0 %v3535
  %3799 = vmatmul.mubr.bf16.gmra.mxu0 %v3534
  %v3800 = vpop.f32.mrf.mxu0
  %v3801 = vadd.f32 0.0, %v3800
  %v3802 = vpop.f32.mrf.mxu0
  %v3803 = vpop.f32.mrf.mxu0
  %v3804 = vadd.f32 0.0, %v3803
  %v3805 = vpop.f32.mrf.mxu0
  %3806 = vmatprep.mubr.bf16.mxu0 %v3537
  %3807 = vmatmul.mubr.bf16.gmra.mxu0 %v3536
  %v3808 = vpop.f32.mrf.mxu0
  %v3809 = vadd.f32 0.0, %v3808
  %v3810 = vpop.f32.mrf.mxu0
  %v3811 = vpop.f32.mrf.mxu0
  %v3812 = vadd.f32 0.0, %v3811
  %v3813 = vpop.f32.mrf.mxu0
  %3814 = vmatprep.mubr.bf16.mxu0 %v3539
  %3815 = vmatmul.mubr.bf16.gmra.mxu0 %v3538
  %v3816 = vpop.f32.mrf.mxu0
  %v3817 = vadd.f32 0.0, %v3816
  %v3818 = vpop.f32.mrf.mxu0
  %v3819 = vpop.f32.mrf.mxu0
  %v3820 = vadd.f32 0.0, %v3819
  %v3821 = vpop.f32.mrf.mxu0
  %3822 = vmatprep.mubr.bf16.mxu0 %v3541
  %3823 = vmatmul.mubr.bf16.gmra.mxu0 %v3540
  %v3824 = vpop.f32.mrf.mxu0
  %v3825 = vadd.f32 0.0, %v3824
  %v3826 = vpop.f32.mrf.mxu0
  %v3827 = vpop.f32.mrf.mxu0
  %v3828 = vadd.f32 0.0, %v3827
  %v3829 = vpop.f32.mrf.mxu0
  %3830 = vdwg.mxu0
  %v3831 = vadd.f32 %v3219, %v3705
  %v3832 = vadd.f32 %v3220, %v3708
  %v3833 = vadd.f32 %v3221, %v3713
  %v3834 = vadd.f32 %v3222, %v3716
  %v3835 = vadd.f32 %v3223, %v3721
  %v3836 = vadd.f32 %v3224, %v3724
  %v3837 = vadd.f32 %v3225, %v3729
  %v3838 = vadd.f32 %v3226, %v3732
  %v3839 = vadd.f32 %v3227, %v3737
  %v3840 = vadd.f32 %v3228, %v3740
  %v3841 = vadd.f32 %v3229, %v3745
  %v3842 = vadd.f32 %v3230, %v3748
  %v3843 = vadd.f32 %v3231, %v3753
  %v3844 = vadd.f32 %v3232, %v3756
  %v3845 = vadd.f32 %v3233, %v3761
  %v3846 = vadd.f32 %v3234, %v3764
  %v3847 = vadd.f32 %v3235, %v3769
  %v3848 = vadd.f32 %v3236, %v3772
  %v3849 = vadd.f32 %v3237, %v3777
  %v3850 = vadd.f32 %v3238, %v3780
  %v3851 = vadd.f32 %v3239, %v3785
  %v3852 = vadd.f32 %v3240, %v3788
  %v3853 = vadd.f32 %v3241, %v3793
  %v3854 = vadd.f32 %v3242, %v3796
  %v3855 = vadd.f32 %v3243, %v3801
  %v3856 = vadd.f32 %v3244, %v3804
  %v3857 = vadd.f32 %v3245, %v3809
  %v3858 = vadd.f32 %v3246, %v3812
  %v3859 = vadd.f32 %v3247, %v3817
  %v3860 = vadd.f32 %v3248, %v3820
  %v3861 = vadd.f32 %v3249, %v3825
  %v3862 = vadd.f32 %v3250, %v3828
  %v3863 = vld [vmem:[#allocation2 + $0x10] sm:$0x77]
  %v3864 = vld [vmem:[#allocation2 + $0x30] sm:$0x77]
  %v3865 = vld [vmem:[#allocation2 + $0x50] sm:$0x77]
  %v3866 = vld [vmem:[#allocation2 + $0x70] sm:$0x77]
  %v3867 = vld [vmem:[#allocation2 + $0x90] sm:$0x77]
  %v3868 = vld [vmem:[#allocation2 + $0xb0] sm:$0x77]
  %v3869 = vld [vmem:[#allocation2 + $0xd0] sm:$0x77]
  %v3870 = vld [vmem:[#allocation2 + $0xf0] sm:$0x77]
  %v3871 = vld [vmem:[#allocation2 + $0x110] sm:$0x77]
  %v3872 = vld [vmem:[#allocation2 + $0x130] sm:$0x77]
  %v3873 = vld [vmem:[#allocation2 + $0x150] sm:$0x77]
  %v3874 = vld [vmem:[#allocation2 + $0x170] sm:$0x77]
  %v3875 = vld [vmem:[#allocation2 + $0x190] sm:$0x77]
  %v3876 = vld [vmem:[#allocation2 + $0x1b0] sm:$0x77]
  %v3877 = vld [vmem:[#allocation2 + $0x1d0] sm:$0x77]
  %v3878 = vld [vmem:[#allocation2 + $0x1f0] sm:$0x77]
  %vm3879 = vsmask.f32 1280
  %vm3880 = vsmask.f32 5392
  %vm3881 = vmor %vm3879, %vm3880
  %v3883 = vshrl.u32 %v3251, 16
  %v3885 = vrot.slane %v3883, 6
  %v3886 = vshll.u32 %v3251, 16
  %v3888 = vrot.slane %v3886, 7
  %v3889 = vor.u32 %v3885, %v3888
  %v3890 = vrot.slane %v3889, 4
  %v3891 = vrot.slane %v1032, 6
  %v3892 = vrot.slane %v1028, 7
  %v3893 = vor.u32 %v3891, %v3892
  %v3894 = vsel %vm3881, %v3890, %v3893
  %v3895 = vrot.slane %v3893, 4
  %v3897 = vshrl.u32 %v3863, 16
  %v3899 = vrot.slane %v3897, 6
  %v3900 = vshll.u32 %v3863, 16
  %v3902 = vrot.slane %v3900, 7
  %v3903 = vor.u32 %v3899, %v3902
  %v3904 = vsel %vm3881, %v3895, %v3903
  %v3906 = vshrl.u32 %v3252, 16
  %v3908 = vrot.slane %v3906, 6
  %v3909 = vshll.u32 %v3252, 16
  %v3911 = vrot.slane %v3909, 7
  %v3912 = vor.u32 %v3908, %v3911
  %v3913 = vrot.slane %v3912, 4
  %v3914 = vrot.slane %v1056, 6
  %v3915 = vrot.slane %v1052, 7
  %v3916 = vor.u32 %v3914, %v3915
  %v3917 = vsel %vm3881, %v3913, %v3916
  %v3918 = vrot.slane %v3916, 4
  %v3920 = vshrl.u32 %v3864, 16
  %v3922 = vrot.slane %v3920, 6
  %v3923 = vshll.u32 %v3864, 16
  %v3925 = vrot.slane %v3923, 7
  %v3926 = vor.u32 %v3922, %v3925
  %v3927 = vsel %vm3881, %v3918, %v3926
  %v3929 = vshrl.u32 %v3253, 16
  %v3931 = vrot.slane %v3929, 6
  %v3932 = vshll.u32 %v3253, 16
  %v3934 = vrot.slane %v3932, 7
  %v3935 = vor.u32 %v3931, %v3934
  %v3936 = vrot.slane %v3935, 4
  %v3937 = vrot.slane %v1080, 6
  %v3938 = vrot.slane %v1076, 7
  %v3939 = vor.u32 %v3937, %v3938
  %v3940 = vsel %vm3881, %v3936, %v3939
  %v3941 = vrot.slane %v3939, 4
  %v3943 = vshrl.u32 %v3865, 16
  %v3945 = vrot.slane %v3943, 6
  %v3946 = vshll.u32 %v3865, 16
  %v3948 = vrot.slane %v3946, 7
  %v3949 = vor.u32 %v3945, %v3948
  %v3950 = vsel %vm3881, %v3941, %v3949
  %v3952 = vshrl.u32 %v3254, 16
  %v3954 = vrot.slane %v3952, 6
  %v3955 = vshll.u32 %v3254, 16
  %v3957 = vrot.slane %v3955, 7
  %v3958 = vor.u32 %v3954, %v3957
  %v3959 = vrot.slane %v3958, 4
  %v3960 = vrot.slane %v1104, 6
  %v3961 = vrot.slane %v1100, 7
  %v3962 = vor.u32 %v3960, %v3961
  %v3963 = vsel %vm3881, %v3959, %v3962
  %v3964 = vrot.slane %v3962, 4
  %v3966 = vshrl.u32 %v3866, 16
  %v3968 = vrot.slane %v3966, 6
  %v3969 = vshll.u32 %v3866, 16
  %v3971 = vrot.slane %v3969, 7
  %v3972 = vor.u32 %v3968, %v3971
  %v3973 = vsel %vm3881, %v3964, %v3972
  %v3975 = vshrl.u32 %v3255, 16
  %v3977 = vrot.slane %v3975, 6
  %v3978 = vshll.u32 %v3255, 16
  %v3980 = vrot.slane %v3978, 7
  %v3981 = vor.u32 %v3977, %v3980
  %v3982 = vrot.slane %v3981, 4
  %v3983 = vrot.slane %v1128, 6
  %v3984 = vrot.slane %v1124, 7
  %v3985 = vor.u32 %v3983, %v3984
  %v3986 = vsel %vm3881, %v3982, %v3985
  %v3987 = vrot.slane %v3985, 4
  %v3989 = vshrl.u32 %v3867, 16
  %v3991 = vrot.slane %v3989, 6
  %v3992 = vshll.u32 %v3867, 16
  %v3994 = vrot.slane %v3992, 7
  %v3995 = vor.u32 %v3991, %v3994
  %v3996 = vsel %vm3881, %v3987, %v3995
  %v3998 = vshrl.u32 %v3256, 16
  %v4000 = vrot.slane %v3998, 6
  %v4001 = vshll.u32 %v3256, 16
  %v4003 = vrot.slane %v4001, 7
  %v4004 = vor.u32 %v4000, %v4003
  %v4005 = vrot.slane %v4004, 4
  %v4006 = vrot.slane %v1152, 6
  %v4007 = vrot.slane %v1148, 7
  %v4008 = vor.u32 %v4006, %v4007
  %v4009 = vsel %vm3881, %v4005, %v4008
  %v4010 = vrot.slane %v4008, 4
  %v4012 = vshrl.u32 %v3868, 16
  %v4014 = vrot.slane %v4012, 6
  %v4015 = vshll.u32 %v3868, 16
  %v4017 = vrot.slane %v4015, 7
  %v4018 = vor.u32 %v4014, %v4017
  %v4019 = vsel %vm3881, %v4010, %v4018
  %v4021 = vshrl.u32 %v3257, 16
  %v4023 = vrot.slane %v4021, 6
  %v4024 = vshll.u32 %v3257, 16
  %v4026 = vrot.slane %v4024, 7
  %v4027 = vor.u32 %v4023, %v4026
  %v4028 = vrot.slane %v4027, 4
  %v4029 = vrot.slane %v1176, 6
  %v4030 = vrot.slane %v1172, 7
  %v4031 = vor.u32 %v4029, %v4030
  %v4032 = vsel %vm3881, %v4028, %v4031
  %v4033 = vrot.slane %v4031, 4
  %v4035 = vshrl.u32 %v3869, 16
  %v4037 = vrot.slane %v4035, 6
  %v4038 = vshll.u32 %v3869, 16
  %v4040 = vrot.slane %v4038, 7
  %v4041 = vor.u32 %v4037, %v4040
  %v4042 = vsel %vm3881, %v4033, %v4041
  %v4044 = vshrl.u32 %v3258, 16
  %v4046 = vrot.slane %v4044, 6
  %v4047 = vshll.u32 %v3258, 16
  %v4049 = vrot.slane %v4047, 7
  %v4050 = vor.u32 %v4046, %v4049
  %v4051 = vrot.slane %v4050, 4
  %v4052 = vrot.slane %v1200, 6
  %v4053 = vrot.slane %v1196, 7
  %v4054 = vor.u32 %v4052, %v4053
  %v4055 = vsel %vm3881, %v4051, %v4054
  %v4056 = vrot.slane %v4054, 4
  %v4058 = vshrl.u32 %v3870, 16
  %v4060 = vrot.slane %v4058, 6
  %v4061 = vshll.u32 %v3870, 16
  %v4063 = vrot.slane %v4061, 7
  %v4064 = vor.u32 %v4060, %v4063
  %v4065 = vsel %vm3881, %v4056, %v4064
  %v4067 = vshrl.u32 %v3259, 16
  %v4069 = vrot.slane %v4067, 6
  %v4070 = vshll.u32 %v3259, 16
  %v4072 = vrot.slane %v4070, 7
  %v4073 = vor.u32 %v4069, %v4072
  %v4074 = vrot.slane %v4073, 4
  %v4075 = vrot.slane %v1224, 6
  %v4076 = vrot.slane %v1220, 7
  %v4077 = vor.u32 %v4075, %v4076
  %v4078 = vsel %vm3881, %v4074, %v4077
  %v4079 = vrot.slane %v4077, 4
  %v4081 = vshrl.u32 %v3871, 16
  %v4083 = vrot.slane %v4081, 6
  %v4084 = vshll.u32 %v3871, 16
  %v4086 = vrot.slane %v4084, 7
  %v4087 = vor.u32 %v4083, %v4086
  %v4088 = vsel %vm3881, %v4079, %v4087
  %v4090 = vshrl.u32 %v3260, 16
  %v4092 = vrot.slane %v4090, 6
  %v4093 = vshll.u32 %v3260, 16
  %v4095 = vrot.slane %v4093, 7
  %v4096 = vor.u32 %v4092, %v4095
  %v4097 = vrot.slane %v4096, 4
  %v4098 = vrot.slane %v1248, 6
  %v4099 = vrot.slane %v1244, 7
  %v4100 = vor.u32 %v4098, %v4099
  %v4101 = vsel %vm3881, %v4097, %v4100
  %v4102 = vrot.slane %v4100, 4
  %v4104 = vshrl.u32 %v3872, 16
  %v4106 = vrot.slane %v4104, 6
  %v4107 = vshll.u32 %v3872, 16
  %v4109 = vrot.slane %v4107, 7
  %v4110 = vor.u32 %v4106, %v4109
  %v4111 = vsel %vm3881, %v4102, %v4110
  %v4113 = vshrl.u32 %v3261, 16
  %v4115 = vrot.slane %v4113, 6
  %v4116 = vshll.u32 %v3261, 16
  %v4118 = vrot.slane %v4116, 7
  %v4119 = vor.u32 %v4115, %v4118
  %v4120 = vrot.slane %v4119, 4
  %v4121 = vrot.slane %v1272, 6
  %v4122 = vrot.slane %v1268, 7
  %v4123 = vor.u32 %v4121, %v4122
  %v4124 = vsel %vm3881, %v4120, %v4123
  %v4125 = vrot.slane %v4123, 4
  %v4127 = vshrl.u32 %v3873, 16
  %v4129 = vrot.slane %v4127, 6
  %v4130 = vshll.u32 %v3873, 16
  %v4132 = vrot.slane %v4130, 7
  %v4133 = vor.u32 %v4129, %v4132
  %v4134 = vsel %vm3881, %v4125, %v4133
  %v4136 = vshrl.u32 %v3262, 16
  %v4138 = vrot.slane %v4136, 6
  %v4139 = vshll.u32 %v3262, 16
  %v4141 = vrot.slane %v4139, 7
  %v4142 = vor.u32 %v4138, %v4141
  %v4143 = vrot.slane %v4142, 4
  %v4144 = vrot.slane %v1296, 6
  %v4145 = vrot.slane %v1292, 7
  %v4146 = vor.u32 %v4144, %v4145
  %v4147 = vsel %vm3881, %v4143, %v4146
  %v4148 = vrot.slane %v4146, 4
  %v4150 = vshrl.u32 %v3874, 16
  %v4152 = vrot.slane %v4150, 6
  %v4153 = vshll.u32 %v3874, 16
  %v4155 = vrot.slane %v4153, 7
  %v4156 = vor.u32 %v4152, %v4155
  %v4157 = vsel %vm3881, %v4148, %v4156
  %v4159 = vshrl.u32 %v3263, 16
  %v4161 = vrot.slane %v4159, 6
  %v4162 = vshll.u32 %v3263, 16
  %v4164 = vrot.slane %v4162, 7
  %v4165 = vor.u32 %v4161, %v4164
  %v4166 = vrot.slane %v4165, 4
  %v4167 = vrot.slane %v1320, 6
  %v4168 = vrot.slane %v1316, 7
  %v4169 = vor.u32 %v4167, %v4168
  %v4170 = vsel %vm3881, %v4166, %v4169
  %v4171 = vrot.slane %v4169, 4
  %v4173 = vshrl.u32 %v3875, 16
  %v4175 = vrot.slane %v4173, 6
  %v4176 = vshll.u32 %v3875, 16
  %v4178 = vrot.slane %v4176, 7
  %v4179 = vor.u32 %v4175, %v4178
  %v4180 = vsel %vm3881, %v4171, %v4179
  %v4182 = vshrl.u32 %v3264, 16
  %v4184 = vrot.slane %v4182, 6
  %v4185 = vshll.u32 %v3264, 16
  %v4187 = vrot.slane %v4185, 7
  %v4188 = vor.u32 %v4184, %v4187
  %v4189 = vrot.slane %v4188, 4
  %v4190 = vrot.slane %v1344, 6
  %v4191 = vrot.slane %v1340, 7
  %v4192 = vor.u32 %v4190, %v4191
  %v4193 = vsel %vm3881, %v4189, %v4192
  %v4194 = vrot.slane %v4192, 4
  %v4196 = vshrl.u32 %v3876, 16
  %v4198 = vrot.slane %v4196, 6
  %v4199 = vshll.u32 %v3876, 16
  %v4201 = vrot.slane %v4199, 7
  %v4202 = vor.u32 %v4198, %v4201
  %v4203 = vsel %vm3881, %v4194, %v4202
  %v4205 = vshrl.u32 %v3265, 16
  %v4207 = vrot.slane %v4205, 6
  %v4208 = vshll.u32 %v3265, 16
  %v4210 = vrot.slane %v4208, 7
  %v4211 = vor.u32 %v4207, %v4210
  %v4212 = vrot.slane %v4211, 4
  %v4213 = vrot.slane %v1368, 6
  %v4214 = vrot.slane %v1364, 7
  %v4215 = vor.u32 %v4213, %v4214
  %v4216 = vsel %vm3881, %v4212, %v4215
  %v4217 = vrot.slane %v4215, 4
  %v4219 = vshrl.u32 %v3877, 16
  %v4221 = vrot.slane %v4219, 6
  %v4222 = vshll.u32 %v3877, 16
  %v4224 = vrot.slane %v4222, 7
  %v4225 = vor.u32 %v4221, %v4224
  %v4226 = vsel %vm3881, %v4217, %v4225
  %v4228 = vshrl.u32 %v3266, 16
  %v4230 = vrot.slane %v4228, 6
  %v4231 = vshll.u32 %v3266, 16
  %v4233 = vrot.slane %v4231, 7
  %v4234 = vor.u32 %v4230, %v4233
  %v4235 = vrot.slane %v4234, 4
  %v4236 = vrot.slane %v1392, 6
  %v4237 = vrot.slane %v1388, 7
  %v4238 = vor.u32 %v4236, %v4237
  %v4239 = vsel %vm3881, %v4235, %v4238
  %v4240 = vrot.slane %v4238, 4
  %v4242 = vshrl.u32 %v3878, 16
  %v4244 = vrot.slane %v4242, 6
  %v4245 = vshll.u32 %v3878, 16
  %v4247 = vrot.slane %v4245, 7
  %v4248 = vor.u32 %v4244, %v4247
  %v4249 = vsel %vm3881, %v4240, %v4248
  %v4250 = vld [vmem:[%s4 + $0x200] sm:$0xf]
  %v4251 = vld [vmem:[%s4 + $0x204] sm:$0xf]
  %v4252 = vld [vmem:[%s4 + $0x208] sm:$0xf]
  %v4253 = vld [vmem:[%s4 + $0x20c] sm:$0xf]
  %v4254 = vld [vmem:[%s4 + $0x210] sm:$0xf]
  %v4255 = vld [vmem:[%s4 + $0x214] sm:$0xf]
  %v4256 = vld [vmem:[%s4 + $0x218] sm:$0xf]
  %v4257 = vld [vmem:[%s4 + $0x21c] sm:$0xf]
  %v4258 = vld [vmem:[%s4 + $0x220] sm:$0xf]
  %v4259 = vld [vmem:[%s4 + $0x224] sm:$0xf]
  %v4260 = vld [vmem:[%s4 + $0x228] sm:$0xf]
  %v4261 = vld [vmem:[%s4 + $0x22c] sm:$0xf]
  %v4262 = vld [vmem:[%s4 + $0x230] sm:$0xf]
  %v4263 = vld [vmem:[%s4 + $0x234] sm:$0xf]
  %v4264 = vld [vmem:[%s4 + $0x238] sm:$0xf]
  %v4265 = vld [vmem:[%s4 + $0x23c] sm:$0xf]
  %v4266 = vld [vmem:[%s4 + $0x240] sm:$0xf]
  %v4267 = vld [vmem:[%s4 + $0x244] sm:$0xf]
  %v4268 = vld [vmem:[%s4 + $0x248] sm:$0xf]
  %v4269 = vld [vmem:[%s4 + $0x24c] sm:$0xf]
  %v4270 = vld [vmem:[%s4 + $0x250] sm:$0xf]
  %v4271 = vld [vmem:[%s4 + $0x254] sm:$0xf]
  %v4272 = vld [vmem:[%s4 + $0x258] sm:$0xf]
  %v4273 = vld [vmem:[%s4 + $0x25c] sm:$0xf]
  %v4274 = vld [vmem:[%s4 + $0x260] sm:$0xf]
  %v4275 = vld [vmem:[%s4 + $0x264] sm:$0xf]
  %v4276 = vld [vmem:[%s4 + $0x268] sm:$0xf]
  %v4277 = vld [vmem:[%s4 + $0x26c] sm:$0xf]
  %v4278 = vld [vmem:[%s4 + $0x270] sm:$0xf]
  %v4279 = vld [vmem:[%s4 + $0x274] sm:$0xf]
  %v4280 = vld [vmem:[%s4 + $0x278] sm:$0xf]
  %v4281 = vld [vmem:[%s4 + $0x27c] sm:$0xf]
  %v4282 = vunpack.c.l.b16 %v3894
  %v4283 = vunpack.c.h.b16 %v3894
  %v4284 = vunpack.c.l.b16 %v3904
  %v4285 = vunpack.c.h.b16 %v3904
  %v4286 = vunpack.c.l.b16 %v3917
  %v4287 = vunpack.c.h.b16 %v3917
  %v4288 = vunpack.c.l.b16 %v3927
  %v4289 = vunpack.c.h.b16 %v3927
  %v4290 = vunpack.c.l.b16 %v3940
  %v4291 = vunpack.c.h.b16 %v3940
  %v4292 = vunpack.c.l.b16 %v3950
  %v4293 = vunpack.c.h.b16 %v3950
  %v4294 = vunpack.c.l.b16 %v3963
  %v4295 = vunpack.c.h.b16 %v3963
  %v4296 = vunpack.c.l.b16 %v3973
  %v4297 = vunpack.c.h.b16 %v3973
  %v4298 = vunpack.c.l.b16 %v3986
  %v4299 = vunpack.c.h.b16 %v3986
  %v4300 = vunpack.c.l.b16 %v3996
  %v4301 = vunpack.c.h.b16 %v3996
  %v4302 = vunpack.c.l.b16 %v4009
  %v4303 = vunpack.c.h.b16 %v4009
  %v4304 = vunpack.c.l.b16 %v4019
  %v4305 = vunpack.c.h.b16 %v4019
  %v4306 = vunpack.c.l.b16 %v4032
  %v4307 = vunpack.c.h.b16 %v4032
  %v4308 = vunpack.c.l.b16 %v4042
  %v4309 = vunpack.c.h.b16 %v4042
  %v4310 = vunpack.c.l.b16 %v4055
  %v4311 = vunpack.c.h.b16 %v4055
  %v4312 = vunpack.c.l.b16 %v4065
  %v4313 = vunpack.c.h.b16 %v4065
  %v4314 = vunpack.c.l.b16 %v4078
  %v4315 = vunpack.c.h.b16 %v4078
  %v4316 = vunpack.c.l.b16 %v4088
  %v4317 = vunpack.c.h.b16 %v4088
  %v4318 = vunpack.c.l.b16 %v4101
  %v4319 = vunpack.c.h.b16 %v4101
  %v4320 = vunpack.c.l.b16 %v4111
  %v4321 = vunpack.c.h.b16 %v4111
  %v4322 = vunpack.c.l.b16 %v4124
  %v4323 = vunpack.c.h.b16 %v4124
  %v4324 = vunpack.c.l.b16 %v4134
  %v4325 = vunpack.c.h.b16 %v4134
  %v4326 = vunpack.c.l.b16 %v4147
  %v4327 = vunpack.c.h.b16 %v4147
  %v4328 = vunpack.c.l.b16 %v4157
  %v4329 = vunpack.c.h.b16 %v4157
  %v4330 = vunpack.c.l.b16 %v4170
  %v4331 = vunpack.c.h.b16 %v4170
  %v4332 = vunpack.c.l.b16 %v4180
  %v4333 = vunpack.c.h.b16 %v4180
  %v4334 = vunpack.c.l.b16 %v4193
  %v4335 = vunpack.c.h.b16 %v4193
  %v4336 = vunpack.c.l.b16 %v4203
  %v4337 = vunpack.c.h.b16 %v4203
  %v4338 = vunpack.c.l.b16 %v4216
  %v4339 = vunpack.c.h.b16 %v4216
  %v4340 = vunpack.c.l.b16 %v4226
  %v4341 = vunpack.c.h.b16 %v4226
  %v4342 = vunpack.c.l.b16 %v4239
  %v4343 = vunpack.c.h.b16 %v4239
  %v4344 = vunpack.c.l.b16 %v4249
  %v4345 = vunpack.c.h.b16 %v4249
  %v4346 = vpack.c.b16 %v4284, %v4282
  %v4347 = vpack.c.b16 %v4285, %v4283
  %v4348 = vpack.c.b16 %v4288, %v4286
  %v4349 = vpack.c.b16 %v4289, %v4287
  %v4350 = vpack.c.b16 %v4292, %v4290
  %v4351 = vpack.c.b16 %v4293, %v4291
  %v4352 = vpack.c.b16 %v4296, %v4294
  %v4353 = vpack.c.b16 %v4297, %v4295
  %v4354 = vpack.c.b16 %v4300, %v4298
  %v4355 = vpack.c.b16 %v4301, %v4299
  %v4356 = vpack.c.b16 %v4304, %v4302
  %v4357 = vpack.c.b16 %v4305, %v4303
  %v4358 = vpack.c.b16 %v4308, %v4306
  %v4359 = vpack.c.b16 %v4309, %v4307
  %v4360 = vpack.c.b16 %v4312, %v4310
  %v4361 = vpack.c.b16 %v4313, %v4311
  %v4362 = vpack.c.b16 %v4316, %v4314
  %v4363 = vpack.c.b16 %v4317, %v4315
  %v4364 = vpack.c.b16 %v4320, %v4318
  %v4365 = vpack.c.b16 %v4321, %v4319
  %v4366 = vpack.c.b16 %v4324, %v4322
  %v4367 = vpack.c.b16 %v4325, %v4323
  %v4368 = vpack.c.b16 %v4328, %v4326
  %v4369 = vpack.c.b16 %v4329, %v4327
  %v4370 = vpack.c.b16 %v4332, %v4330
  %v4371 = vpack.c.b16 %v4333, %v4331
  %v4372 = vpack.c.b16 %v4336, %v4334
  %v4373 = vpack.c.b16 %v4337, %v4335
  %v4374 = vpack.c.b16 %v4340, %v4338
  %v4375 = vpack.c.b16 %v4341, %v4339
  %v4376 = vpack.c.b16 %v4344, %v4342
  %v4377 = vpack.c.b16 %v4345, %v4343
  %v4442 = vunpack.c.l.b16 %v4250
  %v4443 = vunpack.c.l.b16 %v4251
  %v4444 = vunpack.c.l.b16 %v4252
  %v4445 = vunpack.c.l.b16 %v4253
  %v4446 = vunpack.c.l.b16 %v4254
  %v4447 = vunpack.c.l.b16 %v4255
  %v4448 = vunpack.c.l.b16 %v4256
  %v4449 = vunpack.c.l.b16 %v4257
  %v4450 = vunpack.c.l.b16 %v4258
  %v4451 = vunpack.c.l.b16 %v4259
  %v4452 = vunpack.c.l.b16 %v4260
  %v4453 = vunpack.c.l.b16 %v4261
  %v4454 = vunpack.c.l.b16 %v4262
  %v4455 = vunpack.c.l.b16 %v4263
  %v4456 = vunpack.c.l.b16 %v4264
  %v4457 = vunpack.c.l.b16 %v4265
  %v4458 = vunpack.c.l.b16 %v4266
  %v4459 = vunpack.c.l.b16 %v4267
  %v4460 = vunpack.c.l.b16 %v4268
  %v4461 = vunpack.c.l.b16 %v4269
  %v4462 = vunpack.c.l.b16 %v4270
  %v4463 = vunpack.c.l.b16 %v4271
  %v4464 = vunpack.c.l.b16 %v4272
  %v4465 = vunpack.c.l.b16 %v4273
  %v4466 = vunpack.c.l.b16 %v4274
  %v4467 = vunpack.c.l.b16 %v4275
  %v4468 = vunpack.c.l.b16 %v4276
  %v4469 = vunpack.c.l.b16 %v4277
  %v4470 = vunpack.c.l.b16 %v4278
  %v4471 = vunpack.c.l.b16 %v4279
  %v4472 = vunpack.c.l.b16 %v4280
  %v4473 = vunpack.c.l.b16 %v4281
  %v4474 = vpack.c.b16 %v4443, %v4442
  %v4475 = vpack.c.b16 %v4445, %v4444
  %v4476 = vpack.c.b16 %v4447, %v4446
  %v4477 = vpack.c.b16 %v4449, %v4448
  %v4478 = vpack.c.b16 %v4451, %v4450
  %v4479 = vpack.c.b16 %v4453, %v4452
  %v4480 = vpack.c.b16 %v4455, %v4454
  %v4481 = vpack.c.b16 %v4457, %v4456
  %v4482 = vpack.c.b16 %v4459, %v4458
  %v4483 = vpack.c.b16 %v4461, %v4460
  %v4484 = vpack.c.b16 %v4463, %v4462
  %v4485 = vpack.c.b16 %v4465, %v4464
  %v4486 = vpack.c.b16 %v4467, %v4466
  %v4487 = vpack.c.b16 %v4469, %v4468
  %v4488 = vpack.c.b16 %v4471, %v4470
  %v4489 = vpack.c.b16 %v4473, %v4472
  %4506 = vmatprep.subr.bf16.mxu0 0
  %4507 = vmatpush1.bf16.msra.mxu0 %v4481
  %4508 = vmatprep.subr.bf16.mxu0 0
  %4509 = vmatpush1.bf16.msra.mxu0 %v4480
  %4510 = vmatprep.subr.bf16.mxu0 0
  %4511 = vmatpush1.bf16.msra.mxu0 %v4479
  %4512 = vmatprep.subr.bf16.mxu0 0
  %4513 = vmatpush1.bf16.msra.mxu0 %v4478
  %4514 = vmatprep.subr.bf16.mxu0 0
  %4515 = vmatpush1.bf16.msra.mxu0 %v4477
  %4516 = vmatprep.subr.bf16.mxu0 0
  %4517 = vmatpush1.bf16.msra.mxu0 %v4476
  %4518 = vmatprep.subr.bf16.mxu0 0
  %4519 = vmatpush1.bf16.msra.mxu0 %v4475
  %4520 = vmatprep.subr.bf16.mxu0 0
  %4521 = vmatpush1.bf16.msra.mxu0 %v4474
  %4522 = vmatprep.subr.bf16.mxu0 0
  %4523 = vmatpush2.bf16.msra.mxu0 %v4489
  %4524 = vmatprep.subr.bf16.mxu0 0
  %4525 = vmatpush2.bf16.msra.mxu0 %v4488
  %4526 = vmatprep.subr.bf16.mxu0 0
  %4527 = vmatpush2.bf16.msra.mxu0 %v4487
  %4528 = vmatprep.subr.bf16.mxu0 0
  %4529 = vmatpush2.bf16.msra.mxu0 %v4486
  %4530 = vmatprep.subr.bf16.mxu0 0
  %4531 = vmatpush2.bf16.msra.mxu0 %v4485
  %4532 = vmatprep.subr.bf16.mxu0 0
  %4533 = vmatpush2.bf16.msra.mxu0 %v4484
  %4534 = vmatprep.subr.bf16.mxu0 0
  %4535 = vmatpush2.bf16.msra.mxu0 %v4483
  %4536 = vmatprep.subr.bf16.mxu0 0
  %4537 = vmatpush2.bf16.msra.mxu0 %v4482
  %4538 = vmatprep.mubr.bf16.mxu0 %v4347
  %4539 = vmatmul.mubr.bf16.gmra.mxu0 %v4346
  %v4540 = vpop.f32.mrf.mxu0
  %v4541 = vadd.f32 0.0, %v4540
  %v4542 = vpop.f32.mrf.mxu0
  %v4543 = vpop.f32.mrf.mxu0
  %v4544 = vadd.f32 0.0, %v4543
  %v4545 = vpop.f32.mrf.mxu0
  %4546 = vmatprep.mubr.bf16.mxu0 %v4349
  %4547 = vmatmul.mubr.bf16.gmra.mxu0 %v4348
  %v4548 = vpop.f32.mrf.mxu0
  %v4549 = vadd.f32 0.0, %v4548
  %v4550 = vpop.f32.mrf.mxu0
  %v4551 = vpop.f32.mrf.mxu0
  %v4552 = vadd.f32 0.0, %v4551
  %v4553 = vpop.f32.mrf.mxu0
  %4554 = vmatprep.mubr.bf16.mxu0 %v4351
  %4555 = vmatmul.mubr.bf16.gmra.mxu0 %v4350
  %v4556 = vpop.f32.mrf.mxu0
  %v4557 = vadd.f32 0.0, %v4556
  %v4558 = vpop.f32.mrf.mxu0
  %v4559 = vpop.f32.mrf.mxu0
  %v4560 = vadd.f32 0.0, %v4559
  %v4561 = vpop.f32.mrf.mxu0
  %4562 = vmatprep.mubr.bf16.mxu0 %v4353
  %4563 = vmatmul.mubr.bf16.gmra.mxu0 %v4352
  %v4564 = vpop.f32.mrf.mxu0
  %v4565 = vadd.f32 0.0, %v4564
  %v4566 = vpop.f32.mrf.mxu0
  %v4567 = vpop.f32.mrf.mxu0
  %v4568 = vadd.f32 0.0, %v4567
  %v4569 = vpop.f32.mrf.mxu0
  %4570 = vmatprep.mubr.bf16.mxu0 %v4355
  %4571 = vmatmul.mubr.bf16.gmra.mxu0 %v4354
  %v4572 = vpop.f32.mrf.mxu0
  %v4573 = vadd.f32 0.0, %v4572
  %v4574 = vpop.f32.mrf.mxu0
  %v4575 = vpop.f32.mrf.mxu0
  %v4576 = vadd.f32 0.0, %v4575
  %v4577 = vpop.f32.mrf.mxu0
  %4578 = vmatprep.mubr.bf16.mxu0 %v4357
  %4579 = vmatmul.mubr.bf16.gmra.mxu0 %v4356
  %v4580 = vpop.f32.mrf.mxu0
  %v4581 = vadd.f32 0.0, %v4580
  %v4582 = vpop.f32.mrf.mxu0
  %v4583 = vpop.f32.mrf.mxu0
  %v4584 = vadd.f32 0.0, %v4583
  %v4585 = vpop.f32.mrf.mxu0
  %4586 = vmatprep.mubr.bf16.mxu0 %v4359
  %4587 = vmatmul.mubr.bf16.gmra.mxu0 %v4358
  %v4588 = vpop.f32.mrf.mxu0
  %v4589 = vadd.f32 0.0, %v4588
  %v4590 = vpop.f32.mrf.mxu0
  %v4591 = vpop.f32.mrf.mxu0
  %v4592 = vadd.f32 0.0, %v4591
  %v4593 = vpop.f32.mrf.mxu0
  %4594 = vmatprep.mubr.bf16.mxu0 %v4361
  %4595 = vmatmul.mubr.bf16.gmra.mxu0 %v4360
  %v4596 = vpop.f32.mrf.mxu0
  %v4597 = vadd.f32 0.0, %v4596
  %v4598 = vpop.f32.mrf.mxu0
  %v4599 = vpop.f32.mrf.mxu0
  %v4600 = vadd.f32 0.0, %v4599
  %v4601 = vpop.f32.mrf.mxu0
  %4602 = vmatprep.mubr.bf16.mxu0 %v4363
  %4603 = vmatmul.mubr.bf16.gmra.mxu0 %v4362
  %v4604 = vpop.f32.mrf.mxu0
  %v4605 = vadd.f32 0.0, %v4604
  %v4606 = vpop.f32.mrf.mxu0
  %v4607 = vpop.f32.mrf.mxu0
  %v4608 = vadd.f32 0.0, %v4607
  %v4609 = vpop.f32.mrf.mxu0
  %4610 = vmatprep.mubr.bf16.mxu0 %v4365
  %4611 = vmatmul.mubr.bf16.gmra.mxu0 %v4364
  %v4612 = vpop.f32.mrf.mxu0
  %v4613 = vadd.f32 0.0, %v4612
  %v4614 = vpop.f32.mrf.mxu0
  %v4615 = vpop.f32.mrf.mxu0
  %v4616 = vadd.f32 0.0, %v4615
  %v4617 = vpop.f32.mrf.mxu0
  %4618 = vmatprep.mubr.bf16.mxu0 %v4367
  %4619 = vmatmul.mubr.bf16.gmra.mxu0 %v4366
  %v4620 = vpop.f32.mrf.mxu0
  %v4621 = vadd.f32 0.0, %v4620
  %v4622 = vpop.f32.mrf.mxu0
  %v4623 = vpop.f32.mrf.mxu0
  %v4624 = vadd.f32 0.0, %v4623
  %v4625 = vpop.f32.mrf.mxu0
  %4626 = vmatprep.mubr.bf16.mxu0 %v4369
  %4627 = vmatmul.mubr.bf16.gmra.mxu0 %v4368
  %v4628 = vpop.f32.mrf.mxu0
  %v4629 = vadd.f32 0.0, %v4628
  %v4630 = vpop.f32.mrf.mxu0
  %v4631 = vpop.f32.mrf.mxu0
  %v4632 = vadd.f32 0.0, %v4631
  %v4633 = vpop.f32.mrf.mxu0
  %4634 = vmatprep.mubr.bf16.mxu0 %v4371
  %4635 = vmatmul.mubr.bf16.gmra.mxu0 %v4370
  %v4636 = vpop.f32.mrf.mxu0
  %v4637 = vadd.f32 0.0, %v4636
  %v4638 = vpop.f32.mrf.mxu0
  %v4639 = vpop.f32.mrf.mxu0
  %v4640 = vadd.f32 0.0, %v4639
  %v4641 = vpop.f32.mrf.mxu0
  %4642 = vmatprep.mubr.bf16.mxu0 %v4373
  %4643 = vmatmul.mubr.bf16.gmra.mxu0 %v4372
  %v4644 = vpop.f32.mrf.mxu0
  %v4645 = vadd.f32 0.0, %v4644
  %v4646 = vpop.f32.mrf.mxu0
  %v4647 = vpop.f32.mrf.mxu0
  %v4648 = vadd.f32 0.0, %v4647
  %v4649 = vpop.f32.mrf.mxu0
  %4650 = vmatprep.mubr.bf16.mxu0 %v4375
  %4651 = vmatmul.mubr.bf16.gmra.mxu0 %v4374
  %v4652 = vpop.f32.mrf.mxu0
  %v4653 = vadd.f32 0.0, %v4652
  %v4654 = vpop.f32.mrf.mxu0
  %v4655 = vpop.f32.mrf.mxu0
  %v4656 = vadd.f32 0.0, %v4655
  %v4657 = vpop.f32.mrf.mxu0
  %4658 = vmatprep.mubr.bf16.mxu0 %v4377
  %4659 = vmatmul.mubr.bf16.gmra.mxu0 %v4376
  %v4660 = vpop.f32.mrf.mxu0
  %v4661 = vadd.f32 0.0, %v4660
  %v4662 = vpop.f32.mrf.mxu0
  %v4663 = vpop.f32.mrf.mxu0
  %v4664 = vadd.f32 0.0, %v4663
  %v4665 = vpop.f32.mrf.mxu0
  %4666 = vdwg.mxu0
  %v4667 = vadd.f32 %v3831, %v4541
  %v4668 = vadd.f32 %v3832, %v4544
  %v4669 = vadd.f32 %v3833, %v4549
  %v4670 = vadd.f32 %v3834, %v4552
  %v4671 = vadd.f32 %v3835, %v4557
  %v4672 = vadd.f32 %v3836, %v4560
  %v4673 = vadd.f32 %v3837, %v4565
  %v4674 = vadd.f32 %v3838, %v4568
  %v4675 = vadd.f32 %v3839, %v4573
  %v4676 = vadd.f32 %v3840, %v4576
  %v4677 = vadd.f32 %v3841, %v4581
  %v4678 = vadd.f32 %v3842, %v4584
  %v4679 = vadd.f32 %v3843, %v4589
  %v4680 = vadd.f32 %v3844, %v4592
  %v4681 = vadd.f32 %v3845, %v4597
  %v4682 = vadd.f32 %v3846, %v4600
  %v4683 = vadd.f32 %v3847, %v4605
  %v4684 = vadd.f32 %v3848, %v4608
  %v4685 = vadd.f32 %v3849, %v4613
  %v4686 = vadd.f32 %v3850, %v4616
  %v4687 = vadd.f32 %v3851, %v4621
  %v4688 = vadd.f32 %v3852, %v4624
  %v4689 = vadd.f32 %v3853, %v4629
  %v4690 = vadd.f32 %v3854, %v4632
  %v4691 = vadd.f32 %v3855, %v4637
  %v4692 = vadd.f32 %v3856, %v4640
  %v4693 = vadd.f32 %v3857, %v4645
  %v4694 = vadd.f32 %v3858, %v4648
  %v4695 = vadd.f32 %v3859, %v4653
  %v4696 = vadd.f32 %v3860, %v4656
  %v4697 = vadd.f32 %v3861, %v4661
  %v4698 = vadd.f32 %v3862, %v4664
  %v4699 = vld [vmem:[#allocation2] sm:$0x88]
  %v4700 = vld [vmem:[#allocation2 + $0x20] sm:$0x88]
  %v4701 = vld [vmem:[#allocation2 + $0x40] sm:$0x88]
  %v4702 = vld [vmem:[#allocation2 + $0x60] sm:$0x88]
  %v4703 = vld [vmem:[#allocation2 + $0x80] sm:$0x88]
  %v4704 = vld [vmem:[#allocation2 + $0xa0] sm:$0x88]
  %v4705 = vld [vmem:[#allocation2 + $0xc0] sm:$0x88]
  %v4706 = vld [vmem:[#allocation2 + $0xe0] sm:$0x88]
  %v4707 = vld [vmem:[#allocation2 + $0x100] sm:$0x88]
  %v4708 = vld [vmem:[#allocation2 + $0x120] sm:$0x88]
  %v4709 = vld [vmem:[#allocation2 + $0x140] sm:$0x88]
  %v4710 = vld [vmem:[#allocation2 + $0x160] sm:$0x88]
  %v4711 = vld [vmem:[#allocation2 + $0x180] sm:$0x88]
  %v4712 = vld [vmem:[#allocation2 + $0x1a0] sm:$0x88]
  %v4713 = vld [vmem:[#allocation2 + $0x1c0] sm:$0x88]
  %v4714 = vld [vmem:[#allocation2 + $0x1e0] sm:$0x88]
  %vm4747 = vcmask 1040384
  %vm4748 = vcmask 1044484
  %vm4749 = vmor %vm4747, %vm4748
  %v4750 = vrot.slane %v4699, 7
  %v4751 = vrot.slane %v4750, 4
  %v4752 = vrot.slane %v968, 7
  %v4753 = vsel %vm4749, %v4751, %v4752
  %v4754 = vrot.slane %v4752, 4
  %v4755 = vrot.slane %v3863, 7
  %v4756 = vsel %vm4749, %v4754, %v4755
  %v4757 = vrot.slane %v4700, 7
  %v4758 = vrot.slane %v4757, 4
  %v4759 = vrot.slane %v971, 7
  %v4760 = vsel %vm4749, %v4758, %v4759
  %v4761 = vrot.slane %v4759, 4
  %v4762 = vrot.slane %v3864, 7
  %v4763 = vsel %vm4749, %v4761, %v4762
  %v4764 = vrot.slane %v4701, 7
  %v4765 = vrot.slane %v4764, 4
  %v4766 = vrot.slane %v974, 7
  %v4767 = vsel %vm4749, %v4765, %v4766
  %v4768 = vrot.slane %v4766, 4
  %v4769 = vrot.slane %v3865, 7
  %v4770 = vsel %vm4749, %v4768, %v4769
  %v4771 = vrot.slane %v4702, 7
  %v4772 = vrot.slane %v4771, 4
  %v4773 = vrot.slane %v977, 7
  %v4774 = vsel %vm4749, %v4772, %v4773
  %v4775 = vrot.slane %v4773, 4
  %v4776 = vrot.slane %v3866, 7
  %v4777 = vsel %vm4749, %v4775, %v4776
  %v4778 = vrot.slane %v4703, 7
  %v4779 = vrot.slane %v4778, 4
  %v4780 = vrot.slane %v980, 7
  %v4781 = vsel %vm4749, %v4779, %v4780
  %v4782 = vrot.slane %v4780, 4
  %v4783 = vrot.slane %v3867, 7
  %v4784 = vsel %vm4749, %v4782, %v4783
  %v4785 = vrot.slane %v4704, 7
  %v4786 = vrot.slane %v4785, 4
  %v4787 = vrot.slane %v983, 7
  %v4788 = vsel %vm4749, %v4786, %v4787
  %v4789 = vrot.slane %v4787, 4
  %v4790 = vrot.slane %v3868, 7
  %v4791 = vsel %vm4749, %v4789, %v4790
  %v4792 = vrot.slane %v4705, 7
  %v4793 = vrot.slane %v4792, 4
  %v4794 = vrot.slane %v986, 7
  %v4795 = vsel %vm4749, %v4793, %v4794
  %v4796 = vrot.slane %v4794, 4
  %v4797 = vrot.slane %v3869, 7
  %v4798 = vsel %vm4749, %v4796, %v4797
  %v4799 = vrot.slane %v4706, 7
  %v4800 = vrot.slane %v4799, 4
  %v4801 = vrot.slane %v989, 7
  %v4802 = vsel %vm4749, %v4800, %v4801
  %v4803 = vrot.slane %v4801, 4
  %v4804 = vrot.slane %v3870, 7
  %v4805 = vsel %vm4749, %v4803, %v4804
  %v4806 = vrot.slane %v4707, 7
  %v4807 = vrot.slane %v4806, 4
  %v4808 = vrot.slane %v992, 7
  %v4809 = vsel %vm4749, %v4807, %v4808
  %v4810 = vrot.slane %v4808, 4
  %v4811 = vrot.slane %v3871, 7
  %v4812 = vsel %vm4749, %v4810, %v4811
  %v4813 = vrot.slane %v4708, 7
  %v4814 = vrot.slane %v4813, 4
  %v4815 = vrot.slane %v995, 7
  %v4816 = vsel %vm4749, %v4814, %v4815
  %v4817 = vrot.slane %v4815, 4
  %v4818 = vrot.slane %v3872, 7
  %v4819 = vsel %vm4749, %v4817, %v4818
  %v4820 = vrot.slane %v4709, 7
  %v4821 = vrot.slane %v4820, 4
  %v4822 = vrot.slane %v998, 7
  %v4823 = vsel %vm4749, %v4821, %v4822
  %v4824 = vrot.slane %v4822, 4
  %v4825 = vrot.slane %v3873, 7
  %v4826 = vsel %vm4749, %v4824, %v4825
  %v4827 = vrot.slane %v4710, 7
  %v4828 = vrot.slane %v4827, 4
  %v4829 = vrot.slane %v1001, 7
  %v4830 = vsel %vm4749, %v4828, %v4829
  %v4831 = vrot.slane %v4829, 4
  %v4832 = vrot.slane %v3874, 7
  %v4833 = vsel %vm4749, %v4831, %v4832
  %v4834 = vrot.slane %v4711, 7
  %v4835 = vrot.slane %v4834, 4
  %v4836 = vrot.slane %v1004, 7
  %v4837 = vsel %vm4749, %v4835, %v4836
  %v4838 = vrot.slane %v4836, 4
  %v4839 = vrot.slane %v3875, 7
  %v4840 = vsel %vm4749, %v4838, %v4839
  %v4841 = vrot.slane %v4712, 7
  %v4842 = vrot.slane %v4841, 4
  %v4843 = vrot.slane %v1007, 7
  %v4844 = vsel %vm4749, %v4842, %v4843
  %v4845 = vrot.slane %v4843, 4
  %v4846 = vrot.slane %v3876, 7
  %v4847 = vsel %vm4749, %v4845, %v4846
  %v4848 = vrot.slane %v4713, 7
  %v4849 = vrot.slane %v4848, 4
  %v4850 = vrot.slane %v1010, 7
  %v4851 = vsel %vm4749, %v4849, %v4850
  %v4852 = vrot.slane %v4850, 4
  %v4853 = vrot.slane %v3877, 7
  %v4854 = vsel %vm4749, %v4852, %v4853
  %v4855 = vrot.slane %v4714, 7
  %v4856 = vrot.slane %v4855, 4
  %v4857 = vrot.slane %v1013, 7
  %v4858 = vsel %vm4749, %v4856, %v4857
  %v4859 = vrot.slane %v4857, 4
  %v4860 = vrot.slane %v3878, 7
  %v4861 = vsel %vm4749, %v4859, %v4860
  %v4862 = vld [vmem:[%s4 + $0x280] sm:$0xf]
  %v4863 = vld [vmem:[%s4 + $0x284] sm:$0xf]
  %v4864 = vld [vmem:[%s4 + $0x288] sm:$0xf]
  %v4865 = vld [vmem:[%s4 + $0x28c] sm:$0xf]
  %v4866 = vld [vmem:[%s4 + $0x290] sm:$0xf]
  %v4867 = vld [vmem:[%s4 + $0x294] sm:$0xf]
  %v4868 = vld [vmem:[%s4 + $0x298] sm:$0xf]
  %v4869 = vld [vmem:[%s4 + $0x29c] sm:$0xf]
  %v4870 = vld [vmem:[%s4 + $0x2a0] sm:$0xf]
  %v4871 = vld [vmem:[%s4 + $0x2a4] sm:$0xf]
  %v4872 = vld [vmem:[%s4 + $0x2a8] sm:$0xf]
  %v4873 = vld [vmem:[%s4 + $0x2ac] sm:$0xf]
  %v4874 = vld [vmem:[%s4 + $0x2b0] sm:$0xf]
  %v4875 = vld [vmem:[%s4 + $0x2b4] sm:$0xf]
  %v4876 = vld [vmem:[%s4 + $0x2b8] sm:$0xf]
  %v4877 = vld [vmem:[%s4 + $0x2bc] sm:$0xf]
  %v4878 = vld [vmem:[%s4 + $0x2c0] sm:$0xf]
  %v4879 = vld [vmem:[%s4 + $0x2c4] sm:$0xf]
  %v4880 = vld [vmem:[%s4 + $0x2c8] sm:$0xf]
  %v4881 = vld [vmem:[%s4 + $0x2cc] sm:$0xf]
  %v4882 = vld [vmem:[%s4 + $0x2d0] sm:$0xf]
  %v4883 = vld [vmem:[%s4 + $0x2d4] sm:$0xf]
  %v4884 = vld [vmem:[%s4 + $0x2d8] sm:$0xf]
  %v4885 = vld [vmem:[%s4 + $0x2dc] sm:$0xf]
  %v4886 = vld [vmem:[%s4 + $0x2e0] sm:$0xf]
  %v4887 = vld [vmem:[%s4 + $0x2e4] sm:$0xf]
  %v4888 = vld [vmem:[%s4 + $0x2e8] sm:$0xf]
  %v4889 = vld [vmem:[%s4 + $0x2ec] sm:$0xf]
  %v4890 = vld [vmem:[%s4 + $0x2f0] sm:$0xf]
  %v4891 = vld [vmem:[%s4 + $0x2f4] sm:$0xf]
  %v4892 = vld [vmem:[%s4 + $0x2f8] sm:$0xf]
  %v4893 = vld [vmem:[%s4 + $0x2fc] sm:$0xf]
  %v4894 = vunpack.c.l.b16 %v4753
  %v4895 = vunpack.c.h.b16 %v4753
  %v4896 = vunpack.c.l.b16 %v4756
  %v4897 = vunpack.c.h.b16 %v4756
  %v4898 = vunpack.c.l.b16 %v4760
  %v4899 = vunpack.c.h.b16 %v4760
  %v4900 = vunpack.c.l.b16 %v4763
  %v4901 = vunpack.c.h.b16 %v4763
  %v4902 = vunpack.c.l.b16 %v4767
  %v4903 = vunpack.c.h.b16 %v4767
  %v4904 = vunpack.c.l.b16 %v4770
  %v4905 = vunpack.c.h.b16 %v4770
  %v4906 = vunpack.c.l.b16 %v4774
  %v4907 = vunpack.c.h.b16 %v4774
  %v4908 = vunpack.c.l.b16 %v4777
  %v4909 = vunpack.c.h.b16 %v4777
  %v4910 = vunpack.c.l.b16 %v4781
  %v4911 = vunpack.c.h.b16 %v4781
  %v4912 = vunpack.c.l.b16 %v4784
  %v4913 = vunpack.c.h.b16 %v4784
  %v4914 = vunpack.c.l.b16 %v4788
  %v4915 = vunpack.c.h.b16 %v4788
  %v4916 = vunpack.c.l.b16 %v4791
  %v4917 = vunpack.c.h.b16 %v4791
  %v4918 = vunpack.c.l.b16 %v4795
  %v4919 = vunpack.c.h.b16 %v4795
  %v4920 = vunpack.c.l.b16 %v4798
  %v4921 = vunpack.c.h.b16 %v4798
  %v4922 = vunpack.c.l.b16 %v4802
  %v4923 = vunpack.c.h.b16 %v4802
  %v4924 = vunpack.c.l.b16 %v4805
  %v4925 = vunpack.c.h.b16 %v4805
  %v4926 = vunpack.c.l.b16 %v4809
  %v4927 = vunpack.c.h.b16 %v4809
  %v4928 = vunpack.c.l.b16 %v4812
  %v4929 = vunpack.c.h.b16 %v4812
  %v4930 = vunpack.c.l.b16 %v4816
  %v4931 = vunpack.c.h.b16 %v4816
  %v4932 = vunpack.c.l.b16 %v4819
  %v4933 = vunpack.c.h.b16 %v4819
  %v4934 = vunpack.c.l.b16 %v4823
  %v4935 = vunpack.c.h.b16 %v4823
  %v4936 = vunpack.c.l.b16 %v4826
  %v4937 = vunpack.c.h.b16 %v4826
  %v4938 = vunpack.c.l.b16 %v4830
  %v4939 = vunpack.c.h.b16 %v4830
  %v4940 = vunpack.c.l.b16 %v4833
  %v4941 = vunpack.c.h.b16 %v4833
  %v4942 = vunpack.c.l.b16 %v4837
  %v4943 = vunpack.c.h.b16 %v4837
  %v4944 = vunpack.c.l.b16 %v4840
  %v4945 = vunpack.c.h.b16 %v4840
  %v4946 = vunpack.c.l.b16 %v4844
  %v4947 = vunpack.c.h.b16 %v4844
  %v4948 = vunpack.c.l.b16 %v4847
  %v4949 = vunpack.c.h.b16 %v4847
  %v4950 = vunpack.c.l.b16 %v4851
  %v4951 = vunpack.c.h.b16 %v4851
  %v4952 = vunpack.c.l.b16 %v4854
  %v4953 = vunpack.c.h.b16 %v4854
  %v4954 = vunpack.c.l.b16 %v4858
  %v4955 = vunpack.c.h.b16 %v4858
  %v4956 = vunpack.c.l.b16 %v4861
  %v4957 = vunpack.c.h.b16 %v4861
  %v4958 = vpack.c.b16 %v4896, %v4894
  %v4959 = vpack.c.b16 %v4897, %v4895
  %v4960 = vpack.c.b16 %v4900, %v4898
  %v4961 = vpack.c.b16 %v4901, %v4899
  %v4962 = vpack.c.b16 %v4904, %v4902
  %v4963 = vpack.c.b16 %v4905, %v4903
  %v4964 = vpack.c.b16 %v4908, %v4906
  %v4965 = vpack.c.b16 %v4909, %v4907
  %v4966 = vpack.c.b16 %v4912, %v4910
  %v4967 = vpack.c.b16 %v4913, %v4911
  %v4968 = vpack.c.b16 %v4916, %v4914
  %v4969 = vpack.c.b16 %v4917, %v4915
  %v4970 = vpack.c.b16 %v4920, %v4918
  %v4971 = vpack.c.b16 %v4921, %v4919
  %v4972 = vpack.c.b16 %v4924, %v4922
  %v4973 = vpack.c.b16 %v4925, %v4923
  %v4974 = vpack.c.b16 %v4928, %v4926
  %v4975 = vpack.c.b16 %v4929, %v4927
  %v4976 = vpack.c.b16 %v4932, %v4930
  %v4977 = vpack.c.b16 %v4933, %v4931
  %v4978 = vpack.c.b16 %v4936, %v4934
  %v4979 = vpack.c.b16 %v4937, %v4935
  %v4980 = vpack.c.b16 %v4940, %v4938
  %v4981 = vpack.c.b16 %v4941, %v4939
  %v4982 = vpack.c.b16 %v4944, %v4942
  %v4983 = vpack.c.b16 %v4945, %v4943
  %v4984 = vpack.c.b16 %v4948, %v4946
  %v4985 = vpack.c.b16 %v4949, %v4947
  %v4986 = vpack.c.b16 %v4952, %v4950
  %v4987 = vpack.c.b16 %v4953, %v4951
  %v4988 = vpack.c.b16 %v4956, %v4954
  %v4989 = vpack.c.b16 %v4957, %v4955
  %v5054 = vunpack.c.l.b16 %v4862
  %v5055 = vunpack.c.l.b16 %v4863
  %v5056 = vunpack.c.l.b16 %v4864
  %v5057 = vunpack.c.l.b16 %v4865
  %v5058 = vunpack.c.l.b16 %v4866
  %v5059 = vunpack.c.l.b16 %v4867
  %v5060 = vunpack.c.l.b16 %v4868
  %v5061 = vunpack.c.l.b16 %v4869
  %v5062 = vunpack.c.l.b16 %v4870
  %v5063 = vunpack.c.l.b16 %v4871
  %v5064 = vunpack.c.l.b16 %v4872
  %v5065 = vunpack.c.l.b16 %v4873
  %v5066 = vunpack.c.l.b16 %v4874
  %v5067 = vunpack.c.l.b16 %v4875
  %v5068 = vunpack.c.l.b16 %v4876
  %v5069 = vunpack.c.l.b16 %v4877
  %v5070 = vunpack.c.l.b16 %v4878
  %v5071 = vunpack.c.l.b16 %v4879
  %v5072 = vunpack.c.l.b16 %v4880
  %v5073 = vunpack.c.l.b16 %v4881
  %v5074 = vunpack.c.l.b16 %v4882
  %v5075 = vunpack.c.l.b16 %v4883
  %v5076 = vunpack.c.l.b16 %v4884
  %v5077 = vunpack.c.l.b16 %v4885
  %v5078 = vunpack.c.l.b16 %v4886
  %v5079 = vunpack.c.l.b16 %v4887
  %v5080 = vunpack.c.l.b16 %v4888
  %v5081 = vunpack.c.l.b16 %v4889
  %v5082 = vunpack.c.l.b16 %v4890
  %v5083 = vunpack.c.l.b16 %v4891
  %v5084 = vunpack.c.l.b16 %v4892
  %v5085 = vunpack.c.l.b16 %v4893
  %v5086 = vpack.c.b16 %v5055, %v5054
  %v5087 = vpack.c.b16 %v5057, %v5056
  %v5088 = vpack.c.b16 %v5059, %v5058
  %v5089 = vpack.c.b16 %v5061, %v5060
  %v5090 = vpack.c.b16 %v5063, %v5062
  %v5091 = vpack.c.b16 %v5065, %v5064
  %v5092 = vpack.c.b16 %v5067, %v5066
  %v5093 = vpack.c.b16 %v5069, %v5068
  %v5094 = vpack.c.b16 %v5071, %v5070
  %v5095 = vpack.c.b16 %v5073, %v5072
  %v5096 = vpack.c.b16 %v5075, %v5074
  %v5097 = vpack.c.b16 %v5077, %v5076
  %v5098 = vpack.c.b16 %v5079, %v5078
  %v5099 = vpack.c.b16 %v5081, %v5080
  %v5100 = vpack.c.b16 %v5083, %v5082
  %v5101 = vpack.c.b16 %v5085, %v5084
  %5118 = vmatprep.subr.bf16.mxu0 0
  %5119 = vmatpush1.bf16.msra.mxu0 %v5093
  %5120 = vmatprep.subr.bf16.mxu0 0
  %5121 = vmatpush1.bf16.msra.mxu0 %v5092
  %5122 = vmatprep.subr.bf16.mxu0 0
  %5123 = vmatpush1.bf16.msra.mxu0 %v5091
  %5124 = vmatprep.subr.bf16.mxu0 0
  %5125 = vmatpush1.bf16.msra.mxu0 %v5090
  %5126 = vmatprep.subr.bf16.mxu0 0
  %5127 = vmatpush1.bf16.msra.mxu0 %v5089
  %5128 = vmatprep.subr.bf16.mxu0 0
  %5129 = vmatpush1.bf16.msra.mxu0 %v5088
  %5130 = vmatprep.subr.bf16.mxu0 0
  %5131 = vmatpush1.bf16.msra.mxu0 %v5087
  %5132 = vmatprep.subr.bf16.mxu0 0
  %5133 = vmatpush1.bf16.msra.mxu0 %v5086
  %5134 = vmatprep.subr.bf16.mxu0 0
  %5135 = vmatpush2.bf16.msra.mxu0 %v5101
  %5136 = vmatprep.subr.bf16.mxu0 0
  %5137 = vmatpush2.bf16.msra.mxu0 %v5100
  %5138 = vmatprep.subr.bf16.mxu0 0
  %5139 = vmatpush2.bf16.msra.mxu0 %v5099
  %5140 = vmatprep.subr.bf16.mxu0 0
  %5141 = vmatpush2.bf16.msra.mxu0 %v5098
  %5142 = vmatprep.subr.bf16.mxu0 0
  %5143 = vmatpush2.bf16.msra.mxu0 %v5097
  %5144 = vmatprep.subr.bf16.mxu0 0
  %5145 = vmatpush2.bf16.msra.mxu0 %v5096
  %5146 = vmatprep.subr.bf16.mxu0 0
  %5147 = vmatpush2.bf16.msra.mxu0 %v5095
  %5148 = vmatprep.subr.bf16.mxu0 0
  %5149 = vmatpush2.bf16.msra.mxu0 %v5094
  %5150 = vmatprep.mubr.bf16.mxu0 %v4959
  %5151 = vmatmul.mubr.bf16.gmra.mxu0 %v4958
  %v5152 = vpop.f32.mrf.mxu0
  %v5153 = vadd.f32 0.0, %v5152
  %v5154 = vpop.f32.mrf.mxu0
  %v5155 = vpop.f32.mrf.mxu0
  %v5156 = vadd.f32 0.0, %v5155
  %v5157 = vpop.f32.mrf.mxu0
  %5158 = vmatprep.mubr.bf16.mxu0 %v4961
  %5159 = vmatmul.mubr.bf16.gmra.mxu0 %v4960
  %v5160 = vpop.f32.mrf.mxu0
  %v5161 = vadd.f32 0.0, %v5160
  %v5162 = vpop.f32.mrf.mxu0
  %v5163 = vpop.f32.mrf.mxu0
  %v5164 = vadd.f32 0.0, %v5163
  %v5165 = vpop.f32.mrf.mxu0
  %5166 = vmatprep.mubr.bf16.mxu0 %v4963
  %5167 = vmatmul.mubr.bf16.gmra.mxu0 %v4962
  %v5168 = vpop.f32.mrf.mxu0
  %v5169 = vadd.f32 0.0, %v5168
  %v5170 = vpop.f32.mrf.mxu0
  %v5171 = vpop.f32.mrf.mxu0
  %v5172 = vadd.f32 0.0, %v5171
  %v5173 = vpop.f32.mrf.mxu0
  %5174 = vmatprep.mubr.bf16.mxu0 %v4965
  %5175 = vmatmul.mubr.bf16.gmra.mxu0 %v4964
  %v5176 = vpop.f32.mrf.mxu0
  %v5177 = vadd.f32 0.0, %v5176
  %v5178 = vpop.f32.mrf.mxu0
  %v5179 = vpop.f32.mrf.mxu0
  %v5180 = vadd.f32 0.0, %v5179
  %v5181 = vpop.f32.mrf.mxu0
  %5182 = vmatprep.mubr.bf16.mxu0 %v4967
  %5183 = vmatmul.mubr.bf16.gmra.mxu0 %v4966
  %v5184 = vpop.f32.mrf.mxu0
  %v5185 = vadd.f32 0.0, %v5184
  %v5186 = vpop.f32.mrf.mxu0
  %v5187 = vpop.f32.mrf.mxu0
  %v5188 = vadd.f32 0.0, %v5187
  %v5189 = vpop.f32.mrf.mxu0
  %5190 = vmatprep.mubr.bf16.mxu0 %v4969
  %5191 = vmatmul.mubr.bf16.gmra.mxu0 %v4968
  %v5192 = vpop.f32.mrf.mxu0
  %v5193 = vadd.f32 0.0, %v5192
  %v5194 = vpop.f32.mrf.mxu0
  %v5195 = vpop.f32.mrf.mxu0
  %v5196 = vadd.f32 0.0, %v5195
  %v5197 = vpop.f32.mrf.mxu0
  %5198 = vmatprep.mubr.bf16.mxu0 %v4971
  %5199 = vmatmul.mubr.bf16.gmra.mxu0 %v4970
  %v5200 = vpop.f32.mrf.mxu0
  %v5201 = vadd.f32 0.0, %v5200
  %v5202 = vpop.f32.mrf.mxu0
  %v5203 = vpop.f32.mrf.mxu0
  %v5204 = vadd.f32 0.0, %v5203
  %v5205 = vpop.f32.mrf.mxu0
  %5206 = vmatprep.mubr.bf16.mxu0 %v4973
  %5207 = vmatmul.mubr.bf16.gmra.mxu0 %v4972
  %v5208 = vpop.f32.mrf.mxu0
  %v5209 = vadd.f32 0.0, %v5208
  %v5210 = vpop.f32.mrf.mxu0
  %v5211 = vpop.f32.mrf.mxu0
  %v5212 = vadd.f32 0.0, %v5211
  %v5213 = vpop.f32.mrf.mxu0
  %5214 = vmatprep.mubr.bf16.mxu0 %v4975
  %5215 = vmatmul.mubr.bf16.gmra.mxu0 %v4974
  %v5216 = vpop.f32.mrf.mxu0
  %v5217 = vadd.f32 0.0, %v5216
  %v5218 = vpop.f32.mrf.mxu0
  %v5219 = vpop.f32.mrf.mxu0
  %v5220 = vadd.f32 0.0, %v5219
  %v5221 = vpop.f32.mrf.mxu0
  %5222 = vmatprep.mubr.bf16.mxu0 %v4977
  %5223 = vmatmul.mubr.bf16.gmra.mxu0 %v4976
  %v5224 = vpop.f32.mrf.mxu0
  %v5225 = vadd.f32 0.0, %v5224
  %v5226 = vpop.f32.mrf.mxu0
  %v5227 = vpop.f32.mrf.mxu0
  %v5228 = vadd.f32 0.0, %v5227
  %v5229 = vpop.f32.mrf.mxu0
  %5230 = vmatprep.mubr.bf16.mxu0 %v4979
  %5231 = vmatmul.mubr.bf16.gmra.mxu0 %v4978
  %v5232 = vpop.f32.mrf.mxu0
  %v5233 = vadd.f32 0.0, %v5232
  %v5234 = vpop.f32.mrf.mxu0
  %v5235 = vpop.f32.mrf.mxu0
  %v5236 = vadd.f32 0.0, %v5235
  %v5237 = vpop.f32.mrf.mxu0
  %5238 = vmatprep.mubr.bf16.mxu0 %v4981
  %5239 = vmatmul.mubr.bf16.gmra.mxu0 %v4980
  %v5240 = vpop.f32.mrf.mxu0
  %v5241 = vadd.f32 0.0, %v5240
  %v5242 = vpop.f32.mrf.mxu0
  %v5243 = vpop.f32.mrf.mxu0
  %v5244 = vadd.f32 0.0, %v5243
  %v5245 = vpop.f32.mrf.mxu0
  %5246 = vmatprep.mubr.bf16.mxu0 %v4983
  %5247 = vmatmul.mubr.bf16.gmra.mxu0 %v4982
  %v5248 = vpop.f32.mrf.mxu0
  %v5249 = vadd.f32 0.0, %v5248
  %v5250 = vpop.f32.mrf.mxu0
  %v5251 = vpop.f32.mrf.mxu0
  %v5252 = vadd.f32 0.0, %v5251
  %v5253 = vpop.f32.mrf.mxu0
  %5254 = vmatprep.mubr.bf16.mxu0 %v4985
  %5255 = vmatmul.mubr.bf16.gmra.mxu0 %v4984
  %v5256 = vpop.f32.mrf.mxu0
  %v5257 = vadd.f32 0.0, %v5256
  %v5258 = vpop.f32.mrf.mxu0
  %v5259 = vpop.f32.mrf.mxu0
  %v5260 = vadd.f32 0.0, %v5259
  %v5261 = vpop.f32.mrf.mxu0
  %5262 = vmatprep.mubr.bf16.mxu0 %v4987
  %5263 = vmatmul.mubr.bf16.gmra.mxu0 %v4986
  %v5264 = vpop.f32.mrf.mxu0
  %v5265 = vadd.f32 0.0, %v5264
  %v5266 = vpop.f32.mrf.mxu0
  %v5267 = vpop.f32.mrf.mxu0
  %v5268 = vadd.f32 0.0, %v5267
  %v5269 = vpop.f32.mrf.mxu0
  %5270 = vmatprep.mubr.bf16.mxu0 %v4989
  %5271 = vmatmul.mubr.bf16.gmra.mxu0 %v4988
  %v5272 = vpop.f32.mrf.mxu0
  %v5273 = vadd.f32 0.0, %v5272
  %v5274 = vpop.f32.mrf.mxu0
  %v5275 = vpop.f32.mrf.mxu0
  %v5276 = vadd.f32 0.0, %v5275
  %v5277 = vpop.f32.mrf.mxu0
  %5278 = vdwg.mxu0
  %v5279 = vadd.f32 %v4667, %v5153
  %v5280 = vadd.f32 %v4668, %v5156
  %v5281 = vadd.f32 %v4669, %v5161
  %v5282 = vadd.f32 %v4670, %v5164
  %v5283 = vadd.f32 %v4671, %v5169
  %v5284 = vadd.f32 %v4672, %v5172
  %v5285 = vadd.f32 %v4673, %v5177
  %v5286 = vadd.f32 %v4674, %v5180
  %v5287 = vadd.f32 %v4675, %v5185
  %v5288 = vadd.f32 %v4676, %v5188
  %v5289 = vadd.f32 %v4677, %v5193
  %v5290 = vadd.f32 %v4678, %v5196
  %v5291 = vadd.f32 %v4679, %v5201
  %v5292 = vadd.f32 %v4680, %v5204
  %v5293 = vadd.f32 %v4681, %v5209
  %v5294 = vadd.f32 %v4682, %v5212
  %v5295 = vadd.f32 %v4683, %v5217
  %v5296 = vadd.f32 %v4684, %v5220
  %v5297 = vadd.f32 %v4685, %v5225
  %v5298 = vadd.f32 %v4686, %v5228
  %v5299 = vadd.f32 %v4687, %v5233
  %v5300 = vadd.f32 %v4688, %v5236
  %v5301 = vadd.f32 %v4689, %v5241
  %v5302 = vadd.f32 %v4690, %v5244
  %v5303 = vadd.f32 %v4691, %v5249
  %v5304 = vadd.f32 %v4692, %v5252
  %v5305 = vadd.f32 %v4693, %v5257
  %v5306 = vadd.f32 %v4694, %v5260
  %v5307 = vadd.f32 %v4695, %v5265
  %v5308 = vadd.f32 %v4696, %v5268
  %v5309 = vadd.f32 %v4697, %v5273
  %v5310 = vadd.f32 %v4698, %v5276
  %v5311 = vld [vmem:[#allocation2 + $0x10] sm:$0xff]
  %v5312 = vld [vmem:[#allocation2 + $0x30] sm:$0xff]
  %v5313 = vld [vmem:[#allocation2 + $0x50] sm:$0xff]
  %v5314 = vld [vmem:[#allocation2 + $0x70] sm:$0xff]
  %v5315 = vld [vmem:[#allocation2 + $0x90] sm:$0xff]
  %v5316 = vld [vmem:[#allocation2 + $0xb0] sm:$0xff]
  %v5317 = vld [vmem:[#allocation2 + $0xd0] sm:$0xff]
  %v5318 = vld [vmem:[#allocation2 + $0xf0] sm:$0xff]
  %v5319 = vld [vmem:[#allocation2 + $0x110] sm:$0xff]
  %v5320 = vld [vmem:[#allocation2 + $0x130] sm:$0xff]
  %v5321 = vld [vmem:[#allocation2 + $0x150] sm:$0xff]
  %v5322 = vld [vmem:[#allocation2 + $0x170] sm:$0xff]
  %v5323 = vld [vmem:[#allocation2 + $0x190] sm:$0xff]
  %v5324 = vld [vmem:[#allocation2 + $0x1b0] sm:$0xff]
  %v5325 = vld [vmem:[#allocation2 + $0x1d0] sm:$0xff]
  %v5326 = vld [vmem:[#allocation2 + $0x1f0] sm:$0xff]
  %vm5327 = vsmask.f32 256
  %vm5328 = vsmask.f32 4368
  %vm5329 = vmor %vm5327, %vm5328
  %v5331 = vshrl.u32 %v4699, 16
  %v5333 = vrot.slane %v5331, 7
  %v5334 = vrot.slane %v5333, 4
  %v5335 = vrot.slane %v1032, 7
  %v5336 = vor.u32 %v5335, %v1028
  %v5337 = vsel %vm5329, %v5334, %v5336
  %v5338 = vrot.slane %v5335, 4
  %v5340 = vshrl.u32 %v5311, 16
  %v5342 = vrot.slane %v5340, 7
  %v5343 = vshll.u32 %v5311, 16
  %v5345 = vor.u32 %v5342, %v5343
  %v5346 = vsel %vm5329, %v5338, %v5345
  %v5348 = vshrl.u32 %v4700, 16
  %v5350 = vrot.slane %v5348, 7
  %v5351 = vrot.slane %v5350, 4
  %v5352 = vrot.slane %v1056, 7
  %v5353 = vor.u32 %v5352, %v1052
  %v5354 = vsel %vm5329, %v5351, %v5353
  %v5355 = vrot.slane %v5352, 4
  %v5357 = vshrl.u32 %v5312, 16
  %v5359 = vrot.slane %v5357, 7
  %v5360 = vshll.u32 %v5312, 16
  %v5362 = vor.u32 %v5359, %v5360
  %v5363 = vsel %vm5329, %v5355, %v5362
  %v5365 = vshrl.u32 %v4701, 16
  %v5367 = vrot.slane %v5365, 7
  %v5368 = vrot.slane %v5367, 4
  %v5369 = vrot.slane %v1080, 7
  %v5370 = vor.u32 %v5369, %v1076
  %v5371 = vsel %vm5329, %v5368, %v5370
  %v5372 = vrot.slane %v5369, 4
  %v5374 = vshrl.u32 %v5313, 16
  %v5376 = vrot.slane %v5374, 7
  %v5377 = vshll.u32 %v5313, 16
  %v5379 = vor.u32 %v5376, %v5377
  %v5380 = vsel %vm5329, %v5372, %v5379
  %v5382 = vshrl.u32 %v4702, 16
  %v5384 = vrot.slane %v5382, 7
  %v5385 = vrot.slane %v5384, 4
  %v5386 = vrot.slane %v1104, 7
  %v5387 = vor.u32 %v5386, %v1100
  %v5388 = vsel %vm5329, %v5385, %v5387
  %v5389 = vrot.slane %v5386, 4
  %v5391 = vshrl.u32 %v5314, 16
  %v5393 = vrot.slane %v5391, 7
  %v5394 = vshll.u32 %v5314, 16
  %v5396 = vor.u32 %v5393, %v5394
  %v5397 = vsel %vm5329, %v5389, %v5396
  %v5399 = vshrl.u32 %v4703, 16
  %v5401 = vrot.slane %v5399, 7
  %v5402 = vrot.slane %v5401, 4
  %v5403 = vrot.slane %v1128, 7
  %v5404 = vor.u32 %v5403, %v1124
  %v5405 = vsel %vm5329, %v5402, %v5404
  %v5406 = vrot.slane %v5403, 4
  %v5408 = vshrl.u32 %v5315, 16
  %v5410 = vrot.slane %v5408, 7
  %v5411 = vshll.u32 %v5315, 16
  %v5413 = vor.u32 %v5410, %v5411
  %v5414 = vsel %vm5329, %v5406, %v5413
  %v5416 = vshrl.u32 %v4704, 16
  %v5418 = vrot.slane %v5416, 7
  %v5419 = vrot.slane %v5418, 4
  %v5420 = vrot.slane %v1152, 7
  %v5421 = vor.u32 %v5420, %v1148
  %v5422 = vsel %vm5329, %v5419, %v5421
  %v5423 = vrot.slane %v5420, 4
  %v5425 = vshrl.u32 %v5316, 16
  %v5427 = vrot.slane %v5425, 7
  %v5428 = vshll.u32 %v5316, 16
  %v5430 = vor.u32 %v5427, %v5428
  %v5431 = vsel %vm5329, %v5423, %v5430
  %v5433 = vshrl.u32 %v4705, 16
  %v5435 = vrot.slane %v5433, 7
  %v5436 = vrot.slane %v5435, 4
  %v5437 = vrot.slane %v1176, 7
  %v5438 = vor.u32 %v5437, %v1172
  %v5439 = vsel %vm5329, %v5436, %v5438
  %v5440 = vrot.slane %v5437, 4
  %v5442 = vshrl.u32 %v5317, 16
  %v5444 = vrot.slane %v5442, 7
  %v5445 = vshll.u32 %v5317, 16
  %v5447 = vor.u32 %v5444, %v5445
  %v5448 = vsel %vm5329, %v5440, %v5447
  %v5450 = vshrl.u32 %v4706, 16
  %v5452 = vrot.slane %v5450, 7
  %v5453 = vrot.slane %v5452, 4
  %v5454 = vrot.slane %v1200, 7
  %v5455 = vor.u32 %v5454, %v1196
  %v5456 = vsel %vm5329, %v5453, %v5455
  %v5457 = vrot.slane %v5454, 4
  %v5459 = vshrl.u32 %v5318, 16
  %v5461 = vrot.slane %v5459, 7
  %v5462 = vshll.u32 %v5318, 16
  %v5464 = vor.u32 %v5461, %v5462
  %v5465 = vsel %vm5329, %v5457, %v5464
  %v5467 = vshrl.u32 %v4707, 16
  %v5469 = vrot.slane %v5467, 7
  %v5470 = vrot.slane %v5469, 4
  %v5471 = vrot.slane %v1224, 7
  %v5472 = vor.u32 %v5471, %v1220
  %v5473 = vsel %vm5329, %v5470, %v5472
  %v5474 = vrot.slane %v5471, 4
  %v5476 = vshrl.u32 %v5319, 16
  %v5478 = vrot.slane %v5476, 7
  %v5479 = vshll.u32 %v5319, 16
  %v5481 = vor.u32 %v5478, %v5479
  %v5482 = vsel %vm5329, %v5474, %v5481
  %v5484 = vshrl.u32 %v4708, 16
  %v5486 = vrot.slane %v5484, 7
  %v5487 = vrot.slane %v5486, 4
  %v5488 = vrot.slane %v1248, 7
  %v5489 = vor.u32 %v5488, %v1244
  %v5490 = vsel %vm5329, %v5487, %v5489
  %v5491 = vrot.slane %v5488, 4
  %v5493 = vshrl.u32 %v5320, 16
  %v5495 = vrot.slane %v5493, 7
  %v5496 = vshll.u32 %v5320, 16
  %v5498 = vor.u32 %v5495, %v5496
  %v5499 = vsel %vm5329, %v5491, %v5498
  %v5501 = vshrl.u32 %v4709, 16
  %v5503 = vrot.slane %v5501, 7
  %v5504 = vrot.slane %v5503, 4
  %v5505 = vrot.slane %v1272, 7
  %v5506 = vor.u32 %v5505, %v1268
  %v5507 = vsel %vm5329, %v5504, %v5506
  %v5508 = vrot.slane %v5505, 4
  %v5510 = vshrl.u32 %v5321, 16
  %v5512 = vrot.slane %v5510, 7
  %v5513 = vshll.u32 %v5321, 16
  %v5515 = vor.u32 %v5512, %v5513
  %v5516 = vsel %vm5329, %v5508, %v5515
  %v5518 = vshrl.u32 %v4710, 16
  %v5520 = vrot.slane %v5518, 7
  %v5521 = vrot.slane %v5520, 4
  %v5522 = vrot.slane %v1296, 7
  %v5523 = vor.u32 %v5522, %v1292
  %v5524 = vsel %vm5329, %v5521, %v5523
  %v5525 = vrot.slane %v5522, 4
  %v5527 = vshrl.u32 %v5322, 16
  %v5529 = vrot.slane %v5527, 7
  %v5530 = vshll.u32 %v5322, 16
  %v5532 = vor.u32 %v5529, %v5530
  %v5533 = vsel %vm5329, %v5525, %v5532
  %v5535 = vshrl.u32 %v4711, 16
  %v5537 = vrot.slane %v5535, 7
  %v5538 = vrot.slane %v5537, 4
  %v5539 = vrot.slane %v1320, 7
  %v5540 = vor.u32 %v5539, %v1316
  %v5541 = vsel %vm5329, %v5538, %v5540
  %v5542 = vrot.slane %v5539, 4
  %v5544 = vshrl.u32 %v5323, 16
  %v5546 = vrot.slane %v5544, 7
  %v5547 = vshll.u32 %v5323, 16
  %v5549 = vor.u32 %v5546, %v5547
  %v5550 = vsel %vm5329, %v5542, %v5549
  %v5552 = vshrl.u32 %v4712, 16
  %v5554 = vrot.slane %v5552, 7
  %v5555 = vrot.slane %v5554, 4
  %v5556 = vrot.slane %v1344, 7
  %v5557 = vor.u32 %v5556, %v1340
  %v5558 = vsel %vm5329, %v5555, %v5557
  %v5559 = vrot.slane %v5556, 4
  %v5561 = vshrl.u32 %v5324, 16
  %v5563 = vrot.slane %v5561, 7
  %v5564 = vshll.u32 %v5324, 16
  %v5566 = vor.u32 %v5563, %v5564
  %v5567 = vsel %vm5329, %v5559, %v5566
  %v5569 = vshrl.u32 %v4713, 16
  %v5571 = vrot.slane %v5569, 7
  %v5572 = vrot.slane %v5571, 4
  %v5573 = vrot.slane %v1368, 7
  %v5574 = vor.u32 %v5573, %v1364
  %v5575 = vsel %vm5329, %v5572, %v5574
  %v5576 = vrot.slane %v5573, 4
  %v5578 = vshrl.u32 %v5325, 16
  %v5580 = vrot.slane %v5578, 7
  %v5581 = vshll.u32 %v5325, 16
  %v5583 = vor.u32 %v5580, %v5581
  %v5584 = vsel %vm5329, %v5576, %v5583
  %v5586 = vshrl.u32 %v4714, 16
  %v5588 = vrot.slane %v5586, 7
  %v5589 = vrot.slane %v5588, 4
  %v5590 = vrot.slane %v1392, 7
  %v5591 = vor.u32 %v5590, %v1388
  %v5592 = vsel %vm5329, %v5589, %v5591
  %v5593 = vrot.slane %v5590, 4
  %v5595 = vshrl.u32 %v5326, 16
  %v5597 = vrot.slane %v5595, 7
  %v5598 = vshll.u32 %v5326, 16
  %v5600 = vor.u32 %v5597, %v5598
  %v5601 = vsel %vm5329, %v5593, %v5600
  %v5602 = vld [vmem:[%s4 + $0x300] sm:$0xf]
  %v5603 = vld [vmem:[%s4 + $0x304] sm:$0xf]
  %v5604 = vld [vmem:[%s4 + $0x308] sm:$0xf]
  %v5605 = vld [vmem:[%s4 + $0x30c] sm:$0xf]
  %v5606 = vld [vmem:[%s4 + $0x310] sm:$0xf]
  %v5607 = vld [vmem:[%s4 + $0x314] sm:$0xf]
  %v5608 = vld [vmem:[%s4 + $0x318] sm:$0xf]
  %v5609 = vld [vmem:[%s4 + $0x31c] sm:$0xf]
  %v5610 = vld [vmem:[%s4 + $0x320] sm:$0xf]
  %v5611 = vld [vmem:[%s4 + $0x324] sm:$0xf]
  %v5612 = vld [vmem:[%s4 + $0x328] sm:$0xf]
  %v5613 = vld [vmem:[%s4 + $0x32c] sm:$0xf]
  %v5614 = vld [vmem:[%s4 + $0x330] sm:$0xf]
  %v5615 = vld [vmem:[%s4 + $0x334] sm:$0xf]
  %v5616 = vld [vmem:[%s4 + $0x338] sm:$0xf]
  %v5617 = vld [vmem:[%s4 + $0x33c] sm:$0xf]
  %v5618 = vld [vmem:[%s4 + $0x340] sm:$0xf]
  %v5619 = vld [vmem:[%s4 + $0x344] sm:$0xf]
  %v5620 = vld [vmem:[%s4 + $0x348] sm:$0xf]
  %v5621 = vld [vmem:[%s4 + $0x34c] sm:$0xf]
  %v5622 = vld [vmem:[%s4 + $0x350] sm:$0xf]
  %v5623 = vld [vmem:[%s4 + $0x354] sm:$0xf]
  %v5624 = vld [vmem:[%s4 + $0x358] sm:$0xf]
  %v5625 = vld [vmem:[%s4 + $0x35c] sm:$0xf]
  %v5626 = vld [vmem:[%s4 + $0x360] sm:$0xf]
  %v5627 = vld [vmem:[%s4 + $0x364] sm:$0xf]
  %v5628 = vld [vmem:[%s4 + $0x368] sm:$0xf]
  %v5629 = vld [vmem:[%s4 + $0x36c] sm:$0xf]
  %v5630 = vld [vmem:[%s4 + $0x370] sm:$0xf]
  %v5631 = vld [vmem:[%s4 + $0x374] sm:$0xf]
  %v5632 = vld [vmem:[%s4 + $0x378] sm:$0xf]
  %v5633 = vld [vmem:[%s4 + $0x37c] sm:$0xf]
  %v5634 = vunpack.c.l.b16 %v5337
  %v5635 = vunpack.c.h.b16 %v5337
  %v5636 = vunpack.c.l.b16 %v5346
  %v5637 = vunpack.c.h.b16 %v5346
  %v5638 = vunpack.c.l.b16 %v5354
  %v5639 = vunpack.c.h.b16 %v5354
  %v5640 = vunpack.c.l.b16 %v5363
  %v5641 = vunpack.c.h.b16 %v5363
  %v5642 = vunpack.c.l.b16 %v5371
  %v5643 = vunpack.c.h.b16 %v5371
  %v5644 = vunpack.c.l.b16 %v5380
  %v5645 = vunpack.c.h.b16 %v5380
  %v5646 = vunpack.c.l.b16 %v5388
  %v5647 = vunpack.c.h.b16 %v5388
  %v5648 = vunpack.c.l.b16 %v5397
  %v5649 = vunpack.c.h.b16 %v5397
  %v5650 = vunpack.c.l.b16 %v5405
  %v5651 = vunpack.c.h.b16 %v5405
  %v5652 = vunpack.c.l.b16 %v5414
  %v5653 = vunpack.c.h.b16 %v5414
  %v5654 = vunpack.c.l.b16 %v5422
  %v5655 = vunpack.c.h.b16 %v5422
  %v5656 = vunpack.c.l.b16 %v5431
  %v5657 = vunpack.c.h.b16 %v5431
  %v5658 = vunpack.c.l.b16 %v5439
  %v5659 = vunpack.c.h.b16 %v5439
  %v5660 = vunpack.c.l.b16 %v5448
  %v5661 = vunpack.c.h.b16 %v5448
  %v5662 = vunpack.c.l.b16 %v5456
  %v5663 = vunpack.c.h.b16 %v5456
  %v5664 = vunpack.c.l.b16 %v5465
  %v5665 = vunpack.c.h.b16 %v5465
  %v5666 = vunpack.c.l.b16 %v5473
  %v5667 = vunpack.c.h.b16 %v5473
  %v5668 = vunpack.c.l.b16 %v5482
  %v5669 = vunpack.c.h.b16 %v5482
  %v5670 = vunpack.c.l.b16 %v5490
  %v5671 = vunpack.c.h.b16 %v5490
  %v5672 = vunpack.c.l.b16 %v5499
  %v5673 = vunpack.c.h.b16 %v5499
  %v5674 = vunpack.c.l.b16 %v5507
  %v5675 = vunpack.c.h.b16 %v5507
  %v5676 = vunpack.c.l.b16 %v5516
  %v5677 = vunpack.c.h.b16 %v5516
  %v5678 = vunpack.c.l.b16 %v5524
  %v5679 = vunpack.c.h.b16 %v5524
  %v5680 = vunpack.c.l.b16 %v5533
  %v5681 = vunpack.c.h.b16 %v5533
  %v5682 = vunpack.c.l.b16 %v5541
  %v5683 = vunpack.c.h.b16 %v5541
  %v5684 = vunpack.c.l.b16 %v5550
  %v5685 = vunpack.c.h.b16 %v5550
  %v5686 = vunpack.c.l.b16 %v5558
  %v5687 = vunpack.c.h.b16 %v5558
  %v5688 = vunpack.c.l.b16 %v5567
  %v5689 = vunpack.c.h.b16 %v5567
  %v5690 = vunpack.c.l.b16 %v5575
  %v5691 = vunpack.c.h.b16 %v5575
  %v5692 = vunpack.c.l.b16 %v5584
  %v5693 = vunpack.c.h.b16 %v5584
  %v5694 = vunpack.c.l.b16 %v5592
  %v5695 = vunpack.c.h.b16 %v5592
  %v5696 = vunpack.c.l.b16 %v5601
  %v5697 = vunpack.c.h.b16 %v5601
  %v5698 = vpack.c.b16 %v5636, %v5634
  %v5699 = vpack.c.b16 %v5637, %v5635
  %v5700 = vpack.c.b16 %v5640, %v5638
  %v5701 = vpack.c.b16 %v5641, %v5639
  %v5702 = vpack.c.b16 %v5644, %v5642
  %v5703 = vpack.c.b16 %v5645, %v5643
  %v5704 = vpack.c.b16 %v5648, %v5646
  %v5705 = vpack.c.b16 %v5649, %v5647
  %v5706 = vpack.c.b16 %v5652, %v5650
  %v5707 = vpack.c.b16 %v5653, %v5651
  %v5708 = vpack.c.b16 %v5656, %v5654
  %v5709 = vpack.c.b16 %v5657, %v5655
  %v5710 = vpack.c.b16 %v5660, %v5658
  %v5711 = vpack.c.b16 %v5661, %v5659
  %v5712 = vpack.c.b16 %v5664, %v5662
  %v5713 = vpack.c.b16 %v5665, %v5663
  %v5714 = vpack.c.b16 %v5668, %v5666
  %v5715 = vpack.c.b16 %v5669, %v5667
  %v5716 = vpack.c.b16 %v5672, %v5670
  %v5717 = vpack.c.b16 %v5673, %v5671
  %v5718 = vpack.c.b16 %v5676, %v5674
  %v5719 = vpack.c.b16 %v5677, %v5675
  %v5720 = vpack.c.b16 %v5680, %v5678
  %v5721 = vpack.c.b16 %v5681, %v5679
  %v5722 = vpack.c.b16 %v5684, %v5682
  %v5723 = vpack.c.b16 %v5685, %v5683
  %v5724 = vpack.c.b16 %v5688, %v5686
  %v5725 = vpack.c.b16 %v5689, %v5687
  %v5726 = vpack.c.b16 %v5692, %v5690
  %v5727 = vpack.c.b16 %v5693, %v5691
  %v5728 = vpack.c.b16 %v5696, %v5694
  %v5729 = vpack.c.b16 %v5697, %v5695
  %v5794 = vunpack.c.l.b16 %v5602
  %v5795 = vunpack.c.l.b16 %v5603
  %v5796 = vunpack.c.l.b16 %v5604
  %v5797 = vunpack.c.l.b16 %v5605
  %v5798 = vunpack.c.l.b16 %v5606
  %v5799 = vunpack.c.l.b16 %v5607
  %v5800 = vunpack.c.l.b16 %v5608
  %v5801 = vunpack.c.l.b16 %v5609
  %v5802 = vunpack.c.l.b16 %v5610
  %v5803 = vunpack.c.l.b16 %v5611
  %v5804 = vunpack.c.l.b16 %v5612
  %v5805 = vunpack.c.l.b16 %v5613
  %v5806 = vunpack.c.l.b16 %v5614
  %v5807 = vunpack.c.l.b16 %v5615
  %v5808 = vunpack.c.l.b16 %v5616
  %v5809 = vunpack.c.l.b16 %v5617
  %v5810 = vunpack.c.l.b16 %v5618
  %v5811 = vunpack.c.l.b16 %v5619
  %v5812 = vunpack.c.l.b16 %v5620
  %v5813 = vunpack.c.l.b16 %v5621
  %v5814 = vunpack.c.l.b16 %v5622
  %v5815 = vunpack.c.l.b16 %v5623
  %v5816 = vunpack.c.l.b16 %v5624
  %v5817 = vunpack.c.l.b16 %v5625
  %v5818 = vunpack.c.l.b16 %v5626
  %v5819 = vunpack.c.l.b16 %v5627
  %v5820 = vunpack.c.l.b16 %v5628
  %v5821 = vunpack.c.l.b16 %v5629
  %v5822 = vunpack.c.l.b16 %v5630
  %v5823 = vunpack.c.l.b16 %v5631
  %v5824 = vunpack.c.l.b16 %v5632
  %v5825 = vunpack.c.l.b16 %v5633
  %v5826 = vpack.c.b16 %v5795, %v5794
  %v5827 = vpack.c.b16 %v5797, %v5796
  %v5828 = vpack.c.b16 %v5799, %v5798
  %v5829 = vpack.c.b16 %v5801, %v5800
  %v5830 = vpack.c.b16 %v5803, %v5802
  %v5831 = vpack.c.b16 %v5805, %v5804
  %v5832 = vpack.c.b16 %v5807, %v5806
  %v5833 = vpack.c.b16 %v5809, %v5808
  %v5834 = vpack.c.b16 %v5811, %v5810
  %v5835 = vpack.c.b16 %v5813, %v5812
  %v5836 = vpack.c.b16 %v5815, %v5814
  %v5837 = vpack.c.b16 %v5817, %v5816
  %v5838 = vpack.c.b16 %v5819, %v5818
  %v5839 = vpack.c.b16 %v5821, %v5820
  %v5840 = vpack.c.b16 %v5823, %v5822
  %v5841 = vpack.c.b16 %v5825, %v5824
  %5858 = vmatprep.subr.bf16.mxu0 0
  %5859 = vmatpush1.bf16.msra.mxu0 %v5833
  %5860 = vmatprep.subr.bf16.mxu0 0
  %5861 = vmatpush1.bf16.msra.mxu0 %v5832
  %5862 = vmatprep.subr.bf16.mxu0 0
  %5863 = vmatpush1.bf16.msra.mxu0 %v5831
  %5864 = vmatprep.subr.bf16.mxu0 0
  %5865 = vmatpush1.bf16.msra.mxu0 %v5830
  %5866 = vmatprep.subr.bf16.mxu0 0
  %5867 = vmatpush1.bf16.msra.mxu0 %v5829
  %5868 = vmatprep.subr.bf16.mxu0 0
  %5869 = vmatpush1.bf16.msra.mxu0 %v5828
  %5870 = vmatprep.subr.bf16.mxu0 0
  %5871 = vmatpush1.bf16.msra.mxu0 %v5827
  %5872 = vmatprep.subr.bf16.mxu0 0
  %5873 = vmatpush1.bf16.msra.mxu0 %v5826
  %5874 = vmatprep.subr.bf16.mxu0 0
  %5875 = vmatpush2.bf16.msra.mxu0 %v5841
  %5876 = vmatprep.subr.bf16.mxu0 0
  %5877 = vmatpush2.bf16.msra.mxu0 %v5840
  %5878 = vmatprep.subr.bf16.mxu0 0
  %5879 = vmatpush2.bf16.msra.mxu0 %v5839
  %5880 = vmatprep.subr.bf16.mxu0 0
  %5881 = vmatpush2.bf16.msra.mxu0 %v5838
  %5882 = vmatprep.subr.bf16.mxu0 0
  %5883 = vmatpush2.bf16.msra.mxu0 %v5837
  %5884 = vmatprep.subr.bf16.mxu0 0
  %5885 = vmatpush2.bf16.msra.mxu0 %v5836
  %5886 = vmatprep.subr.bf16.mxu0 0
  %5887 = vmatpush2.bf16.msra.mxu0 %v5835
  %5888 = vmatprep.subr.bf16.mxu0 0
  %5889 = vmatpush2.bf16.msra.mxu0 %v5834
  %5890 = vmatprep.mubr.bf16.mxu0 %v5699
  %5891 = vmatmul.mubr.bf16.gmra.mxu0 %v5698
  %v5892 = vpop.f32.mrf.mxu0
  %v5893 = vadd.f32 0.0, %v5892
  %v5894 = vpop.f32.mrf.mxu0
  %v5895 = vpop.f32.mrf.mxu0
  %v5896 = vadd.f32 0.0, %v5895
  %v5897 = vpop.f32.mrf.mxu0
  %5898 = vmatprep.mubr.bf16.mxu0 %v5701
  %5899 = vmatmul.mubr.bf16.gmra.mxu0 %v5700
  %v5900 = vpop.f32.mrf.mxu0
  %v5901 = vadd.f32 0.0, %v5900
  %v5902 = vpop.f32.mrf.mxu0
  %v5903 = vpop.f32.mrf.mxu0
  %v5904 = vadd.f32 0.0, %v5903
  %v5905 = vpop.f32.mrf.mxu0
  %5906 = vmatprep.mubr.bf16.mxu0 %v5703
  %5907 = vmatmul.mubr.bf16.gmra.mxu0 %v5702
  %v5908 = vpop.f32.mrf.mxu0
  %v5909 = vadd.f32 0.0, %v5908
  %v5910 = vpop.f32.mrf.mxu0
  %v5911 = vpop.f32.mrf.mxu0
  %v5912 = vadd.f32 0.0, %v5911
  %v5913 = vpop.f32.mrf.mxu0
  %5914 = vmatprep.mubr.bf16.mxu0 %v5705
  %5915 = vmatmul.mubr.bf16.gmra.mxu0 %v5704
  %v5916 = vpop.f32.mrf.mxu0
  %v5917 = vadd.f32 0.0, %v5916
  %v5918 = vpop.f32.mrf.mxu0
  %v5919 = vpop.f32.mrf.mxu0
  %v5920 = vadd.f32 0.0, %v5919
  %v5921 = vpop.f32.mrf.mxu0
  %5922 = vmatprep.mubr.bf16.mxu0 %v5707
  %5923 = vmatmul.mubr.bf16.gmra.mxu0 %v5706
  %v5924 = vpop.f32.mrf.mxu0
  %v5925 = vadd.f32 0.0, %v5924
  %v5926 = vpop.f32.mrf.mxu0
  %v5927 = vpop.f32.mrf.mxu0
  %v5928 = vadd.f32 0.0, %v5927
  %v5929 = vpop.f32.mrf.mxu0
  %5930 = vmatprep.mubr.bf16.mxu0 %v5709
  %5931 = vmatmul.mubr.bf16.gmra.mxu0 %v5708
  %v5932 = vpop.f32.mrf.mxu0
  %v5933 = vadd.f32 0.0, %v5932
  %v5934 = vpop.f32.mrf.mxu0
  %v5935 = vpop.f32.mrf.mxu0
  %v5936 = vadd.f32 0.0, %v5935
  %v5937 = vpop.f32.mrf.mxu0
  %5938 = vmatprep.mubr.bf16.mxu0 %v5711
  %5939 = vmatmul.mubr.bf16.gmra.mxu0 %v5710
  %v5940 = vpop.f32.mrf.mxu0
  %v5941 = vadd.f32 0.0, %v5940
  %v5942 = vpop.f32.mrf.mxu0
  %v5943 = vpop.f32.mrf.mxu0
  %v5944 = vadd.f32 0.0, %v5943
  %v5945 = vpop.f32.mrf.mxu0
  %5946 = vmatprep.mubr.bf16.mxu0 %v5713
  %5947 = vmatmul.mubr.bf16.gmra.mxu0 %v5712
  %v5948 = vpop.f32.mrf.mxu0
  %v5949 = vadd.f32 0.0, %v5948
  %v5950 = vpop.f32.mrf.mxu0
  %v5951 = vpop.f32.mrf.mxu0
  %v5952 = vadd.f32 0.0, %v5951
  %v5953 = vpop.f32.mrf.mxu0
  %5954 = vmatprep.mubr.bf16.mxu0 %v5715
  %5955 = vmatmul.mubr.bf16.gmra.mxu0 %v5714
  %v5956 = vpop.f32.mrf.mxu0
  %v5957 = vadd.f32 0.0, %v5956
  %v5958 = vpop.f32.mrf.mxu0
  %v5959 = vpop.f32.mrf.mxu0
  %v5960 = vadd.f32 0.0, %v5959
  %v5961 = vpop.f32.mrf.mxu0
  %5962 = vmatprep.mubr.bf16.mxu0 %v5717
  %5963 = vmatmul.mubr.bf16.gmra.mxu0 %v5716
  %v5964 = vpop.f32.mrf.mxu0
  %v5965 = vadd.f32 0.0, %v5964
  %v5966 = vpop.f32.mrf.mxu0
  %v5967 = vpop.f32.mrf.mxu0
  %v5968 = vadd.f32 0.0, %v5967
  %v5969 = vpop.f32.mrf.mxu0
  %5970 = vmatprep.mubr.bf16.mxu0 %v5719
  %5971 = vmatmul.mubr.bf16.gmra.mxu0 %v5718
  %v5972 = vpop.f32.mrf.mxu0
  %v5973 = vadd.f32 0.0, %v5972
  %v5974 = vpop.f32.mrf.mxu0
  %v5975 = vpop.f32.mrf.mxu0
  %v5976 = vadd.f32 0.0, %v5975
  %v5977 = vpop.f32.mrf.mxu0
  %5978 = vmatprep.mubr.bf16.mxu0 %v5721
  %5979 = vmatmul.mubr.bf16.gmra.mxu0 %v5720
  %v5980 = vpop.f32.mrf.mxu0
  %v5981 = vadd.f32 0.0, %v5980
  %v5982 = vpop.f32.mrf.mxu0
  %v5983 = vpop.f32.mrf.mxu0
  %v5984 = vadd.f32 0.0, %v5983
  %v5985 = vpop.f32.mrf.mxu0
  %5986 = vmatprep.mubr.bf16.mxu0 %v5723
  %5987 = vmatmul.mubr.bf16.gmra.mxu0 %v5722
  %v5988 = vpop.f32.mrf.mxu0
  %v5989 = vadd.f32 0.0, %v5988
  %v5990 = vpop.f32.mrf.mxu0
  %v5991 = vpop.f32.mrf.mxu0
  %v5992 = vadd.f32 0.0, %v5991
  %v5993 = vpop.f32.mrf.mxu0
  %5994 = vmatprep.mubr.bf16.mxu0 %v5725
  %5995 = vmatmul.mubr.bf16.gmra.mxu0 %v5724
  %v5996 = vpop.f32.mrf.mxu0
  %v5997 = vadd.f32 0.0, %v5996
  %v5998 = vpop.f32.mrf.mxu0
  %v5999 = vpop.f32.mrf.mxu0
  %v6000 = vadd.f32 0.0, %v5999
  %v6001 = vpop.f32.mrf.mxu0
  %6002 = vmatprep.mubr.bf16.mxu0 %v5727
  %6003 = vmatmul.mubr.bf16.gmra.mxu0 %v5726
  %v6004 = vpop.f32.mrf.mxu0
  %v6005 = vadd.f32 0.0, %v6004
  %v6006 = vpop.f32.mrf.mxu0
  %v6007 = vpop.f32.mrf.mxu0
  %v6008 = vadd.f32 0.0, %v6007
  %v6009 = vpop.f32.mrf.mxu0
  %6010 = vmatprep.mubr.bf16.mxu0 %v5729
  %6011 = vmatmul.mubr.bf16.gmra.mxu0 %v5728
  %v6012 = vpop.f32.mrf.mxu0
  %v6013 = vadd.f32 0.0, %v6012
  %v6014 = vpop.f32.mrf.mxu0
  %v6015 = vpop.f32.mrf.mxu0
  %v6016 = vadd.f32 0.0, %v6015
  %v6017 = vpop.f32.mrf.mxu0
  %6018 = vdwg.mxu0
  %v6019 = vadd.f32 %v5279, %v5893
  %v6020 = vadd.f32 %v5280, %v5896
  %v6021 = vadd.f32 %v5281, %v5901
  %v6022 = vadd.f32 %v5282, %v5904
  %v6023 = vadd.f32 %v5283, %v5909
  %v6024 = vadd.f32 %v5284, %v5912
  %v6025 = vadd.f32 %v5285, %v5917
  %v6026 = vadd.f32 %v5286, %v5920
  %v6027 = vadd.f32 %v5287, %v5925
  %v6028 = vadd.f32 %v5288, %v5928
  %v6029 = vadd.f32 %v5289, %v5933
  %v6030 = vadd.f32 %v5290, %v5936
  %v6031 = vadd.f32 %v5291, %v5941
  %v6032 = vadd.f32 %v5292, %v5944
  %v6033 = vadd.f32 %v5293, %v5949
  %v6034 = vadd.f32 %v5294, %v5952
  %v6035 = vadd.f32 %v5295, %v5957
  %v6036 = vadd.f32 %v5296, %v5960
  %v6037 = vadd.f32 %v5297, %v5965
  %v6038 = vadd.f32 %v5298, %v5968
  %v6039 = vadd.f32 %v5299, %v5973
  %v6040 = vadd.f32 %v5300, %v5976
  %v6041 = vadd.f32 %v5301, %v5981
  %v6042 = vadd.f32 %v5302, %v5984
  %v6043 = vadd.f32 %v5303, %v5989
  %v6044 = vadd.f32 %v5304, %v5992
  %v6045 = vadd.f32 %v5305, %v5997
  %v6046 = vadd.f32 %v5306, %v6000
  %v6047 = vadd.f32 %v5307, %v6005
  %v6048 = vadd.f32 %v5308, %v6008
  %v6049 = vadd.f32 %v5309, %v6013
  %v6050 = vadd.f32 %v5310, %v6016
  %v6051 = vld [vmem:[%s4 + $0x380] sm:$0xf]
  %v6052 = vld [vmem:[%s4 + $0x384] sm:$0xf]
  %v6053 = vld [vmem:[%s4 + $0x388] sm:$0xf]
  %v6054 = vld [vmem:[%s4 + $0x38c] sm:$0xf]
  %v6055 = vld [vmem:[%s4 + $0x390] sm:$0xf]
  %v6056 = vld [vmem:[%s4 + $0x394] sm:$0xf]
  %v6057 = vld [vmem:[%s4 + $0x398] sm:$0xf]
  %v6058 = vld [vmem:[%s4 + $0x39c] sm:$0xf]
  %v6059 = vld [vmem:[%s4 + $0x3a0] sm:$0xf]
  %v6060 = vld [vmem:[%s4 + $0x3a4] sm:$0xf]
  %v6061 = vld [vmem:[%s4 + $0x3a8] sm:$0xf]
  %v6062 = vld [vmem:[%s4 + $0x3ac] sm:$0xf]
  %v6063 = vld [vmem:[%s4 + $0x3b0] sm:$0xf]
  %v6064 = vld [vmem:[%s4 + $0x3b4] sm:$0xf]
  %v6065 = vld [vmem:[%s4 + $0x3b8] sm:$0xf]
  %v6066 = vld [vmem:[%s4 + $0x3bc] sm:$0xf]
  %v6067 = vld [vmem:[%s4 + $0x3c0] sm:$0xf]
  %v6068 = vld [vmem:[%s4 + $0x3c4] sm:$0xf]
  %v6069 = vld [vmem:[%s4 + $0x3c8] sm:$0xf]
  %v6070 = vld [vmem:[%s4 + $0x3cc] sm:$0xf]
  %v6071 = vld [vmem:[%s4 + $0x3d0] sm:$0xf]
  %v6072 = vld [vmem:[%s4 + $0x3d4] sm:$0xf]
  %v6073 = vld [vmem:[%s4 + $0x3d8] sm:$0xf]
  %v6074 = vld [vmem:[%s4 + $0x3dc] sm:$0xf]
  %v6075 = vld [vmem:[%s4 + $0x3e0] sm:$0xf]
  %v6076 = vld [vmem:[%s4 + $0x3e4] sm:$0xf]
  %v6077 = vld [vmem:[%s4 + $0x3e8] sm:$0xf]
  %v6078 = vld [vmem:[%s4 + $0x3ec] sm:$0xf]
  %v6079 = vld [vmem:[%s4 + $0x3f0] sm:$0xf]
  %v6080 = vld [vmem:[%s4 + $0x3f4] sm:$0xf]
  %v6081 = vld [vmem:[%s4 + $0x3f8] sm:$0xf]
  %v6082 = vld [vmem:[%s4 + $0x3fc] sm:$0xf]
  %v6099 = vunpack.c.l.b16 %v968
  %v6100 = vunpack.c.h.b16 %v968
  %v6101 = vunpack.c.l.b16 %v5311
  %v6102 = vunpack.c.h.b16 %v5311
  %v6103 = vunpack.c.l.b16 %v971
  %v6104 = vunpack.c.h.b16 %v971
  %v6105 = vunpack.c.l.b16 %v5312
  %v6106 = vunpack.c.h.b16 %v5312
  %v6107 = vunpack.c.l.b16 %v974
  %v6108 = vunpack.c.h.b16 %v974
  %v6109 = vunpack.c.l.b16 %v5313
  %v6110 = vunpack.c.h.b16 %v5313
  %v6111 = vunpack.c.l.b16 %v977
  %v6112 = vunpack.c.h.b16 %v977
  %v6113 = vunpack.c.l.b16 %v5314
  %v6114 = vunpack.c.h.b16 %v5314
  %v6115 = vunpack.c.l.b16 %v980
  %v6116 = vunpack.c.h.b16 %v980
  %v6117 = vunpack.c.l.b16 %v5315
  %v6118 = vunpack.c.h.b16 %v5315
  %v6119 = vunpack.c.l.b16 %v983
  %v6120 = vunpack.c.h.b16 %v983
  %v6121 = vunpack.c.l.b16 %v5316
  %v6122 = vunpack.c.h.b16 %v5316
  %v6123 = vunpack.c.l.b16 %v986
  %v6124 = vunpack.c.h.b16 %v986
  %v6125 = vunpack.c.l.b16 %v5317
  %v6126 = vunpack.c.h.b16 %v5317
  %v6127 = vunpack.c.l.b16 %v989
  %v6128 = vunpack.c.h.b16 %v989
  %v6129 = vunpack.c.l.b16 %v5318
  %v6130 = vunpack.c.h.b16 %v5318
  %v6131 = vunpack.c.l.b16 %v992
  %v6132 = vunpack.c.h.b16 %v992
  %v6133 = vunpack.c.l.b16 %v5319
  %v6134 = vunpack.c.h.b16 %v5319
  %v6135 = vunpack.c.l.b16 %v995
  %v6136 = vunpack.c.h.b16 %v995
  %v6137 = vunpack.c.l.b16 %v5320
  %v6138 = vunpack.c.h.b16 %v5320
  %v6139 = vunpack.c.l.b16 %v998
  %v6140 = vunpack.c.h.b16 %v998
  %v6141 = vunpack.c.l.b16 %v5321
  %v6142 = vunpack.c.h.b16 %v5321
  %v6143 = vunpack.c.l.b16 %v1001
  %v6144 = vunpack.c.h.b16 %v1001
  %v6145 = vunpack.c.l.b16 %v5322
  %v6146 = vunpack.c.h.b16 %v5322
  %v6147 = vunpack.c.l.b16 %v1004
  %v6148 = vunpack.c.h.b16 %v1004
  %v6149 = vunpack.c.l.b16 %v5323
  %v6150 = vunpack.c.h.b16 %v5323
  %v6151 = vunpack.c.l.b16 %v1007
  %v6152 = vunpack.c.h.b16 %v1007
  %v6153 = vunpack.c.l.b16 %v5324
  %v6154 = vunpack.c.h.b16 %v5324
  %v6155 = vunpack.c.l.b16 %v1010
  %v6156 = vunpack.c.h.b16 %v1010
  %v6157 = vunpack.c.l.b16 %v5325
  %v6158 = vunpack.c.h.b16 %v5325
  %v6159 = vunpack.c.l.b16 %v1013
  %v6160 = vunpack.c.h.b16 %v1013
  %v6161 = vunpack.c.l.b16 %v5326
  %v6162 = vunpack.c.h.b16 %v5326
  %v6163 = vpack.c.b16 %v6101, %v6099
  %v6164 = vpack.c.b16 %v6102, %v6100
  %v6165 = vpack.c.b16 %v6105, %v6103
  %v6166 = vpack.c.b16 %v6106, %v6104
  %v6167 = vpack.c.b16 %v6109, %v6107
  %v6168 = vpack.c.b16 %v6110, %v6108
  %v6169 = vpack.c.b16 %v6113, %v6111
  %v6170 = vpack.c.b16 %v6114, %v6112
  %v6171 = vpack.c.b16 %v6117, %v6115
  %v6172 = vpack.c.b16 %v6118, %v6116
  %v6173 = vpack.c.b16 %v6121, %v6119
  %v6174 = vpack.c.b16 %v6122, %v6120
  %v6175 = vpack.c.b16 %v6125, %v6123
  %v6176 = vpack.c.b16 %v6126, %v6124
  %v6177 = vpack.c.b16 %v6129, %v6127
  %v6178 = vpack.c.b16 %v6130, %v6128
  %v6179 = vpack.c.b16 %v6133, %v6131
  %v6180 = vpack.c.b16 %v6134, %v6132
  %v6181 = vpack.c.b16 %v6137, %v6135
  %v6182 = vpack.c.b16 %v6138, %v6136
  %v6183 = vpack.c.b16 %v6141, %v6139
  %v6184 = vpack.c.b16 %v6142, %v6140
  %v6185 = vpack.c.b16 %v6145, %v6143
  %v6186 = vpack.c.b16 %v6146, %v6144
  %v6187 = vpack.c.b16 %v6149, %v6147
  %v6188 = vpack.c.b16 %v6150, %v6148
  %v6189 = vpack.c.b16 %v6153, %v6151
  %v6190 = vpack.c.b16 %v6154, %v6152
  %v6191 = vpack.c.b16 %v6157, %v6155
  %v6192 = vpack.c.b16 %v6158, %v6156
  %v6193 = vpack.c.b16 %v6161, %v6159
  %v6194 = vpack.c.b16 %v6162, %v6160
  %v6259 = vunpack.c.l.b16 %v6051
  %v6260 = vunpack.c.l.b16 %v6052
  %v6261 = vunpack.c.l.b16 %v6053
  %v6262 = vunpack.c.l.b16 %v6054
  %v6263 = vunpack.c.l.b16 %v6055
  %v6264 = vunpack.c.l.b16 %v6056
  %v6265 = vunpack.c.l.b16 %v6057
  %v6266 = vunpack.c.l.b16 %v6058
  %v6267 = vunpack.c.l.b16 %v6059
  %v6268 = vunpack.c.l.b16 %v6060
  %v6269 = vunpack.c.l.b16 %v6061
  %v6270 = vunpack.c.l.b16 %v6062
  %v6271 = vunpack.c.l.b16 %v6063
  %v6272 = vunpack.c.l.b16 %v6064
  %v6273 = vunpack.c.l.b16 %v6065
  %v6274 = vunpack.c.l.b16 %v6066
  %v6275 = vunpack.c.l.b16 %v6067
  %v6276 = vunpack.c.l.b16 %v6068
  %v6277 = vunpack.c.l.b16 %v6069
  %v6278 = vunpack.c.l.b16 %v6070
  %v6279 = vunpack.c.l.b16 %v6071
  %v6280 = vunpack.c.l.b16 %v6072
  %v6281 = vunpack.c.l.b16 %v6073
  %v6282 = vunpack.c.l.b16 %v6074
  %v6283 = vunpack.c.l.b16 %v6075
  %v6284 = vunpack.c.l.b16 %v6076
  %v6285 = vunpack.c.l.b16 %v6077
  %v6286 = vunpack.c.l.b16 %v6078
  %v6287 = vunpack.c.l.b16 %v6079
  %v6288 = vunpack.c.l.b16 %v6080
  %v6289 = vunpack.c.l.b16 %v6081
  %v6290 = vunpack.c.l.b16 %v6082
  %v6291 = vpack.c.b16 %v6260, %v6259
  %v6292 = vpack.c.b16 %v6262, %v6261
  %v6293 = vpack.c.b16 %v6264, %v6263
  %v6294 = vpack.c.b16 %v6266, %v6265
  %v6295 = vpack.c.b16 %v6268, %v6267
  %v6296 = vpack.c.b16 %v6270, %v6269
  %v6297 = vpack.c.b16 %v6272, %v6271
  %v6298 = vpack.c.b16 %v6274, %v6273
  %v6299 = vpack.c.b16 %v6276, %v6275
  %v6300 = vpack.c.b16 %v6278, %v6277
  %v6301 = vpack.c.b16 %v6280, %v6279
  %v6302 = vpack.c.b16 %v6282, %v6281
  %v6303 = vpack.c.b16 %v6284, %v6283
  %v6304 = vpack.c.b16 %v6286, %v6285
  %v6305 = vpack.c.b16 %v6288, %v6287
  %v6306 = vpack.c.b16 %v6290, %v6289
  %6323 = vmatprep.subr.bf16.mxu0 0
  %6324 = vmatpush1.bf16.msra.mxu0 %v6298
  %6325 = vmatprep.subr.bf16.mxu0 0
  %6326 = vmatpush1.bf16.msra.mxu0 %v6297
  %6327 = vmatprep.subr.bf16.mxu0 0
  %6328 = vmatpush1.bf16.msra.mxu0 %v6296
  %6329 = vmatprep.subr.bf16.mxu0 0
  %6330 = vmatpush1.bf16.msra.mxu0 %v6295
  %6331 = vmatprep.subr.bf16.mxu0 0
  %6332 = vmatpush1.bf16.msra.mxu0 %v6294
  %6333 = vmatprep.subr.bf16.mxu0 0
  %6334 = vmatpush1.bf16.msra.mxu0 %v6293
  %6335 = vmatprep.subr.bf16.mxu0 0
  %6336 = vmatpush1.bf16.msra.mxu0 %v6292
  %6337 = vmatprep.subr.bf16.mxu0 0
  %6338 = vmatpush1.bf16.msra.mxu0 %v6291
  %6339 = vmatprep.subr.bf16.mxu0 0
  %6340 = vmatpush2.bf16.msra.mxu0 %v6306
  %6341 = vmatprep.subr.bf16.mxu0 0
  %6342 = vmatpush2.bf16.msra.mxu0 %v6305
  %6343 = vmatprep.subr.bf16.mxu0 0
  %6344 = vmatpush2.bf16.msra.mxu0 %v6304
  %6345 = vmatprep.subr.bf16.mxu0 0
  %6346 = vmatpush2.bf16.msra.mxu0 %v6303
  %6347 = vmatprep.subr.bf16.mxu0 0
  %6348 = vmatpush2.bf16.msra.mxu0 %v6302
  %6349 = vmatprep.subr.bf16.mxu0 0
  %6350 = vmatpush2.bf16.msra.mxu0 %v6301
  %6351 = vmatprep.subr.bf16.mxu0 0
  %6352 = vmatpush2.bf16.msra.mxu0 %v6300
  %6353 = vmatprep.subr.bf16.mxu0 0
  %6354 = vmatpush2.bf16.msra.mxu0 %v6299
  %6355 = vmatprep.mubr.bf16.mxu0 %v6164
  %6356 = vmatmul.mubr.bf16.gmra.mxu0 %v6163
  %v6357 = vpop.f32.mrf.mxu0
  %v6358 = vadd.f32 0.0, %v6357
  %v6359 = vpop.f32.mrf.mxu0
  %v6360 = vpop.f32.mrf.mxu0
  %v6361 = vadd.f32 0.0, %v6360
  %v6362 = vpop.f32.mrf.mxu0
  %6363 = vmatprep.mubr.bf16.mxu0 %v6166
  %6364 = vmatmul.mubr.bf16.gmra.mxu0 %v6165
  %v6365 = vpop.f32.mrf.mxu0
  %v6366 = vadd.f32 0.0, %v6365
  %v6367 = vpop.f32.mrf.mxu0
  %v6368 = vpop.f32.mrf.mxu0
  %v6369 = vadd.f32 0.0, %v6368
  %v6370 = vpop.f32.mrf.mxu0
  %6371 = vmatprep.mubr.bf16.mxu0 %v6168
  %6372 = vmatmul.mubr.bf16.gmra.mxu0 %v6167
  %v6373 = vpop.f32.mrf.mxu0
  %v6374 = vadd.f32 0.0, %v6373
  %v6375 = vpop.f32.mrf.mxu0
  %v6376 = vpop.f32.mrf.mxu0
  %v6377 = vadd.f32 0.0, %v6376
  %v6378 = vpop.f32.mrf.mxu0
  %6379 = vmatprep.mubr.bf16.mxu0 %v6170
  %6380 = vmatmul.mubr.bf16.gmra.mxu0 %v6169
  %v6381 = vpop.f32.mrf.mxu0
  %v6382 = vadd.f32 0.0, %v6381
  %v6383 = vpop.f32.mrf.mxu0
  %v6384 = vpop.f32.mrf.mxu0
  %v6385 = vadd.f32 0.0, %v6384
  %v6386 = vpop.f32.mrf.mxu0
  %6387 = vmatprep.mubr.bf16.mxu0 %v6172
  %6388 = vmatmul.mubr.bf16.gmra.mxu0 %v6171
  %v6389 = vpop.f32.mrf.mxu0
  %v6390 = vadd.f32 0.0, %v6389
  %v6391 = vpop.f32.mrf.mxu0
  %v6392 = vpop.f32.mrf.mxu0
  %v6393 = vadd.f32 0.0, %v6392
  %v6394 = vpop.f32.mrf.mxu0
  %6395 = vmatprep.mubr.bf16.mxu0 %v6174
  %6396 = vmatmul.mubr.bf16.gmra.mxu0 %v6173
  %v6397 = vpop.f32.mrf.mxu0
  %v6398 = vadd.f32 0.0, %v6397
  %v6399 = vpop.f32.mrf.mxu0
  %v6400 = vpop.f32.mrf.mxu0
  %v6401 = vadd.f32 0.0, %v6400
  %v6402 = vpop.f32.mrf.mxu0
  %6403 = vmatprep.mubr.bf16.mxu0 %v6176
  %6404 = vmatmul.mubr.bf16.gmra.mxu0 %v6175
  %v6405 = vpop.f32.mrf.mxu0
  %v6406 = vadd.f32 0.0, %v6405
  %v6407 = vpop.f32.mrf.mxu0
  %v6408 = vpop.f32.mrf.mxu0
  %v6409 = vadd.f32 0.0, %v6408
  %v6410 = vpop.f32.mrf.mxu0
  %6411 = vmatprep.mubr.bf16.mxu0 %v6178
  %6412 = vmatmul.mubr.bf16.gmra.mxu0 %v6177
  %v6413 = vpop.f32.mrf.mxu0
  %v6414 = vadd.f32 0.0, %v6413
  %v6415 = vpop.f32.mrf.mxu0
  %v6416 = vpop.f32.mrf.mxu0
  %v6417 = vadd.f32 0.0, %v6416
  %v6418 = vpop.f32.mrf.mxu0
  %6419 = vmatprep.mubr.bf16.mxu0 %v6180
  %6420 = vmatmul.mubr.bf16.gmra.mxu0 %v6179
  %v6421 = vpop.f32.mrf.mxu0
  %v6422 = vadd.f32 0.0, %v6421
  %v6423 = vpop.f32.mrf.mxu0
  %v6424 = vpop.f32.mrf.mxu0
  %v6425 = vadd.f32 0.0, %v6424
  %v6426 = vpop.f32.mrf.mxu0
  %6427 = vmatprep.mubr.bf16.mxu0 %v6182
  %6428 = vmatmul.mubr.bf16.gmra.mxu0 %v6181
  %v6429 = vpop.f32.mrf.mxu0
  %v6430 = vadd.f32 0.0, %v6429
  %v6431 = vpop.f32.mrf.mxu0
  %v6432 = vpop.f32.mrf.mxu0
  %v6433 = vadd.f32 0.0, %v6432
  %v6434 = vpop.f32.mrf.mxu0
  %6435 = vmatprep.mubr.bf16.mxu0 %v6184
  %6436 = vmatmul.mubr.bf16.gmra.mxu0 %v6183
  %v6437 = vpop.f32.mrf.mxu0
  %v6438 = vadd.f32 0.0, %v6437
  %v6439 = vpop.f32.mrf.mxu0
  %v6440 = vpop.f32.mrf.mxu0
  %v6441 = vadd.f32 0.0, %v6440
  %v6442 = vpop.f32.mrf.mxu0
  %6443 = vmatprep.mubr.bf16.mxu0 %v6186
  %6444 = vmatmul.mubr.bf16.gmra.mxu0 %v6185
  %v6445 = vpop.f32.mrf.mxu0
  %v6446 = vadd.f32 0.0, %v6445
  %v6447 = vpop.f32.mrf.mxu0
  %v6448 = vpop.f32.mrf.mxu0
  %v6449 = vadd.f32 0.0, %v6448
  %v6450 = vpop.f32.mrf.mxu0
  %6451 = vmatprep.mubr.bf16.mxu0 %v6188
  %6452 = vmatmul.mubr.bf16.gmra.mxu0 %v6187
  %v6453 = vpop.f32.mrf.mxu0
  %v6454 = vadd.f32 0.0, %v6453
  %v6455 = vpop.f32.mrf.mxu0
  %v6456 = vpop.f32.mrf.mxu0
  %v6457 = vadd.f32 0.0, %v6456
  %v6458 = vpop.f32.mrf.mxu0
  %6459 = vmatprep.mubr.bf16.mxu0 %v6190
  %6460 = vmatmul.mubr.bf16.gmra.mxu0 %v6189
  %v6461 = vpop.f32.mrf.mxu0
  %v6462 = vadd.f32 0.0, %v6461
  %v6463 = vpop.f32.mrf.mxu0
  %v6464 = vpop.f32.mrf.mxu0
  %v6465 = vadd.f32 0.0, %v6464
  %v6466 = vpop.f32.mrf.mxu0
  %6467 = vmatprep.mubr.bf16.mxu0 %v6192
  %6468 = vmatmul.mubr.bf16.gmra.mxu0 %v6191
  %v6469 = vpop.f32.mrf.mxu0
  %v6470 = vadd.f32 0.0, %v6469
  %v6471 = vpop.f32.mrf.mxu0
  %v6472 = vpop.f32.mrf.mxu0
  %v6473 = vadd.f32 0.0, %v6472
  %v6474 = vpop.f32.mrf.mxu0
  %6475 = vmatprep.mubr.bf16.mxu0 %v6194
  %6476 = vmatmul.mubr.bf16.gmra.mxu0 %v6193
  %v6477 = vpop.f32.mrf.mxu0
  %v6478 = vadd.f32 0.0, %v6477
  %v6479 = vpop.f32.mrf.mxu0
  %v6480 = vpop.f32.mrf.mxu0
  %v6481 = vadd.f32 0.0, %v6480
  %v6482 = vpop.f32.mrf.mxu0
  %6483 = vdwg.mxu0
  %v6484 = vadd.f32 %v6019, %v6358
  %v6485 = vadd.f32 %v6020, %v6361
  %v6486 = vadd.f32 %v6021, %v6366
  %v6487 = vadd.f32 %v6022, %v6369
  %v6488 = vadd.f32 %v6023, %v6374
  %v6489 = vadd.f32 %v6024, %v6377
  %v6490 = vadd.f32 %v6025, %v6382
  %v6491 = vadd.f32 %v6026, %v6385
  %v6492 = vadd.f32 %v6027, %v6390
  %v6493 = vadd.f32 %v6028, %v6393
  %v6494 = vadd.f32 %v6029, %v6398
  %v6495 = vadd.f32 %v6030, %v6401
  %v6496 = vadd.f32 %v6031, %v6406
  %v6497 = vadd.f32 %v6032, %v6409
  %v6498 = vadd.f32 %v6033, %v6414
  %v6499 = vadd.f32 %v6034, %v6417
  %v6500 = vadd.f32 %v6035, %v6422
  %v6501 = vadd.f32 %v6036, %v6425
  %v6502 = vadd.f32 %v6037, %v6430
  %v6503 = vadd.f32 %v6038, %v6433
  %v6504 = vadd.f32 %v6039, %v6438
  %v6505 = vadd.f32 %v6040, %v6441
  %v6506 = vadd.f32 %v6041, %v6446
  %v6507 = vadd.f32 %v6042, %v6449
  %v6508 = vadd.f32 %v6043, %v6454
  %v6509 = vadd.f32 %v6044, %v6457
  %v6510 = vadd.f32 %v6045, %v6462
  %v6511 = vadd.f32 %v6046, %v6465
  %v6512 = vadd.f32 %v6047, %v6470
  %v6513 = vadd.f32 %v6048, %v6473
  %v6514 = vadd.f32 %v6049, %v6478
  %v6515 = vadd.f32 %v6050, %v6481
  %v6516 = vld [vmem:[#allocation2 + $0x8] sm:$0xff]
  %v6517 = vld [vmem:[#allocation2 + $0x10] sm:$0xff]
  %v6518 = vld [vmem:[#allocation2 + $0x18] sm:$0x11]
  %v6519 = vld [vmem:[#allocation2 + $0x28] sm:$0xff]
  %v6520 = vld [vmem:[#allocation2 + $0x30] sm:$0xff]
  %v6521 = vld [vmem:[#allocation2 + $0x38] sm:$0x11]
  %v6522 = vld [vmem:[#allocation2 + $0x48] sm:$0xff]
  %v6523 = vld [vmem:[#allocation2 + $0x50] sm:$0xff]
  %v6524 = vld [vmem:[#allocation2 + $0x58] sm:$0x11]
  %v6525 = vld [vmem:[#allocation2 + $0x68] sm:$0xff]
  %v6526 = vld [vmem:[#allocation2 + $0x70] sm:$0xff]
  %v6527 = vld [vmem:[#allocation2 + $0x78] sm:$0x11]
  %v6528 = vld [vmem:[#allocation2 + $0x88] sm:$0xff]
  %v6529 = vld [vmem:[#allocation2 + $0x90] sm:$0xff]
  %v6530 = vld [vmem:[#allocation2 + $0x98] sm:$0x11]
  %v6531 = vld [vmem:[#allocation2 + $0xa8] sm:$0xff]
  %v6532 = vld [vmem:[#allocation2 + $0xb0] sm:$0xff]
  %v6533 = vld [vmem:[#allocation2 + $0xb8] sm:$0x11]
  %v6534 = vld [vmem:[#allocation2 + $0xc8] sm:$0xff]
  %v6535 = vld [vmem:[#allocation2 + $0xd0] sm:$0xff]
  %v6536 = vld [vmem:[#allocation2 + $0xd8] sm:$0x11]
  %v6537 = vld [vmem:[#allocation2 + $0xe8] sm:$0xff]
  %v6538 = vld [vmem:[#allocation2 + $0xf0] sm:$0xff]
  %v6539 = vld [vmem:[#allocation2 + $0xf8] sm:$0x11]
  %v6540 = vld [vmem:[#allocation2 + $0x108] sm:$0xff]
  %v6541 = vld [vmem:[#allocation2 + $0x110] sm:$0xff]
  %v6542 = vld [vmem:[#allocation2 + $0x118] sm:$0x11]
  %v6543 = vld [vmem:[#allocation2 + $0x128] sm:$0xff]
  %v6544 = vld [vmem:[#allocation2 + $0x130] sm:$0xff]
  %v6545 = vld [vmem:[#allocation2 + $0x138] sm:$0x11]
  %v6546 = vld [vmem:[#allocation2 + $0x148] sm:$0xff]
  %v6547 = vld [vmem:[#allocation2 + $0x150] sm:$0xff]
  %v6548 = vld [vmem:[#allocation2 + $0x158] sm:$0x11]
  %v6549 = vld [vmem:[#allocation2 + $0x168] sm:$0xff]
  %v6550 = vld [vmem:[#allocation2 + $0x170] sm:$0xff]
  %v6551 = vld [vmem:[#allocation2 + $0x178] sm:$0x11]
  %v6552 = vld [vmem:[#allocation2 + $0x188] sm:$0xff]
  %v6553 = vld [vmem:[#allocation2 + $0x190] sm:$0xff]
  %v6554 = vld [vmem:[#allocation2 + $0x198] sm:$0x11]
  %v6555 = vld [vmem:[#allocation2 + $0x1a8] sm:$0xff]
  %v6556 = vld [vmem:[#allocation2 + $0x1b0] sm:$0xff]
  %v6557 = vld [vmem:[#allocation2 + $0x1b8] sm:$0x11]
  %v6558 = vld [vmem:[#allocation2 + $0x1c8] sm:$0xff]
  %v6559 = vld [vmem:[#allocation2 + $0x1d0] sm:$0xff]
  %v6560 = vld [vmem:[#allocation2 + $0x1d8] sm:$0x11]
  %v6561 = vld [vmem:[#allocation2 + $0x1e8] sm:$0xff]
  %v6562 = vld [vmem:[#allocation2 + $0x1f0] sm:$0xff]
  %v6563 = vld [vmem:[#allocation2 + $0x1f8] sm:$0x11]
  %v6565 = vshrl.u32 %v6516, 16
  %v6567 = vrot.slane %v6565, 4
  %v6568 = vshll.u32 %v6516, 16
  %v6570 = vrot.slane %v6568, 5
  %v6571 = vor.u32 %v6567, %v6570
  %v6572 = vrot.slane %v6571, 4
  %v6574 = vshll.u32 %v6517, 16
  %v6576 = vrot.slane %v6574, 5
  %v6577 = vsel %vm1017, %v6572, %v6576
  %v6578 = vshrl.u32 %v6517, 16
  %v6580 = vrot.slane %v6578, 4
  %v6581 = vor.u32 %v6580, %v6576
  %v6582 = vrot.slane %v6581, 4
  %v6584 = vshll.u32 %v6518, 16
  %v6586 = vrot.slane %v6584, 5
  %v6587 = vsel %vm1017, %v6582, %v6586
  %v6589 = vshrl.u32 %v6519, 16
  %v6591 = vrot.slane %v6589, 4
  %v6592 = vshll.u32 %v6519, 16
  %v6594 = vrot.slane %v6592, 5
  %v6595 = vor.u32 %v6591, %v6594
  %v6596 = vrot.slane %v6595, 4
  %v6598 = vshll.u32 %v6520, 16
  %v6600 = vrot.slane %v6598, 5
  %v6601 = vsel %vm1017, %v6596, %v6600
  %v6602 = vshrl.u32 %v6520, 16
  %v6604 = vrot.slane %v6602, 4
  %v6605 = vor.u32 %v6604, %v6600
  %v6606 = vrot.slane %v6605, 4
  %v6608 = vshll.u32 %v6521, 16
  %v6610 = vrot.slane %v6608, 5
  %v6611 = vsel %vm1017, %v6606, %v6610
  %v6613 = vshrl.u32 %v6522, 16
  %v6615 = vrot.slane %v6613, 4
  %v6616 = vshll.u32 %v6522, 16
  %v6618 = vrot.slane %v6616, 5
  %v6619 = vor.u32 %v6615, %v6618
  %v6620 = vrot.slane %v6619, 4
  %v6622 = vshll.u32 %v6523, 16
  %v6624 = vrot.slane %v6622, 5
  %v6625 = vsel %vm1017, %v6620, %v6624
  %v6626 = vshrl.u32 %v6523, 16
  %v6628 = vrot.slane %v6626, 4
  %v6629 = vor.u32 %v6628, %v6624
  %v6630 = vrot.slane %v6629, 4
  %v6632 = vshll.u32 %v6524, 16
  %v6634 = vrot.slane %v6632, 5
  %v6635 = vsel %vm1017, %v6630, %v6634
  %v6637 = vshrl.u32 %v6525, 16
  %v6639 = vrot.slane %v6637, 4
  %v6640 = vshll.u32 %v6525, 16
  %v6642 = vrot.slane %v6640, 5
  %v6643 = vor.u32 %v6639, %v6642
  %v6644 = vrot.slane %v6643, 4
  %v6646 = vshll.u32 %v6526, 16
  %v6648 = vrot.slane %v6646, 5
  %v6649 = vsel %vm1017, %v6644, %v6648
  %v6650 = vshrl.u32 %v6526, 16
  %v6652 = vrot.slane %v6650, 4
  %v6653 = vor.u32 %v6652, %v6648
  %v6654 = vrot.slane %v6653, 4
  %v6656 = vshll.u32 %v6527, 16
  %v6658 = vrot.slane %v6656, 5
  %v6659 = vsel %vm1017, %v6654, %v6658
  %v6661 = vshrl.u32 %v6528, 16
  %v6663 = vrot.slane %v6661, 4
  %v6664 = vshll.u32 %v6528, 16
  %v6666 = vrot.slane %v6664, 5
  %v6667 = vor.u32 %v6663, %v6666
  %v6668 = vrot.slane %v6667, 4
  %v6670 = vshll.u32 %v6529, 16
  %v6672 = vrot.slane %v6670, 5
  %v6673 = vsel %vm1017, %v6668, %v6672
  %v6674 = vshrl.u32 %v6529, 16
  %v6676 = vrot.slane %v6674, 4
  %v6677 = vor.u32 %v6676, %v6672
  %v6678 = vrot.slane %v6677, 4
  %v6680 = vshll.u32 %v6530, 16
  %v6682 = vrot.slane %v6680, 5
  %v6683 = vsel %vm1017, %v6678, %v6682
  %v6685 = vshrl.u32 %v6531, 16
  %v6687 = vrot.slane %v6685, 4
  %v6688 = vshll.u32 %v6531, 16
  %v6690 = vrot.slane %v6688, 5
  %v6691 = vor.u32 %v6687, %v6690
  %v6692 = vrot.slane %v6691, 4
  %v6694 = vshll.u32 %v6532, 16
  %v6696 = vrot.slane %v6694, 5
  %v6697 = vsel %vm1017, %v6692, %v6696
  %v6698 = vshrl.u32 %v6532, 16
  %v6700 = vrot.slane %v6698, 4
  %v6701 = vor.u32 %v6700, %v6696
  %v6702 = vrot.slane %v6701, 4
  %v6704 = vshll.u32 %v6533, 16
  %v6706 = vrot.slane %v6704, 5
  %v6707 = vsel %vm1017, %v6702, %v6706
  %v6709 = vshrl.u32 %v6534, 16
  %v6711 = vrot.slane %v6709, 4
  %v6712 = vshll.u32 %v6534, 16
  %v6714 = vrot.slane %v6712, 5
  %v6715 = vor.u32 %v6711, %v6714
  %v6716 = vrot.slane %v6715, 4
  %v6718 = vshll.u32 %v6535, 16
  %v6720 = vrot.slane %v6718, 5
  %v6721 = vsel %vm1017, %v6716, %v6720
  %v6722 = vshrl.u32 %v6535, 16
  %v6724 = vrot.slane %v6722, 4
  %v6725 = vor.u32 %v6724, %v6720
  %v6726 = vrot.slane %v6725, 4
  %v6728 = vshll.u32 %v6536, 16
  %v6730 = vrot.slane %v6728, 5
  %v6731 = vsel %vm1017, %v6726, %v6730
  %v6733 = vshrl.u32 %v6537, 16
  %v6735 = vrot.slane %v6733, 4
  %v6736 = vshll.u32 %v6537, 16
  %v6738 = vrot.slane %v6736, 5
  %v6739 = vor.u32 %v6735, %v6738
  %v6740 = vrot.slane %v6739, 4
  %v6742 = vshll.u32 %v6538, 16
  %v6744 = vrot.slane %v6742, 5
  %v6745 = vsel %vm1017, %v6740, %v6744
  %v6746 = vshrl.u32 %v6538, 16
  %v6748 = vrot.slane %v6746, 4
  %v6749 = vor.u32 %v6748, %v6744
  %v6750 = vrot.slane %v6749, 4
  %v6752 = vshll.u32 %v6539, 16
  %v6754 = vrot.slane %v6752, 5
  %v6755 = vsel %vm1017, %v6750, %v6754
  %v6757 = vshrl.u32 %v6540, 16
  %v6759 = vrot.slane %v6757, 4
  %v6760 = vshll.u32 %v6540, 16
  %v6762 = vrot.slane %v6760, 5
  %v6763 = vor.u32 %v6759, %v6762
  %v6764 = vrot.slane %v6763, 4
  %v6766 = vshll.u32 %v6541, 16
  %v6768 = vrot.slane %v6766, 5
  %v6769 = vsel %vm1017, %v6764, %v6768
  %v6770 = vshrl.u32 %v6541, 16
  %v6772 = vrot.slane %v6770, 4
  %v6773 = vor.u32 %v6772, %v6768
  %v6774 = vrot.slane %v6773, 4
  %v6776 = vshll.u32 %v6542, 16
  %v6778 = vrot.slane %v6776, 5
  %v6779 = vsel %vm1017, %v6774, %v6778
  %v6781 = vshrl.u32 %v6543, 16
  %v6783 = vrot.slane %v6781, 4
  %v6784 = vshll.u32 %v6543, 16
  %v6786 = vrot.slane %v6784, 5
  %v6787 = vor.u32 %v6783, %v6786
  %v6788 = vrot.slane %v6787, 4
  %v6790 = vshll.u32 %v6544, 16
  %v6792 = vrot.slane %v6790, 5
  %v6793 = vsel %vm1017, %v6788, %v6792
  %v6794 = vshrl.u32 %v6544, 16
  %v6796 = vrot.slane %v6794, 4
  %v6797 = vor.u32 %v6796, %v6792
  %v6798 = vrot.slane %v6797, 4
  %v6800 = vshll.u32 %v6545, 16
  %v6802 = vrot.slane %v6800, 5
  %v6803 = vsel %vm1017, %v6798, %v6802
  %v6805 = vshrl.u32 %v6546, 16
  %v6807 = vrot.slane %v6805, 4
  %v6808 = vshll.u32 %v6546, 16
  %v6810 = vrot.slane %v6808, 5
  %v6811 = vor.u32 %v6807, %v6810
  %v6812 = vrot.slane %v6811, 4
  %v6814 = vshll.u32 %v6547, 16
  %v6816 = vrot.slane %v6814, 5
  %v6817 = vsel %vm1017, %v6812, %v6816
  %v6818 = vshrl.u32 %v6547, 16
  %v6820 = vrot.slane %v6818, 4
  %v6821 = vor.u32 %v6820, %v6816
  %v6822 = vrot.slane %v6821, 4
  %v6824 = vshll.u32 %v6548, 16
  %v6826 = vrot.slane %v6824, 5
  %v6827 = vsel %vm1017, %v6822, %v6826
  %v6829 = vshrl.u32 %v6549, 16
  %v6831 = vrot.slane %v6829, 4
  %v6832 = vshll.u32 %v6549, 16
  %v6834 = vrot.slane %v6832, 5
  %v6835 = vor.u32 %v6831, %v6834
  %v6836 = vrot.slane %v6835, 4
  %v6838 = vshll.u32 %v6550, 16
  %v6840 = vrot.slane %v6838, 5
  %v6841 = vsel %vm1017, %v6836, %v6840
  %v6842 = vshrl.u32 %v6550, 16
  %v6844 = vrot.slane %v6842, 4
  %v6845 = vor.u32 %v6844, %v6840
  %v6846 = vrot.slane %v6845, 4
  %v6848 = vshll.u32 %v6551, 16
  %v6850 = vrot.slane %v6848, 5
  %v6851 = vsel %vm1017, %v6846, %v6850
  %v6853 = vshrl.u32 %v6552, 16
  %v6855 = vrot.slane %v6853, 4
  %v6856 = vshll.u32 %v6552, 16
  %v6858 = vrot.slane %v6856, 5
  %v6859 = vor.u32 %v6855, %v6858
  %v6860 = vrot.slane %v6859, 4
  %v6862 = vshll.u32 %v6553, 16
  %v6864 = vrot.slane %v6862, 5
  %v6865 = vsel %vm1017, %v6860, %v6864
  %v6866 = vshrl.u32 %v6553, 16
  %v6868 = vrot.slane %v6866, 4
  %v6869 = vor.u32 %v6868, %v6864
  %v6870 = vrot.slane %v6869, 4
  %v6872 = vshll.u32 %v6554, 16
  %v6874 = vrot.slane %v6872, 5
  %v6875 = vsel %vm1017, %v6870, %v6874
  %v6877 = vshrl.u32 %v6555, 16
  %v6879 = vrot.slane %v6877, 4
  %v6880 = vshll.u32 %v6555, 16
  %v6882 = vrot.slane %v6880, 5
  %v6883 = vor.u32 %v6879, %v6882
  %v6884 = vrot.slane %v6883, 4
  %v6886 = vshll.u32 %v6556, 16
  %v6888 = vrot.slane %v6886, 5
  %v6889 = vsel %vm1017, %v6884, %v6888
  %v6890 = vshrl.u32 %v6556, 16
  %v6892 = vrot.slane %v6890, 4
  %v6893 = vor.u32 %v6892, %v6888
  %v6894 = vrot.slane %v6893, 4
  %v6896 = vshll.u32 %v6557, 16
  %v6898 = vrot.slane %v6896, 5
  %v6899 = vsel %vm1017, %v6894, %v6898
  %v6901 = vshrl.u32 %v6558, 16
  %v6903 = vrot.slane %v6901, 4
  %v6904 = vshll.u32 %v6558, 16
  %v6906 = vrot.slane %v6904, 5
  %v6907 = vor.u32 %v6903, %v6906
  %v6908 = vrot.slane %v6907, 4
  %v6910 = vshll.u32 %v6559, 16
  %v6912 = vrot.slane %v6910, 5
  %v6913 = vsel %vm1017, %v6908, %v6912
  %v6914 = vshrl.u32 %v6559, 16
  %v6916 = vrot.slane %v6914, 4
  %v6917 = vor.u32 %v6916, %v6912
  %v6918 = vrot.slane %v6917, 4
  %v6920 = vshll.u32 %v6560, 16
  %v6922 = vrot.slane %v6920, 5
  %v6923 = vsel %vm1017, %v6918, %v6922
  %v6925 = vshrl.u32 %v6561, 16
  %v6927 = vrot.slane %v6925, 4
  %v6928 = vshll.u32 %v6561, 16
  %v6930 = vrot.slane %v6928, 5
  %v6931 = vor.u32 %v6927, %v6930
  %v6932 = vrot.slane %v6931, 4
  %v6934 = vshll.u32 %v6562, 16
  %v6936 = vrot.slane %v6934, 5
  %v6937 = vsel %vm1017, %v6932, %v6936
  %v6938 = vshrl.u32 %v6562, 16
  %v6940 = vrot.slane %v6938, 4
  %v6941 = vor.u32 %v6940, %v6936
  %v6942 = vrot.slane %v6941, 4
  %v6944 = vshll.u32 %v6563, 16
  %v6946 = vrot.slane %v6944, 5
  %v6947 = vsel %vm1017, %v6942, %v6946
  %v6948 = vld [vmem:[%s4 + $0x400] sm:$0xf]
  %v6949 = vld [vmem:[%s4 + $0x404] sm:$0xf]
  %v6950 = vld [vmem:[%s4 + $0x408] sm:$0xf]
  %v6951 = vld [vmem:[%s4 + $0x40c] sm:$0xf]
  %v6952 = vld [vmem:[%s4 + $0x410] sm:$0xf]
  %v6953 = vld [vmem:[%s4 + $0x414] sm:$0xf]
  %v6954 = vld [vmem:[%s4 + $0x418] sm:$0xf]
  %v6955 = vld [vmem:[%s4 + $0x41c] sm:$0xf]
  %v6956 = vld [vmem:[%s4 + $0x420] sm:$0xf]
  %v6957 = vld [vmem:[%s4 + $0x424] sm:$0xf]
  %v6958 = vld [vmem:[%s4 + $0x428] sm:$0xf]
  %v6959 = vld [vmem:[%s4 + $0x42c] sm:$0xf]
  %v6960 = vld [vmem:[%s4 + $0x430] sm:$0xf]
  %v6961 = vld [vmem:[%s4 + $0x434] sm:$0xf]
  %v6962 = vld [vmem:[%s4 + $0x438] sm:$0xf]
  %v6963 = vld [vmem:[%s4 + $0x43c] sm:$0xf]
  %v6964 = vld [vmem:[%s4 + $0x440] sm:$0xf]
  %v6965 = vld [vmem:[%s4 + $0x444] sm:$0xf]
  %v6966 = vld [vmem:[%s4 + $0x448] sm:$0xf]
  %v6967 = vld [vmem:[%s4 + $0x44c] sm:$0xf]
  %v6968 = vld [vmem:[%s4 + $0x450] sm:$0xf]
  %v6969 = vld [vmem:[%s4 + $0x454] sm:$0xf]
  %v6970 = vld [vmem:[%s4 + $0x458] sm:$0xf]
  %v6971 = vld [vmem:[%s4 + $0x45c] sm:$0xf]
  %v6972 = vld [vmem:[%s4 + $0x460] sm:$0xf]
  %v6973 = vld [vmem:[%s4 + $0x464] sm:$0xf]
  %v6974 = vld [vmem:[%s4 + $0x468] sm:$0xf]
  %v6975 = vld [vmem:[%s4 + $0x46c] sm:$0xf]
  %v6976 = vld [vmem:[%s4 + $0x470] sm:$0xf]
  %v6977 = vld [vmem:[%s4 + $0x474] sm:$0xf]
  %v6978 = vld [vmem:[%s4 + $0x478] sm:$0xf]
  %v6979 = vld [vmem:[%s4 + $0x47c] sm:$0xf]
  %v6980 = vunpack.c.l.b16 %v6577
  %v6981 = vunpack.c.h.b16 %v6577
  %v6982 = vunpack.c.l.b16 %v6587
  %v6983 = vunpack.c.h.b16 %v6587
  %v6984 = vunpack.c.l.b16 %v6601
  %v6985 = vunpack.c.h.b16 %v6601
  %v6986 = vunpack.c.l.b16 %v6611
  %v6987 = vunpack.c.h.b16 %v6611
  %v6988 = vunpack.c.l.b16 %v6625
  %v6989 = vunpack.c.h.b16 %v6625
  %v6990 = vunpack.c.l.b16 %v6635
  %v6991 = vunpack.c.h.b16 %v6635
  %v6992 = vunpack.c.l.b16 %v6649
  %v6993 = vunpack.c.h.b16 %v6649
  %v6994 = vunpack.c.l.b16 %v6659
  %v6995 = vunpack.c.h.b16 %v6659
  %v6996 = vunpack.c.l.b16 %v6673
  %v6997 = vunpack.c.h.b16 %v6673
  %v6998 = vunpack.c.l.b16 %v6683
  %v6999 = vunpack.c.h.b16 %v6683
  %v7000 = vunpack.c.l.b16 %v6697
  %v7001 = vunpack.c.h.b16 %v6697
  %v7002 = vunpack.c.l.b16 %v6707
  %v7003 = vunpack.c.h.b16 %v6707
  %v7004 = vunpack.c.l.b16 %v6721
  %v7005 = vunpack.c.h.b16 %v6721
  %v7006 = vunpack.c.l.b16 %v6731
  %v7007 = vunpack.c.h.b16 %v6731
  %v7008 = vunpack.c.l.b16 %v6745
  %v7009 = vunpack.c.h.b16 %v6745
  %v7010 = vunpack.c.l.b16 %v6755
  %v7011 = vunpack.c.h.b16 %v6755
  %v7012 = vunpack.c.l.b16 %v6769
  %v7013 = vunpack.c.h.b16 %v6769
  %v7014 = vunpack.c.l.b16 %v6779
  %v7015 = vunpack.c.h.b16 %v6779
  %v7016 = vunpack.c.l.b16 %v6793
  %v7017 = vunpack.c.h.b16 %v6793
  %v7018 = vunpack.c.l.b16 %v6803
  %v7019 = vunpack.c.h.b16 %v6803
  %v7020 = vunpack.c.l.b16 %v6817
  %v7021 = vunpack.c.h.b16 %v6817
  %v7022 = vunpack.c.l.b16 %v6827
  %v7023 = vunpack.c.h.b16 %v6827
  %v7024 = vunpack.c.l.b16 %v6841
  %v7025 = vunpack.c.h.b16 %v6841
  %v7026 = vunpack.c.l.b16 %v6851
  %v7027 = vunpack.c.h.b16 %v6851
  %v7028 = vunpack.c.l.b16 %v6865
  %v7029 = vunpack.c.h.b16 %v6865
  %v7030 = vunpack.c.l.b16 %v6875
  %v7031 = vunpack.c.h.b16 %v6875
  %v7032 = vunpack.c.l.b16 %v6889
  %v7033 = vunpack.c.h.b16 %v6889
  %v7034 = vunpack.c.l.b16 %v6899
  %v7035 = vunpack.c.h.b16 %v6899
  %v7036 = vunpack.c.l.b16 %v6913
  %v7037 = vunpack.c.h.b16 %v6913
  %v7038 = vunpack.c.l.b16 %v6923
  %v7039 = vunpack.c.h.b16 %v6923
  %v7040 = vunpack.c.l.b16 %v6937
  %v7041 = vunpack.c.h.b16 %v6937
  %v7042 = vunpack.c.l.b16 %v6947
  %v7043 = vunpack.c.h.b16 %v6947
  %v7044 = vpack.c.b16 %v6982, %v6980
  %v7045 = vpack.c.b16 %v6983, %v6981
  %v7046 = vpack.c.b16 %v6986, %v6984
  %v7047 = vpack.c.b16 %v6987, %v6985
  %v7048 = vpack.c.b16 %v6990, %v6988
  %v7049 = vpack.c.b16 %v6991, %v6989
  %v7050 = vpack.c.b16 %v6994, %v6992
  %v7051 = vpack.c.b16 %v6995, %v6993
  %v7052 = vpack.c.b16 %v6998, %v6996
  %v7053 = vpack.c.b16 %v6999, %v6997
  %v7054 = vpack.c.b16 %v7002, %v7000
  %v7055 = vpack.c.b16 %v7003, %v7001
  %v7056 = vpack.c.b16 %v7006, %v7004
  %v7057 = vpack.c.b16 %v7007, %v7005
  %v7058 = vpack.c.b16 %v7010, %v7008
  %v7059 = vpack.c.b16 %v7011, %v7009
  %v7060 = vpack.c.b16 %v7014, %v7012
  %v7061 = vpack.c.b16 %v7015, %v7013
  %v7062 = vpack.c.b16 %v7018, %v7016
  %v7063 = vpack.c.b16 %v7019, %v7017
  %v7064 = vpack.c.b16 %v7022, %v7020
  %v7065 = vpack.c.b16 %v7023, %v7021
  %v7066 = vpack.c.b16 %v7026, %v7024
  %v7067 = vpack.c.b16 %v7027, %v7025
  %v7068 = vpack.c.b16 %v7030, %v7028
  %v7069 = vpack.c.b16 %v7031, %v7029
  %v7070 = vpack.c.b16 %v7034, %v7032
  %v7071 = vpack.c.b16 %v7035, %v7033
  %v7072 = vpack.c.b16 %v7038, %v7036
  %v7073 = vpack.c.b16 %v7039, %v7037
  %v7074 = vpack.c.b16 %v7042, %v7040
  %v7075 = vpack.c.b16 %v7043, %v7041
  %v7140 = vunpack.c.l.b16 %v6948
  %v7141 = vunpack.c.l.b16 %v6949
  %v7142 = vunpack.c.l.b16 %v6950
  %v7143 = vunpack.c.l.b16 %v6951
  %v7144 = vunpack.c.l.b16 %v6952
  %v7145 = vunpack.c.l.b16 %v6953
  %v7146 = vunpack.c.l.b16 %v6954
  %v7147 = vunpack.c.l.b16 %v6955
  %v7148 = vunpack.c.l.b16 %v6956
  %v7149 = vunpack.c.l.b16 %v6957
  %v7150 = vunpack.c.l.b16 %v6958
  %v7151 = vunpack.c.l.b16 %v6959
  %v7152 = vunpack.c.l.b16 %v6960
  %v7153 = vunpack.c.l.b16 %v6961
  %v7154 = vunpack.c.l.b16 %v6962
  %v7155 = vunpack.c.l.b16 %v6963
  %v7156 = vunpack.c.l.b16 %v6964
  %v7157 = vunpack.c.l.b16 %v6965
  %v7158 = vunpack.c.l.b16 %v6966
  %v7159 = vunpack.c.l.b16 %v6967
  %v7160 = vunpack.c.l.b16 %v6968
  %v7161 = vunpack.c.l.b16 %v6969
  %v7162 = vunpack.c.l.b16 %v6970
  %v7163 = vunpack.c.l.b16 %v6971
  %v7164 = vunpack.c.l.b16 %v6972
  %v7165 = vunpack.c.l.b16 %v6973
  %v7166 = vunpack.c.l.b16 %v6974
  %v7167 = vunpack.c.l.b16 %v6975
  %v7168 = vunpack.c.l.b16 %v6976
  %v7169 = vunpack.c.l.b16 %v6977
  %v7170 = vunpack.c.l.b16 %v6978
  %v7171 = vunpack.c.l.b16 %v6979
  %v7172 = vpack.c.b16 %v7141, %v7140
  %v7173 = vpack.c.b16 %v7143, %v7142
  %v7174 = vpack.c.b16 %v7145, %v7144
  %v7175 = vpack.c.b16 %v7147, %v7146
  %v7176 = vpack.c.b16 %v7149, %v7148
  %v7177 = vpack.c.b16 %v7151, %v7150
  %v7178 = vpack.c.b16 %v7153, %v7152
  %v7179 = vpack.c.b16 %v7155, %v7154
  %v7180 = vpack.c.b16 %v7157, %v7156
  %v7181 = vpack.c.b16 %v7159, %v7158
  %v7182 = vpack.c.b16 %v7161, %v7160
  %v7183 = vpack.c.b16 %v7163, %v7162
  %v7184 = vpack.c.b16 %v7165, %v7164
  %v7185 = vpack.c.b16 %v7167, %v7166
  %v7186 = vpack.c.b16 %v7169, %v7168
  %v7187 = vpack.c.b16 %v7171, %v7170
  %7204 = vmatprep.subr.bf16.mxu0 0
  %7205 = vmatpush1.bf16.msra.mxu0 %v7179
  %7206 = vmatprep.subr.bf16.mxu0 0
  %7207 = vmatpush1.bf16.msra.mxu0 %v7178
  %7208 = vmatprep.subr.bf16.mxu0 0
  %7209 = vmatpush1.bf16.msra.mxu0 %v7177
  %7210 = vmatprep.subr.bf16.mxu0 0
  %7211 = vmatpush1.bf16.msra.mxu0 %v7176
  %7212 = vmatprep.subr.bf16.mxu0 0
  %7213 = vmatpush1.bf16.msra.mxu0 %v7175
  %7214 = vmatprep.subr.bf16.mxu0 0
  %7215 = vmatpush1.bf16.msra.mxu0 %v7174
  %7216 = vmatprep.subr.bf16.mxu0 0
  %7217 = vmatpush1.bf16.msra.mxu0 %v7173
  %7218 = vmatprep.subr.bf16.mxu0 0
  %7219 = vmatpush1.bf16.msra.mxu0 %v7172
  %7220 = vmatprep.subr.bf16.mxu0 0
  %7221 = vmatpush2.bf16.msra.mxu0 %v7187
  %7222 = vmatprep.subr.bf16.mxu0 0
  %7223 = vmatpush2.bf16.msra.mxu0 %v7186
  %7224 = vmatprep.subr.bf16.mxu0 0
  %7225 = vmatpush2.bf16.msra.mxu0 %v7185
  %7226 = vmatprep.subr.bf16.mxu0 0
  %7227 = vmatpush2.bf16.msra.mxu0 %v7184
  %7228 = vmatprep.subr.bf16.mxu0 0
  %7229 = vmatpush2.bf16.msra.mxu0 %v7183
  %7230 = vmatprep.subr.bf16.mxu0 0
  %7231 = vmatpush2.bf16.msra.mxu0 %v7182
  %7232 = vmatprep.subr.bf16.mxu0 0
  %7233 = vmatpush2.bf16.msra.mxu0 %v7181
  %7234 = vmatprep.subr.bf16.mxu0 0
  %7235 = vmatpush2.bf16.msra.mxu0 %v7180
  %7236 = vmatprep.mubr.bf16.mxu0 %v7045
  %7237 = vmatmul.mubr.bf16.gmra.mxu0 %v7044
  %v7238 = vpop.f32.mrf.mxu0
  %v7239 = vadd.f32 0.0, %v7238
  %v7240 = vpop.f32.mrf.mxu0
  %v7241 = vpop.f32.mrf.mxu0
  %v7242 = vadd.f32 0.0, %v7241
  %v7243 = vpop.f32.mrf.mxu0
  %7244 = vmatprep.mubr.bf16.mxu0 %v7047
  %7245 = vmatmul.mubr.bf16.gmra.mxu0 %v7046
  %v7246 = vpop.f32.mrf.mxu0
  %v7247 = vadd.f32 0.0, %v7246
  %v7248 = vpop.f32.mrf.mxu0
  %v7249 = vpop.f32.mrf.mxu0
  %v7250 = vadd.f32 0.0, %v7249
  %v7251 = vpop.f32.mrf.mxu0
  %7252 = vmatprep.mubr.bf16.mxu0 %v7049
  %7253 = vmatmul.mubr.bf16.gmra.mxu0 %v7048
  %v7254 = vpop.f32.mrf.mxu0
  %v7255 = vadd.f32 0.0, %v7254
  %v7256 = vpop.f32.mrf.mxu0
  %v7257 = vpop.f32.mrf.mxu0
  %v7258 = vadd.f32 0.0, %v7257
  %v7259 = vpop.f32.mrf.mxu0
  %7260 = vmatprep.mubr.bf16.mxu0 %v7051
  %7261 = vmatmul.mubr.bf16.gmra.mxu0 %v7050
  %v7262 = vpop.f32.mrf.mxu0
  %v7263 = vadd.f32 0.0, %v7262
  %v7264 = vpop.f32.mrf.mxu0
  %v7265 = vpop.f32.mrf.mxu0
  %v7266 = vadd.f32 0.0, %v7265
  %v7267 = vpop.f32.mrf.mxu0
  %7268 = vmatprep.mubr.bf16.mxu0 %v7053
  %7269 = vmatmul.mubr.bf16.gmra.mxu0 %v7052
  %v7270 = vpop.f32.mrf.mxu0
  %v7271 = vadd.f32 0.0, %v7270
  %v7272 = vpop.f32.mrf.mxu0
  %v7273 = vpop.f32.mrf.mxu0
  %v7274 = vadd.f32 0.0, %v7273
  %v7275 = vpop.f32.mrf.mxu0
  %7276 = vmatprep.mubr.bf16.mxu0 %v7055
  %7277 = vmatmul.mubr.bf16.gmra.mxu0 %v7054
  %v7278 = vpop.f32.mrf.mxu0
  %v7279 = vadd.f32 0.0, %v7278
  %v7280 = vpop.f32.mrf.mxu0
  %v7281 = vpop.f32.mrf.mxu0
  %v7282 = vadd.f32 0.0, %v7281
  %v7283 = vpop.f32.mrf.mxu0
  %7284 = vmatprep.mubr.bf16.mxu0 %v7057
  %7285 = vmatmul.mubr.bf16.gmra.mxu0 %v7056
  %v7286 = vpop.f32.mrf.mxu0
  %v7287 = vadd.f32 0.0, %v7286
  %v7288 = vpop.f32.mrf.mxu0
  %v7289 = vpop.f32.mrf.mxu0
  %v7290 = vadd.f32 0.0, %v7289
  %v7291 = vpop.f32.mrf.mxu0
  %7292 = vmatprep.mubr.bf16.mxu0 %v7059
  %7293 = vmatmul.mubr.bf16.gmra.mxu0 %v7058
  %v7294 = vpop.f32.mrf.mxu0
  %v7295 = vadd.f32 0.0, %v7294
  %v7296 = vpop.f32.mrf.mxu0
  %v7297 = vpop.f32.mrf.mxu0
  %v7298 = vadd.f32 0.0, %v7297
  %v7299 = vpop.f32.mrf.mxu0
  %7300 = vmatprep.mubr.bf16.mxu0 %v7061
  %7301 = vmatmul.mubr.bf16.gmra.mxu0 %v7060
  %v7302 = vpop.f32.mrf.mxu0
  %v7303 = vadd.f32 0.0, %v7302
  %v7304 = vpop.f32.mrf.mxu0
  %v7305 = vpop.f32.mrf.mxu0
  %v7306 = vadd.f32 0.0, %v7305
  %v7307 = vpop.f32.mrf.mxu0
  %7308 = vmatprep.mubr.bf16.mxu0 %v7063
  %7309 = vmatmul.mubr.bf16.gmra.mxu0 %v7062
  %v7310 = vpop.f32.mrf.mxu0
  %v7311 = vadd.f32 0.0, %v7310
  %v7312 = vpop.f32.mrf.mxu0
  %v7313 = vpop.f32.mrf.mxu0
  %v7314 = vadd.f32 0.0, %v7313
  %v7315 = vpop.f32.mrf.mxu0
  %7316 = vmatprep.mubr.bf16.mxu0 %v7065
  %7317 = vmatmul.mubr.bf16.gmra.mxu0 %v7064
  %v7318 = vpop.f32.mrf.mxu0
  %v7319 = vadd.f32 0.0, %v7318
  %v7320 = vpop.f32.mrf.mxu0
  %v7321 = vpop.f32.mrf.mxu0
  %v7322 = vadd.f32 0.0, %v7321
  %v7323 = vpop.f32.mrf.mxu0
  %7324 = vmatprep.mubr.bf16.mxu0 %v7067
  %7325 = vmatmul.mubr.bf16.gmra.mxu0 %v7066
  %v7326 = vpop.f32.mrf.mxu0
  %v7327 = vadd.f32 0.0, %v7326
  %v7328 = vpop.f32.mrf.mxu0
  %v7329 = vpop.f32.mrf.mxu0
  %v7330 = vadd.f32 0.0, %v7329
  %v7331 = vpop.f32.mrf.mxu0
  %7332 = vmatprep.mubr.bf16.mxu0 %v7069
  %7333 = vmatmul.mubr.bf16.gmra.mxu0 %v7068
  %v7334 = vpop.f32.mrf.mxu0
  %v7335 = vadd.f32 0.0, %v7334
  %v7336 = vpop.f32.mrf.mxu0
  %v7337 = vpop.f32.mrf.mxu0
  %v7338 = vadd.f32 0.0, %v7337
  %v7339 = vpop.f32.mrf.mxu0
  %7340 = vmatprep.mubr.bf16.mxu0 %v7071
  %7341 = vmatmul.mubr.bf16.gmra.mxu0 %v7070
  %v7342 = vpop.f32.mrf.mxu0
  %v7343 = vadd.f32 0.0, %v7342
  %v7344 = vpop.f32.mrf.mxu0
  %v7345 = vpop.f32.mrf.mxu0
  %v7346 = vadd.f32 0.0, %v7345
  %v7347 = vpop.f32.mrf.mxu0
  %7348 = vmatprep.mubr.bf16.mxu0 %v7073
  %7349 = vmatmul.mubr.bf16.gmra.mxu0 %v7072
  %v7350 = vpop.f32.mrf.mxu0
  %v7351 = vadd.f32 0.0, %v7350
  %v7352 = vpop.f32.mrf.mxu0
  %v7353 = vpop.f32.mrf.mxu0
  %v7354 = vadd.f32 0.0, %v7353
  %v7355 = vpop.f32.mrf.mxu0
  %7356 = vmatprep.mubr.bf16.mxu0 %v7075
  %7357 = vmatmul.mubr.bf16.gmra.mxu0 %v7074
  %v7358 = vpop.f32.mrf.mxu0
  %v7359 = vadd.f32 0.0, %v7358
  %v7360 = vpop.f32.mrf.mxu0
  %v7361 = vpop.f32.mrf.mxu0
  %v7362 = vadd.f32 0.0, %v7361
  %v7363 = vpop.f32.mrf.mxu0
  %7364 = vdwg.mxu0
  %v7365 = vadd.f32 %v6484, %v7239
  %v7366 = vadd.f32 %v6485, %v7242
  %v7367 = vadd.f32 %v6486, %v7247
  %v7368 = vadd.f32 %v6487, %v7250
  %v7369 = vadd.f32 %v6488, %v7255
  %v7370 = vadd.f32 %v6489, %v7258
  %v7371 = vadd.f32 %v6490, %v7263
  %v7372 = vadd.f32 %v6491, %v7266
  %v7373 = vadd.f32 %v6492, %v7271
  %v7374 = vadd.f32 %v6493, %v7274
  %v7375 = vadd.f32 %v6494, %v7279
  %v7376 = vadd.f32 %v6495, %v7282
  %v7377 = vadd.f32 %v6496, %v7287
  %v7378 = vadd.f32 %v6497, %v7290
  %v7379 = vadd.f32 %v6498, %v7295
  %v7380 = vadd.f32 %v6499, %v7298
  %v7381 = vadd.f32 %v6500, %v7303
  %v7382 = vadd.f32 %v6501, %v7306
  %v7383 = vadd.f32 %v6502, %v7311
  %v7384 = vadd.f32 %v6503, %v7314
  %v7385 = vadd.f32 %v6504, %v7319
  %v7386 = vadd.f32 %v6505, %v7322
  %v7387 = vadd.f32 %v6506, %v7327
  %v7388 = vadd.f32 %v6507, %v7330
  %v7389 = vadd.f32 %v6508, %v7335
  %v7390 = vadd.f32 %v6509, %v7338
  %v7391 = vadd.f32 %v6510, %v7343
  %v7392 = vadd.f32 %v6511, %v7346
  %v7393 = vadd.f32 %v6512, %v7351
  %v7394 = vadd.f32 %v6513, %v7354
  %v7395 = vadd.f32 %v6514, %v7359
  %v7396 = vadd.f32 %v6515, %v7362
  %v7397 = vld [vmem:[#allocation2 + $0x8] sm:$0xee]
  %v7398 = vld [vmem:[#allocation2 + $0x28] sm:$0xee]
  %v7399 = vld [vmem:[#allocation2 + $0x48] sm:$0xee]
  %v7400 = vld [vmem:[#allocation2 + $0x68] sm:$0xee]
  %v7401 = vld [vmem:[#allocation2 + $0x88] sm:$0xee]
  %v7402 = vld [vmem:[#allocation2 + $0xa8] sm:$0xee]
  %v7403 = vld [vmem:[#allocation2 + $0xc8] sm:$0xee]
  %v7404 = vld [vmem:[#allocation2 + $0xe8] sm:$0xee]
  %v7405 = vld [vmem:[#allocation2 + $0x108] sm:$0xee]
  %v7406 = vld [vmem:[#allocation2 + $0x128] sm:$0xee]
  %v7407 = vld [vmem:[#allocation2 + $0x148] sm:$0xee]
  %v7408 = vld [vmem:[#allocation2 + $0x168] sm:$0xee]
  %v7409 = vld [vmem:[#allocation2 + $0x188] sm:$0xee]
  %v7410 = vld [vmem:[#allocation2 + $0x1a8] sm:$0xee]
  %v7411 = vld [vmem:[#allocation2 + $0x1c8] sm:$0xee]
  %v7412 = vld [vmem:[#allocation2 + $0x1e8] sm:$0xee]
  %v7461 = vrot.slane %v7397, 5
  %v7462 = vrot.slane %v7461, 4
  %v7463 = vrot.slane %v6517, 5
  %v7464 = vsel %vm1500, %v7462, %v7463
  %v7465 = vrot.slane %v7463, 4
  %v7466 = vrot.slane %v6518, 5
  %v7467 = vsel %vm1500, %v7465, %v7466
  %v7468 = vrot.slane %v7398, 5
  %v7469 = vrot.slane %v7468, 4
  %v7470 = vrot.slane %v6520, 5
  %v7471 = vsel %vm1500, %v7469, %v7470
  %v7472 = vrot.slane %v7470, 4
  %v7473 = vrot.slane %v6521, 5
  %v7474 = vsel %vm1500, %v7472, %v7473
  %v7475 = vrot.slane %v7399, 5
  %v7476 = vrot.slane %v7475, 4
  %v7477 = vrot.slane %v6523, 5
  %v7478 = vsel %vm1500, %v7476, %v7477
  %v7479 = vrot.slane %v7477, 4
  %v7480 = vrot.slane %v6524, 5
  %v7481 = vsel %vm1500, %v7479, %v7480
  %v7482 = vrot.slane %v7400, 5
  %v7483 = vrot.slane %v7482, 4
  %v7484 = vrot.slane %v6526, 5
  %v7485 = vsel %vm1500, %v7483, %v7484
  %v7486 = vrot.slane %v7484, 4
  %v7487 = vrot.slane %v6527, 5
  %v7488 = vsel %vm1500, %v7486, %v7487
  %v7489 = vrot.slane %v7401, 5
  %v7490 = vrot.slane %v7489, 4
  %v7491 = vrot.slane %v6529, 5
  %v7492 = vsel %vm1500, %v7490, %v7491
  %v7493 = vrot.slane %v7491, 4
  %v7494 = vrot.slane %v6530, 5
  %v7495 = vsel %vm1500, %v7493, %v7494
  %v7496 = vrot.slane %v7402, 5
  %v7497 = vrot.slane %v7496, 4
  %v7498 = vrot.slane %v6532, 5
  %v7499 = vsel %vm1500, %v7497, %v7498
  %v7500 = vrot.slane %v7498, 4
  %v7501 = vrot.slane %v6533, 5
  %v7502 = vsel %vm1500, %v7500, %v7501
  %v7503 = vrot.slane %v7403, 5
  %v7504 = vrot.slane %v7503, 4
  %v7505 = vrot.slane %v6535, 5
  %v7506 = vsel %vm1500, %v7504, %v7505
  %v7507 = vrot.slane %v7505, 4
  %v7508 = vrot.slane %v6536, 5
  %v7509 = vsel %vm1500, %v7507, %v7508
  %v7510 = vrot.slane %v7404, 5
  %v7511 = vrot.slane %v7510, 4
  %v7512 = vrot.slane %v6538, 5
  %v7513 = vsel %vm1500, %v7511, %v7512
  %v7514 = vrot.slane %v7512, 4
  %v7515 = vrot.slane %v6539, 5
  %v7516 = vsel %vm1500, %v7514, %v7515
  %v7517 = vrot.slane %v7405, 5
  %v7518 = vrot.slane %v7517, 4
  %v7519 = vrot.slane %v6541, 5
  %v7520 = vsel %vm1500, %v7518, %v7519
  %v7521 = vrot.slane %v7519, 4
  %v7522 = vrot.slane %v6542, 5
  %v7523 = vsel %vm1500, %v7521, %v7522
  %v7524 = vrot.slane %v7406, 5
  %v7525 = vrot.slane %v7524, 4
  %v7526 = vrot.slane %v6544, 5
  %v7527 = vsel %vm1500, %v7525, %v7526
  %v7528 = vrot.slane %v7526, 4
  %v7529 = vrot.slane %v6545, 5
  %v7530 = vsel %vm1500, %v7528, %v7529
  %v7531 = vrot.slane %v7407, 5
  %v7532 = vrot.slane %v7531, 4
  %v7533 = vrot.slane %v6547, 5
  %v7534 = vsel %vm1500, %v7532, %v7533
  %v7535 = vrot.slane %v7533, 4
  %v7536 = vrot.slane %v6548, 5
  %v7537 = vsel %vm1500, %v7535, %v7536
  %v7538 = vrot.slane %v7408, 5
  %v7539 = vrot.slane %v7538, 4
  %v7540 = vrot.slane %v6550, 5
  %v7541 = vsel %vm1500, %v7539, %v7540
  %v7542 = vrot.slane %v7540, 4
  %v7543 = vrot.slane %v6551, 5
  %v7544 = vsel %vm1500, %v7542, %v7543
  %v7545 = vrot.slane %v7409, 5
  %v7546 = vrot.slane %v7545, 4
  %v7547 = vrot.slane %v6553, 5
  %v7548 = vsel %vm1500, %v7546, %v7547
  %v7549 = vrot.slane %v7547, 4
  %v7550 = vrot.slane %v6554, 5
  %v7551 = vsel %vm1500, %v7549, %v7550
  %v7552 = vrot.slane %v7410, 5
  %v7553 = vrot.slane %v7552, 4
  %v7554 = vrot.slane %v6556, 5
  %v7555 = vsel %vm1500, %v7553, %v7554
  %v7556 = vrot.slane %v7554, 4
  %v7557 = vrot.slane %v6557, 5
  %v7558 = vsel %vm1500, %v7556, %v7557
  %v7559 = vrot.slane %v7411, 5
  %v7560 = vrot.slane %v7559, 4
  %v7561 = vrot.slane %v6559, 5
  %v7562 = vsel %vm1500, %v7560, %v7561
  %v7563 = vrot.slane %v7561, 4
  %v7564 = vrot.slane %v6560, 5
  %v7565 = vsel %vm1500, %v7563, %v7564
  %v7566 = vrot.slane %v7412, 5
  %v7567 = vrot.slane %v7566, 4
  %v7568 = vrot.slane %v6562, 5
  %v7569 = vsel %vm1500, %v7567, %v7568
  %v7570 = vrot.slane %v7568, 4
  %v7571 = vrot.slane %v6563, 5
  %v7572 = vsel %vm1500, %v7570, %v7571
  %v7573 = vld [vmem:[%s4 + $0x480] sm:$0xf]
  %v7574 = vld [vmem:[%s4 + $0x484] sm:$0xf]
  %v7575 = vld [vmem:[%s4 + $0x488] sm:$0xf]
  %v7576 = vld [vmem:[%s4 + $0x48c] sm:$0xf]
  %v7577 = vld [vmem:[%s4 + $0x490] sm:$0xf]
  %v7578 = vld [vmem:[%s4 + $0x494] sm:$0xf]
  %v7579 = vld [vmem:[%s4 + $0x498] sm:$0xf]
  %v7580 = vld [vmem:[%s4 + $0x49c] sm:$0xf]
  %v7581 = vld [vmem:[%s4 + $0x4a0] sm:$0xf]
  %v7582 = vld [vmem:[%s4 + $0x4a4] sm:$0xf]
  %v7583 = vld [vmem:[%s4 + $0x4a8] sm:$0xf]
  %v7584 = vld [vmem:[%s4 + $0x4ac] sm:$0xf]
  %v7585 = vld [vmem:[%s4 + $0x4b0] sm:$0xf]
  %v7586 = vld [vmem:[%s4 + $0x4b4] sm:$0xf]
  %v7587 = vld [vmem:[%s4 + $0x4b8] sm:$0xf]
  %v7588 = vld [vmem:[%s4 + $0x4bc] sm:$0xf]
  %v7589 = vld [vmem:[%s4 + $0x4c0] sm:$0xf]
  %v7590 = vld [vmem:[%s4 + $0x4c4] sm:$0xf]
  %v7591 = vld [vmem:[%s4 + $0x4c8] sm:$0xf]
  %v7592 = vld [vmem:[%s4 + $0x4cc] sm:$0xf]
  %v7593 = vld [vmem:[%s4 + $0x4d0] sm:$0xf]
  %v7594 = vld [vmem:[%s4 + $0x4d4] sm:$0xf]
  %v7595 = vld [vmem:[%s4 + $0x4d8] sm:$0xf]
  %v7596 = vld [vmem:[%s4 + $0x4dc] sm:$0xf]
  %v7597 = vld [vmem:[%s4 + $0x4e0] sm:$0xf]
  %v7598 = vld [vmem:[%s4 + $0x4e4] sm:$0xf]
  %v7599 = vld [vmem:[%s4 + $0x4e8] sm:$0xf]
  %v7600 = vld [vmem:[%s4 + $0x4ec] sm:$0xf]
  %v7601 = vld [vmem:[%s4 + $0x4f0] sm:$0xf]
  %v7602 = vld [vmem:[%s4 + $0x4f4] sm:$0xf]
  %v7603 = vld [vmem:[%s4 + $0x4f8] sm:$0xf]
  %v7604 = vld [vmem:[%s4 + $0x4fc] sm:$0xf]
  %v7605 = vunpack.c.l.b16 %v7464
  %v7606 = vunpack.c.h.b16 %v7464
  %v7607 = vunpack.c.l.b16 %v7467
  %v7608 = vunpack.c.h.b16 %v7467
  %v7609 = vunpack.c.l.b16 %v7471
  %v7610 = vunpack.c.h.b16 %v7471
  %v7611 = vunpack.c.l.b16 %v7474
  %v7612 = vunpack.c.h.b16 %v7474
  %v7613 = vunpack.c.l.b16 %v7478
  %v7614 = vunpack.c.h.b16 %v7478
  %v7615 = vunpack.c.l.b16 %v7481
  %v7616 = vunpack.c.h.b16 %v7481
  %v7617 = vunpack.c.l.b16 %v7485
  %v7618 = vunpack.c.h.b16 %v7485
  %v7619 = vunpack.c.l.b16 %v7488
  %v7620 = vunpack.c.h.b16 %v7488
  %v7621 = vunpack.c.l.b16 %v7492
  %v7622 = vunpack.c.h.b16 %v7492
  %v7623 = vunpack.c.l.b16 %v7495
  %v7624 = vunpack.c.h.b16 %v7495
  %v7625 = vunpack.c.l.b16 %v7499
  %v7626 = vunpack.c.h.b16 %v7499
  %v7627 = vunpack.c.l.b16 %v7502
  %v7628 = vunpack.c.h.b16 %v7502
  %v7629 = vunpack.c.l.b16 %v7506
  %v7630 = vunpack.c.h.b16 %v7506
  %v7631 = vunpack.c.l.b16 %v7509
  %v7632 = vunpack.c.h.b16 %v7509
  %v7633 = vunpack.c.l.b16 %v7513
  %v7634 = vunpack.c.h.b16 %v7513
  %v7635 = vunpack.c.l.b16 %v7516
  %v7636 = vunpack.c.h.b16 %v7516
  %v7637 = vunpack.c.l.b16 %v7520
  %v7638 = vunpack.c.h.b16 %v7520
  %v7639 = vunpack.c.l.b16 %v7523
  %v7640 = vunpack.c.h.b16 %v7523
  %v7641 = vunpack.c.l.b16 %v7527
  %v7642 = vunpack.c.h.b16 %v7527
  %v7643 = vunpack.c.l.b16 %v7530
  %v7644 = vunpack.c.h.b16 %v7530
  %v7645 = vunpack.c.l.b16 %v7534
  %v7646 = vunpack.c.h.b16 %v7534
  %v7647 = vunpack.c.l.b16 %v7537
  %v7648 = vunpack.c.h.b16 %v7537
  %v7649 = vunpack.c.l.b16 %v7541
  %v7650 = vunpack.c.h.b16 %v7541
  %v7651 = vunpack.c.l.b16 %v7544
  %v7652 = vunpack.c.h.b16 %v7544
  %v7653 = vunpack.c.l.b16 %v7548
  %v7654 = vunpack.c.h.b16 %v7548
  %v7655 = vunpack.c.l.b16 %v7551
  %v7656 = vunpack.c.h.b16 %v7551
  %v7657 = vunpack.c.l.b16 %v7555
  %v7658 = vunpack.c.h.b16 %v7555
  %v7659 = vunpack.c.l.b16 %v7558
  %v7660 = vunpack.c.h.b16 %v7558
  %v7661 = vunpack.c.l.b16 %v7562
  %v7662 = vunpack.c.h.b16 %v7562
  %v7663 = vunpack.c.l.b16 %v7565
  %v7664 = vunpack.c.h.b16 %v7565
  %v7665 = vunpack.c.l.b16 %v7569
  %v7666 = vunpack.c.h.b16 %v7569
  %v7667 = vunpack.c.l.b16 %v7572
  %v7668 = vunpack.c.h.b16 %v7572
  %v7669 = vpack.c.b16 %v7607, %v7605
  %v7670 = vpack.c.b16 %v7608, %v7606
  %v7671 = vpack.c.b16 %v7611, %v7609
  %v7672 = vpack.c.b16 %v7612, %v7610
  %v7673 = vpack.c.b16 %v7615, %v7613
  %v7674 = vpack.c.b16 %v7616, %v7614
  %v7675 = vpack.c.b16 %v7619, %v7617
  %v7676 = vpack.c.b16 %v7620, %v7618
  %v7677 = vpack.c.b16 %v7623, %v7621
  %v7678 = vpack.c.b16 %v7624, %v7622
  %v7679 = vpack.c.b16 %v7627, %v7625
  %v7680 = vpack.c.b16 %v7628, %v7626
  %v7681 = vpack.c.b16 %v7631, %v7629
  %v7682 = vpack.c.b16 %v7632, %v7630
  %v7683 = vpack.c.b16 %v7635, %v7633
  %v7684 = vpack.c.b16 %v7636, %v7634
  %v7685 = vpack.c.b16 %v7639, %v7637
  %v7686 = vpack.c.b16 %v7640, %v7638
  %v7687 = vpack.c.b16 %v7643, %v7641
  %v7688 = vpack.c.b16 %v7644, %v7642
  %v7689 = vpack.c.b16 %v7647, %v7645
  %v7690 = vpack.c.b16 %v7648, %v7646
  %v7691 = vpack.c.b16 %v7651, %v7649
  %v7692 = vpack.c.b16 %v7652, %v7650
  %v7693 = vpack.c.b16 %v7655, %v7653
  %v7694 = vpack.c.b16 %v7656, %v7654
  %v7695 = vpack.c.b16 %v7659, %v7657
  %v7696 = vpack.c.b16 %v7660, %v7658
  %v7697 = vpack.c.b16 %v7663, %v7661
  %v7698 = vpack.c.b16 %v7664, %v7662
  %v7699 = vpack.c.b16 %v7667, %v7665
  %v7700 = vpack.c.b16 %v7668, %v7666
  %v7765 = vunpack.c.l.b16 %v7573
  %v7766 = vunpack.c.l.b16 %v7574
  %v7767 = vunpack.c.l.b16 %v7575
  %v7768 = vunpack.c.l.b16 %v7576
  %v7769 = vunpack.c.l.b16 %v7577
  %v7770 = vunpack.c.l.b16 %v7578
  %v7771 = vunpack.c.l.b16 %v7579
  %v7772 = vunpack.c.l.b16 %v7580
  %v7773 = vunpack.c.l.b16 %v7581
  %v7774 = vunpack.c.l.b16 %v7582
  %v7775 = vunpack.c.l.b16 %v7583
  %v7776 = vunpack.c.l.b16 %v7584
  %v7777 = vunpack.c.l.b16 %v7585
  %v7778 = vunpack.c.l.b16 %v7586
  %v7779 = vunpack.c.l.b16 %v7587
  %v7780 = vunpack.c.l.b16 %v7588
  %v7781 = vunpack.c.l.b16 %v7589
  %v7782 = vunpack.c.l.b16 %v7590
  %v7783 = vunpack.c.l.b16 %v7591
  %v7784 = vunpack.c.l.b16 %v7592
  %v7785 = vunpack.c.l.b16 %v7593
  %v7786 = vunpack.c.l.b16 %v7594
  %v7787 = vunpack.c.l.b16 %v7595
  %v7788 = vunpack.c.l.b16 %v7596
  %v7789 = vunpack.c.l.b16 %v7597
  %v7790 = vunpack.c.l.b16 %v7598
  %v7791 = vunpack.c.l.b16 %v7599
  %v7792 = vunpack.c.l.b16 %v7600
  %v7793 = vunpack.c.l.b16 %v7601
  %v7794 = vunpack.c.l.b16 %v7602
  %v7795 = vunpack.c.l.b16 %v7603
  %v7796 = vunpack.c.l.b16 %v7604
  %v7797 = vpack.c.b16 %v7766, %v7765
  %v7798 = vpack.c.b16 %v7768, %v7767
  %v7799 = vpack.c.b16 %v7770, %v7769
  %v7800 = vpack.c.b16 %v7772, %v7771
  %v7801 = vpack.c.b16 %v7774, %v7773
  %v7802 = vpack.c.b16 %v7776, %v7775
  %v7803 = vpack.c.b16 %v7778, %v7777
  %v7804 = vpack.c.b16 %v7780, %v7779
  %v7805 = vpack.c.b16 %v7782, %v7781
  %v7806 = vpack.c.b16 %v7784, %v7783
  %v7807 = vpack.c.b16 %v7786, %v7785
  %v7808 = vpack.c.b16 %v7788, %v7787
  %v7809 = vpack.c.b16 %v7790, %v7789
  %v7810 = vpack.c.b16 %v7792, %v7791
  %v7811 = vpack.c.b16 %v7794, %v7793
  %v7812 = vpack.c.b16 %v7796, %v7795
  %7829 = vmatprep.subr.bf16.mxu0 0
  %7830 = vmatpush1.bf16.msra.mxu0 %v7804
  %7831 = vmatprep.subr.bf16.mxu0 0
  %7832 = vmatpush1.bf16.msra.mxu0 %v7803
  %7833 = vmatprep.subr.bf16.mxu0 0
  %7834 = vmatpush1.bf16.msra.mxu0 %v7802
  %7835 = vmatprep.subr.bf16.mxu0 0
  %7836 = vmatpush1.bf16.msra.mxu0 %v7801
  %7837 = vmatprep.subr.bf16.mxu0 0
  %7838 = vmatpush1.bf16.msra.mxu0 %v7800
  %7839 = vmatprep.subr.bf16.mxu0 0
  %7840 = vmatpush1.bf16.msra.mxu0 %v7799
  %7841 = vmatprep.subr.bf16.mxu0 0
  %7842 = vmatpush1.bf16.msra.mxu0 %v7798
  %7843 = vmatprep.subr.bf16.mxu0 0
  %7844 = vmatpush1.bf16.msra.mxu0 %v7797
  %7845 = vmatprep.subr.bf16.mxu0 0
  %7846 = vmatpush2.bf16.msra.mxu0 %v7812
  %7847 = vmatprep.subr.bf16.mxu0 0
  %7848 = vmatpush2.bf16.msra.mxu0 %v7811
  %7849 = vmatprep.subr.bf16.mxu0 0
  %7850 = vmatpush2.bf16.msra.mxu0 %v7810
  %7851 = vmatprep.subr.bf16.mxu0 0
  %7852 = vmatpush2.bf16.msra.mxu0 %v7809
  %7853 = vmatprep.subr.bf16.mxu0 0
  %7854 = vmatpush2.bf16.msra.mxu0 %v7808
  %7855 = vmatprep.subr.bf16.mxu0 0
  %7856 = vmatpush2.bf16.msra.mxu0 %v7807
  %7857 = vmatprep.subr.bf16.mxu0 0
  %7858 = vmatpush2.bf16.msra.mxu0 %v7806
  %7859 = vmatprep.subr.bf16.mxu0 0
  %7860 = vmatpush2.bf16.msra.mxu0 %v7805
  %7861 = vmatprep.mubr.bf16.mxu0 %v7670
  %7862 = vmatmul.mubr.bf16.gmra.mxu0 %v7669
  %v7863 = vpop.f32.mrf.mxu0
  %v7864 = vadd.f32 0.0, %v7863
  %v7865 = vpop.f32.mrf.mxu0
  %v7866 = vpop.f32.mrf.mxu0
  %v7867 = vadd.f32 0.0, %v7866
  %v7868 = vpop.f32.mrf.mxu0
  %7869 = vmatprep.mubr.bf16.mxu0 %v7672
  %7870 = vmatmul.mubr.bf16.gmra.mxu0 %v7671
  %v7871 = vpop.f32.mrf.mxu0
  %v7872 = vadd.f32 0.0, %v7871
  %v7873 = vpop.f32.mrf.mxu0
  %v7874 = vpop.f32.mrf.mxu0
  %v7875 = vadd.f32 0.0, %v7874
  %v7876 = vpop.f32.mrf.mxu0
  %7877 = vmatprep.mubr.bf16.mxu0 %v7674
  %7878 = vmatmul.mubr.bf16.gmra.mxu0 %v7673
  %v7879 = vpop.f32.mrf.mxu0
  %v7880 = vadd.f32 0.0, %v7879
  %v7881 = vpop.f32.mrf.mxu0
  %v7882 = vpop.f32.mrf.mxu0
  %v7883 = vadd.f32 0.0, %v7882
  %v7884 = vpop.f32.mrf.mxu0
  %7885 = vmatprep.mubr.bf16.mxu0 %v7676
  %7886 = vmatmul.mubr.bf16.gmra.mxu0 %v7675
  %v7887 = vpop.f32.mrf.mxu0
  %v7888 = vadd.f32 0.0, %v7887
  %v7889 = vpop.f32.mrf.mxu0
  %v7890 = vpop.f32.mrf.mxu0
  %v7891 = vadd.f32 0.0, %v7890
  %v7892 = vpop.f32.mrf.mxu0
  %7893 = vmatprep.mubr.bf16.mxu0 %v7678
  %7894 = vmatmul.mubr.bf16.gmra.mxu0 %v7677
  %v7895 = vpop.f32.mrf.mxu0
  %v7896 = vadd.f32 0.0, %v7895
  %v7897 = vpop.f32.mrf.mxu0
  %v7898 = vpop.f32.mrf.mxu0
  %v7899 = vadd.f32 0.0, %v7898
  %v7900 = vpop.f32.mrf.mxu0
  %7901 = vmatprep.mubr.bf16.mxu0 %v7680
  %7902 = vmatmul.mubr.bf16.gmra.mxu0 %v7679
  %v7903 = vpop.f32.mrf.mxu0
  %v7904 = vadd.f32 0.0, %v7903
  %v7905 = vpop.f32.mrf.mxu0
  %v7906 = vpop.f32.mrf.mxu0
  %v7907 = vadd.f32 0.0, %v7906
  %v7908 = vpop.f32.mrf.mxu0
  %7909 = vmatprep.mubr.bf16.mxu0 %v7682
  %7910 = vmatmul.mubr.bf16.gmra.mxu0 %v7681
  %v7911 = vpop.f32.mrf.mxu0
  %v7912 = vadd.f32 0.0, %v7911
  %v7913 = vpop.f32.mrf.mxu0
  %v7914 = vpop.f32.mrf.mxu0
  %v7915 = vadd.f32 0.0, %v7914
  %v7916 = vpop.f32.mrf.mxu0
  %7917 = vmatprep.mubr.bf16.mxu0 %v7684
  %7918 = vmatmul.mubr.bf16.gmra.mxu0 %v7683
  %v7919 = vpop.f32.mrf.mxu0
  %v7920 = vadd.f32 0.0, %v7919
  %v7921 = vpop.f32.mrf.mxu0
  %v7922 = vpop.f32.mrf.mxu0
  %v7923 = vadd.f32 0.0, %v7922
  %v7924 = vpop.f32.mrf.mxu0
  %7925 = vmatprep.mubr.bf16.mxu0 %v7686
  %7926 = vmatmul.mubr.bf16.gmra.mxu0 %v7685
  %v7927 = vpop.f32.mrf.mxu0
  %v7928 = vadd.f32 0.0, %v7927
  %v7929 = vpop.f32.mrf.mxu0
  %v7930 = vpop.f32.mrf.mxu0
  %v7931 = vadd.f32 0.0, %v7930
  %v7932 = vpop.f32.mrf.mxu0
  %7933 = vmatprep.mubr.bf16.mxu0 %v7688
  %7934 = vmatmul.mubr.bf16.gmra.mxu0 %v7687
  %v7935 = vpop.f32.mrf.mxu0
  %v7936 = vadd.f32 0.0, %v7935
  %v7937 = vpop.f32.mrf.mxu0
  %v7938 = vpop.f32.mrf.mxu0
  %v7939 = vadd.f32 0.0, %v7938
  %v7940 = vpop.f32.mrf.mxu0
  %7941 = vmatprep.mubr.bf16.mxu0 %v7690
  %7942 = vmatmul.mubr.bf16.gmra.mxu0 %v7689
  %v7943 = vpop.f32.mrf.mxu0
  %v7944 = vadd.f32 0.0, %v7943
  %v7945 = vpop.f32.mrf.mxu0
  %v7946 = vpop.f32.mrf.mxu0
  %v7947 = vadd.f32 0.0, %v7946
  %v7948 = vpop.f32.mrf.mxu0
  %7949 = vmatprep.mubr.bf16.mxu0 %v7692
  %7950 = vmatmul.mubr.bf16.gmra.mxu0 %v7691
  %v7951 = vpop.f32.mrf.mxu0
  %v7952 = vadd.f32 0.0, %v7951
  %v7953 = vpop.f32.mrf.mxu0
  %v7954 = vpop.f32.mrf.mxu0
  %v7955 = vadd.f32 0.0, %v7954
  %v7956 = vpop.f32.mrf.mxu0
  %7957 = vmatprep.mubr.bf16.mxu0 %v7694
  %7958 = vmatmul.mubr.bf16.gmra.mxu0 %v7693
  %v7959 = vpop.f32.mrf.mxu0
  %v7960 = vadd.f32 0.0, %v7959
  %v7961 = vpop.f32.mrf.mxu0
  %v7962 = vpop.f32.mrf.mxu0
  %v7963 = vadd.f32 0.0, %v7962
  %v7964 = vpop.f32.mrf.mxu0
  %7965 = vmatprep.mubr.bf16.mxu0 %v7696
  %7966 = vmatmul.mubr.bf16.gmra.mxu0 %v7695
  %v7967 = vpop.f32.mrf.mxu0
  %v7968 = vadd.f32 0.0, %v7967
  %v7969 = vpop.f32.mrf.mxu0
  %v7970 = vpop.f32.mrf.mxu0
  %v7971 = vadd.f32 0.0, %v7970
  %v7972 = vpop.f32.mrf.mxu0
  %7973 = vmatprep.mubr.bf16.mxu0 %v7698
  %7974 = vmatmul.mubr.bf16.gmra.mxu0 %v7697
  %v7975 = vpop.f32.mrf.mxu0
  %v7976 = vadd.f32 0.0, %v7975
  %v7977 = vpop.f32.mrf.mxu0
  %v7978 = vpop.f32.mrf.mxu0
  %v7979 = vadd.f32 0.0, %v7978
  %v7980 = vpop.f32.mrf.mxu0
  %7981 = vmatprep.mubr.bf16.mxu0 %v7700
  %7982 = vmatmul.mubr.bf16.gmra.mxu0 %v7699
  %v7983 = vpop.f32.mrf.mxu0
  %v7984 = vadd.f32 0.0, %v7983
  %v7985 = vpop.f32.mrf.mxu0
  %v7986 = vpop.f32.mrf.mxu0
  %v7987 = vadd.f32 0.0, %v7986
  %v7988 = vpop.f32.mrf.mxu0
  %7989 = vdwg.mxu0
  %v7990 = vadd.f32 %v7365, %v7864
  %v7991 = vadd.f32 %v7366, %v7867
  %v7992 = vadd.f32 %v7367, %v7872
  %v7993 = vadd.f32 %v7368, %v7875
  %v7994 = vadd.f32 %v7369, %v7880
  %v7995 = vadd.f32 %v7370, %v7883
  %v7996 = vadd.f32 %v7371, %v7888
  %v7997 = vadd.f32 %v7372, %v7891
  %v7998 = vadd.f32 %v7373, %v7896
  %v7999 = vadd.f32 %v7374, %v7899
  %v8000 = vadd.f32 %v7375, %v7904
  %v8001 = vadd.f32 %v7376, %v7907
  %v8002 = vadd.f32 %v7377, %v7912
  %v8003 = vadd.f32 %v7378, %v7915
  %v8004 = vadd.f32 %v7379, %v7920
  %v8005 = vadd.f32 %v7380, %v7923
  %v8006 = vadd.f32 %v7381, %v7928
  %v8007 = vadd.f32 %v7382, %v7931
  %v8008 = vadd.f32 %v7383, %v7936
  %v8009 = vadd.f32 %v7384, %v7939
  %v8010 = vadd.f32 %v7385, %v7944
  %v8011 = vadd.f32 %v7386, %v7947
  %v8012 = vadd.f32 %v7387, %v7952
  %v8013 = vadd.f32 %v7388, %v7955
  %v8014 = vadd.f32 %v7389, %v7960
  %v8015 = vadd.f32 %v7390, %v7963
  %v8016 = vadd.f32 %v7391, %v7968
  %v8017 = vadd.f32 %v7392, %v7971
  %v8018 = vadd.f32 %v7393, %v7976
  %v8019 = vadd.f32 %v7394, %v7979
  %v8020 = vadd.f32 %v7395, %v7984
  %v8021 = vadd.f32 %v7396, %v7987
  %v8022 = vld [vmem:[#allocation2 + $0x18] sm:$0x33]
  %v8023 = vld [vmem:[#allocation2 + $0x38] sm:$0x33]
  %v8024 = vld [vmem:[#allocation2 + $0x58] sm:$0x33]
  %v8025 = vld [vmem:[#allocation2 + $0x78] sm:$0x33]
  %v8026 = vld [vmem:[#allocation2 + $0x98] sm:$0x33]
  %v8027 = vld [vmem:[#allocation2 + $0xb8] sm:$0x33]
  %v8028 = vld [vmem:[#allocation2 + $0xd8] sm:$0x33]
  %v8029 = vld [vmem:[#allocation2 + $0xf8] sm:$0x33]
  %v8030 = vld [vmem:[#allocation2 + $0x118] sm:$0x33]
  %v8031 = vld [vmem:[#allocation2 + $0x138] sm:$0x33]
  %v8032 = vld [vmem:[#allocation2 + $0x158] sm:$0x33]
  %v8033 = vld [vmem:[#allocation2 + $0x178] sm:$0x33]
  %v8034 = vld [vmem:[#allocation2 + $0x198] sm:$0x33]
  %v8035 = vld [vmem:[#allocation2 + $0x1b8] sm:$0x33]
  %v8036 = vld [vmem:[#allocation2 + $0x1d8] sm:$0x33]
  %v8037 = vld [vmem:[#allocation2 + $0x1f8] sm:$0x33]
  %v8039 = vshrl.u32 %v7397, 16
  %v8041 = vrot.slane %v8039, 5
  %v8042 = vshll.u32 %v7397, 16
  %v8044 = vrot.slane %v8042, 6
  %v8045 = vor.u32 %v8041, %v8044
  %v8046 = vrot.slane %v8045, 4
  %v8047 = vrot.slane %v6578, 5
  %v8048 = vrot.slane %v6574, 6
  %v8049 = vor.u32 %v8047, %v8048
  %v8050 = vsel %vm2433, %v8046, %v8049
  %v8051 = vrot.slane %v8049, 4
  %v8053 = vshrl.u32 %v8022, 16
  %v8055 = vrot.slane %v8053, 5
  %v8056 = vshll.u32 %v8022, 16
  %v8058 = vrot.slane %v8056, 6
  %v8059 = vor.u32 %v8055, %v8058
  %v8060 = vsel %vm2433, %v8051, %v8059
  %v8062 = vshrl.u32 %v7398, 16
  %v8064 = vrot.slane %v8062, 5
  %v8065 = vshll.u32 %v7398, 16
  %v8067 = vrot.slane %v8065, 6
  %v8068 = vor.u32 %v8064, %v8067
  %v8069 = vrot.slane %v8068, 4
  %v8070 = vrot.slane %v6602, 5
  %v8071 = vrot.slane %v6598, 6
  %v8072 = vor.u32 %v8070, %v8071
  %v8073 = vsel %vm2433, %v8069, %v8072
  %v8074 = vrot.slane %v8072, 4
  %v8076 = vshrl.u32 %v8023, 16
  %v8078 = vrot.slane %v8076, 5
  %v8079 = vshll.u32 %v8023, 16
  %v8081 = vrot.slane %v8079, 6
  %v8082 = vor.u32 %v8078, %v8081
  %v8083 = vsel %vm2433, %v8074, %v8082
  %v8085 = vshrl.u32 %v7399, 16
  %v8087 = vrot.slane %v8085, 5
  %v8088 = vshll.u32 %v7399, 16
  %v8090 = vrot.slane %v8088, 6
  %v8091 = vor.u32 %v8087, %v8090
  %v8092 = vrot.slane %v8091, 4
  %v8093 = vrot.slane %v6626, 5
  %v8094 = vrot.slane %v6622, 6
  %v8095 = vor.u32 %v8093, %v8094
  %v8096 = vsel %vm2433, %v8092, %v8095
  %v8097 = vrot.slane %v8095, 4
  %v8099 = vshrl.u32 %v8024, 16
  %v8101 = vrot.slane %v8099, 5
  %v8102 = vshll.u32 %v8024, 16
  %v8104 = vrot.slane %v8102, 6
  %v8105 = vor.u32 %v8101, %v8104
  %v8106 = vsel %vm2433, %v8097, %v8105
  %v8108 = vshrl.u32 %v7400, 16
  %v8110 = vrot.slane %v8108, 5
  %v8111 = vshll.u32 %v7400, 16
  %v8113 = vrot.slane %v8111, 6
  %v8114 = vor.u32 %v8110, %v8113
  %v8115 = vrot.slane %v8114, 4
  %v8116 = vrot.slane %v6650, 5
  %v8117 = vrot.slane %v6646, 6
  %v8118 = vor.u32 %v8116, %v8117
  %v8119 = vsel %vm2433, %v8115, %v8118
  %v8120 = vrot.slane %v8118, 4
  %v8122 = vshrl.u32 %v8025, 16
  %v8124 = vrot.slane %v8122, 5
  %v8125 = vshll.u32 %v8025, 16
  %v8127 = vrot.slane %v8125, 6
  %v8128 = vor.u32 %v8124, %v8127
  %v8129 = vsel %vm2433, %v8120, %v8128
  %v8131 = vshrl.u32 %v7401, 16
  %v8133 = vrot.slane %v8131, 5
  %v8134 = vshll.u32 %v7401, 16
  %v8136 = vrot.slane %v8134, 6
  %v8137 = vor.u32 %v8133, %v8136
  %v8138 = vrot.slane %v8137, 4
  %v8139 = vrot.slane %v6674, 5
  %v8140 = vrot.slane %v6670, 6
  %v8141 = vor.u32 %v8139, %v8140
  %v8142 = vsel %vm2433, %v8138, %v8141
  %v8143 = vrot.slane %v8141, 4
  %v8145 = vshrl.u32 %v8026, 16
  %v8147 = vrot.slane %v8145, 5
  %v8148 = vshll.u32 %v8026, 16
  %v8150 = vrot.slane %v8148, 6
  %v8151 = vor.u32 %v8147, %v8150
  %v8152 = vsel %vm2433, %v8143, %v8151
  %v8154 = vshrl.u32 %v7402, 16
  %v8156 = vrot.slane %v8154, 5
  %v8157 = vshll.u32 %v7402, 16
  %v8159 = vrot.slane %v8157, 6
  %v8160 = vor.u32 %v8156, %v8159
  %v8161 = vrot.slane %v8160, 4
  %v8162 = vrot.slane %v6698, 5
  %v8163 = vrot.slane %v6694, 6
  %v8164 = vor.u32 %v8162, %v8163
  %v8165 = vsel %vm2433, %v8161, %v8164
  %v8166 = vrot.slane %v8164, 4
  %v8168 = vshrl.u32 %v8027, 16
  %v8170 = vrot.slane %v8168, 5
  %v8171 = vshll.u32 %v8027, 16
  %v8173 = vrot.slane %v8171, 6
  %v8174 = vor.u32 %v8170, %v8173
  %v8175 = vsel %vm2433, %v8166, %v8174
  %v8177 = vshrl.u32 %v7403, 16
  %v8179 = vrot.slane %v8177, 5
  %v8180 = vshll.u32 %v7403, 16
  %v8182 = vrot.slane %v8180, 6
  %v8183 = vor.u32 %v8179, %v8182
  %v8184 = vrot.slane %v8183, 4
  %v8185 = vrot.slane %v6722, 5
  %v8186 = vrot.slane %v6718, 6
  %v8187 = vor.u32 %v8185, %v8186
  %v8188 = vsel %vm2433, %v8184, %v8187
  %v8189 = vrot.slane %v8187, 4
  %v8191 = vshrl.u32 %v8028, 16
  %v8193 = vrot.slane %v8191, 5
  %v8194 = vshll.u32 %v8028, 16
  %v8196 = vrot.slane %v8194, 6
  %v8197 = vor.u32 %v8193, %v8196
  %v8198 = vsel %vm2433, %v8189, %v8197
  %v8200 = vshrl.u32 %v7404, 16
  %v8202 = vrot.slane %v8200, 5
  %v8203 = vshll.u32 %v7404, 16
  %v8205 = vrot.slane %v8203, 6
  %v8206 = vor.u32 %v8202, %v8205
  %v8207 = vrot.slane %v8206, 4
  %v8208 = vrot.slane %v6746, 5
  %v8209 = vrot.slane %v6742, 6
  %v8210 = vor.u32 %v8208, %v8209
  %v8211 = vsel %vm2433, %v8207, %v8210
  %v8212 = vrot.slane %v8210, 4
  %v8214 = vshrl.u32 %v8029, 16
  %v8216 = vrot.slane %v8214, 5
  %v8217 = vshll.u32 %v8029, 16
  %v8219 = vrot.slane %v8217, 6
  %v8220 = vor.u32 %v8216, %v8219
  %v8221 = vsel %vm2433, %v8212, %v8220
  %v8223 = vshrl.u32 %v7405, 16
  %v8225 = vrot.slane %v8223, 5
  %v8226 = vshll.u32 %v7405, 16
  %v8228 = vrot.slane %v8226, 6
  %v8229 = vor.u32 %v8225, %v8228
  %v8230 = vrot.slane %v8229, 4
  %v8231 = vrot.slane %v6770, 5
  %v8232 = vrot.slane %v6766, 6
  %v8233 = vor.u32 %v8231, %v8232
  %v8234 = vsel %vm2433, %v8230, %v8233
  %v8235 = vrot.slane %v8233, 4
  %v8237 = vshrl.u32 %v8030, 16
  %v8239 = vrot.slane %v8237, 5
  %v8240 = vshll.u32 %v8030, 16
  %v8242 = vrot.slane %v8240, 6
  %v8243 = vor.u32 %v8239, %v8242
  %v8244 = vsel %vm2433, %v8235, %v8243
  %v8246 = vshrl.u32 %v7406, 16
  %v8248 = vrot.slane %v8246, 5
  %v8249 = vshll.u32 %v7406, 16
  %v8251 = vrot.slane %v8249, 6
  %v8252 = vor.u32 %v8248, %v8251
  %v8253 = vrot.slane %v8252, 4
  %v8254 = vrot.slane %v6794, 5
  %v8255 = vrot.slane %v6790, 6
  %v8256 = vor.u32 %v8254, %v8255
  %v8257 = vsel %vm2433, %v8253, %v8256
  %v8258 = vrot.slane %v8256, 4
  %v8260 = vshrl.u32 %v8031, 16
  %v8262 = vrot.slane %v8260, 5
  %v8263 = vshll.u32 %v8031, 16
  %v8265 = vrot.slane %v8263, 6
  %v8266 = vor.u32 %v8262, %v8265
  %v8267 = vsel %vm2433, %v8258, %v8266
  %v8269 = vshrl.u32 %v7407, 16
  %v8271 = vrot.slane %v8269, 5
  %v8272 = vshll.u32 %v7407, 16
  %v8274 = vrot.slane %v8272, 6
  %v8275 = vor.u32 %v8271, %v8274
  %v8276 = vrot.slane %v8275, 4
  %v8277 = vrot.slane %v6818, 5
  %v8278 = vrot.slane %v6814, 6
  %v8279 = vor.u32 %v8277, %v8278
  %v8280 = vsel %vm2433, %v8276, %v8279
  %v8281 = vrot.slane %v8279, 4
  %v8283 = vshrl.u32 %v8032, 16
  %v8285 = vrot.slane %v8283, 5
  %v8286 = vshll.u32 %v8032, 16
  %v8288 = vrot.slane %v8286, 6
  %v8289 = vor.u32 %v8285, %v8288
  %v8290 = vsel %vm2433, %v8281, %v8289
  %v8292 = vshrl.u32 %v7408, 16
  %v8294 = vrot.slane %v8292, 5
  %v8295 = vshll.u32 %v7408, 16
  %v8297 = vrot.slane %v8295, 6
  %v8298 = vor.u32 %v8294, %v8297
  %v8299 = vrot.slane %v8298, 4
  %v8300 = vrot.slane %v6842, 5
  %v8301 = vrot.slane %v6838, 6
  %v8302 = vor.u32 %v8300, %v8301
  %v8303 = vsel %vm2433, %v8299, %v8302
  %v8304 = vrot.slane %v8302, 4
  %v8306 = vshrl.u32 %v8033, 16
  %v8308 = vrot.slane %v8306, 5
  %v8309 = vshll.u32 %v8033, 16
  %v8311 = vrot.slane %v8309, 6
  %v8312 = vor.u32 %v8308, %v8311
  %v8313 = vsel %vm2433, %v8304, %v8312
  %v8315 = vshrl.u32 %v7409, 16
  %v8317 = vrot.slane %v8315, 5
  %v8318 = vshll.u32 %v7409, 16
  %v8320 = vrot.slane %v8318, 6
  %v8321 = vor.u32 %v8317, %v8320
  %v8322 = vrot.slane %v8321, 4
  %v8323 = vrot.slane %v6866, 5
  %v8324 = vrot.slane %v6862, 6
  %v8325 = vor.u32 %v8323, %v8324
  %v8326 = vsel %vm2433, %v8322, %v8325
  %v8327 = vrot.slane %v8325, 4
  %v8329 = vshrl.u32 %v8034, 16
  %v8331 = vrot.slane %v8329, 5
  %v8332 = vshll.u32 %v8034, 16
  %v8334 = vrot.slane %v8332, 6
  %v8335 = vor.u32 %v8331, %v8334
  %v8336 = vsel %vm2433, %v8327, %v8335
  %v8338 = vshrl.u32 %v7410, 16
  %v8340 = vrot.slane %v8338, 5
  %v8341 = vshll.u32 %v7410, 16
  %v8343 = vrot.slane %v8341, 6
  %v8344 = vor.u32 %v8340, %v8343
  %v8345 = vrot.slane %v8344, 4
  %v8346 = vrot.slane %v6890, 5
  %v8347 = vrot.slane %v6886, 6
  %v8348 = vor.u32 %v8346, %v8347
  %v8349 = vsel %vm2433, %v8345, %v8348
  %v8350 = vrot.slane %v8348, 4
  %v8352 = vshrl.u32 %v8035, 16
  %v8354 = vrot.slane %v8352, 5
  %v8355 = vshll.u32 %v8035, 16
  %v8357 = vrot.slane %v8355, 6
  %v8358 = vor.u32 %v8354, %v8357
  %v8359 = vsel %vm2433, %v8350, %v8358
  %v8361 = vshrl.u32 %v7411, 16
  %v8363 = vrot.slane %v8361, 5
  %v8364 = vshll.u32 %v7411, 16
  %v8366 = vrot.slane %v8364, 6
  %v8367 = vor.u32 %v8363, %v8366
  %v8368 = vrot.slane %v8367, 4
  %v8369 = vrot.slane %v6914, 5
  %v8370 = vrot.slane %v6910, 6
  %v8371 = vor.u32 %v8369, %v8370
  %v8372 = vsel %vm2433, %v8368, %v8371
  %v8373 = vrot.slane %v8371, 4
  %v8375 = vshrl.u32 %v8036, 16
  %v8377 = vrot.slane %v8375, 5
  %v8378 = vshll.u32 %v8036, 16
  %v8380 = vrot.slane %v8378, 6
  %v8381 = vor.u32 %v8377, %v8380
  %v8382 = vsel %vm2433, %v8373, %v8381
  %v8384 = vshrl.u32 %v7412, 16
  %v8386 = vrot.slane %v8384, 5
  %v8387 = vshll.u32 %v7412, 16
  %v8389 = vrot.slane %v8387, 6
  %v8390 = vor.u32 %v8386, %v8389
  %v8391 = vrot.slane %v8390, 4
  %v8392 = vrot.slane %v6938, 5
  %v8393 = vrot.slane %v6934, 6
  %v8394 = vor.u32 %v8392, %v8393
  %v8395 = vsel %vm2433, %v8391, %v8394
  %v8396 = vrot.slane %v8394, 4
  %v8398 = vshrl.u32 %v8037, 16
  %v8400 = vrot.slane %v8398, 5
  %v8401 = vshll.u32 %v8037, 16
  %v8403 = vrot.slane %v8401, 6
  %v8404 = vor.u32 %v8400, %v8403
  %v8405 = vsel %vm2433, %v8396, %v8404
  %v8406 = vld [vmem:[%s4 + $0x500] sm:$0xf]
  %v8407 = vld [vmem:[%s4 + $0x504] sm:$0xf]
  %v8408 = vld [vmem:[%s4 + $0x508] sm:$0xf]
  %v8409 = vld [vmem:[%s4 + $0x50c] sm:$0xf]
  %v8410 = vld [vmem:[%s4 + $0x510] sm:$0xf]
  %v8411 = vld [vmem:[%s4 + $0x514] sm:$0xf]
  %v8412 = vld [vmem:[%s4 + $0x518] sm:$0xf]
  %v8413 = vld [vmem:[%s4 + $0x51c] sm:$0xf]
  %v8414 = vld [vmem:[%s4 + $0x520] sm:$0xf]
  %v8415 = vld [vmem:[%s4 + $0x524] sm:$0xf]
  %v8416 = vld [vmem:[%s4 + $0x528] sm:$0xf]
  %v8417 = vld [vmem:[%s4 + $0x52c] sm:$0xf]
  %v8418 = vld [vmem:[%s4 + $0x530] sm:$0xf]
  %v8419 = vld [vmem:[%s4 + $0x534] sm:$0xf]
  %v8420 = vld [vmem:[%s4 + $0x538] sm:$0xf]
  %v8421 = vld [vmem:[%s4 + $0x53c] sm:$0xf]
  %v8422 = vld [vmem:[%s4 + $0x540] sm:$0xf]
  %v8423 = vld [vmem:[%s4 + $0x544] sm:$0xf]
  %v8424 = vld [vmem:[%s4 + $0x548] sm:$0xf]
  %v8425 = vld [vmem:[%s4 + $0x54c] sm:$0xf]
  %v8426 = vld [vmem:[%s4 + $0x550] sm:$0xf]
  %v8427 = vld [vmem:[%s4 + $0x554] sm:$0xf]
  %v8428 = vld [vmem:[%s4 + $0x558] sm:$0xf]
  %v8429 = vld [vmem:[%s4 + $0x55c] sm:$0xf]
  %v8430 = vld [vmem:[%s4 + $0x560] sm:$0xf]
  %v8431 = vld [vmem:[%s4 + $0x564] sm:$0xf]
  %v8432 = vld [vmem:[%s4 + $0x568] sm:$0xf]
  %v8433 = vld [vmem:[%s4 + $0x56c] sm:$0xf]
  %v8434 = vld [vmem:[%s4 + $0x570] sm:$0xf]
  %v8435 = vld [vmem:[%s4 + $0x574] sm:$0xf]
  %v8436 = vld [vmem:[%s4 + $0x578] sm:$0xf]
  %v8437 = vld [vmem:[%s4 + $0x57c] sm:$0xf]
  %v8438 = vunpack.c.l.b16 %v8050
  %v8439 = vunpack.c.h.b16 %v8050
  %v8440 = vunpack.c.l.b16 %v8060
  %v8441 = vunpack.c.h.b16 %v8060
  %v8442 = vunpack.c.l.b16 %v8073
  %v8443 = vunpack.c.h.b16 %v8073
  %v8444 = vunpack.c.l.b16 %v8083
  %v8445 = vunpack.c.h.b16 %v8083
  %v8446 = vunpack.c.l.b16 %v8096
  %v8447 = vunpack.c.h.b16 %v8096
  %v8448 = vunpack.c.l.b16 %v8106
  %v8449 = vunpack.c.h.b16 %v8106
  %v8450 = vunpack.c.l.b16 %v8119
  %v8451 = vunpack.c.h.b16 %v8119
  %v8452 = vunpack.c.l.b16 %v8129
  %v8453 = vunpack.c.h.b16 %v8129
  %v8454 = vunpack.c.l.b16 %v8142
  %v8455 = vunpack.c.h.b16 %v8142
  %v8456 = vunpack.c.l.b16 %v8152
  %v8457 = vunpack.c.h.b16 %v8152
  %v8458 = vunpack.c.l.b16 %v8165
  %v8459 = vunpack.c.h.b16 %v8165
  %v8460 = vunpack.c.l.b16 %v8175
  %v8461 = vunpack.c.h.b16 %v8175
  %v8462 = vunpack.c.l.b16 %v8188
  %v8463 = vunpack.c.h.b16 %v8188
  %v8464 = vunpack.c.l.b16 %v8198
  %v8465 = vunpack.c.h.b16 %v8198
  %v8466 = vunpack.c.l.b16 %v8211
  %v8467 = vunpack.c.h.b16 %v8211
  %v8468 = vunpack.c.l.b16 %v8221
  %v8469 = vunpack.c.h.b16 %v8221
  %v8470 = vunpack.c.l.b16 %v8234
  %v8471 = vunpack.c.h.b16 %v8234
  %v8472 = vunpack.c.l.b16 %v8244
  %v8473 = vunpack.c.h.b16 %v8244
  %v8474 = vunpack.c.l.b16 %v8257
  %v8475 = vunpack.c.h.b16 %v8257
  %v8476 = vunpack.c.l.b16 %v8267
  %v8477 = vunpack.c.h.b16 %v8267
  %v8478 = vunpack.c.l.b16 %v8280
  %v8479 = vunpack.c.h.b16 %v8280
  %v8480 = vunpack.c.l.b16 %v8290
  %v8481 = vunpack.c.h.b16 %v8290
  %v8482 = vunpack.c.l.b16 %v8303
  %v8483 = vunpack.c.h.b16 %v8303
  %v8484 = vunpack.c.l.b16 %v8313
  %v8485 = vunpack.c.h.b16 %v8313
  %v8486 = vunpack.c.l.b16 %v8326
  %v8487 = vunpack.c.h.b16 %v8326
  %v8488 = vunpack.c.l.b16 %v8336
  %v8489 = vunpack.c.h.b16 %v8336
  %v8490 = vunpack.c.l.b16 %v8349
  %v8491 = vunpack.c.h.b16 %v8349
  %v8492 = vunpack.c.l.b16 %v8359
  %v8493 = vunpack.c.h.b16 %v8359
  %v8494 = vunpack.c.l.b16 %v8372
  %v8495 = vunpack.c.h.b16 %v8372
  %v8496 = vunpack.c.l.b16 %v8382
  %v8497 = vunpack.c.h.b16 %v8382
  %v8498 = vunpack.c.l.b16 %v8395
  %v8499 = vunpack.c.h.b16 %v8395
  %v8500 = vunpack.c.l.b16 %v8405
  %v8501 = vunpack.c.h.b16 %v8405
  %v8502 = vpack.c.b16 %v8440, %v8438
  %v8503 = vpack.c.b16 %v8441, %v8439
  %v8504 = vpack.c.b16 %v8444, %v8442
  %v8505 = vpack.c.b16 %v8445, %v8443
  %v8506 = vpack.c.b16 %v8448, %v8446
  %v8507 = vpack.c.b16 %v8449, %v8447
  %v8508 = vpack.c.b16 %v8452, %v8450
  %v8509 = vpack.c.b16 %v8453, %v8451
  %v8510 = vpack.c.b16 %v8456, %v8454
  %v8511 = vpack.c.b16 %v8457, %v8455
  %v8512 = vpack.c.b16 %v8460, %v8458
  %v8513 = vpack.c.b16 %v8461, %v8459
  %v8514 = vpack.c.b16 %v8464, %v8462
  %v8515 = vpack.c.b16 %v8465, %v8463
  %v8516 = vpack.c.b16 %v8468, %v8466
  %v8517 = vpack.c.b16 %v8469, %v8467
  %v8518 = vpack.c.b16 %v8472, %v8470
  %v8519 = vpack.c.b16 %v8473, %v8471
  %v8520 = vpack.c.b16 %v8476, %v8474
  %v8521 = vpack.c.b16 %v8477, %v8475
  %v8522 = vpack.c.b16 %v8480, %v8478
  %v8523 = vpack.c.b16 %v8481, %v8479
  %v8524 = vpack.c.b16 %v8484, %v8482
  %v8525 = vpack.c.b16 %v8485, %v8483
  %v8526 = vpack.c.b16 %v8488, %v8486
  %v8527 = vpack.c.b16 %v8489, %v8487
  %v8528 = vpack.c.b16 %v8492, %v8490
  %v8529 = vpack.c.b16 %v8493, %v8491
  %v8530 = vpack.c.b16 %v8496, %v8494
  %v8531 = vpack.c.b16 %v8497, %v8495
  %v8532 = vpack.c.b16 %v8500, %v8498
  %v8533 = vpack.c.b16 %v8501, %v8499
  %v8598 = vunpack.c.l.b16 %v8406
  %v8599 = vunpack.c.l.b16 %v8407
  %v8600 = vunpack.c.l.b16 %v8408
  %v8601 = vunpack.c.l.b16 %v8409
  %v8602 = vunpack.c.l.b16 %v8410
  %v8603 = vunpack.c.l.b16 %v8411
  %v8604 = vunpack.c.l.b16 %v8412
  %v8605 = vunpack.c.l.b16 %v8413
  %v8606 = vunpack.c.l.b16 %v8414
  %v8607 = vunpack.c.l.b16 %v8415
  %v8608 = vunpack.c.l.b16 %v8416
  %v8609 = vunpack.c.l.b16 %v8417
  %v8610 = vunpack.c.l.b16 %v8418
  %v8611 = vunpack.c.l.b16 %v8419
  %v8612 = vunpack.c.l.b16 %v8420
  %v8613 = vunpack.c.l.b16 %v8421
  %v8614 = vunpack.c.l.b16 %v8422
  %v8615 = vunpack.c.l.b16 %v8423
  %v8616 = vunpack.c.l.b16 %v8424
  %v8617 = vunpack.c.l.b16 %v8425
  %v8618 = vunpack.c.l.b16 %v8426
  %v8619 = vunpack.c.l.b16 %v8427
  %v8620 = vunpack.c.l.b16 %v8428
  %v8621 = vunpack.c.l.b16 %v8429
  %v8622 = vunpack.c.l.b16 %v8430
  %v8623 = vunpack.c.l.b16 %v8431
  %v8624 = vunpack.c.l.b16 %v8432
  %v8625 = vunpack.c.l.b16 %v8433
  %v8626 = vunpack.c.l.b16 %v8434
  %v8627 = vunpack.c.l.b16 %v8435
  %v8628 = vunpack.c.l.b16 %v8436
  %v8629 = vunpack.c.l.b16 %v8437
  %v8630 = vpack.c.b16 %v8599, %v8598
  %v8631 = vpack.c.b16 %v8601, %v8600
  %v8632 = vpack.c.b16 %v8603, %v8602
  %v8633 = vpack.c.b16 %v8605, %v8604
  %v8634 = vpack.c.b16 %v8607, %v8606
  %v8635 = vpack.c.b16 %v8609, %v8608
  %v8636 = vpack.c.b16 %v8611, %v8610
  %v8637 = vpack.c.b16 %v8613, %v8612
  %v8638 = vpack.c.b16 %v8615, %v8614
  %v8639 = vpack.c.b16 %v8617, %v8616
  %v8640 = vpack.c.b16 %v8619, %v8618
  %v8641 = vpack.c.b16 %v8621, %v8620
  %v8642 = vpack.c.b16 %v8623, %v8622
  %v8643 = vpack.c.b16 %v8625, %v8624
  %v8644 = vpack.c.b16 %v8627, %v8626
  %v8645 = vpack.c.b16 %v8629, %v8628
  %8662 = vmatprep.subr.bf16.mxu0 0
  %8663 = vmatpush1.bf16.msra.mxu0 %v8637
  %8664 = vmatprep.subr.bf16.mxu0 0
  %8665 = vmatpush1.bf16.msra.mxu0 %v8636
  %8666 = vmatprep.subr.bf16.mxu0 0
  %8667 = vmatpush1.bf16.msra.mxu0 %v8635
  %8668 = vmatprep.subr.bf16.mxu0 0
  %8669 = vmatpush1.bf16.msra.mxu0 %v8634
  %8670 = vmatprep.subr.bf16.mxu0 0
  %8671 = vmatpush1.bf16.msra.mxu0 %v8633
  %8672 = vmatprep.subr.bf16.mxu0 0
  %8673 = vmatpush1.bf16.msra.mxu0 %v8632
  %8674 = vmatprep.subr.bf16.mxu0 0
  %8675 = vmatpush1.bf16.msra.mxu0 %v8631
  %8676 = vmatprep.subr.bf16.mxu0 0
  %8677 = vmatpush1.bf16.msra.mxu0 %v8630
  %8678 = vmatprep.subr.bf16.mxu0 0
  %8679 = vmatpush2.bf16.msra.mxu0 %v8645
  %8680 = vmatprep.subr.bf16.mxu0 0
  %8681 = vmatpush2.bf16.msra.mxu0 %v8644
  %8682 = vmatprep.subr.bf16.mxu0 0
  %8683 = vmatpush2.bf16.msra.mxu0 %v8643
  %8684 = vmatprep.subr.bf16.mxu0 0
  %8685 = vmatpush2.bf16.msra.mxu0 %v8642
  %8686 = vmatprep.subr.bf16.mxu0 0
  %8687 = vmatpush2.bf16.msra.mxu0 %v8641
  %8688 = vmatprep.subr.bf16.mxu0 0
  %8689 = vmatpush2.bf16.msra.mxu0 %v8640
  %8690 = vmatprep.subr.bf16.mxu0 0
  %8691 = vmatpush2.bf16.msra.mxu0 %v8639
  %8692 = vmatprep.subr.bf16.mxu0 0
  %8693 = vmatpush2.bf16.msra.mxu0 %v8638
  %8694 = vmatprep.mubr.bf16.mxu0 %v8503
  %8695 = vmatmul.mubr.bf16.gmra.mxu0 %v8502
  %v8696 = vpop.f32.mrf.mxu0
  %v8697 = vadd.f32 0.0, %v8696
  %v8698 = vpop.f32.mrf.mxu0
  %v8699 = vpop.f32.mrf.mxu0
  %v8700 = vadd.f32 0.0, %v8699
  %v8701 = vpop.f32.mrf.mxu0
  %8702 = vmatprep.mubr.bf16.mxu0 %v8505
  %8703 = vmatmul.mubr.bf16.gmra.mxu0 %v8504
  %v8704 = vpop.f32.mrf.mxu0
  %v8705 = vadd.f32 0.0, %v8704
  %v8706 = vpop.f32.mrf.mxu0
  %v8707 = vpop.f32.mrf.mxu0
  %v8708 = vadd.f32 0.0, %v8707
  %v8709 = vpop.f32.mrf.mxu0
  %8710 = vmatprep.mubr.bf16.mxu0 %v8507
  %8711 = vmatmul.mubr.bf16.gmra.mxu0 %v8506
  %v8712 = vpop.f32.mrf.mxu0
  %v8713 = vadd.f32 0.0, %v8712
  %v8714 = vpop.f32.mrf.mxu0
  %v8715 = vpop.f32.mrf.mxu0
  %v8716 = vadd.f32 0.0, %v8715
  %v8717 = vpop.f32.mrf.mxu0
  %8718 = vmatprep.mubr.bf16.mxu0 %v8509
  %8719 = vmatmul.mubr.bf16.gmra.mxu0 %v8508
  %v8720 = vpop.f32.mrf.mxu0
  %v8721 = vadd.f32 0.0, %v8720
  %v8722 = vpop.f32.mrf.mxu0
  %v8723 = vpop.f32.mrf.mxu0
  %v8724 = vadd.f32 0.0, %v8723
  %v8725 = vpop.f32.mrf.mxu0
  %8726 = vmatprep.mubr.bf16.mxu0 %v8511
  %8727 = vmatmul.mubr.bf16.gmra.mxu0 %v8510
  %v8728 = vpop.f32.mrf.mxu0
  %v8729 = vadd.f32 0.0, %v8728
  %v8730 = vpop.f32.mrf.mxu0
  %v8731 = vpop.f32.mrf.mxu0
  %v8732 = vadd.f32 0.0, %v8731
  %v8733 = vpop.f32.mrf.mxu0
  %8734 = vmatprep.mubr.bf16.mxu0 %v8513
  %8735 = vmatmul.mubr.bf16.gmra.mxu0 %v8512
  %v8736 = vpop.f32.mrf.mxu0
  %v8737 = vadd.f32 0.0, %v8736
  %v8738 = vpop.f32.mrf.mxu0
  %v8739 = vpop.f32.mrf.mxu0
  %v8740 = vadd.f32 0.0, %v8739
  %v8741 = vpop.f32.mrf.mxu0
  %8742 = vmatprep.mubr.bf16.mxu0 %v8515
  %8743 = vmatmul.mubr.bf16.gmra.mxu0 %v8514
  %v8744 = vpop.f32.mrf.mxu0
  %v8745 = vadd.f32 0.0, %v8744
  %v8746 = vpop.f32.mrf.mxu0
  %v8747 = vpop.f32.mrf.mxu0
  %v8748 = vadd.f32 0.0, %v8747
  %v8749 = vpop.f32.mrf.mxu0
  %8750 = vmatprep.mubr.bf16.mxu0 %v8517
  %8751 = vmatmul.mubr.bf16.gmra.mxu0 %v8516
  %v8752 = vpop.f32.mrf.mxu0
  %v8753 = vadd.f32 0.0, %v8752
  %v8754 = vpop.f32.mrf.mxu0
  %v8755 = vpop.f32.mrf.mxu0
  %v8756 = vadd.f32 0.0, %v8755
  %v8757 = vpop.f32.mrf.mxu0
  %8758 = vmatprep.mubr.bf16.mxu0 %v8519
  %8759 = vmatmul.mubr.bf16.gmra.mxu0 %v8518
  %v8760 = vpop.f32.mrf.mxu0
  %v8761 = vadd.f32 0.0, %v8760
  %v8762 = vpop.f32.mrf.mxu0
  %v8763 = vpop.f32.mrf.mxu0
  %v8764 = vadd.f32 0.0, %v8763
  %v8765 = vpop.f32.mrf.mxu0
  %8766 = vmatprep.mubr.bf16.mxu0 %v8521
  %8767 = vmatmul.mubr.bf16.gmra.mxu0 %v8520
  %v8768 = vpop.f32.mrf.mxu0
  %v8769 = vadd.f32 0.0, %v8768
  %v8770 = vpop.f32.mrf.mxu0
  %v8771 = vpop.f32.mrf.mxu0
  %v8772 = vadd.f32 0.0, %v8771
  %v8773 = vpop.f32.mrf.mxu0
  %8774 = vmatprep.mubr.bf16.mxu0 %v8523
  %8775 = vmatmul.mubr.bf16.gmra.mxu0 %v8522
  %v8776 = vpop.f32.mrf.mxu0
  %v8777 = vadd.f32 0.0, %v8776
  %v8778 = vpop.f32.mrf.mxu0
  %v8779 = vpop.f32.mrf.mxu0
  %v8780 = vadd.f32 0.0, %v8779
  %v8781 = vpop.f32.mrf.mxu0
  %8782 = vmatprep.mubr.bf16.mxu0 %v8525
  %8783 = vmatmul.mubr.bf16.gmra.mxu0 %v8524
  %v8784 = vpop.f32.mrf.mxu0
  %v8785 = vadd.f32 0.0, %v8784
  %v8786 = vpop.f32.mrf.mxu0
  %v8787 = vpop.f32.mrf.mxu0
  %v8788 = vadd.f32 0.0, %v8787
  %v8789 = vpop.f32.mrf.mxu0
  %8790 = vmatprep.mubr.bf16.mxu0 %v8527
  %8791 = vmatmul.mubr.bf16.gmra.mxu0 %v8526
  %v8792 = vpop.f32.mrf.mxu0
  %v8793 = vadd.f32 0.0, %v8792
  %v8794 = vpop.f32.mrf.mxu0
  %v8795 = vpop.f32.mrf.mxu0
  %v8796 = vadd.f32 0.0, %v8795
  %v8797 = vpop.f32.mrf.mxu0
  %8798 = vmatprep.mubr.bf16.mxu0 %v8529
  %8799 = vmatmul.mubr.bf16.gmra.mxu0 %v8528
  %v8800 = vpop.f32.mrf.mxu0
  %v8801 = vadd.f32 0.0, %v8800
  %v8802 = vpop.f32.mrf.mxu0
  %v8803 = vpop.f32.mrf.mxu0
  %v8804 = vadd.f32 0.0, %v8803
  %v8805 = vpop.f32.mrf.mxu0
  %8806 = vmatprep.mubr.bf16.mxu0 %v8531
  %8807 = vmatmul.mubr.bf16.gmra.mxu0 %v8530
  %v8808 = vpop.f32.mrf.mxu0
  %v8809 = vadd.f32 0.0, %v8808
  %v8810 = vpop.f32.mrf.mxu0
  %v8811 = vpop.f32.mrf.mxu0
  %v8812 = vadd.f32 0.0, %v8811
  %v8813 = vpop.f32.mrf.mxu0
  %8814 = vmatprep.mubr.bf16.mxu0 %v8533
  %8815 = vmatmul.mubr.bf16.gmra.mxu0 %v8532
  %v8816 = vpop.f32.mrf.mxu0
  %v8817 = vadd.f32 0.0, %v8816
  %v8818 = vpop.f32.mrf.mxu0
  %v8819 = vpop.f32.mrf.mxu0
  %v8820 = vadd.f32 0.0, %v8819
  %v8821 = vpop.f32.mrf.mxu0
  %8822 = vdwg.mxu0
  %v8823 = vadd.f32 %v7990, %v8697
  %v8824 = vadd.f32 %v7991, %v8700
  %v8825 = vadd.f32 %v7992, %v8705
  %v8826 = vadd.f32 %v7993, %v8708
  %v8827 = vadd.f32 %v7994, %v8713
  %v8828 = vadd.f32 %v7995, %v8716
  %v8829 = vadd.f32 %v7996, %v8721
  %v8830 = vadd.f32 %v7997, %v8724
  %v8831 = vadd.f32 %v7998, %v8729
  %v8832 = vadd.f32 %v7999, %v8732
  %v8833 = vadd.f32 %v8000, %v8737
  %v8834 = vadd.f32 %v8001, %v8740
  %v8835 = vadd.f32 %v8002, %v8745
  %v8836 = vadd.f32 %v8003, %v8748
  %v8837 = vadd.f32 %v8004, %v8753
  %v8838 = vadd.f32 %v8005, %v8756
  %v8839 = vadd.f32 %v8006, %v8761
  %v8840 = vadd.f32 %v8007, %v8764
  %v8841 = vadd.f32 %v8008, %v8769
  %v8842 = vadd.f32 %v8009, %v8772
  %v8843 = vadd.f32 %v8010, %v8777
  %v8844 = vadd.f32 %v8011, %v8780
  %v8845 = vadd.f32 %v8012, %v8785
  %v8846 = vadd.f32 %v8013, %v8788
  %v8847 = vadd.f32 %v8014, %v8793
  %v8848 = vadd.f32 %v8015, %v8796
  %v8849 = vadd.f32 %v8016, %v8801
  %v8850 = vadd.f32 %v8017, %v8804
  %v8851 = vadd.f32 %v8018, %v8809
  %v8852 = vadd.f32 %v8019, %v8812
  %v8853 = vadd.f32 %v8020, %v8817
  %v8854 = vadd.f32 %v8021, %v8820
  %v8855 = vld [vmem:[#allocation2 + $0x8] sm:$0xcc]
  %v8856 = vld [vmem:[#allocation2 + $0x28] sm:$0xcc]
  %v8857 = vld [vmem:[#allocation2 + $0x48] sm:$0xcc]
  %v8858 = vld [vmem:[#allocation2 + $0x68] sm:$0xcc]
  %v8859 = vld [vmem:[#allocation2 + $0x88] sm:$0xcc]
  %v8860 = vld [vmem:[#allocation2 + $0xa8] sm:$0xcc]
  %v8861 = vld [vmem:[#allocation2 + $0xc8] sm:$0xcc]
  %v8862 = vld [vmem:[#allocation2 + $0xe8] sm:$0xcc]
  %v8863 = vld [vmem:[#allocation2 + $0x108] sm:$0xcc]
  %v8864 = vld [vmem:[#allocation2 + $0x128] sm:$0xcc]
  %v8865 = vld [vmem:[#allocation2 + $0x148] sm:$0xcc]
  %v8866 = vld [vmem:[#allocation2 + $0x168] sm:$0xcc]
  %v8867 = vld [vmem:[#allocation2 + $0x188] sm:$0xcc]
  %v8868 = vld [vmem:[#allocation2 + $0x1a8] sm:$0xcc]
  %v8869 = vld [vmem:[#allocation2 + $0x1c8] sm:$0xcc]
  %v8870 = vld [vmem:[#allocation2 + $0x1e8] sm:$0xcc]
  %v8903 = vrot.slane %v8855, 6
  %v8904 = vrot.slane %v8903, 4
  %v8905 = vrot.slane %v6517, 6
  %v8906 = vsel %vm3301, %v8904, %v8905
  %v8907 = vrot.slane %v8905, 4
  %v8908 = vrot.slane %v8022, 6
  %v8909 = vsel %vm3301, %v8907, %v8908
  %v8910 = vrot.slane %v8856, 6
  %v8911 = vrot.slane %v8910, 4
  %v8912 = vrot.slane %v6520, 6
  %v8913 = vsel %vm3301, %v8911, %v8912
  %v8914 = vrot.slane %v8912, 4
  %v8915 = vrot.slane %v8023, 6
  %v8916 = vsel %vm3301, %v8914, %v8915
  %v8917 = vrot.slane %v8857, 6
  %v8918 = vrot.slane %v8917, 4
  %v8919 = vrot.slane %v6523, 6
  %v8920 = vsel %vm3301, %v8918, %v8919
  %v8921 = vrot.slane %v8919, 4
  %v8922 = vrot.slane %v8024, 6
  %v8923 = vsel %vm3301, %v8921, %v8922
  %v8924 = vrot.slane %v8858, 6
  %v8925 = vrot.slane %v8924, 4
  %v8926 = vrot.slane %v6526, 6
  %v8927 = vsel %vm3301, %v8925, %v8926
  %v8928 = vrot.slane %v8926, 4
  %v8929 = vrot.slane %v8025, 6
  %v8930 = vsel %vm3301, %v8928, %v8929
  %v8931 = vrot.slane %v8859, 6
  %v8932 = vrot.slane %v8931, 4
  %v8933 = vrot.slane %v6529, 6
  %v8934 = vsel %vm3301, %v8932, %v8933
  %v8935 = vrot.slane %v8933, 4
  %v8936 = vrot.slane %v8026, 6
  %v8937 = vsel %vm3301, %v8935, %v8936
  %v8938 = vrot.slane %v8860, 6
  %v8939 = vrot.slane %v8938, 4
  %v8940 = vrot.slane %v6532, 6
  %v8941 = vsel %vm3301, %v8939, %v8940
  %v8942 = vrot.slane %v8940, 4
  %v8943 = vrot.slane %v8027, 6
  %v8944 = vsel %vm3301, %v8942, %v8943
  %v8945 = vrot.slane %v8861, 6
  %v8946 = vrot.slane %v8945, 4
  %v8947 = vrot.slane %v6535, 6
  %v8948 = vsel %vm3301, %v8946, %v8947
  %v8949 = vrot.slane %v8947, 4
  %v8950 = vrot.slane %v8028, 6
  %v8951 = vsel %vm3301, %v8949, %v8950
  %v8952 = vrot.slane %v8862, 6
  %v8953 = vrot.slane %v8952, 4
  %v8954 = vrot.slane %v6538, 6
  %v8955 = vsel %vm3301, %v8953, %v8954
  %v8956 = vrot.slane %v8954, 4
  %v8957 = vrot.slane %v8029, 6
  %v8958 = vsel %vm3301, %v8956, %v8957
  %v8959 = vrot.slane %v8863, 6
  %v8960 = vrot.slane %v8959, 4
  %v8961 = vrot.slane %v6541, 6
  %v8962 = vsel %vm3301, %v8960, %v8961
  %v8963 = vrot.slane %v8961, 4
  %v8964 = vrot.slane %v8030, 6
  %v8965 = vsel %vm3301, %v8963, %v8964
  %v8966 = vrot.slane %v8864, 6
  %v8967 = vrot.slane %v8966, 4
  %v8968 = vrot.slane %v6544, 6
  %v8969 = vsel %vm3301, %v8967, %v8968
  %v8970 = vrot.slane %v8968, 4
  %v8971 = vrot.slane %v8031, 6
  %v8972 = vsel %vm3301, %v8970, %v8971
  %v8973 = vrot.slane %v8865, 6
  %v8974 = vrot.slane %v8973, 4
  %v8975 = vrot.slane %v6547, 6
  %v8976 = vsel %vm3301, %v8974, %v8975
  %v8977 = vrot.slane %v8975, 4
  %v8978 = vrot.slane %v8032, 6
  %v8979 = vsel %vm3301, %v8977, %v8978
  %v8980 = vrot.slane %v8866, 6
  %v8981 = vrot.slane %v8980, 4
  %v8982 = vrot.slane %v6550, 6
  %v8983 = vsel %vm3301, %v8981, %v8982
  %v8984 = vrot.slane %v8982, 4
  %v8985 = vrot.slane %v8033, 6
  %v8986 = vsel %vm3301, %v8984, %v8985
  %v8987 = vrot.slane %v8867, 6
  %v8988 = vrot.slane %v8987, 4
  %v8989 = vrot.slane %v6553, 6
  %v8990 = vsel %vm3301, %v8988, %v8989
  %v8991 = vrot.slane %v8989, 4
  %v8992 = vrot.slane %v8034, 6
  %v8993 = vsel %vm3301, %v8991, %v8992
  %v8994 = vrot.slane %v8868, 6
  %v8995 = vrot.slane %v8994, 4
  %v8996 = vrot.slane %v6556, 6
  %v8997 = vsel %vm3301, %v8995, %v8996
  %v8998 = vrot.slane %v8996, 4
  %v8999 = vrot.slane %v8035, 6
  %v9000 = vsel %vm3301, %v8998, %v8999
  %v9001 = vrot.slane %v8869, 6
  %v9002 = vrot.slane %v9001, 4
  %v9003 = vrot.slane %v6559, 6
  %v9004 = vsel %vm3301, %v9002, %v9003
  %v9005 = vrot.slane %v9003, 4
  %v9006 = vrot.slane %v8036, 6
  %v9007 = vsel %vm3301, %v9005, %v9006
  %v9008 = vrot.slane %v8870, 6
  %v9009 = vrot.slane %v9008, 4
  %v9010 = vrot.slane %v6562, 6
  %v9011 = vsel %vm3301, %v9009, %v9010
  %v9012 = vrot.slane %v9010, 4
  %v9013 = vrot.slane %v8037, 6
  %v9014 = vsel %vm3301, %v9012, %v9013
  %v9015 = vld [vmem:[%s4 + $0x580] sm:$0xf]
  %v9016 = vld [vmem:[%s4 + $0x584] sm:$0xf]
  %v9017 = vld [vmem:[%s4 + $0x588] sm:$0xf]
  %v9018 = vld [vmem:[%s4 + $0x58c] sm:$0xf]
  %v9019 = vld [vmem:[%s4 + $0x590] sm:$0xf]
  %v9020 = vld [vmem:[%s4 + $0x594] sm:$0xf]
  %v9021 = vld [vmem:[%s4 + $0x598] sm:$0xf]
  %v9022 = vld [vmem:[%s4 + $0x59c] sm:$0xf]
  %v9023 = vld [vmem:[%s4 + $0x5a0] sm:$0xf]
  %v9024 = vld [vmem:[%s4 + $0x5a4] sm:$0xf]
  %v9025 = vld [vmem:[%s4 + $0x5a8] sm:$0xf]
  %v9026 = vld [vmem:[%s4 + $0x5ac] sm:$0xf]
  %v9027 = vld [vmem:[%s4 + $0x5b0] sm:$0xf]
  %v9028 = vld [vmem:[%s4 + $0x5b4] sm:$0xf]
  %v9029 = vld [vmem:[%s4 + $0x5b8] sm:$0xf]
  %v9030 = vld [vmem:[%s4 + $0x5bc] sm:$0xf]
  %v9031 = vld [vmem:[%s4 + $0x5c0] sm:$0xf]
  %v9032 = vld [vmem:[%s4 + $0x5c4] sm:$0xf]
  %v9033 = vld [vmem:[%s4 + $0x5c8] sm:$0xf]
  %v9034 = vld [vmem:[%s4 + $0x5cc] sm:$0xf]
  %v9035 = vld [vmem:[%s4 + $0x5d0] sm:$0xf]
  %v9036 = vld [vmem:[%s4 + $0x5d4] sm:$0xf]
  %v9037 = vld [vmem:[%s4 + $0x5d8] sm:$0xf]
  %v9038 = vld [vmem:[%s4 + $0x5dc] sm:$0xf]
  %v9039 = vld [vmem:[%s4 + $0x5e0] sm:$0xf]
  %v9040 = vld [vmem:[%s4 + $0x5e4] sm:$0xf]
  %v9041 = vld [vmem:[%s4 + $0x5e8] sm:$0xf]
  %v9042 = vld [vmem:[%s4 + $0x5ec] sm:$0xf]
  %v9043 = vld [vmem:[%s4 + $0x5f0] sm:$0xf]
  %v9044 = vld [vmem:[%s4 + $0x5f4] sm:$0xf]
  %v9045 = vld [vmem:[%s4 + $0x5f8] sm:$0xf]
  %v9046 = vld [vmem:[%s4 + $0x5fc] sm:$0xf]
  %v9047 = vunpack.c.l.b16 %v8906
  %v9048 = vunpack.c.h.b16 %v8906
  %v9049 = vunpack.c.l.b16 %v8909
  %v9050 = vunpack.c.h.b16 %v8909
  %v9051 = vunpack.c.l.b16 %v8913
  %v9052 = vunpack.c.h.b16 %v8913
  %v9053 = vunpack.c.l.b16 %v8916
  %v9054 = vunpack.c.h.b16 %v8916
  %v9055 = vunpack.c.l.b16 %v8920
  %v9056 = vunpack.c.h.b16 %v8920
  %v9057 = vunpack.c.l.b16 %v8923
  %v9058 = vunpack.c.h.b16 %v8923
  %v9059 = vunpack.c.l.b16 %v8927
  %v9060 = vunpack.c.h.b16 %v8927
  %v9061 = vunpack.c.l.b16 %v8930
  %v9062 = vunpack.c.h.b16 %v8930
  %v9063 = vunpack.c.l.b16 %v8934
  %v9064 = vunpack.c.h.b16 %v8934
  %v9065 = vunpack.c.l.b16 %v8937
  %v9066 = vunpack.c.h.b16 %v8937
  %v9067 = vunpack.c.l.b16 %v8941
  %v9068 = vunpack.c.h.b16 %v8941
  %v9069 = vunpack.c.l.b16 %v8944
  %v9070 = vunpack.c.h.b16 %v8944
  %v9071 = vunpack.c.l.b16 %v8948
  %v9072 = vunpack.c.h.b16 %v8948
  %v9073 = vunpack.c.l.b16 %v8951
  %v9074 = vunpack.c.h.b16 %v8951
  %v9075 = vunpack.c.l.b16 %v8955
  %v9076 = vunpack.c.h.b16 %v8955
  %v9077 = vunpack.c.l.b16 %v8958
  %v9078 = vunpack.c.h.b16 %v8958
  %v9079 = vunpack.c.l.b16 %v8962
  %v9080 = vunpack.c.h.b16 %v8962
  %v9081 = vunpack.c.l.b16 %v8965
  %v9082 = vunpack.c.h.b16 %v8965
  %v9083 = vunpack.c.l.b16 %v8969
  %v9084 = vunpack.c.h.b16 %v8969
  %v9085 = vunpack.c.l.b16 %v8972
  %v9086 = vunpack.c.h.b16 %v8972
  %v9087 = vunpack.c.l.b16 %v8976
  %v9088 = vunpack.c.h.b16 %v8976
  %v9089 = vunpack.c.l.b16 %v8979
  %v9090 = vunpack.c.h.b16 %v8979
  %v9091 = vunpack.c.l.b16 %v8983
  %v9092 = vunpack.c.h.b16 %v8983
  %v9093 = vunpack.c.l.b16 %v8986
  %v9094 = vunpack.c.h.b16 %v8986
  %v9095 = vunpack.c.l.b16 %v8990
  %v9096 = vunpack.c.h.b16 %v8990
  %v9097 = vunpack.c.l.b16 %v8993
  %v9098 = vunpack.c.h.b16 %v8993
  %v9099 = vunpack.c.l.b16 %v8997
  %v9100 = vunpack.c.h.b16 %v8997
  %v9101 = vunpack.c.l.b16 %v9000
  %v9102 = vunpack.c.h.b16 %v9000
  %v9103 = vunpack.c.l.b16 %v9004
  %v9104 = vunpack.c.h.b16 %v9004
  %v9105 = vunpack.c.l.b16 %v9007
  %v9106 = vunpack.c.h.b16 %v9007
  %v9107 = vunpack.c.l.b16 %v9011
  %v9108 = vunpack.c.h.b16 %v9011
  %v9109 = vunpack.c.l.b16 %v9014
  %v9110 = vunpack.c.h.b16 %v9014
  %v9111 = vpack.c.b16 %v9049, %v9047
  %v9112 = vpack.c.b16 %v9050, %v9048
  %v9113 = vpack.c.b16 %v9053, %v9051
  %v9114 = vpack.c.b16 %v9054, %v9052
  %v9115 = vpack.c.b16 %v9057, %v9055
  %v9116 = vpack.c.b16 %v9058, %v9056
  %v9117 = vpack.c.b16 %v9061, %v9059
  %v9118 = vpack.c.b16 %v9062, %v9060
  %v9119 = vpack.c.b16 %v9065, %v9063
  %v9120 = vpack.c.b16 %v9066, %v9064
  %v9121 = vpack.c.b16 %v9069, %v9067
  %v9122 = vpack.c.b16 %v9070, %v9068
  %v9123 = vpack.c.b16 %v9073, %v9071
  %v9124 = vpack.c.b16 %v9074, %v9072
  %v9125 = vpack.c.b16 %v9077, %v9075
  %v9126 = vpack.c.b16 %v9078, %v9076
  %v9127 = vpack.c.b16 %v9081, %v9079
  %v9128 = vpack.c.b16 %v9082, %v9080
  %v9129 = vpack.c.b16 %v9085, %v9083
  %v9130 = vpack.c.b16 %v9086, %v9084
  %v9131 = vpack.c.b16 %v9089, %v9087
  %v9132 = vpack.c.b16 %v9090, %v9088
  %v9133 = vpack.c.b16 %v9093, %v9091
  %v9134 = vpack.c.b16 %v9094, %v9092
  %v9135 = vpack.c.b16 %v9097, %v9095
  %v9136 = vpack.c.b16 %v9098, %v9096
  %v9137 = vpack.c.b16 %v9101, %v9099
  %v9138 = vpack.c.b16 %v9102, %v9100
  %v9139 = vpack.c.b16 %v9105, %v9103
  %v9140 = vpack.c.b16 %v9106, %v9104
  %v9141 = vpack.c.b16 %v9109, %v9107
  %v9142 = vpack.c.b16 %v9110, %v9108
  %v9207 = vunpack.c.l.b16 %v9015
  %v9208 = vunpack.c.l.b16 %v9016
  %v9209 = vunpack.c.l.b16 %v9017
  %v9210 = vunpack.c.l.b16 %v9018
  %v9211 = vunpack.c.l.b16 %v9019
  %v9212 = vunpack.c.l.b16 %v9020
  %v9213 = vunpack.c.l.b16 %v9021
  %v9214 = vunpack.c.l.b16 %v9022
  %v9215 = vunpack.c.l.b16 %v9023
  %v9216 = vunpack.c.l.b16 %v9024
  %v9217 = vunpack.c.l.b16 %v9025
  %v9218 = vunpack.c.l.b16 %v9026
  %v9219 = vunpack.c.l.b16 %v9027
  %v9220 = vunpack.c.l.b16 %v9028
  %v9221 = vunpack.c.l.b16 %v9029
  %v9222 = vunpack.c.l.b16 %v9030
  %v9223 = vunpack.c.l.b16 %v9031
  %v9224 = vunpack.c.l.b16 %v9032
  %v9225 = vunpack.c.l.b16 %v9033
  %v9226 = vunpack.c.l.b16 %v9034
  %v9227 = vunpack.c.l.b16 %v9035
  %v9228 = vunpack.c.l.b16 %v9036
  %v9229 = vunpack.c.l.b16 %v9037
  %v9230 = vunpack.c.l.b16 %v9038
  %v9231 = vunpack.c.l.b16 %v9039
  %v9232 = vunpack.c.l.b16 %v9040
  %v9233 = vunpack.c.l.b16 %v9041
  %v9234 = vunpack.c.l.b16 %v9042
  %v9235 = vunpack.c.l.b16 %v9043
  %v9236 = vunpack.c.l.b16 %v9044
  %v9237 = vunpack.c.l.b16 %v9045
  %v9238 = vunpack.c.l.b16 %v9046
  %v9239 = vpack.c.b16 %v9208, %v9207
  %v9240 = vpack.c.b16 %v9210, %v9209
  %v9241 = vpack.c.b16 %v9212, %v9211
  %v9242 = vpack.c.b16 %v9214, %v9213
  %v9243 = vpack.c.b16 %v9216, %v9215
  %v9244 = vpack.c.b16 %v9218, %v9217
  %v9245 = vpack.c.b16 %v9220, %v9219
  %v9246 = vpack.c.b16 %v9222, %v9221
  %v9247 = vpack.c.b16 %v9224, %v9223
  %v9248 = vpack.c.b16 %v9226, %v9225
  %v9249 = vpack.c.b16 %v9228, %v9227
  %v9250 = vpack.c.b16 %v9230, %v9229
  %v9251 = vpack.c.b16 %v9232, %v9231
  %v9252 = vpack.c.b16 %v9234, %v9233
  %v9253 = vpack.c.b16 %v9236, %v9235
  %v9254 = vpack.c.b16 %v9238, %v9237
  %9271 = vmatprep.subr.bf16.mxu0 0
  %9272 = vmatpush1.bf16.msra.mxu0 %v9246
  %9273 = vmatprep.subr.bf16.mxu0 0
  %9274 = vmatpush1.bf16.msra.mxu0 %v9245
  %9275 = vmatprep.subr.bf16.mxu0 0
  %9276 = vmatpush1.bf16.msra.mxu0 %v9244
  %9277 = vmatprep.subr.bf16.mxu0 0
  %9278 = vmatpush1.bf16.msra.mxu0 %v9243
  %9279 = vmatprep.subr.bf16.mxu0 0
  %9280 = vmatpush1.bf16.msra.mxu0 %v9242
  %9281 = vmatprep.subr.bf16.mxu0 0
  %9282 = vmatpush1.bf16.msra.mxu0 %v9241
  %9283 = vmatprep.subr.bf16.mxu0 0
  %9284 = vmatpush1.bf16.msra.mxu0 %v9240
  %9285 = vmatprep.subr.bf16.mxu0 0
  %9286 = vmatpush1.bf16.msra.mxu0 %v9239
  %9287 = vmatprep.subr.bf16.mxu0 0
  %9288 = vmatpush2.bf16.msra.mxu0 %v9254
  %9289 = vmatprep.subr.bf16.mxu0 0
  %9290 = vmatpush2.bf16.msra.mxu0 %v9253
  %9291 = vmatprep.subr.bf16.mxu0 0
  %9292 = vmatpush2.bf16.msra.mxu0 %v9252
  %9293 = vmatprep.subr.bf16.mxu0 0
  %9294 = vmatpush2.bf16.msra.mxu0 %v9251
  %9295 = vmatprep.subr.bf16.mxu0 0
  %9296 = vmatpush2.bf16.msra.mxu0 %v9250
  %9297 = vmatprep.subr.bf16.mxu0 0
  %9298 = vmatpush2.bf16.msra.mxu0 %v9249
  %9299 = vmatprep.subr.bf16.mxu0 0
  %9300 = vmatpush2.bf16.msra.mxu0 %v9248
  %9301 = vmatprep.subr.bf16.mxu0 0
  %9302 = vmatpush2.bf16.msra.mxu0 %v9247
  %9303 = vmatprep.mubr.bf16.mxu0 %v9112
  %9304 = vmatmul.mubr.bf16.gmra.mxu0 %v9111
  %v9305 = vpop.f32.mrf.mxu0
  %v9306 = vadd.f32 0.0, %v9305
  %v9307 = vpop.f32.mrf.mxu0
  %v9308 = vpop.f32.mrf.mxu0
  %v9309 = vadd.f32 0.0, %v9308
  %v9310 = vpop.f32.mrf.mxu0
  %9311 = vmatprep.mubr.bf16.mxu0 %v9114
  %9312 = vmatmul.mubr.bf16.gmra.mxu0 %v9113
  %v9313 = vpop.f32.mrf.mxu0
  %v9314 = vadd.f32 0.0, %v9313
  %v9315 = vpop.f32.mrf.mxu0
  %v9316 = vpop.f32.mrf.mxu0
  %v9317 = vadd.f32 0.0, %v9316
  %v9318 = vpop.f32.mrf.mxu0
  %9319 = vmatprep.mubr.bf16.mxu0 %v9116
  %9320 = vmatmul.mubr.bf16.gmra.mxu0 %v9115
  %v9321 = vpop.f32.mrf.mxu0
  %v9322 = vadd.f32 0.0, %v9321
  %v9323 = vpop.f32.mrf.mxu0
  %v9324 = vpop.f32.mrf.mxu0
  %v9325 = vadd.f32 0.0, %v9324
  %v9326 = vpop.f32.mrf.mxu0
  %9327 = vmatprep.mubr.bf16.mxu0 %v9118
  %9328 = vmatmul.mubr.bf16.gmra.mxu0 %v9117
  %v9329 = vpop.f32.mrf.mxu0
  %v9330 = vadd.f32 0.0, %v9329
  %v9331 = vpop.f32.mrf.mxu0
  %v9332 = vpop.f32.mrf.mxu0
  %v9333 = vadd.f32 0.0, %v9332
  %v9334 = vpop.f32.mrf.mxu0
  %9335 = vmatprep.mubr.bf16.mxu0 %v9120
  %9336 = vmatmul.mubr.bf16.gmra.mxu0 %v9119
  %v9337 = vpop.f32.mrf.mxu0
  %v9338 = vadd.f32 0.0, %v9337
  %v9339 = vpop.f32.mrf.mxu0
  %v9340 = vpop.f32.mrf.mxu0
  %v9341 = vadd.f32 0.0, %v9340
  %v9342 = vpop.f32.mrf.mxu0
  %9343 = vmatprep.mubr.bf16.mxu0 %v9122
  %9344 = vmatmul.mubr.bf16.gmra.mxu0 %v9121
  %v9345 = vpop.f32.mrf.mxu0
  %v9346 = vadd.f32 0.0, %v9345
  %v9347 = vpop.f32.mrf.mxu0
  %v9348 = vpop.f32.mrf.mxu0
  %v9349 = vadd.f32 0.0, %v9348
  %v9350 = vpop.f32.mrf.mxu0
  %9351 = vmatprep.mubr.bf16.mxu0 %v9124
  %9352 = vmatmul.mubr.bf16.gmra.mxu0 %v9123
  %v9353 = vpop.f32.mrf.mxu0
  %v9354 = vadd.f32 0.0, %v9353
  %v9355 = vpop.f32.mrf.mxu0
  %v9356 = vpop.f32.mrf.mxu0
  %v9357 = vadd.f32 0.0, %v9356
  %v9358 = vpop.f32.mrf.mxu0
  %9359 = vmatprep.mubr.bf16.mxu0 %v9126
  %9360 = vmatmul.mubr.bf16.gmra.mxu0 %v9125
  %v9361 = vpop.f32.mrf.mxu0
  %v9362 = vadd.f32 0.0, %v9361
  %v9363 = vpop.f32.mrf.mxu0
  %v9364 = vpop.f32.mrf.mxu0
  %v9365 = vadd.f32 0.0, %v9364
  %v9366 = vpop.f32.mrf.mxu0
  %9367 = vmatprep.mubr.bf16.mxu0 %v9128
  %9368 = vmatmul.mubr.bf16.gmra.mxu0 %v9127
  %v9369 = vpop.f32.mrf.mxu0
  %v9370 = vadd.f32 0.0, %v9369
  %v9371 = vpop.f32.mrf.mxu0
  %v9372 = vpop.f32.mrf.mxu0
  %v9373 = vadd.f32 0.0, %v9372
  %v9374 = vpop.f32.mrf.mxu0
  %9375 = vmatprep.mubr.bf16.mxu0 %v9130
  %9376 = vmatmul.mubr.bf16.gmra.mxu0 %v9129
  %v9377 = vpop.f32.mrf.mxu0
  %v9378 = vadd.f32 0.0, %v9377
  %v9379 = vpop.f32.mrf.mxu0
  %v9380 = vpop.f32.mrf.mxu0
  %v9381 = vadd.f32 0.0, %v9380
  %v9382 = vpop.f32.mrf.mxu0
  %9383 = vmatprep.mubr.bf16.mxu0 %v9132
  %9384 = vmatmul.mubr.bf16.gmra.mxu0 %v9131
  %v9385 = vpop.f32.mrf.mxu0
  %v9386 = vadd.f32 0.0, %v9385
  %v9387 = vpop.f32.mrf.mxu0
  %v9388 = vpop.f32.mrf.mxu0
  %v9389 = vadd.f32 0.0, %v9388
  %v9390 = vpop.f32.mrf.mxu0
  %9391 = vmatprep.mubr.bf16.mxu0 %v9134
  %9392 = vmatmul.mubr.bf16.gmra.mxu0 %v9133
  %v9393 = vpop.f32.mrf.mxu0
  %v9394 = vadd.f32 0.0, %v9393
  %v9395 = vpop.f32.mrf.mxu0
  %v9396 = vpop.f32.mrf.mxu0
  %v9397 = vadd.f32 0.0, %v9396
  %v9398 = vpop.f32.mrf.mxu0
  %9399 = vmatprep.mubr.bf16.mxu0 %v9136
  %9400 = vmatmul.mubr.bf16.gmra.mxu0 %v9135
  %v9401 = vpop.f32.mrf.mxu0
  %v9402 = vadd.f32 0.0, %v9401
  %v9403 = vpop.f32.mrf.mxu0
  %v9404 = vpop.f32.mrf.mxu0
  %v9405 = vadd.f32 0.0, %v9404
  %v9406 = vpop.f32.mrf.mxu0
  %9407 = vmatprep.mubr.bf16.mxu0 %v9138
  %9408 = vmatmul.mubr.bf16.gmra.mxu0 %v9137
  %v9409 = vpop.f32.mrf.mxu0
  %v9410 = vadd.f32 0.0, %v9409
  %v9411 = vpop.f32.mrf.mxu0
  %v9412 = vpop.f32.mrf.mxu0
  %v9413 = vadd.f32 0.0, %v9412
  %v9414 = vpop.f32.mrf.mxu0
  %9415 = vmatprep.mubr.bf16.mxu0 %v9140
  %9416 = vmatmul.mubr.bf16.gmra.mxu0 %v9139
  %v9417 = vpop.f32.mrf.mxu0
  %v9418 = vadd.f32 0.0, %v9417
  %v9419 = vpop.f32.mrf.mxu0
  %v9420 = vpop.f32.mrf.mxu0
  %v9421 = vadd.f32 0.0, %v9420
  %v9422 = vpop.f32.mrf.mxu0
  %9423 = vmatprep.mubr.bf16.mxu0 %v9142
  %9424 = vmatmul.mubr.bf16.gmra.mxu0 %v9141
  %v9425 = vpop.f32.mrf.mxu0
  %v9426 = vadd.f32 0.0, %v9425
  %v9427 = vpop.f32.mrf.mxu0
  %v9428 = vpop.f32.mrf.mxu0
  %v9429 = vadd.f32 0.0, %v9428
  %v9430 = vpop.f32.mrf.mxu0
  %9431 = vdwg.mxu0
  %v9432 = vadd.f32 %v8823, %v9306
  %v9433 = vadd.f32 %v8824, %v9309
  %v9434 = vadd.f32 %v8825, %v9314
  %v9435 = vadd.f32 %v8826, %v9317
  %v9436 = vadd.f32 %v8827, %v9322
  %v9437 = vadd.f32 %v8828, %v9325
  %v9438 = vadd.f32 %v8829, %v9330
  %v9439 = vadd.f32 %v8830, %v9333
  %v9440 = vadd.f32 %v8831, %v9338
  %v9441 = vadd.f32 %v8832, %v9341
  %v9442 = vadd.f32 %v8833, %v9346
  %v9443 = vadd.f32 %v8834, %v9349
  %v9444 = vadd.f32 %v8835, %v9354
  %v9445 = vadd.f32 %v8836, %v9357
  %v9446 = vadd.f32 %v8837, %v9362
  %v9447 = vadd.f32 %v8838, %v9365
  %v9448 = vadd.f32 %v8839, %v9370
  %v9449 = vadd.f32 %v8840, %v9373
  %v9450 = vadd.f32 %v8841, %v9378
  %v9451 = vadd.f32 %v8842, %v9381
  %v9452 = vadd.f32 %v8843, %v9386
  %v9453 = vadd.f32 %v8844, %v9389
  %v9454 = vadd.f32 %v8845, %v9394
  %v9455 = vadd.f32 %v8846, %v9397
  %v9456 = vadd.f32 %v8847, %v9402
  %v9457 = vadd.f32 %v8848, %v9405
  %v9458 = vadd.f32 %v8849, %v9410
  %v9459 = vadd.f32 %v8850, %v9413
  %v9460 = vadd.f32 %v8851, %v9418
  %v9461 = vadd.f32 %v8852, %v9421
  %v9462 = vadd.f32 %v8853, %v9426
  %v9463 = vadd.f32 %v8854, %v9429
  %v9464 = vld [vmem:[#allocation2 + $0x18] sm:$0x77]
  %v9465 = vld [vmem:[#allocation2 + $0x38] sm:$0x77]
  %v9466 = vld [vmem:[#allocation2 + $0x58] sm:$0x77]
  %v9467 = vld [vmem:[#allocation2 + $0x78] sm:$0x77]
  %v9468 = vld [vmem:[#allocation2 + $0x98] sm:$0x77]
  %v9469 = vld [vmem:[#allocation2 + $0xb8] sm:$0x77]
  %v9470 = vld [vmem:[#allocation2 + $0xd8] sm:$0x77]
  %v9471 = vld [vmem:[#allocation2 + $0xf8] sm:$0x77]
  %v9472 = vld [vmem:[#allocation2 + $0x118] sm:$0x77]
  %v9473 = vld [vmem:[#allocation2 + $0x138] sm:$0x77]
  %v9474 = vld [vmem:[#allocation2 + $0x158] sm:$0x77]
  %v9475 = vld [vmem:[#allocation2 + $0x178] sm:$0x77]
  %v9476 = vld [vmem:[#allocation2 + $0x198] sm:$0x77]
  %v9477 = vld [vmem:[#allocation2 + $0x1b8] sm:$0x77]
  %v9478 = vld [vmem:[#allocation2 + $0x1d8] sm:$0x77]
  %v9479 = vld [vmem:[#allocation2 + $0x1f8] sm:$0x77]
  %v9481 = vshrl.u32 %v8855, 16
  %v9483 = vrot.slane %v9481, 6
  %v9484 = vshll.u32 %v8855, 16
  %v9486 = vrot.slane %v9484, 7
  %v9487 = vor.u32 %v9483, %v9486
  %v9488 = vrot.slane %v9487, 4
  %v9489 = vrot.slane %v6578, 6
  %v9490 = vrot.slane %v6574, 7
  %v9491 = vor.u32 %v9489, %v9490
  %v9492 = vsel %vm3881, %v9488, %v9491
  %v9493 = vrot.slane %v9491, 4
  %v9495 = vshrl.u32 %v9464, 16
  %v9497 = vrot.slane %v9495, 6
  %v9498 = vshll.u32 %v9464, 16
  %v9500 = vrot.slane %v9498, 7
  %v9501 = vor.u32 %v9497, %v9500
  %v9502 = vsel %vm3881, %v9493, %v9501
  %v9504 = vshrl.u32 %v8856, 16
  %v9506 = vrot.slane %v9504, 6
  %v9507 = vshll.u32 %v8856, 16
  %v9509 = vrot.slane %v9507, 7
  %v9510 = vor.u32 %v9506, %v9509
  %v9511 = vrot.slane %v9510, 4
  %v9512 = vrot.slane %v6602, 6
  %v9513 = vrot.slane %v6598, 7
  %v9514 = vor.u32 %v9512, %v9513
  %v9515 = vsel %vm3881, %v9511, %v9514
  %v9516 = vrot.slane %v9514, 4
  %v9518 = vshrl.u32 %v9465, 16
  %v9520 = vrot.slane %v9518, 6
  %v9521 = vshll.u32 %v9465, 16
  %v9523 = vrot.slane %v9521, 7
  %v9524 = vor.u32 %v9520, %v9523
  %v9525 = vsel %vm3881, %v9516, %v9524
  %v9527 = vshrl.u32 %v8857, 16
  %v9529 = vrot.slane %v9527, 6
  %v9530 = vshll.u32 %v8857, 16
  %v9532 = vrot.slane %v9530, 7
  %v9533 = vor.u32 %v9529, %v9532
  %v9534 = vrot.slane %v9533, 4
  %v9535 = vrot.slane %v6626, 6
  %v9536 = vrot.slane %v6622, 7
  %v9537 = vor.u32 %v9535, %v9536
  %v9538 = vsel %vm3881, %v9534, %v9537
  %v9539 = vrot.slane %v9537, 4
  %v9541 = vshrl.u32 %v9466, 16
  %v9543 = vrot.slane %v9541, 6
  %v9544 = vshll.u32 %v9466, 16
  %v9546 = vrot.slane %v9544, 7
  %v9547 = vor.u32 %v9543, %v9546
  %v9548 = vsel %vm3881, %v9539, %v9547
  %v9550 = vshrl.u32 %v8858, 16
  %v9552 = vrot.slane %v9550, 6
  %v9553 = vshll.u32 %v8858, 16
  %v9555 = vrot.slane %v9553, 7
  %v9556 = vor.u32 %v9552, %v9555
  %v9557 = vrot.slane %v9556, 4
  %v9558 = vrot.slane %v6650, 6
  %v9559 = vrot.slane %v6646, 7
  %v9560 = vor.u32 %v9558, %v9559
  %v9561 = vsel %vm3881, %v9557, %v9560
  %v9562 = vrot.slane %v9560, 4
  %v9564 = vshrl.u32 %v9467, 16
  %v9566 = vrot.slane %v9564, 6
  %v9567 = vshll.u32 %v9467, 16
  %v9569 = vrot.slane %v9567, 7
  %v9570 = vor.u32 %v9566, %v9569
  %v9571 = vsel %vm3881, %v9562, %v9570
  %v9573 = vshrl.u32 %v8859, 16
  %v9575 = vrot.slane %v9573, 6
  %v9576 = vshll.u32 %v8859, 16
  %v9578 = vrot.slane %v9576, 7
  %v9579 = vor.u32 %v9575, %v9578
  %v9580 = vrot.slane %v9579, 4
  %v9581 = vrot.slane %v6674, 6
  %v9582 = vrot.slane %v6670, 7
  %v9583 = vor.u32 %v9581, %v9582
  %v9584 = vsel %vm3881, %v9580, %v9583
  %v9585 = vrot.slane %v9583, 4
  %v9587 = vshrl.u32 %v9468, 16
  %v9589 = vrot.slane %v9587, 6
  %v9590 = vshll.u32 %v9468, 16
  %v9592 = vrot.slane %v9590, 7
  %v9593 = vor.u32 %v9589, %v9592
  %v9594 = vsel %vm3881, %v9585, %v9593
  %v9596 = vshrl.u32 %v8860, 16
  %v9598 = vrot.slane %v9596, 6
  %v9599 = vshll.u32 %v8860, 16
  %v9601 = vrot.slane %v9599, 7
  %v9602 = vor.u32 %v9598, %v9601
  %v9603 = vrot.slane %v9602, 4
  %v9604 = vrot.slane %v6698, 6
  %v9605 = vrot.slane %v6694, 7
  %v9606 = vor.u32 %v9604, %v9605
  %v9607 = vsel %vm3881, %v9603, %v9606
  %v9608 = vrot.slane %v9606, 4
  %v9610 = vshrl.u32 %v9469, 16
  %v9612 = vrot.slane %v9610, 6
  %v9613 = vshll.u32 %v9469, 16
  %v9615 = vrot.slane %v9613, 7
  %v9616 = vor.u32 %v9612, %v9615
  %v9617 = vsel %vm3881, %v9608, %v9616
  %v9619 = vshrl.u32 %v8861, 16
  %v9621 = vrot.slane %v9619, 6
  %v9622 = vshll.u32 %v8861, 16
  %v9624 = vrot.slane %v9622, 7
  %v9625 = vor.u32 %v9621, %v9624
  %v9626 = vrot.slane %v9625, 4
  %v9627 = vrot.slane %v6722, 6
  %v9628 = vrot.slane %v6718, 7
  %v9629 = vor.u32 %v9627, %v9628
  %v9630 = vsel %vm3881, %v9626, %v9629
  %v9631 = vrot.slane %v9629, 4
  %v9633 = vshrl.u32 %v9470, 16
  %v9635 = vrot.slane %v9633, 6
  %v9636 = vshll.u32 %v9470, 16
  %v9638 = vrot.slane %v9636, 7
  %v9639 = vor.u32 %v9635, %v9638
  %v9640 = vsel %vm3881, %v9631, %v9639
  %v9642 = vshrl.u32 %v8862, 16
  %v9644 = vrot.slane %v9642, 6
  %v9645 = vshll.u32 %v8862, 16
  %v9647 = vrot.slane %v9645, 7
  %v9648 = vor.u32 %v9644, %v9647
  %v9649 = vrot.slane %v9648, 4
  %v9650 = vrot.slane %v6746, 6
  %v9651 = vrot.slane %v6742, 7
  %v9652 = vor.u32 %v9650, %v9651
  %v9653 = vsel %vm3881, %v9649, %v9652
  %v9654 = vrot.slane %v9652, 4
  %v9656 = vshrl.u32 %v9471, 16
  %v9658 = vrot.slane %v9656, 6
  %v9659 = vshll.u32 %v9471, 16
  %v9661 = vrot.slane %v9659, 7
  %v9662 = vor.u32 %v9658, %v9661
  %v9663 = vsel %vm3881, %v9654, %v9662
  %v9665 = vshrl.u32 %v8863, 16
  %v9667 = vrot.slane %v9665, 6
  %v9668 = vshll.u32 %v8863, 16
  %v9670 = vrot.slane %v9668, 7
  %v9671 = vor.u32 %v9667, %v9670
  %v9672 = vrot.slane %v9671, 4
  %v9673 = vrot.slane %v6770, 6
  %v9674 = vrot.slane %v6766, 7
  %v9675 = vor.u32 %v9673, %v9674
  %v9676 = vsel %vm3881, %v9672, %v9675
  %v9677 = vrot.slane %v9675, 4
  %v9679 = vshrl.u32 %v9472, 16
  %v9681 = vrot.slane %v9679, 6
  %v9682 = vshll.u32 %v9472, 16
  %v9684 = vrot.slane %v9682, 7
  %v9685 = vor.u32 %v9681, %v9684
  %v9686 = vsel %vm3881, %v9677, %v9685
  %v9688 = vshrl.u32 %v8864, 16
  %v9690 = vrot.slane %v9688, 6
  %v9691 = vshll.u32 %v8864, 16
  %v9693 = vrot.slane %v9691, 7
  %v9694 = vor.u32 %v9690, %v9693
  %v9695 = vrot.slane %v9694, 4
  %v9696 = vrot.slane %v6794, 6
  %v9697 = vrot.slane %v6790, 7
  %v9698 = vor.u32 %v9696, %v9697
  %v9699 = vsel %vm3881, %v9695, %v9698
  %v9700 = vrot.slane %v9698, 4
  %v9702 = vshrl.u32 %v9473, 16
  %v9704 = vrot.slane %v9702, 6
  %v9705 = vshll.u32 %v9473, 16
  %v9707 = vrot.slane %v9705, 7
  %v9708 = vor.u32 %v9704, %v9707
  %v9709 = vsel %vm3881, %v9700, %v9708
  %v9711 = vshrl.u32 %v8865, 16
  %v9713 = vrot.slane %v9711, 6
  %v9714 = vshll.u32 %v8865, 16
  %v9716 = vrot.slane %v9714, 7
  %v9717 = vor.u32 %v9713, %v9716
  %v9718 = vrot.slane %v9717, 4
  %v9719 = vrot.slane %v6818, 6
  %v9720 = vrot.slane %v6814, 7
  %v9721 = vor.u32 %v9719, %v9720
  %v9722 = vsel %vm3881, %v9718, %v9721
  %v9723 = vrot.slane %v9721, 4
  %v9725 = vshrl.u32 %v9474, 16
  %v9727 = vrot.slane %v9725, 6
  %v9728 = vshll.u32 %v9474, 16
  %v9730 = vrot.slane %v9728, 7
  %v9731 = vor.u32 %v9727, %v9730
  %v9732 = vsel %vm3881, %v9723, %v9731
  %v9734 = vshrl.u32 %v8866, 16
  %v9736 = vrot.slane %v9734, 6
  %v9737 = vshll.u32 %v8866, 16
  %v9739 = vrot.slane %v9737, 7
  %v9740 = vor.u32 %v9736, %v9739
  %v9741 = vrot.slane %v9740, 4
  %v9742 = vrot.slane %v6842, 6
  %v9743 = vrot.slane %v6838, 7
  %v9744 = vor.u32 %v9742, %v9743
  %v9745 = vsel %vm3881, %v9741, %v9744
  %v9746 = vrot.slane %v9744, 4
  %v9748 = vshrl.u32 %v9475, 16
  %v9750 = vrot.slane %v9748, 6
  %v9751 = vshll.u32 %v9475, 16
  %v9753 = vrot.slane %v9751, 7
  %v9754 = vor.u32 %v9750, %v9753
  %v9755 = vsel %vm3881, %v9746, %v9754
  %v9757 = vshrl.u32 %v8867, 16
  %v9759 = vrot.slane %v9757, 6
  %v9760 = vshll.u32 %v8867, 16
  %v9762 = vrot.slane %v9760, 7
  %v9763 = vor.u32 %v9759, %v9762
  %v9764 = vrot.slane %v9763, 4
  %v9765 = vrot.slane %v6866, 6
  %v9766 = vrot.slane %v6862, 7
  %v9767 = vor.u32 %v9765, %v9766
  %v9768 = vsel %vm3881, %v9764, %v9767
  %v9769 = vrot.slane %v9767, 4
  %v9771 = vshrl.u32 %v9476, 16
  %v9773 = vrot.slane %v9771, 6
  %v9774 = vshll.u32 %v9476, 16
  %v9776 = vrot.slane %v9774, 7
  %v9777 = vor.u32 %v9773, %v9776
  %v9778 = vsel %vm3881, %v9769, %v9777
  %v9780 = vshrl.u32 %v8868, 16
  %v9782 = vrot.slane %v9780, 6
  %v9783 = vshll.u32 %v8868, 16
  %v9785 = vrot.slane %v9783, 7
  %v9786 = vor.u32 %v9782, %v9785
  %v9787 = vrot.slane %v9786, 4
  %v9788 = vrot.slane %v6890, 6
  %v9789 = vrot.slane %v6886, 7
  %v9790 = vor.u32 %v9788, %v9789
  %v9791 = vsel %vm3881, %v9787, %v9790
  %v9792 = vrot.slane %v9790, 4
  %v9794 = vshrl.u32 %v9477, 16
  %v9796 = vrot.slane %v9794, 6
  %v9797 = vshll.u32 %v9477, 16
  %v9799 = vrot.slane %v9797, 7
  %v9800 = vor.u32 %v9796, %v9799
  %v9801 = vsel %vm3881, %v9792, %v9800
  %v9803 = vshrl.u32 %v8869, 16
  %v9805 = vrot.slane %v9803, 6
  %v9806 = vshll.u32 %v8869, 16
  %v9808 = vrot.slane %v9806, 7
  %v9809 = vor.u32 %v9805, %v9808
  %v9810 = vrot.slane %v9809, 4
  %v9811 = vrot.slane %v6914, 6
  %v9812 = vrot.slane %v6910, 7
  %v9813 = vor.u32 %v9811, %v9812
  %v9814 = vsel %vm3881, %v9810, %v9813
  %v9815 = vrot.slane %v9813, 4
  %v9817 = vshrl.u32 %v9478, 16
  %v9819 = vrot.slane %v9817, 6
  %v9820 = vshll.u32 %v9478, 16
  %v9822 = vrot.slane %v9820, 7
  %v9823 = vor.u32 %v9819, %v9822
  %v9824 = vsel %vm3881, %v9815, %v9823
  %v9826 = vshrl.u32 %v8870, 16
  %v9828 = vrot.slane %v9826, 6
  %v9829 = vshll.u32 %v8870, 16
  %v9831 = vrot.slane %v9829, 7
  %v9832 = vor.u32 %v9828, %v9831
  %v9833 = vrot.slane %v9832, 4
  %v9834 = vrot.slane %v6938, 6
  %v9835 = vrot.slane %v6934, 7
  %v9836 = vor.u32 %v9834, %v9835
  %v9837 = vsel %vm3881, %v9833, %v9836
  %v9838 = vrot.slane %v9836, 4
  %v9840 = vshrl.u32 %v9479, 16
  %v9842 = vrot.slane %v9840, 6
  %v9843 = vshll.u32 %v9479, 16
  %v9845 = vrot.slane %v9843, 7
  %v9846 = vor.u32 %v9842, %v9845
  %v9847 = vsel %vm3881, %v9838, %v9846
  %v9848 = vld [vmem:[%s4 + $0x600] sm:$0xf]
  %v9849 = vld [vmem:[%s4 + $0x604] sm:$0xf]
  %v9850 = vld [vmem:[%s4 + $0x608] sm:$0xf]
  %v9851 = vld [vmem:[%s4 + $0x60c] sm:$0xf]
  %v9852 = vld [vmem:[%s4 + $0x610] sm:$0xf]
  %v9853 = vld [vmem:[%s4 + $0x614] sm:$0xf]
  %v9854 = vld [vmem:[%s4 + $0x618] sm:$0xf]
  %v9855 = vld [vmem:[%s4 + $0x61c] sm:$0xf]
  %v9856 = vld [vmem:[%s4 + $0x620] sm:$0xf]
  %v9857 = vld [vmem:[%s4 + $0x624] sm:$0xf]
  %v9858 = vld [vmem:[%s4 + $0x628] sm:$0xf]
  %v9859 = vld [vmem:[%s4 + $0x62c] sm:$0xf]
  %v9860 = vld [vmem:[%s4 + $0x630] sm:$0xf]
  %v9861 = vld [vmem:[%s4 + $0x634] sm:$0xf]
  %v9862 = vld [vmem:[%s4 + $0x638] sm:$0xf]
  %v9863 = vld [vmem:[%s4 + $0x63c] sm:$0xf]
  %v9864 = vld [vmem:[%s4 + $0x640] sm:$0xf]
  %v9865 = vld [vmem:[%s4 + $0x644] sm:$0xf]
  %v9866 = vld [vmem:[%s4 + $0x648] sm:$0xf]
  %v9867 = vld [vmem:[%s4 + $0x64c] sm:$0xf]
  %v9868 = vld [vmem:[%s4 + $0x650] sm:$0xf]
  %v9869 = vld [vmem:[%s4 + $0x654] sm:$0xf]
  %v9870 = vld [vmem:[%s4 + $0x658] sm:$0xf]
  %v9871 = vld [vmem:[%s4 + $0x65c] sm:$0xf]
  %v9872 = vld [vmem:[%s4 + $0x660] sm:$0xf]
  %v9873 = vld [vmem:[%s4 + $0x664] sm:$0xf]
  %v9874 = vld [vmem:[%s4 + $0x668] sm:$0xf]
  %v9875 = vld [vmem:[%s4 + $0x66c] sm:$0xf]
  %v9876 = vld [vmem:[%s4 + $0x670] sm:$0xf]
  %v9877 = vld [vmem:[%s4 + $0x674] sm:$0xf]
  %v9878 = vld [vmem:[%s4 + $0x678] sm:$0xf]
  %v9879 = vld [vmem:[%s4 + $0x67c] sm:$0xf]
  %v9880 = vunpack.c.l.b16 %v9492
  %v9881 = vunpack.c.h.b16 %v9492
  %v9882 = vunpack.c.l.b16 %v9502
  %v9883 = vunpack.c.h.b16 %v9502
  %v9884 = vunpack.c.l.b16 %v9515
  %v9885 = vunpack.c.h.b16 %v9515
  %v9886 = vunpack.c.l.b16 %v9525
  %v9887 = vunpack.c.h.b16 %v9525
  %v9888 = vunpack.c.l.b16 %v9538
  %v9889 = vunpack.c.h.b16 %v9538
  %v9890 = vunpack.c.l.b16 %v9548
  %v9891 = vunpack.c.h.b16 %v9548
  %v9892 = vunpack.c.l.b16 %v9561
  %v9893 = vunpack.c.h.b16 %v9561
  %v9894 = vunpack.c.l.b16 %v9571
  %v9895 = vunpack.c.h.b16 %v9571
  %v9896 = vunpack.c.l.b16 %v9584
  %v9897 = vunpack.c.h.b16 %v9584
  %v9898 = vunpack.c.l.b16 %v9594
  %v9899 = vunpack.c.h.b16 %v9594
  %v9900 = vunpack.c.l.b16 %v9607
  %v9901 = vunpack.c.h.b16 %v9607
  %v9902 = vunpack.c.l.b16 %v9617
  %v9903 = vunpack.c.h.b16 %v9617
  %v9904 = vunpack.c.l.b16 %v9630
  %v9905 = vunpack.c.h.b16 %v9630
  %v9906 = vunpack.c.l.b16 %v9640
  %v9907 = vunpack.c.h.b16 %v9640
  %v9908 = vunpack.c.l.b16 %v9653
  %v9909 = vunpack.c.h.b16 %v9653
  %v9910 = vunpack.c.l.b16 %v9663
  %v9911 = vunpack.c.h.b16 %v9663
  %v9912 = vunpack.c.l.b16 %v9676
  %v9913 = vunpack.c.h.b16 %v9676
  %v9914 = vunpack.c.l.b16 %v9686
  %v9915 = vunpack.c.h.b16 %v9686
  %v9916 = vunpack.c.l.b16 %v9699
  %v9917 = vunpack.c.h.b16 %v9699
  %v9918 = vunpack.c.l.b16 %v9709
  %v9919 = vunpack.c.h.b16 %v9709
  %v9920 = vunpack.c.l.b16 %v9722
  %v9921 = vunpack.c.h.b16 %v9722
  %v9922 = vunpack.c.l.b16 %v9732
  %v9923 = vunpack.c.h.b16 %v9732
  %v9924 = vunpack.c.l.b16 %v9745
  %v9925 = vunpack.c.h.b16 %v9745
  %v9926 = vunpack.c.l.b16 %v9755
  %v9927 = vunpack.c.h.b16 %v9755
  %v9928 = vunpack.c.l.b16 %v9768
  %v9929 = vunpack.c.h.b16 %v9768
  %v9930 = vunpack.c.l.b16 %v9778
  %v9931 = vunpack.c.h.b16 %v9778
  %v9932 = vunpack.c.l.b16 %v9791
  %v9933 = vunpack.c.h.b16 %v9791
  %v9934 = vunpack.c.l.b16 %v9801
  %v9935 = vunpack.c.h.b16 %v9801
  %v9936 = vunpack.c.l.b16 %v9814
  %v9937 = vunpack.c.h.b16 %v9814
  %v9938 = vunpack.c.l.b16 %v9824
  %v9939 = vunpack.c.h.b16 %v9824
  %v9940 = vunpack.c.l.b16 %v9837
  %v9941 = vunpack.c.h.b16 %v9837
  %v9942 = vunpack.c.l.b16 %v9847
  %v9943 = vunpack.c.h.b16 %v9847
  %v9944 = vpack.c.b16 %v9882, %v9880
  %v9945 = vpack.c.b16 %v9883, %v9881
  %v9946 = vpack.c.b16 %v9886, %v9884
  %v9947 = vpack.c.b16 %v9887, %v9885
  %v9948 = vpack.c.b16 %v9890, %v9888
  %v9949 = vpack.c.b16 %v9891, %v9889
  %v9950 = vpack.c.b16 %v9894, %v9892
  %v9951 = vpack.c.b16 %v9895, %v9893
  %v9952 = vpack.c.b16 %v9898, %v9896
  %v9953 = vpack.c.b16 %v9899, %v9897
  %v9954 = vpack.c.b16 %v9902, %v9900
  %v9955 = vpack.c.b16 %v9903, %v9901
  %v9956 = vpack.c.b16 %v9906, %v9904
  %v9957 = vpack.c.b16 %v9907, %v9905
  %v9958 = vpack.c.b16 %v9910, %v9908
  %v9959 = vpack.c.b16 %v9911, %v9909
  %v9960 = vpack.c.b16 %v9914, %v9912
  %v9961 = vpack.c.b16 %v9915, %v9913
  %v9962 = vpack.c.b16 %v9918, %v9916
  %v9963 = vpack.c.b16 %v9919, %v9917
  %v9964 = vpack.c.b16 %v9922, %v9920
  %v9965 = vpack.c.b16 %v9923, %v9921
  %v9966 = vpack.c.b16 %v9926, %v9924
  %v9967 = vpack.c.b16 %v9927, %v9925
  %v9968 = vpack.c.b16 %v9930, %v9928
  %v9969 = vpack.c.b16 %v9931, %v9929
  %v9970 = vpack.c.b16 %v9934, %v9932
  %v9971 = vpack.c.b16 %v9935, %v9933
  %v9972 = vpack.c.b16 %v9938, %v9936
  %v9973 = vpack.c.b16 %v9939, %v9937
  %v9974 = vpack.c.b16 %v9942, %v9940
  %v9975 = vpack.c.b16 %v9943, %v9941
  %v10040 = vunpack.c.l.b16 %v9848
  %v10041 = vunpack.c.l.b16 %v9849
  %v10042 = vunpack.c.l.b16 %v9850
  %v10043 = vunpack.c.l.b16 %v9851
  %v10044 = vunpack.c.l.b16 %v9852
  %v10045 = vunpack.c.l.b16 %v9853
  %v10046 = vunpack.c.l.b16 %v9854
  %v10047 = vunpack.c.l.b16 %v9855
  %v10048 = vunpack.c.l.b16 %v9856
  %v10049 = vunpack.c.l.b16 %v9857
  %v10050 = vunpack.c.l.b16 %v9858
  %v10051 = vunpack.c.l.b16 %v9859
  %v10052 = vunpack.c.l.b16 %v9860
  %v10053 = vunpack.c.l.b16 %v9861
  %v10054 = vunpack.c.l.b16 %v9862
  %v10055 = vunpack.c.l.b16 %v9863
  %v10056 = vunpack.c.l.b16 %v9864
  %v10057 = vunpack.c.l.b16 %v9865
  %v10058 = vunpack.c.l.b16 %v9866
  %v10059 = vunpack.c.l.b16 %v9867
  %v10060 = vunpack.c.l.b16 %v9868
  %v10061 = vunpack.c.l.b16 %v9869
  %v10062 = vunpack.c.l.b16 %v9870
  %v10063 = vunpack.c.l.b16 %v9871
  %v10064 = vunpack.c.l.b16 %v9872
  %v10065 = vunpack.c.l.b16 %v9873
  %v10066 = vunpack.c.l.b16 %v9874
  %v10067 = vunpack.c.l.b16 %v9875
  %v10068 = vunpack.c.l.b16 %v9876
  %v10069 = vunpack.c.l.b16 %v9877
  %v10070 = vunpack.c.l.b16 %v9878
  %v10071 = vunpack.c.l.b16 %v9879
  %v10072 = vpack.c.b16 %v10041, %v10040
  %v10073 = vpack.c.b16 %v10043, %v10042
  %v10074 = vpack.c.b16 %v10045, %v10044
  %v10075 = vpack.c.b16 %v10047, %v10046
  %v10076 = vpack.c.b16 %v10049, %v10048
  %v10077 = vpack.c.b16 %v10051, %v10050
  %v10078 = vpack.c.b16 %v10053, %v10052
  %v10079 = vpack.c.b16 %v10055, %v10054
  %v10080 = vpack.c.b16 %v10057, %v10056
  %v10081 = vpack.c.b16 %v10059, %v10058
  %v10082 = vpack.c.b16 %v10061, %v10060
  %v10083 = vpack.c.b16 %v10063, %v10062
  %v10084 = vpack.c.b16 %v10065, %v10064
  %v10085 = vpack.c.b16 %v10067, %v10066
  %v10086 = vpack.c.b16 %v10069, %v10068
  %v10087 = vpack.c.b16 %v10071, %v10070
  %10104 = vmatprep.subr.bf16.mxu0 0
  %10105 = vmatpush1.bf16.msra.mxu0 %v10079
  %10106 = vmatprep.subr.bf16.mxu0 0
  %10107 = vmatpush1.bf16.msra.mxu0 %v10078
  %10108 = vmatprep.subr.bf16.mxu0 0
  %10109 = vmatpush1.bf16.msra.mxu0 %v10077
  %10110 = vmatprep.subr.bf16.mxu0 0
  %10111 = vmatpush1.bf16.msra.mxu0 %v10076
  %10112 = vmatprep.subr.bf16.mxu0 0
  %10113 = vmatpush1.bf16.msra.mxu0 %v10075
  %10114 = vmatprep.subr.bf16.mxu0 0
  %10115 = vmatpush1.bf16.msra.mxu0 %v10074
  %10116 = vmatprep.subr.bf16.mxu0 0
  %10117 = vmatpush1.bf16.msra.mxu0 %v10073
  %10118 = vmatprep.subr.bf16.mxu0 0
  %10119 = vmatpush1.bf16.msra.mxu0 %v10072
  %10120 = vmatprep.subr.bf16.mxu0 0
  %10121 = vmatpush2.bf16.msra.mxu0 %v10087
  %10122 = vmatprep.subr.bf16.mxu0 0
  %10123 = vmatpush2.bf16.msra.mxu0 %v10086
  %10124 = vmatprep.subr.bf16.mxu0 0
  %10125 = vmatpush2.bf16.msra.mxu0 %v10085
  %10126 = vmatprep.subr.bf16.mxu0 0
  %10127 = vmatpush2.bf16.msra.mxu0 %v10084
  %10128 = vmatprep.subr.bf16.mxu0 0
  %10129 = vmatpush2.bf16.msra.mxu0 %v10083
  %10130 = vmatprep.subr.bf16.mxu0 0
  %10131 = vmatpush2.bf16.msra.mxu0 %v10082
  %10132 = vmatprep.subr.bf16.mxu0 0
  %10133 = vmatpush2.bf16.msra.mxu0 %v10081
  %10134 = vmatprep.subr.bf16.mxu0 0
  %10135 = vmatpush2.bf16.msra.mxu0 %v10080
  %10136 = vmatprep.mubr.bf16.mxu0 %v9945
  %10137 = vmatmul.mubr.bf16.gmra.mxu0 %v9944
  %v10138 = vpop.f32.mrf.mxu0
  %v10139 = vadd.f32 0.0, %v10138
  %v10140 = vpop.f32.mrf.mxu0
  %v10141 = vpop.f32.mrf.mxu0
  %v10142 = vadd.f32 0.0, %v10141
  %v10143 = vpop.f32.mrf.mxu0
  %10144 = vmatprep.mubr.bf16.mxu0 %v9947
  %10145 = vmatmul.mubr.bf16.gmra.mxu0 %v9946
  %v10146 = vpop.f32.mrf.mxu0
  %v10147 = vadd.f32 0.0, %v10146
  %v10148 = vpop.f32.mrf.mxu0
  %v10149 = vpop.f32.mrf.mxu0
  %v10150 = vadd.f32 0.0, %v10149
  %v10151 = vpop.f32.mrf.mxu0
  %10152 = vmatprep.mubr.bf16.mxu0 %v9949
  %10153 = vmatmul.mubr.bf16.gmra.mxu0 %v9948
  %v10154 = vpop.f32.mrf.mxu0
  %v10155 = vadd.f32 0.0, %v10154
  %v10156 = vpop.f32.mrf.mxu0
  %v10157 = vpop.f32.mrf.mxu0
  %v10158 = vadd.f32 0.0, %v10157
  %v10159 = vpop.f32.mrf.mxu0
  %10160 = vmatprep.mubr.bf16.mxu0 %v9951
  %10161 = vmatmul.mubr.bf16.gmra.mxu0 %v9950
  %v10162 = vpop.f32.mrf.mxu0
  %v10163 = vadd.f32 0.0, %v10162
  %v10164 = vpop.f32.mrf.mxu0
  %v10165 = vpop.f32.mrf.mxu0
  %v10166 = vadd.f32 0.0, %v10165
  %v10167 = vpop.f32.mrf.mxu0
  %10168 = vmatprep.mubr.bf16.mxu0 %v9953
  %10169 = vmatmul.mubr.bf16.gmra.mxu0 %v9952
  %v10170 = vpop.f32.mrf.mxu0
  %v10171 = vadd.f32 0.0, %v10170
  %v10172 = vpop.f32.mrf.mxu0
  %v10173 = vpop.f32.mrf.mxu0
  %v10174 = vadd.f32 0.0, %v10173
  %v10175 = vpop.f32.mrf.mxu0
  %10176 = vmatprep.mubr.bf16.mxu0 %v9955
  %10177 = vmatmul.mubr.bf16.gmra.mxu0 %v9954
  %v10178 = vpop.f32.mrf.mxu0
  %v10179 = vadd.f32 0.0, %v10178
  %v10180 = vpop.f32.mrf.mxu0
  %v10181 = vpop.f32.mrf.mxu0
  %v10182 = vadd.f32 0.0, %v10181
  %v10183 = vpop.f32.mrf.mxu0
  %10184 = vmatprep.mubr.bf16.mxu0 %v9957
  %10185 = vmatmul.mubr.bf16.gmra.mxu0 %v9956
  %v10186 = vpop.f32.mrf.mxu0
  %v10187 = vadd.f32 0.0, %v10186
  %v10188 = vpop.f32.mrf.mxu0
  %v10189 = vpop.f32.mrf.mxu0
  %v10190 = vadd.f32 0.0, %v10189
  %v10191 = vpop.f32.mrf.mxu0
  %10192 = vmatprep.mubr.bf16.mxu0 %v9959
  %10193 = vmatmul.mubr.bf16.gmra.mxu0 %v9958
  %v10194 = vpop.f32.mrf.mxu0
  %v10195 = vadd.f32 0.0, %v10194
  %v10196 = vpop.f32.mrf.mxu0
  %v10197 = vpop.f32.mrf.mxu0
  %v10198 = vadd.f32 0.0, %v10197
  %v10199 = vpop.f32.mrf.mxu0
  %10200 = vmatprep.mubr.bf16.mxu0 %v9961
  %10201 = vmatmul.mubr.bf16.gmra.mxu0 %v9960
  %v10202 = vpop.f32.mrf.mxu0
  %v10203 = vadd.f32 0.0, %v10202
  %v10204 = vpop.f32.mrf.mxu0
  %v10205 = vpop.f32.mrf.mxu0
  %v10206 = vadd.f32 0.0, %v10205
  %v10207 = vpop.f32.mrf.mxu0
  %10208 = vmatprep.mubr.bf16.mxu0 %v9963
  %10209 = vmatmul.mubr.bf16.gmra.mxu0 %v9962
  %v10210 = vpop.f32.mrf.mxu0
  %v10211 = vadd.f32 0.0, %v10210
  %v10212 = vpop.f32.mrf.mxu0
  %v10213 = vpop.f32.mrf.mxu0
  %v10214 = vadd.f32 0.0, %v10213
  %v10215 = vpop.f32.mrf.mxu0
  %10216 = vmatprep.mubr.bf16.mxu0 %v9965
  %10217 = vmatmul.mubr.bf16.gmra.mxu0 %v9964
  %v10218 = vpop.f32.mrf.mxu0
  %v10219 = vadd.f32 0.0, %v10218
  %v10220 = vpop.f32.mrf.mxu0
  %v10221 = vpop.f32.mrf.mxu0
  %v10222 = vadd.f32 0.0, %v10221
  %v10223 = vpop.f32.mrf.mxu0
  %10224 = vmatprep.mubr.bf16.mxu0 %v9967
  %10225 = vmatmul.mubr.bf16.gmra.mxu0 %v9966
  %v10226 = vpop.f32.mrf.mxu0
  %v10227 = vadd.f32 0.0, %v10226
  %v10228 = vpop.f32.mrf.mxu0
  %v10229 = vpop.f32.mrf.mxu0
  %v10230 = vadd.f32 0.0, %v10229
  %v10231 = vpop.f32.mrf.mxu0
  %10232 = vmatprep.mubr.bf16.mxu0 %v9969
  %10233 = vmatmul.mubr.bf16.gmra.mxu0 %v9968
  %v10234 = vpop.f32.mrf.mxu0
  %v10235 = vadd.f32 0.0, %v10234
  %v10236 = vpop.f32.mrf.mxu0
  %v10237 = vpop.f32.mrf.mxu0
  %v10238 = vadd.f32 0.0, %v10237
  %v10239 = vpop.f32.mrf.mxu0
  %10240 = vmatprep.mubr.bf16.mxu0 %v9971
  %10241 = vmatmul.mubr.bf16.gmra.mxu0 %v9970
  %v10242 = vpop.f32.mrf.mxu0
  %v10243 = vadd.f32 0.0, %v10242
  %v10244 = vpop.f32.mrf.mxu0
  %v10245 = vpop.f32.mrf.mxu0
  %v10246 = vadd.f32 0.0, %v10245
  %v10247 = vpop.f32.mrf.mxu0
  %10248 = vmatprep.mubr.bf16.mxu0 %v9973
  %10249 = vmatmul.mubr.bf16.gmra.mxu0 %v9972
  %v10250 = vpop.f32.mrf.mxu0
  %v10251 = vadd.f32 0.0, %v10250
  %v10252 = vpop.f32.mrf.mxu0
  %v10253 = vpop.f32.mrf.mxu0
  %v10254 = vadd.f32 0.0, %v10253
  %v10255 = vpop.f32.mrf.mxu0
  %10256 = vmatprep.mubr.bf16.mxu0 %v9975
  %10257 = vmatmul.mubr.bf16.gmra.mxu0 %v9974
  %v10258 = vpop.f32.mrf.mxu0
  %v10259 = vadd.f32 0.0, %v10258
  %v10260 = vpop.f32.mrf.mxu0
  %v10261 = vpop.f32.mrf.mxu0
  %v10262 = vadd.f32 0.0, %v10261
  %v10263 = vpop.f32.mrf.mxu0
  %10264 = vdwg.mxu0
  %v10265 = vadd.f32 %v9432, %v10139
  %v10266 = vadd.f32 %v9433, %v10142
  %v10267 = vadd.f32 %v9434, %v10147
  %v10268 = vadd.f32 %v9435, %v10150
  %v10269 = vadd.f32 %v9436, %v10155
  %v10270 = vadd.f32 %v9437, %v10158
  %v10271 = vadd.f32 %v9438, %v10163
  %v10272 = vadd.f32 %v9439, %v10166
  %v10273 = vadd.f32 %v9440, %v10171
  %v10274 = vadd.f32 %v9441, %v10174
  %v10275 = vadd.f32 %v9442, %v10179
  %v10276 = vadd.f32 %v9443, %v10182
  %v10277 = vadd.f32 %v9444, %v10187
  %v10278 = vadd.f32 %v9445, %v10190
  %v10279 = vadd.f32 %v9446, %v10195
  %v10280 = vadd.f32 %v9447, %v10198
  %v10281 = vadd.f32 %v9448, %v10203
  %v10282 = vadd.f32 %v9449, %v10206
  %v10283 = vadd.f32 %v9450, %v10211
  %v10284 = vadd.f32 %v9451, %v10214
  %v10285 = vadd.f32 %v9452, %v10219
  %v10286 = vadd.f32 %v9453, %v10222
  %v10287 = vadd.f32 %v9454, %v10227
  %v10288 = vadd.f32 %v9455, %v10230
  %v10289 = vadd.f32 %v9456, %v10235
  %v10290 = vadd.f32 %v9457, %v10238
  %v10291 = vadd.f32 %v9458, %v10243
  %v10292 = vadd.f32 %v9459, %v10246
  %v10293 = vadd.f32 %v9460, %v10251
  %v10294 = vadd.f32 %v9461, %v10254
  %v10295 = vadd.f32 %v9462, %v10259
  %v10296 = vadd.f32 %v9463, %v10262
  %v10297 = vld [vmem:[#allocation2 + $0x8] sm:$0x88]
  %v10298 = vld [vmem:[#allocation2 + $0x28] sm:$0x88]
  %v10299 = vld [vmem:[#allocation2 + $0x48] sm:$0x88]
  %v10300 = vld [vmem:[#allocation2 + $0x68] sm:$0x88]
  %v10301 = vld [vmem:[#allocation2 + $0x88] sm:$0x88]
  %v10302 = vld [vmem:[#allocation2 + $0xa8] sm:$0x88]
  %v10303 = vld [vmem:[#allocation2 + $0xc8] sm:$0x88]
  %v10304 = vld [vmem:[#allocation2 + $0xe8] sm:$0x88]
  %v10305 = vld [vmem:[#allocation2 + $0x108] sm:$0x88]
  %v10306 = vld [vmem:[#allocation2 + $0x128] sm:$0x88]
  %v10307 = vld [vmem:[#allocation2 + $0x148] sm:$0x88]
  %v10308 = vld [vmem:[#allocation2 + $0x168] sm:$0x88]
  %v10309 = vld [vmem:[#allocation2 + $0x188] sm:$0x88]
  %v10310 = vld [vmem:[#allocation2 + $0x1a8] sm:$0x88]
  %v10311 = vld [vmem:[#allocation2 + $0x1c8] sm:$0x88]
  %v10312 = vld [vmem:[#allocation2 + $0x1e8] sm:$0x88]
  %v10345 = vrot.slane %v10297, 7
  %v10346 = vrot.slane %v10345, 4
  %v10347 = vrot.slane %v6517, 7
  %v10348 = vsel %vm4749, %v10346, %v10347
  %v10349 = vrot.slane %v10347, 4
  %v10350 = vrot.slane %v9464, 7
  %v10351 = vsel %vm4749, %v10349, %v10350
  %v10352 = vrot.slane %v10298, 7
  %v10353 = vrot.slane %v10352, 4
  %v10354 = vrot.slane %v6520, 7
  %v10355 = vsel %vm4749, %v10353, %v10354
  %v10356 = vrot.slane %v10354, 4
  %v10357 = vrot.slane %v9465, 7
  %v10358 = vsel %vm4749, %v10356, %v10357
  %v10359 = vrot.slane %v10299, 7
  %v10360 = vrot.slane %v10359, 4
  %v10361 = vrot.slane %v6523, 7
  %v10362 = vsel %vm4749, %v10360, %v10361
  %v10363 = vrot.slane %v10361, 4
  %v10364 = vrot.slane %v9466, 7
  %v10365 = vsel %vm4749, %v10363, %v10364
  %v10366 = vrot.slane %v10300, 7
  %v10367 = vrot.slane %v10366, 4
  %v10368 = vrot.slane %v6526, 7
  %v10369 = vsel %vm4749, %v10367, %v10368
  %v10370 = vrot.slane %v10368, 4
  %v10371 = vrot.slane %v9467, 7
  %v10372 = vsel %vm4749, %v10370, %v10371
  %v10373 = vrot.slane %v10301, 7
  %v10374 = vrot.slane %v10373, 4
  %v10375 = vrot.slane %v6529, 7
  %v10376 = vsel %vm4749, %v10374, %v10375
  %v10377 = vrot.slane %v10375, 4
  %v10378 = vrot.slane %v9468, 7
  %v10379 = vsel %vm4749, %v10377, %v10378
  %v10380 = vrot.slane %v10302, 7
  %v10381 = vrot.slane %v10380, 4
  %v10382 = vrot.slane %v6532, 7
  %v10383 = vsel %vm4749, %v10381, %v10382
  %v10384 = vrot.slane %v10382, 4
  %v10385 = vrot.slane %v9469, 7
  %v10386 = vsel %vm4749, %v10384, %v10385
  %v10387 = vrot.slane %v10303, 7
  %v10388 = vrot.slane %v10387, 4
  %v10389 = vrot.slane %v6535, 7
  %v10390 = vsel %vm4749, %v10388, %v10389
  %v10391 = vrot.slane %v10389, 4
  %v10392 = vrot.slane %v9470, 7
  %v10393 = vsel %vm4749, %v10391, %v10392
  %v10394 = vrot.slane %v10304, 7
  %v10395 = vrot.slane %v10394, 4
  %v10396 = vrot.slane %v6538, 7
  %v10397 = vsel %vm4749, %v10395, %v10396
  %v10398 = vrot.slane %v10396, 4
  %v10399 = vrot.slane %v9471, 7
  %v10400 = vsel %vm4749, %v10398, %v10399
  %v10401 = vrot.slane %v10305, 7
  %v10402 = vrot.slane %v10401, 4
  %v10403 = vrot.slane %v6541, 7
  %v10404 = vsel %vm4749, %v10402, %v10403
  %v10405 = vrot.slane %v10403, 4
  %v10406 = vrot.slane %v9472, 7
  %v10407 = vsel %vm4749, %v10405, %v10406
  %v10408 = vrot.slane %v10306, 7
  %v10409 = vrot.slane %v10408, 4
  %v10410 = vrot.slane %v6544, 7
  %v10411 = vsel %vm4749, %v10409, %v10410
  %v10412 = vrot.slane %v10410, 4
  %v10413 = vrot.slane %v9473, 7
  %v10414 = vsel %vm4749, %v10412, %v10413
  %v10415 = vrot.slane %v10307, 7
  %v10416 = vrot.slane %v10415, 4
  %v10417 = vrot.slane %v6547, 7
  %v10418 = vsel %vm4749, %v10416, %v10417
  %v10419 = vrot.slane %v10417, 4
  %v10420 = vrot.slane %v9474, 7
  %v10421 = vsel %vm4749, %v10419, %v10420
  %v10422 = vrot.slane %v10308, 7
  %v10423 = vrot.slane %v10422, 4
  %v10424 = vrot.slane %v6550, 7
  %v10425 = vsel %vm4749, %v10423, %v10424
  %v10426 = vrot.slane %v10424, 4
  %v10427 = vrot.slane %v9475, 7
  %v10428 = vsel %vm4749, %v10426, %v10427
  %v10429 = vrot.slane %v10309, 7
  %v10430 = vrot.slane %v10429, 4
  %v10431 = vrot.slane %v6553, 7
  %v10432 = vsel %vm4749, %v10430, %v10431
  %v10433 = vrot.slane %v10431, 4
  %v10434 = vrot.slane %v9476, 7
  %v10435 = vsel %vm4749, %v10433, %v10434
  %v10436 = vrot.slane %v10310, 7
  %v10437 = vrot.slane %v10436, 4
  %v10438 = vrot.slane %v6556, 7
  %v10439 = vsel %vm4749, %v10437, %v10438
  %v10440 = vrot.slane %v10438, 4
  %v10441 = vrot.slane %v9477, 7
  %v10442 = vsel %vm4749, %v10440, %v10441
  %v10443 = vrot.slane %v10311, 7
  %v10444 = vrot.slane %v10443, 4
  %v10445 = vrot.slane %v6559, 7
  %v10446 = vsel %vm4749, %v10444, %v10445
  %v10447 = vrot.slane %v10445, 4
  %v10448 = vrot.slane %v9478, 7
  %v10449 = vsel %vm4749, %v10447, %v10448
  %v10450 = vrot.slane %v10312, 7
  %v10451 = vrot.slane %v10450, 4
  %v10452 = vrot.slane %v6562, 7
  %v10453 = vsel %vm4749, %v10451, %v10452
  %v10454 = vrot.slane %v10452, 4
  %v10455 = vrot.slane %v9479, 7
  %v10456 = vsel %vm4749, %v10454, %v10455
  %v10457 = vld [vmem:[%s4 + $0x680] sm:$0xf]
  %v10458 = vld [vmem:[%s4 + $0x684] sm:$0xf]
  %v10459 = vld [vmem:[%s4 + $0x688] sm:$0xf]
  %v10460 = vld [vmem:[%s4 + $0x68c] sm:$0xf]
  %v10461 = vld [vmem:[%s4 + $0x690] sm:$0xf]
  %v10462 = vld [vmem:[%s4 + $0x694] sm:$0xf]
  %v10463 = vld [vmem:[%s4 + $0x698] sm:$0xf]
  %v10464 = vld [vmem:[%s4 + $0x69c] sm:$0xf]
  %v10465 = vld [vmem:[%s4 + $0x6a0] sm:$0xf]
  %v10466 = vld [vmem:[%s4 + $0x6a4] sm:$0xf]
  %v10467 = vld [vmem:[%s4 + $0x6a8] sm:$0xf]
  %v10468 = vld [vmem:[%s4 + $0x6ac] sm:$0xf]
  %v10469 = vld [vmem:[%s4 + $0x6b0] sm:$0xf]
  %v10470 = vld [vmem:[%s4 + $0x6b4] sm:$0xf]
  %v10471 = vld [vmem:[%s4 + $0x6b8] sm:$0xf]
  %v10472 = vld [vmem:[%s4 + $0x6bc] sm:$0xf]
  %v10473 = vld [vmem:[%s4 + $0x6c0] sm:$0xf]
  %v10474 = vld [vmem:[%s4 + $0x6c4] sm:$0xf]
  %v10475 = vld [vmem:[%s4 + $0x6c8] sm:$0xf]
  %v10476 = vld [vmem:[%s4 + $0x6cc] sm:$0xf]
  %v10477 = vld [vmem:[%s4 + $0x6d0] sm:$0xf]
  %v10478 = vld [vmem:[%s4 + $0x6d4] sm:$0xf]
  %v10479 = vld [vmem:[%s4 + $0x6d8] sm:$0xf]
  %v10480 = vld [vmem:[%s4 + $0x6dc] sm:$0xf]
  %v10481 = vld [vmem:[%s4 + $0x6e0] sm:$0xf]
  %v10482 = vld [vmem:[%s4 + $0x6e4] sm:$0xf]
  %v10483 = vld [vmem:[%s4 + $0x6e8] sm:$0xf]
  %v10484 = vld [vmem:[%s4 + $0x6ec] sm:$0xf]
  %v10485 = vld [vmem:[%s4 + $0x6f0] sm:$0xf]
  %v10486 = vld [vmem:[%s4 + $0x6f4] sm:$0xf]
  %v10487 = vld [vmem:[%s4 + $0x6f8] sm:$0xf]
  %v10488 = vld [vmem:[%s4 + $0x6fc] sm:$0xf]
  %v10489 = vunpack.c.l.b16 %v10348
  %v10490 = vunpack.c.h.b16 %v10348
  %v10491 = vunpack.c.l.b16 %v10351
  %v10492 = vunpack.c.h.b16 %v10351
  %v10493 = vunpack.c.l.b16 %v10355
  %v10494 = vunpack.c.h.b16 %v10355
  %v10495 = vunpack.c.l.b16 %v10358
  %v10496 = vunpack.c.h.b16 %v10358
  %v10497 = vunpack.c.l.b16 %v10362
  %v10498 = vunpack.c.h.b16 %v10362
  %v10499 = vunpack.c.l.b16 %v10365
  %v10500 = vunpack.c.h.b16 %v10365
  %v10501 = vunpack.c.l.b16 %v10369
  %v10502 = vunpack.c.h.b16 %v10369
  %v10503 = vunpack.c.l.b16 %v10372
  %v10504 = vunpack.c.h.b16 %v10372
  %v10505 = vunpack.c.l.b16 %v10376
  %v10506 = vunpack.c.h.b16 %v10376
  %v10507 = vunpack.c.l.b16 %v10379
  %v10508 = vunpack.c.h.b16 %v10379
  %v10509 = vunpack.c.l.b16 %v10383
  %v10510 = vunpack.c.h.b16 %v10383
  %v10511 = vunpack.c.l.b16 %v10386
  %v10512 = vunpack.c.h.b16 %v10386
  %v10513 = vunpack.c.l.b16 %v10390
  %v10514 = vunpack.c.h.b16 %v10390
  %v10515 = vunpack.c.l.b16 %v10393
  %v10516 = vunpack.c.h.b16 %v10393
  %v10517 = vunpack.c.l.b16 %v10397
  %v10518 = vunpack.c.h.b16 %v10397
  %v10519 = vunpack.c.l.b16 %v10400
  %v10520 = vunpack.c.h.b16 %v10400
  %v10521 = vunpack.c.l.b16 %v10404
  %v10522 = vunpack.c.h.b16 %v10404
  %v10523 = vunpack.c.l.b16 %v10407
  %v10524 = vunpack.c.h.b16 %v10407
  %v10525 = vunpack.c.l.b16 %v10411
  %v10526 = vunpack.c.h.b16 %v10411
  %v10527 = vunpack.c.l.b16 %v10414
  %v10528 = vunpack.c.h.b16 %v10414
  %v10529 = vunpack.c.l.b16 %v10418
  %v10530 = vunpack.c.h.b16 %v10418
  %v10531 = vunpack.c.l.b16 %v10421
  %v10532 = vunpack.c.h.b16 %v10421
  %v10533 = vunpack.c.l.b16 %v10425
  %v10534 = vunpack.c.h.b16 %v10425
  %v10535 = vunpack.c.l.b16 %v10428
  %v10536 = vunpack.c.h.b16 %v10428
  %v10537 = vunpack.c.l.b16 %v10432
  %v10538 = vunpack.c.h.b16 %v10432
  %v10539 = vunpack.c.l.b16 %v10435
  %v10540 = vunpack.c.h.b16 %v10435
  %v10541 = vunpack.c.l.b16 %v10439
  %v10542 = vunpack.c.h.b16 %v10439
  %v10543 = vunpack.c.l.b16 %v10442
  %v10544 = vunpack.c.h.b16 %v10442
  %v10545 = vunpack.c.l.b16 %v10446
  %v10546 = vunpack.c.h.b16 %v10446
  %v10547 = vunpack.c.l.b16 %v10449
  %v10548 = vunpack.c.h.b16 %v10449
  %v10549 = vunpack.c.l.b16 %v10453
  %v10550 = vunpack.c.h.b16 %v10453
  %v10551 = vunpack.c.l.b16 %v10456
  %v10552 = vunpack.c.h.b16 %v10456
  %v10553 = vpack.c.b16 %v10491, %v10489
  %v10554 = vpack.c.b16 %v10492, %v10490
  %v10555 = vpack.c.b16 %v10495, %v10493
  %v10556 = vpack.c.b16 %v10496, %v10494
  %v10557 = vpack.c.b16 %v10499, %v10497
  %v10558 = vpack.c.b16 %v10500, %v10498
  %v10559 = vpack.c.b16 %v10503, %v10501
  %v10560 = vpack.c.b16 %v10504, %v10502
  %v10561 = vpack.c.b16 %v10507, %v10505
  %v10562 = vpack.c.b16 %v10508, %v10506
  %v10563 = vpack.c.b16 %v10511, %v10509
  %v10564 = vpack.c.b16 %v10512, %v10510
  %v10565 = vpack.c.b16 %v10515, %v10513
  %v10566 = vpack.c.b16 %v10516, %v10514
  %v10567 = vpack.c.b16 %v10519, %v10517
  %v10568 = vpack.c.b16 %v10520, %v10518
  %v10569 = vpack.c.b16 %v10523, %v10521
  %v10570 = vpack.c.b16 %v10524, %v10522
  %v10571 = vpack.c.b16 %v10527, %v10525
  %v10572 = vpack.c.b16 %v10528, %v10526
  %v10573 = vpack.c.b16 %v10531, %v10529
  %v10574 = vpack.c.b16 %v10532, %v10530
  %v10575 = vpack.c.b16 %v10535, %v10533
  %v10576 = vpack.c.b16 %v10536, %v10534
  %v10577 = vpack.c.b16 %v10539, %v10537
  %v10578 = vpack.c.b16 %v10540, %v10538
  %v10579 = vpack.c.b16 %v10543, %v10541
  %v10580 = vpack.c.b16 %v10544, %v10542
  %v10581 = vpack.c.b16 %v10547, %v10545
  %v10582 = vpack.c.b16 %v10548, %v10546
  %v10583 = vpack.c.b16 %v10551, %v10549
  %v10584 = vpack.c.b16 %v10552, %v10550
  %v10649 = vunpack.c.l.b16 %v10457
  %v10650 = vunpack.c.l.b16 %v10458
  %v10651 = vunpack.c.l.b16 %v10459
  %v10652 = vunpack.c.l.b16 %v10460
  %v10653 = vunpack.c.l.b16 %v10461
  %v10654 = vunpack.c.l.b16 %v10462
  %v10655 = vunpack.c.l.b16 %v10463
  %v10656 = vunpack.c.l.b16 %v10464
  %v10657 = vunpack.c.l.b16 %v10465
  %v10658 = vunpack.c.l.b16 %v10466
  %v10659 = vunpack.c.l.b16 %v10467
  %v10660 = vunpack.c.l.b16 %v10468
  %v10661 = vunpack.c.l.b16 %v10469
  %v10662 = vunpack.c.l.b16 %v10470
  %v10663 = vunpack.c.l.b16 %v10471
  %v10664 = vunpack.c.l.b16 %v10472
  %v10665 = vunpack.c.l.b16 %v10473
  %v10666 = vunpack.c.l.b16 %v10474
  %v10667 = vunpack.c.l.b16 %v10475
  %v10668 = vunpack.c.l.b16 %v10476
  %v10669 = vunpack.c.l.b16 %v10477
  %v10670 = vunpack.c.l.b16 %v10478
  %v10671 = vunpack.c.l.b16 %v10479
  %v10672 = vunpack.c.l.b16 %v10480
  %v10673 = vunpack.c.l.b16 %v10481
  %v10674 = vunpack.c.l.b16 %v10482
  %v10675 = vunpack.c.l.b16 %v10483
  %v10676 = vunpack.c.l.b16 %v10484
  %v10677 = vunpack.c.l.b16 %v10485
  %v10678 = vunpack.c.l.b16 %v10486
  %v10679 = vunpack.c.l.b16 %v10487
  %v10680 = vunpack.c.l.b16 %v10488
  %v10681 = vpack.c.b16 %v10650, %v10649
  %v10682 = vpack.c.b16 %v10652, %v10651
  %v10683 = vpack.c.b16 %v10654, %v10653
  %v10684 = vpack.c.b16 %v10656, %v10655
  %v10685 = vpack.c.b16 %v10658, %v10657
  %v10686 = vpack.c.b16 %v10660, %v10659
  %v10687 = vpack.c.b16 %v10662, %v10661
  %v10688 = vpack.c.b16 %v10664, %v10663
  %v10689 = vpack.c.b16 %v10666, %v10665
  %v10690 = vpack.c.b16 %v10668, %v10667
  %v10691 = vpack.c.b16 %v10670, %v10669
  %v10692 = vpack.c.b16 %v10672, %v10671
  %v10693 = vpack.c.b16 %v10674, %v10673
  %v10694 = vpack.c.b16 %v10676, %v10675
  %v10695 = vpack.c.b16 %v10678, %v10677
  %v10696 = vpack.c.b16 %v10680, %v10679
  %10713 = vmatprep.subr.bf16.mxu0 0
  %10714 = vmatpush1.bf16.msra.mxu0 %v10688
  %10715 = vmatprep.subr.bf16.mxu0 0
  %10716 = vmatpush1.bf16.msra.mxu0 %v10687
  %10717 = vmatprep.subr.bf16.mxu0 0
  %10718 = vmatpush1.bf16.msra.mxu0 %v10686
  %10719 = vmatprep.subr.bf16.mxu0 0
  %10720 = vmatpush1.bf16.msra.mxu0 %v10685
  %10721 = vmatprep.subr.bf16.mxu0 0
  %10722 = vmatpush1.bf16.msra.mxu0 %v10684
  %10723 = vmatprep.subr.bf16.mxu0 0
  %10724 = vmatpush1.bf16.msra.mxu0 %v10683
  %10725 = vmatprep.subr.bf16.mxu0 0
  %10726 = vmatpush1.bf16.msra.mxu0 %v10682
  %10727 = vmatprep.subr.bf16.mxu0 0
  %10728 = vmatpush1.bf16.msra.mxu0 %v10681
  %10729 = vmatprep.subr.bf16.mxu0 0
  %10730 = vmatpush2.bf16.msra.mxu0 %v10696
  %10731 = vmatprep.subr.bf16.mxu0 0
  %10732 = vmatpush2.bf16.msra.mxu0 %v10695
  %10733 = vmatprep.subr.bf16.mxu0 0
  %10734 = vmatpush2.bf16.msra.mxu0 %v10694
  %10735 = vmatprep.subr.bf16.mxu0 0
  %10736 = vmatpush2.bf16.msra.mxu0 %v10693
  %10737 = vmatprep.subr.bf16.mxu0 0
  %10738 = vmatpush2.bf16.msra.mxu0 %v10692
  %10739 = vmatprep.subr.bf16.mxu0 0
  %10740 = vmatpush2.bf16.msra.mxu0 %v10691
  %10741 = vmatprep.subr.bf16.mxu0 0
  %10742 = vmatpush2.bf16.msra.mxu0 %v10690
  %10743 = vmatprep.subr.bf16.mxu0 0
  %10744 = vmatpush2.bf16.msra.mxu0 %v10689
  %10745 = vmatprep.mubr.bf16.mxu0 %v10554
  %10746 = vmatmul.mubr.bf16.gmra.mxu0 %v10553
  %v10747 = vpop.f32.mrf.mxu0
  %v10748 = vadd.f32 0.0, %v10747
  %v10749 = vpop.f32.mrf.mxu0
  %v10750 = vpop.f32.mrf.mxu0
  %v10751 = vadd.f32 0.0, %v10750
  %v10752 = vpop.f32.mrf.mxu0
  %10753 = vmatprep.mubr.bf16.mxu0 %v10556
  %10754 = vmatmul.mubr.bf16.gmra.mxu0 %v10555
  %v10755 = vpop.f32.mrf.mxu0
  %v10756 = vadd.f32 0.0, %v10755
  %v10757 = vpop.f32.mrf.mxu0
  %v10758 = vpop.f32.mrf.mxu0
  %v10759 = vadd.f32 0.0, %v10758
  %v10760 = vpop.f32.mrf.mxu0
  %10761 = vmatprep.mubr.bf16.mxu0 %v10558
  %10762 = vmatmul.mubr.bf16.gmra.mxu0 %v10557
  %v10763 = vpop.f32.mrf.mxu0
  %v10764 = vadd.f32 0.0, %v10763
  %v10765 = vpop.f32.mrf.mxu0
  %v10766 = vpop.f32.mrf.mxu0
  %v10767 = vadd.f32 0.0, %v10766
  %v10768 = vpop.f32.mrf.mxu0
  %10769 = vmatprep.mubr.bf16.mxu0 %v10560
  %10770 = vmatmul.mubr.bf16.gmra.mxu0 %v10559
  %v10771 = vpop.f32.mrf.mxu0
  %v10772 = vadd.f32 0.0, %v10771
  %v10773 = vpop.f32.mrf.mxu0
  %v10774 = vpop.f32.mrf.mxu0
  %v10775 = vadd.f32 0.0, %v10774
  %v10776 = vpop.f32.mrf.mxu0
  %10777 = vmatprep.mubr.bf16.mxu0 %v10562
  %10778 = vmatmul.mubr.bf16.gmra.mxu0 %v10561
  %v10779 = vpop.f32.mrf.mxu0
  %v10780 = vadd.f32 0.0, %v10779
  %v10781 = vpop.f32.mrf.mxu0
  %v10782 = vpop.f32.mrf.mxu0
  %v10783 = vadd.f32 0.0, %v10782
  %v10784 = vpop.f32.mrf.mxu0
  %10785 = vmatprep.mubr.bf16.mxu0 %v10564
  %10786 = vmatmul.mubr.bf16.gmra.mxu0 %v10563
  %v10787 = vpop.f32.mrf.mxu0
  %v10788 = vadd.f32 0.0, %v10787
  %v10789 = vpop.f32.mrf.mxu0
  %v10790 = vpop.f32.mrf.mxu0
  %v10791 = vadd.f32 0.0, %v10790
  %v10792 = vpop.f32.mrf.mxu0
  %10793 = vmatprep.mubr.bf16.mxu0 %v10566
  %10794 = vmatmul.mubr.bf16.gmra.mxu0 %v10565
  %v10795 = vpop.f32.mrf.mxu0
  %v10796 = vadd.f32 0.0, %v10795
  %v10797 = vpop.f32.mrf.mxu0
  %v10798 = vpop.f32.mrf.mxu0
  %v10799 = vadd.f32 0.0, %v10798
  %v10800 = vpop.f32.mrf.mxu0
  %10801 = vmatprep.mubr.bf16.mxu0 %v10568
  %10802 = vmatmul.mubr.bf16.gmra.mxu0 %v10567
  %v10803 = vpop.f32.mrf.mxu0
  %v10804 = vadd.f32 0.0, %v10803
  %v10805 = vpop.f32.mrf.mxu0
  %v10806 = vpop.f32.mrf.mxu0
  %v10807 = vadd.f32 0.0, %v10806
  %v10808 = vpop.f32.mrf.mxu0
  %10809 = vmatprep.mubr.bf16.mxu0 %v10570
  %10810 = vmatmul.mubr.bf16.gmra.mxu0 %v10569
  %v10811 = vpop.f32.mrf.mxu0
  %v10812 = vadd.f32 0.0, %v10811
  %v10813 = vpop.f32.mrf.mxu0
  %v10814 = vpop.f32.mrf.mxu0
  %v10815 = vadd.f32 0.0, %v10814
  %v10816 = vpop.f32.mrf.mxu0
  %10817 = vmatprep.mubr.bf16.mxu0 %v10572
  %10818 = vmatmul.mubr.bf16.gmra.mxu0 %v10571
  %v10819 = vpop.f32.mrf.mxu0
  %v10820 = vadd.f32 0.0, %v10819
  %v10821 = vpop.f32.mrf.mxu0
  %v10822 = vpop.f32.mrf.mxu0
  %v10823 = vadd.f32 0.0, %v10822
  %v10824 = vpop.f32.mrf.mxu0
  %10825 = vmatprep.mubr.bf16.mxu0 %v10574
  %10826 = vmatmul.mubr.bf16.gmra.mxu0 %v10573
  %v10827 = vpop.f32.mrf.mxu0
  %v10828 = vadd.f32 0.0, %v10827
  %v10829 = vpop.f32.mrf.mxu0
  %v10830 = vpop.f32.mrf.mxu0
  %v10831 = vadd.f32 0.0, %v10830
  %v10832 = vpop.f32.mrf.mxu0
  %10833 = vmatprep.mubr.bf16.mxu0 %v10576
  %10834 = vmatmul.mubr.bf16.gmra.mxu0 %v10575
  %v10835 = vpop.f32.mrf.mxu0
  %v10836 = vadd.f32 0.0, %v10835
  %v10837 = vpop.f32.mrf.mxu0
  %v10838 = vpop.f32.mrf.mxu0
  %v10839 = vadd.f32 0.0, %v10838
  %v10840 = vpop.f32.mrf.mxu0
  %10841 = vmatprep.mubr.bf16.mxu0 %v10578
  %10842 = vmatmul.mubr.bf16.gmra.mxu0 %v10577
  %v10843 = vpop.f32.mrf.mxu0
  %v10844 = vadd.f32 0.0, %v10843
  %v10845 = vpop.f32.mrf.mxu0
  %v10846 = vpop.f32.mrf.mxu0
  %v10847 = vadd.f32 0.0, %v10846
  %v10848 = vpop.f32.mrf.mxu0
  %10849 = vmatprep.mubr.bf16.mxu0 %v10580
  %10850 = vmatmul.mubr.bf16.gmra.mxu0 %v10579
  %v10851 = vpop.f32.mrf.mxu0
  %v10852 = vadd.f32 0.0, %v10851
  %v10853 = vpop.f32.mrf.mxu0
  %v10854 = vpop.f32.mrf.mxu0
  %v10855 = vadd.f32 0.0, %v10854
  %v10856 = vpop.f32.mrf.mxu0
  %10857 = vmatprep.mubr.bf16.mxu0 %v10582
  %10858 = vmatmul.mubr.bf16.gmra.mxu0 %v10581
  %v10859 = vpop.f32.mrf.mxu0
  %v10860 = vadd.f32 0.0, %v10859
  %v10861 = vpop.f32.mrf.mxu0
  %v10862 = vpop.f32.mrf.mxu0
  %v10863 = vadd.f32 0.0, %v10862
  %v10864 = vpop.f32.mrf.mxu0
  %10865 = vmatprep.mubr.bf16.mxu0 %v10584
  %10866 = vmatmul.mubr.bf16.gmra.mxu0 %v10583
  %v10867 = vpop.f32.mrf.mxu0
  %v10868 = vadd.f32 0.0, %v10867
  %v10869 = vpop.f32.mrf.mxu0
  %v10870 = vpop.f32.mrf.mxu0
  %v10871 = vadd.f32 0.0, %v10870
  %v10872 = vpop.f32.mrf.mxu0
  %10873 = vdwg.mxu0
  %v10874 = vadd.f32 %v10265, %v10748
  %v10875 = vadd.f32 %v10266, %v10751
  %v10876 = vadd.f32 %v10267, %v10756
  %v10877 = vadd.f32 %v10268, %v10759
  %v10878 = vadd.f32 %v10269, %v10764
  %v10879 = vadd.f32 %v10270, %v10767
  %v10880 = vadd.f32 %v10271, %v10772
  %v10881 = vadd.f32 %v10272, %v10775
  %v10882 = vadd.f32 %v10273, %v10780
  %v10883 = vadd.f32 %v10274, %v10783
  %v10884 = vadd.f32 %v10275, %v10788
  %v10885 = vadd.f32 %v10276, %v10791
  %v10886 = vadd.f32 %v10277, %v10796
  %v10887 = vadd.f32 %v10278, %v10799
  %v10888 = vadd.f32 %v10279, %v10804
  %v10889 = vadd.f32 %v10280, %v10807
  %v10890 = vadd.f32 %v10281, %v10812
  %v10891 = vadd.f32 %v10282, %v10815
  %v10892 = vadd.f32 %v10283, %v10820
  %v10893 = vadd.f32 %v10284, %v10823
  %v10894 = vadd.f32 %v10285, %v10828
  %v10895 = vadd.f32 %v10286, %v10831
  %v10896 = vadd.f32 %v10287, %v10836
  %v10897 = vadd.f32 %v10288, %v10839
  %v10898 = vadd.f32 %v10289, %v10844
  %v10899 = vadd.f32 %v10290, %v10847
  %v10900 = vadd.f32 %v10291, %v10852
  %v10901 = vadd.f32 %v10292, %v10855
  %v10902 = vadd.f32 %v10293, %v10860
  %v10903 = vadd.f32 %v10294, %v10863
  %v10904 = vadd.f32 %v10295, %v10868
  %v10905 = vadd.f32 %v10296, %v10871
  %v10906 = vld [vmem:[#allocation2 + $0x18] sm:$0xff]
  %v10907 = vld [vmem:[#allocation2 + $0x38] sm:$0xff]
  %v10908 = vld [vmem:[#allocation2 + $0x58] sm:$0xff]
  %v10909 = vld [vmem:[#allocation2 + $0x78] sm:$0xff]
  %v10910 = vld [vmem:[#allocation2 + $0x98] sm:$0xff]
  %v10911 = vld [vmem:[#allocation2 + $0xb8] sm:$0xff]
  %v10912 = vld [vmem:[#allocation2 + $0xd8] sm:$0xff]
  %v10913 = vld [vmem:[#allocation2 + $0xf8] sm:$0xff]
  %v10914 = vld [vmem:[#allocation2 + $0x118] sm:$0xff]
  %v10915 = vld [vmem:[#allocation2 + $0x138] sm:$0xff]
  %v10916 = vld [vmem:[#allocation2 + $0x158] sm:$0xff]
  %v10917 = vld [vmem:[#allocation2 + $0x178] sm:$0xff]
  %v10918 = vld [vmem:[#allocation2 + $0x198] sm:$0xff]
  %v10919 = vld [vmem:[#allocation2 + $0x1b8] sm:$0xff]
  %v10920 = vld [vmem:[#allocation2 + $0x1d8] sm:$0xff]
  %v10921 = vld [vmem:[#allocation2 + $0x1f8] sm:$0xff]
  %v10923 = vshrl.u32 %v10297, 16
  %v10925 = vrot.slane %v10923, 7
  %v10926 = vrot.slane %v10925, 4
  %v10927 = vrot.slane %v6578, 7
  %v10928 = vor.u32 %v10927, %v6574
  %v10929 = vsel %vm5329, %v10926, %v10928
  %v10930 = vrot.slane %v10927, 4
  %v10932 = vshrl.u32 %v10906, 16
  %v10934 = vrot.slane %v10932, 7
  %v10935 = vshll.u32 %v10906, 16
  %v10937 = vor.u32 %v10934, %v10935
  %v10938 = vsel %vm5329, %v10930, %v10937
  %v10940 = vshrl.u32 %v10298, 16
  %v10942 = vrot.slane %v10940, 7
  %v10943 = vrot.slane %v10942, 4
  %v10944 = vrot.slane %v6602, 7
  %v10945 = vor.u32 %v10944, %v6598
  %v10946 = vsel %vm5329, %v10943, %v10945
  %v10947 = vrot.slane %v10944, 4
  %v10949 = vshrl.u32 %v10907, 16
  %v10951 = vrot.slane %v10949, 7
  %v10952 = vshll.u32 %v10907, 16
  %v10954 = vor.u32 %v10951, %v10952
  %v10955 = vsel %vm5329, %v10947, %v10954
  %v10957 = vshrl.u32 %v10299, 16
  %v10959 = vrot.slane %v10957, 7
  %v10960 = vrot.slane %v10959, 4
  %v10961 = vrot.slane %v6626, 7
  %v10962 = vor.u32 %v10961, %v6622
  %v10963 = vsel %vm5329, %v10960, %v10962
  %v10964 = vrot.slane %v10961, 4
  %v10966 = vshrl.u32 %v10908, 16
  %v10968 = vrot.slane %v10966, 7
  %v10969 = vshll.u32 %v10908, 16
  %v10971 = vor.u32 %v10968, %v10969
  %v10972 = vsel %vm5329, %v10964, %v10971
  %v10974 = vshrl.u32 %v10300, 16
  %v10976 = vrot.slane %v10974, 7
  %v10977 = vrot.slane %v10976, 4
  %v10978 = vrot.slane %v6650, 7
  %v10979 = vor.u32 %v10978, %v6646
  %v10980 = vsel %vm5329, %v10977, %v10979
  %v10981 = vrot.slane %v10978, 4
  %v10983 = vshrl.u32 %v10909, 16
  %v10985 = vrot.slane %v10983, 7
  %v10986 = vshll.u32 %v10909, 16
  %v10988 = vor.u32 %v10985, %v10986
  %v10989 = vsel %vm5329, %v10981, %v10988
  %v10991 = vshrl.u32 %v10301, 16
  %v10993 = vrot.slane %v10991, 7
  %v10994 = vrot.slane %v10993, 4
  %v10995 = vrot.slane %v6674, 7
  %v10996 = vor.u32 %v10995, %v6670
  %v10997 = vsel %vm5329, %v10994, %v10996
  %v10998 = vrot.slane %v10995, 4
  %v11000 = vshrl.u32 %v10910, 16
  %v11002 = vrot.slane %v11000, 7
  %v11003 = vshll.u32 %v10910, 16
  %v11005 = vor.u32 %v11002, %v11003
  %v11006 = vsel %vm5329, %v10998, %v11005
  %v11008 = vshrl.u32 %v10302, 16
  %v11010 = vrot.slane %v11008, 7
  %v11011 = vrot.slane %v11010, 4
  %v11012 = vrot.slane %v6698, 7
  %v11013 = vor.u32 %v11012, %v6694
  %v11014 = vsel %vm5329, %v11011, %v11013
  %v11015 = vrot.slane %v11012, 4
  %v11017 = vshrl.u32 %v10911, 16
  %v11019 = vrot.slane %v11017, 7
  %v11020 = vshll.u32 %v10911, 16
  %v11022 = vor.u32 %v11019, %v11020
  %v11023 = vsel %vm5329, %v11015, %v11022
  %v11025 = vshrl.u32 %v10303, 16
  %v11027 = vrot.slane %v11025, 7
  %v11028 = vrot.slane %v11027, 4
  %v11029 = vrot.slane %v6722, 7
  %v11030 = vor.u32 %v11029, %v6718
  %v11031 = vsel %vm5329, %v11028, %v11030
  %v11032 = vrot.slane %v11029, 4
  %v11034 = vshrl.u32 %v10912, 16
  %v11036 = vrot.slane %v11034, 7
  %v11037 = vshll.u32 %v10912, 16
  %v11039 = vor.u32 %v11036, %v11037
  %v11040 = vsel %vm5329, %v11032, %v11039
  %v11042 = vshrl.u32 %v10304, 16
  %v11044 = vrot.slane %v11042, 7
  %v11045 = vrot.slane %v11044, 4
  %v11046 = vrot.slane %v6746, 7
  %v11047 = vor.u32 %v11046, %v6742
  %v11048 = vsel %vm5329, %v11045, %v11047
  %v11049 = vrot.slane %v11046, 4
  %v11051 = vshrl.u32 %v10913, 16
  %v11053 = vrot.slane %v11051, 7
  %v11054 = vshll.u32 %v10913, 16
  %v11056 = vor.u32 %v11053, %v11054
  %v11057 = vsel %vm5329, %v11049, %v11056
  %v11059 = vshrl.u32 %v10305, 16
  %v11061 = vrot.slane %v11059, 7
  %v11062 = vrot.slane %v11061, 4
  %v11063 = vrot.slane %v6770, 7
  %v11064 = vor.u32 %v11063, %v6766
  %v11065 = vsel %vm5329, %v11062, %v11064
  %v11066 = vrot.slane %v11063, 4
  %v11068 = vshrl.u32 %v10914, 16
  %v11070 = vrot.slane %v11068, 7
  %v11071 = vshll.u32 %v10914, 16
  %v11073 = vor.u32 %v11070, %v11071
  %v11074 = vsel %vm5329, %v11066, %v11073
  %v11076 = vshrl.u32 %v10306, 16
  %v11078 = vrot.slane %v11076, 7
  %v11079 = vrot.slane %v11078, 4
  %v11080 = vrot.slane %v6794, 7
  %v11081 = vor.u32 %v11080, %v6790
  %v11082 = vsel %vm5329, %v11079, %v11081
  %v11083 = vrot.slane %v11080, 4
  %v11085 = vshrl.u32 %v10915, 16
  %v11087 = vrot.slane %v11085, 7
  %v11088 = vshll.u32 %v10915, 16
  %v11090 = vor.u32 %v11087, %v11088
  %v11091 = vsel %vm5329, %v11083, %v11090
  %v11093 = vshrl.u32 %v10307, 16
  %v11095 = vrot.slane %v11093, 7
  %v11096 = vrot.slane %v11095, 4
  %v11097 = vrot.slane %v6818, 7
  %v11098 = vor.u32 %v11097, %v6814
  %v11099 = vsel %vm5329, %v11096, %v11098
  %v11100 = vrot.slane %v11097, 4
  %v11102 = vshrl.u32 %v10916, 16
  %v11104 = vrot.slane %v11102, 7
  %v11105 = vshll.u32 %v10916, 16
  %v11107 = vor.u32 %v11104, %v11105
  %v11108 = vsel %vm5329, %v11100, %v11107
  %v11110 = vshrl.u32 %v10308, 16
  %v11112 = vrot.slane %v11110, 7
  %v11113 = vrot.slane %v11112, 4
  %v11114 = vrot.slane %v6842, 7
  %v11115 = vor.u32 %v11114, %v6838
  %v11116 = vsel %vm5329, %v11113, %v11115
  %v11117 = vrot.slane %v11114, 4
  %v11119 = vshrl.u32 %v10917, 16
  %v11121 = vrot.slane %v11119, 7
  %v11122 = vshll.u32 %v10917, 16
  %v11124 = vor.u32 %v11121, %v11122
  %v11125 = vsel %vm5329, %v11117, %v11124
  %v11127 = vshrl.u32 %v10309, 16
  %v11129 = vrot.slane %v11127, 7
  %v11130 = vrot.slane %v11129, 4
  %v11131 = vrot.slane %v6866, 7
  %v11132 = vor.u32 %v11131, %v6862
  %v11133 = vsel %vm5329, %v11130, %v11132
  %v11134 = vrot.slane %v11131, 4
  %v11136 = vshrl.u32 %v10918, 16
  %v11138 = vrot.slane %v11136, 7
  %v11139 = vshll.u32 %v10918, 16
  %v11141 = vor.u32 %v11138, %v11139
  %v11142 = vsel %vm5329, %v11134, %v11141
  %v11144 = vshrl.u32 %v10310, 16
  %v11146 = vrot.slane %v11144, 7
  %v11147 = vrot.slane %v11146, 4
  %v11148 = vrot.slane %v6890, 7
  %v11149 = vor.u32 %v11148, %v6886
  %v11150 = vsel %vm5329, %v11147, %v11149
  %v11151 = vrot.slane %v11148, 4
  %v11153 = vshrl.u32 %v10919, 16
  %v11155 = vrot.slane %v11153, 7
  %v11156 = vshll.u32 %v10919, 16
  %v11158 = vor.u32 %v11155, %v11156
  %v11159 = vsel %vm5329, %v11151, %v11158
  %v11161 = vshrl.u32 %v10311, 16
  %v11163 = vrot.slane %v11161, 7
  %v11164 = vrot.slane %v11163, 4
  %v11165 = vrot.slane %v6914, 7
  %v11166 = vor.u32 %v11165, %v6910
  %v11167 = vsel %vm5329, %v11164, %v11166
  %v11168 = vrot.slane %v11165, 4
  %v11170 = vshrl.u32 %v10920, 16
  %v11172 = vrot.slane %v11170, 7
  %v11173 = vshll.u32 %v10920, 16
  %v11175 = vor.u32 %v11172, %v11173
  %v11176 = vsel %vm5329, %v11168, %v11175
  %v11178 = vshrl.u32 %v10312, 16
  %v11180 = vrot.slane %v11178, 7
  %v11181 = vrot.slane %v11180, 4
  %v11182 = vrot.slane %v6938, 7
  %v11183 = vor.u32 %v11182, %v6934
  %v11184 = vsel %vm5329, %v11181, %v11183
  %v11185 = vrot.slane %v11182, 4
  %v11187 = vshrl.u32 %v10921, 16
  %v11189 = vrot.slane %v11187, 7
  %v11190 = vshll.u32 %v10921, 16
  %v11192 = vor.u32 %v11189, %v11190
  %v11193 = vsel %vm5329, %v11185, %v11192
  %v11194 = vld [vmem:[%s4 + $0x700] sm:$0xf]
  %v11195 = vld [vmem:[%s4 + $0x704] sm:$0xf]
  %v11196 = vld [vmem:[%s4 + $0x708] sm:$0xf]
  %v11197 = vld [vmem:[%s4 + $0x70c] sm:$0xf]
  %v11198 = vld [vmem:[%s4 + $0x710] sm:$0xf]
  %v11199 = vld [vmem:[%s4 + $0x714] sm:$0xf]
  %v11200 = vld [vmem:[%s4 + $0x718] sm:$0xf]
  %v11201 = vld [vmem:[%s4 + $0x71c] sm:$0xf]
  %v11202 = vld [vmem:[%s4 + $0x720] sm:$0xf]
  %v11203 = vld [vmem:[%s4 + $0x724] sm:$0xf]
  %v11204 = vld [vmem:[%s4 + $0x728] sm:$0xf]
  %v11205 = vld [vmem:[%s4 + $0x72c] sm:$0xf]
  %v11206 = vld [vmem:[%s4 + $0x730] sm:$0xf]
  %v11207 = vld [vmem:[%s4 + $0x734] sm:$0xf]
  %v11208 = vld [vmem:[%s4 + $0x738] sm:$0xf]
  %v11209 = vld [vmem:[%s4 + $0x73c] sm:$0xf]
  %v11210 = vld [vmem:[%s4 + $0x740] sm:$0xf]
  %v11211 = vld [vmem:[%s4 + $0x744] sm:$0xf]
  %v11212 = vld [vmem:[%s4 + $0x748] sm:$0xf]
  %v11213 = vld [vmem:[%s4 + $0x74c] sm:$0xf]
  %v11214 = vld [vmem:[%s4 + $0x750] sm:$0xf]
  %v11215 = vld [vmem:[%s4 + $0x754] sm:$0xf]
  %v11216 = vld [vmem:[%s4 + $0x758] sm:$0xf]
  %v11217 = vld [vmem:[%s4 + $0x75c] sm:$0xf]
  %v11218 = vld [vmem:[%s4 + $0x760] sm:$0xf]
  %v11219 = vld [vmem:[%s4 + $0x764] sm:$0xf]
  %v11220 = vld [vmem:[%s4 + $0x768] sm:$0xf]
  %v11221 = vld [vmem:[%s4 + $0x76c] sm:$0xf]
  %v11222 = vld [vmem:[%s4 + $0x770] sm:$0xf]
  %v11223 = vld [vmem:[%s4 + $0x774] sm:$0xf]
  %v11224 = vld [vmem:[%s4 + $0x778] sm:$0xf]
  %v11225 = vld [vmem:[%s4 + $0x77c] sm:$0xf]
  %v11226 = vunpack.c.l.b16 %v10929
  %v11227 = vunpack.c.h.b16 %v10929
  %v11228 = vunpack.c.l.b16 %v10938
  %v11229 = vunpack.c.h.b16 %v10938
  %v11230 = vunpack.c.l.b16 %v10946
  %v11231 = vunpack.c.h.b16 %v10946
  %v11232 = vunpack.c.l.b16 %v10955
  %v11233 = vunpack.c.h.b16 %v10955
  %v11234 = vunpack.c.l.b16 %v10963
  %v11235 = vunpack.c.h.b16 %v10963
  %v11236 = vunpack.c.l.b16 %v10972
  %v11237 = vunpack.c.h.b16 %v10972
  %v11238 = vunpack.c.l.b16 %v10980
  %v11239 = vunpack.c.h.b16 %v10980
  %v11240 = vunpack.c.l.b16 %v10989
  %v11241 = vunpack.c.h.b16 %v10989
  %v11242 = vunpack.c.l.b16 %v10997
  %v11243 = vunpack.c.h.b16 %v10997
  %v11244 = vunpack.c.l.b16 %v11006
  %v11245 = vunpack.c.h.b16 %v11006
  %v11246 = vunpack.c.l.b16 %v11014
  %v11247 = vunpack.c.h.b16 %v11014
  %v11248 = vunpack.c.l.b16 %v11023
  %v11249 = vunpack.c.h.b16 %v11023
  %v11250 = vunpack.c.l.b16 %v11031
  %v11251 = vunpack.c.h.b16 %v11031
  %v11252 = vunpack.c.l.b16 %v11040
  %v11253 = vunpack.c.h.b16 %v11040
  %v11254 = vunpack.c.l.b16 %v11048
  %v11255 = vunpack.c.h.b16 %v11048
  %v11256 = vunpack.c.l.b16 %v11057
  %v11257 = vunpack.c.h.b16 %v11057
  %v11258 = vunpack.c.l.b16 %v11065
  %v11259 = vunpack.c.h.b16 %v11065
  %v11260 = vunpack.c.l.b16 %v11074
  %v11261 = vunpack.c.h.b16 %v11074
  %v11262 = vunpack.c.l.b16 %v11082
  %v11263 = vunpack.c.h.b16 %v11082
  %v11264 = vunpack.c.l.b16 %v11091
  %v11265 = vunpack.c.h.b16 %v11091
  %v11266 = vunpack.c.l.b16 %v11099
  %v11267 = vunpack.c.h.b16 %v11099
  %v11268 = vunpack.c.l.b16 %v11108
  %v11269 = vunpack.c.h.b16 %v11108
  %v11270 = vunpack.c.l.b16 %v11116
  %v11271 = vunpack.c.h.b16 %v11116
  %v11272 = vunpack.c.l.b16 %v11125
  %v11273 = vunpack.c.h.b16 %v11125
  %v11274 = vunpack.c.l.b16 %v11133
  %v11275 = vunpack.c.h.b16 %v11133
  %v11276 = vunpack.c.l.b16 %v11142
  %v11277 = vunpack.c.h.b16 %v11142
  %v11278 = vunpack.c.l.b16 %v11150
  %v11279 = vunpack.c.h.b16 %v11150
  %v11280 = vunpack.c.l.b16 %v11159
  %v11281 = vunpack.c.h.b16 %v11159
  %v11282 = vunpack.c.l.b16 %v11167
  %v11283 = vunpack.c.h.b16 %v11167
  %v11284 = vunpack.c.l.b16 %v11176
  %v11285 = vunpack.c.h.b16 %v11176
  %v11286 = vunpack.c.l.b16 %v11184
  %v11287 = vunpack.c.h.b16 %v11184
  %v11288 = vunpack.c.l.b16 %v11193
  %v11289 = vunpack.c.h.b16 %v11193
  %v11290 = vpack.c.b16 %v11228, %v11226
  %v11291 = vpack.c.b16 %v11229, %v11227
  %v11292 = vpack.c.b16 %v11232, %v11230
  %v11293 = vpack.c.b16 %v11233, %v11231
  %v11294 = vpack.c.b16 %v11236, %v11234
  %v11295 = vpack.c.b16 %v11237, %v11235
  %v11296 = vpack.c.b16 %v11240, %v11238
  %v11297 = vpack.c.b16 %v11241, %v11239
  %v11298 = vpack.c.b16 %v11244, %v11242
  %v11299 = vpack.c.b16 %v11245, %v11243
  %v11300 = vpack.c.b16 %v11248, %v11246
  %v11301 = vpack.c.b16 %v11249, %v11247
  %v11302 = vpack.c.b16 %v11252, %v11250
  %v11303 = vpack.c.b16 %v11253, %v11251
  %v11304 = vpack.c.b16 %v11256, %v11254
  %v11305 = vpack.c.b16 %v11257, %v11255
  %v11306 = vpack.c.b16 %v11260, %v11258
  %v11307 = vpack.c.b16 %v11261, %v11259
  %v11308 = vpack.c.b16 %v11264, %v11262
  %v11309 = vpack.c.b16 %v11265, %v11263
  %v11310 = vpack.c.b16 %v11268, %v11266
  %v11311 = vpack.c.b16 %v11269, %v11267
  %v11312 = vpack.c.b16 %v11272, %v11270
  %v11313 = vpack.c.b16 %v11273, %v11271
  %v11314 = vpack.c.b16 %v11276, %v11274
  %v11315 = vpack.c.b16 %v11277, %v11275
  %v11316 = vpack.c.b16 %v11280, %v11278
  %v11317 = vpack.c.b16 %v11281, %v11279
  %v11318 = vpack.c.b16 %v11284, %v11282
  %v11319 = vpack.c.b16 %v11285, %v11283
  %v11320 = vpack.c.b16 %v11288, %v11286
  %v11321 = vpack.c.b16 %v11289, %v11287
  %v11386 = vunpack.c.l.b16 %v11194
  %v11387 = vunpack.c.l.b16 %v11195
  %v11388 = vunpack.c.l.b16 %v11196
  %v11389 = vunpack.c.l.b16 %v11197
  %v11390 = vunpack.c.l.b16 %v11198
  %v11391 = vunpack.c.l.b16 %v11199
  %v11392 = vunpack.c.l.b16 %v11200
  %v11393 = vunpack.c.l.b16 %v11201
  %v11394 = vunpack.c.l.b16 %v11202
  %v11395 = vunpack.c.l.b16 %v11203
  %v11396 = vunpack.c.l.b16 %v11204
  %v11397 = vunpack.c.l.b16 %v11205
  %v11398 = vunpack.c.l.b16 %v11206
  %v11399 = vunpack.c.l.b16 %v11207
  %v11400 = vunpack.c.l.b16 %v11208
  %v11401 = vunpack.c.l.b16 %v11209
  %v11402 = vunpack.c.l.b16 %v11210
  %v11403 = vunpack.c.l.b16 %v11211
  %v11404 = vunpack.c.l.b16 %v11212
  %v11405 = vunpack.c.l.b16 %v11213
  %v11406 = vunpack.c.l.b16 %v11214
  %v11407 = vunpack.c.l.b16 %v11215
  %v11408 = vunpack.c.l.b16 %v11216
  %v11409 = vunpack.c.l.b16 %v11217
  %v11410 = vunpack.c.l.b16 %v11218
  %v11411 = vunpack.c.l.b16 %v11219
  %v11412 = vunpack.c.l.b16 %v11220
  %v11413 = vunpack.c.l.b16 %v11221
  %v11414 = vunpack.c.l.b16 %v11222
  %v11415 = vunpack.c.l.b16 %v11223
  %v11416 = vunpack.c.l.b16 %v11224
  %v11417 = vunpack.c.l.b16 %v11225
  %v11418 = vpack.c.b16 %v11387, %v11386
  %v11419 = vpack.c.b16 %v11389, %v11388
  %v11420 = vpack.c.b16 %v11391, %v11390
  %v11421 = vpack.c.b16 %v11393, %v11392
  %v11422 = vpack.c.b16 %v11395, %v11394
  %v11423 = vpack.c.b16 %v11397, %v11396
  %v11424 = vpack.c.b16 %v11399, %v11398
  %v11425 = vpack.c.b16 %v11401, %v11400
  %v11426 = vpack.c.b16 %v11403, %v11402
  %v11427 = vpack.c.b16 %v11405, %v11404
  %v11428 = vpack.c.b16 %v11407, %v11406
  %v11429 = vpack.c.b16 %v11409, %v11408
  %v11430 = vpack.c.b16 %v11411, %v11410
  %v11431 = vpack.c.b16 %v11413, %v11412
  %v11432 = vpack.c.b16 %v11415, %v11414
  %v11433 = vpack.c.b16 %v11417, %v11416
  %11450 = vmatprep.subr.bf16.mxu0 0
  %11451 = vmatpush1.bf16.msra.mxu0 %v11425
  %11452 = vmatprep.subr.bf16.mxu0 0
  %11453 = vmatpush1.bf16.msra.mxu0 %v11424
  %11454 = vmatprep.subr.bf16.mxu0 0
  %11455 = vmatpush1.bf16.msra.mxu0 %v11423
  %11456 = vmatprep.subr.bf16.mxu0 0
  %11457 = vmatpush1.bf16.msra.mxu0 %v11422
  %11458 = vmatprep.subr.bf16.mxu0 0
  %11459 = vmatpush1.bf16.msra.mxu0 %v11421
  %11460 = vmatprep.subr.bf16.mxu0 0
  %11461 = vmatpush1.bf16.msra.mxu0 %v11420
  %11462 = vmatprep.subr.bf16.mxu0 0
  %11463 = vmatpush1.bf16.msra.mxu0 %v11419
  %11464 = vmatprep.subr.bf16.mxu0 0
  %11465 = vmatpush1.bf16.msra.mxu0 %v11418
  %11466 = vmatprep.subr.bf16.mxu0 0
  %11467 = vmatpush2.bf16.msra.mxu0 %v11433
  %11468 = vmatprep.subr.bf16.mxu0 0
  %11469 = vmatpush2.bf16.msra.mxu0 %v11432
  %11470 = vmatprep.subr.bf16.mxu0 0
  %11471 = vmatpush2.bf16.msra.mxu0 %v11431
  %11472 = vmatprep.subr.bf16.mxu0 0
  %11473 = vmatpush2.bf16.msra.mxu0 %v11430
  %11474 = vmatprep.subr.bf16.mxu0 0
  %11475 = vmatpush2.bf16.msra.mxu0 %v11429
  %11476 = vmatprep.subr.bf16.mxu0 0
  %11477 = vmatpush2.bf16.msra.mxu0 %v11428
  %11478 = vmatprep.subr.bf16.mxu0 0
  %11479 = vmatpush2.bf16.msra.mxu0 %v11427
  %11480 = vmatprep.subr.bf16.mxu0 0
  %11481 = vmatpush2.bf16.msra.mxu0 %v11426
  %11482 = vmatprep.mubr.bf16.mxu0 %v11291
  %11483 = vmatmul.mubr.bf16.gmra.mxu0 %v11290
  %v11484 = vpop.f32.mrf.mxu0
  %v11485 = vadd.f32 0.0, %v11484
  %v11486 = vpop.f32.mrf.mxu0
  %v11487 = vpop.f32.mrf.mxu0
  %v11488 = vadd.f32 0.0, %v11487
  %v11489 = vpop.f32.mrf.mxu0
  %11490 = vmatprep.mubr.bf16.mxu0 %v11293
  %11491 = vmatmul.mubr.bf16.gmra.mxu0 %v11292
  %v11492 = vpop.f32.mrf.mxu0
  %v11493 = vadd.f32 0.0, %v11492
  %v11494 = vpop.f32.mrf.mxu0
  %v11495 = vpop.f32.mrf.mxu0
  %v11496 = vadd.f32 0.0, %v11495
  %v11497 = vpop.f32.mrf.mxu0
  %11498 = vmatprep.mubr.bf16.mxu0 %v11295
  %11499 = vmatmul.mubr.bf16.gmra.mxu0 %v11294
  %v11500 = vpop.f32.mrf.mxu0
  %v11501 = vadd.f32 0.0, %v11500
  %v11502 = vpop.f32.mrf.mxu0
  %v11503 = vpop.f32.mrf.mxu0
  %v11504 = vadd.f32 0.0, %v11503
  %v11505 = vpop.f32.mrf.mxu0
  %11506 = vmatprep.mubr.bf16.mxu0 %v11297
  %11507 = vmatmul.mubr.bf16.gmra.mxu0 %v11296
  %v11508 = vpop.f32.mrf.mxu0
  %v11509 = vadd.f32 0.0, %v11508
  %v11510 = vpop.f32.mrf.mxu0
  %v11511 = vpop.f32.mrf.mxu0
  %v11512 = vadd.f32 0.0, %v11511
  %v11513 = vpop.f32.mrf.mxu0
  %11514 = vmatprep.mubr.bf16.mxu0 %v11299
  %11515 = vmatmul.mubr.bf16.gmra.mxu0 %v11298
  %v11516 = vpop.f32.mrf.mxu0
  %v11517 = vadd.f32 0.0, %v11516
  %v11518 = vpop.f32.mrf.mxu0
  %v11519 = vpop.f32.mrf.mxu0
  %v11520 = vadd.f32 0.0, %v11519
  %v11521 = vpop.f32.mrf.mxu0
  %11522 = vmatprep.mubr.bf16.mxu0 %v11301
  %11523 = vmatmul.mubr.bf16.gmra.mxu0 %v11300
  %v11524 = vpop.f32.mrf.mxu0
  %v11525 = vadd.f32 0.0, %v11524
  %v11526 = vpop.f32.mrf.mxu0
  %v11527 = vpop.f32.mrf.mxu0
  %v11528 = vadd.f32 0.0, %v11527
  %v11529 = vpop.f32.mrf.mxu0
  %11530 = vmatprep.mubr.bf16.mxu0 %v11303
  %11531 = vmatmul.mubr.bf16.gmra.mxu0 %v11302
  %v11532 = vpop.f32.mrf.mxu0
  %v11533 = vadd.f32 0.0, %v11532
  %v11534 = vpop.f32.mrf.mxu0
  %v11535 = vpop.f32.mrf.mxu0
  %v11536 = vadd.f32 0.0, %v11535
  %v11537 = vpop.f32.mrf.mxu0
  %11538 = vmatprep.mubr.bf16.mxu0 %v11305
  %11539 = vmatmul.mubr.bf16.gmra.mxu0 %v11304
  %v11540 = vpop.f32.mrf.mxu0
  %v11541 = vadd.f32 0.0, %v11540
  %v11542 = vpop.f32.mrf.mxu0
  %v11543 = vpop.f32.mrf.mxu0
  %v11544 = vadd.f32 0.0, %v11543
  %v11545 = vpop.f32.mrf.mxu0
  %11546 = vmatprep.mubr.bf16.mxu0 %v11307
  %11547 = vmatmul.mubr.bf16.gmra.mxu0 %v11306
  %v11548 = vpop.f32.mrf.mxu0
  %v11549 = vadd.f32 0.0, %v11548
  %v11550 = vpop.f32.mrf.mxu0
  %v11551 = vpop.f32.mrf.mxu0
  %v11552 = vadd.f32 0.0, %v11551
  %v11553 = vpop.f32.mrf.mxu0
  %11554 = vmatprep.mubr.bf16.mxu0 %v11309
  %11555 = vmatmul.mubr.bf16.gmra.mxu0 %v11308
  %v11556 = vpop.f32.mrf.mxu0
  %v11557 = vadd.f32 0.0, %v11556
  %v11558 = vpop.f32.mrf.mxu0
  %v11559 = vpop.f32.mrf.mxu0
  %v11560 = vadd.f32 0.0, %v11559
  %v11561 = vpop.f32.mrf.mxu0
  %11562 = vmatprep.mubr.bf16.mxu0 %v11311
  %11563 = vmatmul.mubr.bf16.gmra.mxu0 %v11310
  %v11564 = vpop.f32.mrf.mxu0
  %v11565 = vadd.f32 0.0, %v11564
  %v11566 = vpop.f32.mrf.mxu0
  %v11567 = vpop.f32.mrf.mxu0
  %v11568 = vadd.f32 0.0, %v11567
  %v11569 = vpop.f32.mrf.mxu0
  %11570 = vmatprep.mubr.bf16.mxu0 %v11313
  %11571 = vmatmul.mubr.bf16.gmra.mxu0 %v11312
  %v11572 = vpop.f32.mrf.mxu0
  %v11573 = vadd.f32 0.0, %v11572
  %v11574 = vpop.f32.mrf.mxu0
  %v11575 = vpop.f32.mrf.mxu0
  %v11576 = vadd.f32 0.0, %v11575
  %v11577 = vpop.f32.mrf.mxu0
  %11578 = vmatprep.mubr.bf16.mxu0 %v11315
  %11579 = vmatmul.mubr.bf16.gmra.mxu0 %v11314
  %v11580 = vpop.f32.mrf.mxu0
  %v11581 = vadd.f32 0.0, %v11580
  %v11582 = vpop.f32.mrf.mxu0
  %v11583 = vpop.f32.mrf.mxu0
  %v11584 = vadd.f32 0.0, %v11583
  %v11585 = vpop.f32.mrf.mxu0
  %11586 = vmatprep.mubr.bf16.mxu0 %v11317
  %11587 = vmatmul.mubr.bf16.gmra.mxu0 %v11316
  %v11588 = vpop.f32.mrf.mxu0
  %v11589 = vadd.f32 0.0, %v11588
  %v11590 = vpop.f32.mrf.mxu0
  %v11591 = vpop.f32.mrf.mxu0
  %v11592 = vadd.f32 0.0, %v11591
  %v11593 = vpop.f32.mrf.mxu0
  %11594 = vmatprep.mubr.bf16.mxu0 %v11319
  %11595 = vmatmul.mubr.bf16.gmra.mxu0 %v11318
  %v11596 = vpop.f32.mrf.mxu0
  %v11597 = vadd.f32 0.0, %v11596
  %v11598 = vpop.f32.mrf.mxu0
  %v11599 = vpop.f32.mrf.mxu0
  %v11600 = vadd.f32 0.0, %v11599
  %v11601 = vpop.f32.mrf.mxu0
  %11602 = vmatprep.mubr.bf16.mxu0 %v11321
  %11603 = vmatmul.mubr.bf16.gmra.mxu0 %v11320
  %v11604 = vpop.f32.mrf.mxu0
  %v11605 = vadd.f32 0.0, %v11604
  %v11606 = vpop.f32.mrf.mxu0
  %v11607 = vpop.f32.mrf.mxu0
  %v11608 = vadd.f32 0.0, %v11607
  %v11609 = vpop.f32.mrf.mxu0
  %11610 = vdwg.mxu0
  %v11611 = vadd.f32 %v10874, %v11485
  %v11612 = vadd.f32 %v10875, %v11488
  %v11613 = vadd.f32 %v10876, %v11493
  %v11614 = vadd.f32 %v10877, %v11496
  %v11615 = vadd.f32 %v10878, %v11501
  %v11616 = vadd.f32 %v10879, %v11504
  %v11617 = vadd.f32 %v10880, %v11509
  %v11618 = vadd.f32 %v10881, %v11512
  %v11619 = vadd.f32 %v10882, %v11517
  %v11620 = vadd.f32 %v10883, %v11520
  %v11621 = vadd.f32 %v10884, %v11525
  %v11622 = vadd.f32 %v10885, %v11528
  %v11623 = vadd.f32 %v10886, %v11533
  %v11624 = vadd.f32 %v10887, %v11536
  %v11625 = vadd.f32 %v10888, %v11541
  %v11626 = vadd.f32 %v10889, %v11544
  %v11627 = vadd.f32 %v10890, %v11549
  %v11628 = vadd.f32 %v10891, %v11552
  %v11629 = vadd.f32 %v10892, %v11557
  %v11630 = vadd.f32 %v10893, %v11560
  %v11631 = vadd.f32 %v10894, %v11565
  %v11632 = vadd.f32 %v10895, %v11568
  %v11633 = vadd.f32 %v10896, %v11573
  %v11634 = vadd.f32 %v10897, %v11576
  %v11635 = vadd.f32 %v10898, %v11581
  %v11636 = vadd.f32 %v10899, %v11584
  %v11637 = vadd.f32 %v10900, %v11589
  %v11638 = vadd.f32 %v10901, %v11592
  %v11639 = vadd.f32 %v10902, %v11597
  %v11640 = vadd.f32 %v10903, %v11600
  %v11641 = vadd.f32 %v10904, %v11605
  %v11642 = vadd.f32 %v10905, %v11608
  %v11643 = vld [vmem:[%s5] sm:$0x1]
  %v11645 = vlaneseq
  %v11646 = vshrl.u32 %v11645, 7
  %v11647 = vsub.s32 0, %v11646
  %v11648 = vrot.slane %v11643, %v11647
  %v11650 = vmul.f32 %v11611, %v11648
  %v11651 = vmul.f32 %v11612, %v11648
  %v11652 = vmul.f32 %v11613, %v11648
  %v11653 = vmul.f32 %v11614, %v11648
  %v11654 = vmul.f32 %v11615, %v11648
  %v11655 = vmul.f32 %v11616, %v11648
  %v11656 = vmul.f32 %v11617, %v11648
  %v11657 = vmul.f32 %v11618, %v11648
  %v11658 = vmul.f32 %v11619, %v11648
  %v11659 = vmul.f32 %v11620, %v11648
  %v11660 = vmul.f32 %v11621, %v11648
  %v11661 = vmul.f32 %v11622, %v11648
  %v11662 = vmul.f32 %v11623, %v11648
  %v11663 = vmul.f32 %v11624, %v11648
  %v11664 = vmul.f32 %v11625, %v11648
  %v11665 = vmul.f32 %v11626, %v11648
  %v11666 = vmul.f32 %v11627, %v11648
  %v11667 = vmul.f32 %v11628, %v11648
  %v11668 = vmul.f32 %v11629, %v11648
  %v11669 = vmul.f32 %v11630, %v11648
  %v11670 = vmul.f32 %v11631, %v11648
  %v11671 = vmul.f32 %v11632, %v11648
  %v11672 = vmul.f32 %v11633, %v11648
  %v11673 = vmul.f32 %v11634, %v11648
  %v11674 = vmul.f32 %v11635, %v11648
  %v11675 = vmul.f32 %v11636, %v11648
  %v11676 = vmul.f32 %v11637, %v11648
  %v11677 = vmul.f32 %v11638, %v11648
  %v11678 = vmul.f32 %v11639, %v11648
  %v11679 = vmul.f32 %v11640, %v11648
  %v11680 = vmul.f32 %v11641, %v11648
  %v11681 = vmul.f32 %v11642, %v11648
  %v11682 = vld [vmem:[%s6] sm:$0x1]
  %v11684 = vlaneseq
  %v11685 = vshrl.u32 %v11684, 7
  %v11686 = vsub.s32 0, %v11685
  %v11687 = vrot.slane %v11682, %v11686
  %v11689 = vadd.f32 %v11650, %v11687
  %v11690 = vadd.f32 %v11651, %v11687
  %v11691 = vadd.f32 %v11652, %v11687
  %v11692 = vadd.f32 %v11653, %v11687
  %v11693 = vadd.f32 %v11654, %v11687
  %v11694 = vadd.f32 %v11655, %v11687
  %v11695 = vadd.f32 %v11656, %v11687
  %v11696 = vadd.f32 %v11657, %v11687
  %v11697 = vadd.f32 %v11658, %v11687
  %v11698 = vadd.f32 %v11659, %v11687
  %v11699 = vadd.f32 %v11660, %v11687
  %v11700 = vadd.f32 %v11661, %v11687
  %v11701 = vadd.f32 %v11662, %v11687
  %v11702 = vadd.f32 %v11663, %v11687
  %v11703 = vadd.f32 %v11664, %v11687
  %v11704 = vadd.f32 %v11665, %v11687
  %v11705 = vadd.f32 %v11666, %v11687
  %v11706 = vadd.f32 %v11667, %v11687
  %v11707 = vadd.f32 %v11668, %v11687
  %v11708 = vadd.f32 %v11669, %v11687
  %v11709 = vadd.f32 %v11670, %v11687
  %v11710 = vadd.f32 %v11671, %v11687
  %v11711 = vadd.f32 %v11672, %v11687
  %v11712 = vadd.f32 %v11673, %v11687
  %v11713 = vadd.f32 %v11674, %v11687
  %v11714 = vadd.f32 %v11675, %v11687
  %v11715 = vadd.f32 %v11676, %v11687
  %v11716 = vadd.f32 %v11677, %v11687
  %v11717 = vadd.f32 %v11678, %v11687
  %v11718 = vadd.f32 %v11679, %v11687
  %v11719 = vadd.f32 %v11680, %v11687
  %v11720 = vadd.f32 %v11681, %v11687
  %v11721 = vmax.f32 %v11689, 0.0
  %v11722 = vmax.f32 %v11690, 0.0
  %v11723 = vmax.f32 %v11691, 0.0
  %v11724 = vmax.f32 %v11692, 0.0
  %v11725 = vmax.f32 %v11693, 0.0
  %v11726 = vmax.f32 %v11694, 0.0
  %v11727 = vmax.f32 %v11695, 0.0
  %v11728 = vmax.f32 %v11696, 0.0
  %v11729 = vmax.f32 %v11697, 0.0
  %v11730 = vmax.f32 %v11698, 0.0
  %v11731 = vmax.f32 %v11699, 0.0
  %v11732 = vmax.f32 %v11700, 0.0
  %v11733 = vmax.f32 %v11701, 0.0
  %v11734 = vmax.f32 %v11702, 0.0
  %v11735 = vmax.f32 %v11703, 0.0
  %v11736 = vmax.f32 %v11704, 0.0
  %v11737 = vmax.f32 %v11705, 0.0
  %v11738 = vmax.f32 %v11706, 0.0
  %v11739 = vmax.f32 %v11707, 0.0
  %v11740 = vmax.f32 %v11708, 0.0
  %v11741 = vmax.f32 %v11709, 0.0
  %v11742 = vmax.f32 %v11710, 0.0
  %v11743 = vmax.f32 %v11711, 0.0
  %v11744 = vmax.f32 %v11712, 0.0
  %v11745 = vmax.f32 %v11713, 0.0
  %v11746 = vmax.f32 %v11714, 0.0
  %v11747 = vmax.f32 %v11715, 0.0
  %v11748 = vmax.f32 %v11716, 0.0
  %v11749 = vmax.f32 %v11717, 0.0
  %v11750 = vmax.f32 %v11718, 0.0
  %v11751 = vmax.f32 %v11719, 0.0
  %v11752 = vmax.f32 %v11720, 0.0
  %vm11753 = vcmask 523264
  %v11754 = vsel %vm11753, %v11721, -inf
  %v11755 = vsel %vm11753, %v11722, -inf
  %v11756 = vmax.f32 %v11754, %v11755
  %v11757 = vrot.slane %v11756, 4
  %v11758 = vmax.f32 %v11756, %v11757
  %v11759 = vrot.slane %v11758, 2
  %v11760 = vmax.f32 %v11758, %v11759
  %v11761 = vrot.slane %v11760, 1
  %v11762 = vmax.f32 %v11760, %v11761
  %v11763 = vsel %vm11753, %v11723, -inf
  %v11764 = vsel %vm11753, %v11724, -inf
  %v11765 = vmax.f32 %v11763, %v11764
  %v11766 = vrot.slane %v11765, 4
  %v11767 = vmax.f32 %v11765, %v11766
  %v11768 = vrot.slane %v11767, 2
  %v11769 = vmax.f32 %v11767, %v11768
  %v11770 = vrot.slane %v11769, 1
  %v11771 = vmax.f32 %v11769, %v11770
  %v11772 = vsel %vm11753, %v11725, -inf
  %v11773 = vsel %vm11753, %v11726, -inf
  %v11774 = vmax.f32 %v11772, %v11773
  %v11775 = vrot.slane %v11774, 4
  %v11776 = vmax.f32 %v11774, %v11775
  %v11777 = vrot.slane %v11776, 2
  %v11778 = vmax.f32 %v11776, %v11777
  %v11779 = vrot.slane %v11778, 1
  %v11780 = vmax.f32 %v11778, %v11779
  %v11781 = vsel %vm11753, %v11727, -inf
  %v11782 = vsel %vm11753, %v11728, -inf
  %v11783 = vmax.f32 %v11781, %v11782
  %v11784 = vrot.slane %v11783, 4
  %v11785 = vmax.f32 %v11783, %v11784
  %v11786 = vrot.slane %v11785, 2
  %v11787 = vmax.f32 %v11785, %v11786
  %v11788 = vrot.slane %v11787, 1
  %v11789 = vmax.f32 %v11787, %v11788
  %v11790 = vsel %vm11753, %v11729, -inf
  %v11791 = vsel %vm11753, %v11730, -inf
  %v11792 = vmax.f32 %v11790, %v11791
  %v11793 = vrot.slane %v11792, 4
  %v11794 = vmax.f32 %v11792, %v11793
  %v11795 = vrot.slane %v11794, 2
  %v11796 = vmax.f32 %v11794, %v11795
  %v11797 = vrot.slane %v11796, 1
  %v11798 = vmax.f32 %v11796, %v11797
  %v11799 = vsel %vm11753, %v11731, -inf
  %v11800 = vsel %vm11753, %v11732, -inf
  %v11801 = vmax.f32 %v11799, %v11800
  %v11802 = vrot.slane %v11801, 4
  %v11803 = vmax.f32 %v11801, %v11802
  %v11804 = vrot.slane %v11803, 2
  %v11805 = vmax.f32 %v11803, %v11804
  %v11806 = vrot.slane %v11805, 1
  %v11807 = vmax.f32 %v11805, %v11806
  %v11808 = vsel %vm11753, %v11733, -inf
  %v11809 = vsel %vm11753, %v11734, -inf
  %v11810 = vmax.f32 %v11808, %v11809
  %v11811 = vrot.slane %v11810, 4
  %v11812 = vmax.f32 %v11810, %v11811
  %v11813 = vrot.slane %v11812, 2
  %v11814 = vmax.f32 %v11812, %v11813
  %v11815 = vrot.slane %v11814, 1
  %v11816 = vmax.f32 %v11814, %v11815
  %v11817 = vsel %vm11753, %v11735, -inf
  %v11818 = vsel %vm11753, %v11736, -inf
  %v11819 = vmax.f32 %v11817, %v11818
  %v11820 = vrot.slane %v11819, 4
  %v11821 = vmax.f32 %v11819, %v11820
  %v11822 = vrot.slane %v11821, 2
  %v11823 = vmax.f32 %v11821, %v11822
  %v11824 = vrot.slane %v11823, 1
  %v11825 = vmax.f32 %v11823, %v11824
  %v11826 = vsel %vm11753, %v11737, -inf
  %v11827 = vsel %vm11753, %v11738, -inf
  %v11828 = vmax.f32 %v11826, %v11827
  %v11829 = vrot.slane %v11828, 4
  %v11830 = vmax.f32 %v11828, %v11829
  %v11831 = vrot.slane %v11830, 2
  %v11832 = vmax.f32 %v11830, %v11831
  %v11833 = vrot.slane %v11832, 1
  %v11834 = vmax.f32 %v11832, %v11833
  %v11835 = vsel %vm11753, %v11739, -inf
  %v11836 = vsel %vm11753, %v11740, -inf
  %v11837 = vmax.f32 %v11835, %v11836
  %v11838 = vrot.slane %v11837, 4
  %v11839 = vmax.f32 %v11837, %v11838
  %v11840 = vrot.slane %v11839, 2
  %v11841 = vmax.f32 %v11839, %v11840
  %v11842 = vrot.slane %v11841, 1
  %v11843 = vmax.f32 %v11841, %v11842
  %v11844 = vsel %vm11753, %v11741, -inf
  %v11845 = vsel %vm11753, %v11742, -inf
  %v11846 = vmax.f32 %v11844, %v11845
  %v11847 = vrot.slane %v11846, 4
  %v11848 = vmax.f32 %v11846, %v11847
  %v11849 = vrot.slane %v11848, 2
  %v11850 = vmax.f32 %v11848, %v11849
  %v11851 = vrot.slane %v11850, 1
  %v11852 = vmax.f32 %v11850, %v11851
  %v11853 = vsel %vm11753, %v11743, -inf
  %v11854 = vsel %vm11753, %v11744, -inf
  %v11855 = vmax.f32 %v11853, %v11854
  %v11856 = vrot.slane %v11855, 4
  %v11857 = vmax.f32 %v11855, %v11856
  %v11858 = vrot.slane %v11857, 2
  %v11859 = vmax.f32 %v11857, %v11858
  %v11860 = vrot.slane %v11859, 1
  %v11861 = vmax.f32 %v11859, %v11860
  %v11862 = vsel %vm11753, %v11745, -inf
  %v11863 = vsel %vm11753, %v11746, -inf
  %v11864 = vmax.f32 %v11862, %v11863
  %v11865 = vrot.slane %v11864, 4
  %v11866 = vmax.f32 %v11864, %v11865
  %v11867 = vrot.slane %v11866, 2
  %v11868 = vmax.f32 %v11866, %v11867
  %v11869 = vrot.slane %v11868, 1
  %v11870 = vmax.f32 %v11868, %v11869
  %v11871 = vsel %vm11753, %v11747, -inf
  %v11872 = vsel %vm11753, %v11748, -inf
  %v11873 = vmax.f32 %v11871, %v11872
  %v11874 = vrot.slane %v11873, 4
  %v11875 = vmax.f32 %v11873, %v11874
  %v11876 = vrot.slane %v11875, 2
  %v11877 = vmax.f32 %v11875, %v11876
  %v11878 = vrot.slane %v11877, 1
  %v11879 = vmax.f32 %v11877, %v11878
  %v11880 = vsel %vm11753, %v11749, -inf
  %v11881 = vsel %vm11753, %v11750, -inf
  %v11882 = vmax.f32 %v11880, %v11881
  %v11883 = vrot.slane %v11882, 4
  %v11884 = vmax.f32 %v11882, %v11883
  %v11885 = vrot.slane %v11884, 2
  %v11886 = vmax.f32 %v11884, %v11885
  %v11887 = vrot.slane %v11886, 1
  %v11888 = vmax.f32 %v11886, %v11887
  %v11889 = vsel %vm11753, %v11751, -inf
  %v11890 = vsel %vm11753, %v11752, -inf
  %v11891 = vmax.f32 %v11889, %v11890
  %v11892 = vrot.slane %v11891, 4
  %v11893 = vmax.f32 %v11891, %v11892
  %v11894 = vrot.slane %v11893, 2
  %v11895 = vmax.f32 %v11893, %v11894
  %v11896 = vrot.slane %v11895, 1
  %v11897 = vmax.f32 %v11895, %v11896
  %v11898 = vld [vmem:[%s7] sm:$0xff]
  %v11899 = vld [vmem:[%s7 + $0x8] sm:$0xff]
  %v11900 = vld [vmem:[%s8] sm:$0x1]
  %v11902 = vlaneseq
  %v11903 = vshrl.u32 %v11902, 7
  %v11904 = vsub.s32 0, %v11903
  %v11905 = vrot.slane %v11900, %v11904
  %v11907 = vmul.f32 %v11898, %v11905
  %v11908 = vmul.f32 %v11899, %v11905
  %v11909 = vld [vmem:[%s9] sm:$0x1]
  %v11911 = vlaneseq
  %v11912 = vshrl.u32 %v11911, 7
  %v11913 = vsub.s32 0, %v11912
  %v11914 = vrot.slane %v11909, %v11913
  %v11916 = vadd.f32 %v11907, %v11914
  %v11917 = vadd.f32 %v11908, %v11914
  %v11918 = vpack.c.bf16 %v11917, %v11916
  %v11919 = vld [vmem:[%s10] sm:$0xf]
  %v11920 = vld [vmem:[%s10 + $0x4] sm:$0xf]
  %v11921 = vld [vmem:[%s10 + $0x8] sm:$0xf]
  %v11922 = vld [vmem:[%s10 + $0xc] sm:$0xf]
  %v11923 = vld [vmem:[%s11] sm:$0x1]
  %v11925 = vlaneseq
  %v11926 = vshrl.u32 %v11925, 7
  %v11927 = vsub.s32 0, %v11926
  %v11928 = vrot.slane %v11923, %v11927
  %v11934 = vunpack.c.l.b16 %v11919
  %v11935 = vunpack.c.l.b16 %v11920
  %v11936 = vunpack.c.l.b16 %v11921
  %v11937 = vunpack.c.l.b16 %v11922
  %v11938 = vpack.c.b16 %v11935, %v11934
  %v11939 = vpack.c.b16 %v11937, %v11936
  %vm11942 = vcmask 261120
  %v11944 = vsel %vm11942, %v11918, 0
  %11946 = vmatprep.subr.bf16.mxu0 0
  %11947 = vmatpush1.bf16.msra.mxu0 0
  %11948 = vmatprep.subr.bf16.mxu0 0
  %11949 = vmatpush1.bf16.msra.mxu0 0
  %11950 = vmatprep.subr.bf16.mxu0 0
  %11951 = vmatpush1.bf16.msra.mxu0 0
  %11952 = vmatprep.subr.bf16.mxu0 0
  %11953 = vmatpush1.bf16.msra.mxu0 0
  %11954 = vmatprep.subr.bf16.mxu0 0
  %11955 = vmatpush1.bf16.msra.mxu0 0
  %11956 = vmatprep.subr.bf16.mxu0 0
  %11957 = vmatpush1.bf16.msra.mxu0 0
  %11958 = vmatprep.subr.bf16.mxu0 0
  %11959 = vmatpush1.bf16.msra.mxu0 %v11939
  %11960 = vmatprep.subr.bf16.mxu0 0
  %11961 = vmatpush1.bf16.msra.mxu0 %v11938
  %11962 = vmatprep.subr.bf16.mxu0 0
  %11963 = vmatpush2.bf16.msra.mxu0 0
  %11964 = vmatprep.subr.bf16.mxu0 0
  %11965 = vmatpush2.bf16.msra.mxu0 0
  %11966 = vmatprep.subr.bf16.mxu0 0
  %11967 = vmatpush2.bf16.msra.mxu0 0
  %11968 = vmatprep.subr.bf16.mxu0 0
  %11969 = vmatpush2.bf16.msra.mxu0 0
  %11970 = vmatprep.subr.bf16.mxu0 0
  %11971 = vmatpush2.bf16.msra.mxu0 0
  %11972 = vmatprep.subr.bf16.mxu0 0
  %11973 = vmatpush2.bf16.msra.mxu0 0
  %11974 = vmatprep.subr.bf16.mxu0 0
  %11975 = vmatpush2.bf16.msra.mxu0 0
  %11976 = vmatprep.subr.bf16.mxu0 0
  %11977 = vmatpush2.bf16.msra.mxu0 0
  %11978 = vmatprep.mubr.bf16.mxu0 0
  %11979 = vmatmul.mubr.bf16.gmra.mxu0 %v11944
  %v11980 = vpop.f32.mrf.mxu0
  %v11981 = vadd.f32 %v11928, %v11980
  %v11982 = vpop.f32.mrf.mxu0
  %v11983 = vpop.f32.mrf.mxu0
  %v11984 = vadd.f32 %v11928, %v11983
  %v11985 = vpop.f32.mrf.mxu0
  %11986 = vdwg.mxu0
  %vm11987 = vcmp.gt.f32.partialorder %v11981, 0.0
  %vm11988 = vcmp.gt.f32.partialorder %v11984, 0.0
  %v11989 = vmin.f32 %v11981, 0.0
  %v11990 = vmin.f32 %v11984, 0.0
  %v11991 = vmul.f32 %v11989, 1.442695
  %v11992 = vpow.pop %v11991
  %v11993 = vmul.f32 %v11990, 1.442695
  %v11994 = vpow.pop %v11993
  %v11995 = vsub.f32 %v11992, 1.0
  %v11996 = vsub.f32 %v11994, 1.0
  %v11997 = vsel %vm11987, %v11981, %v11995
  %v11998 = vsel %vm11988, %v11984, %v11996
  %v11999 = vld [vmem:[%s12] sm:$0x1]
  %v12001 = vlaneseq
  %v12002 = vshrl.u32 %v12001, 7
  %v12003 = vsub.s32 0, %v12002
  %v12004 = vrot.slane %v11999, %v12003
  %v12006 = vmul.f32 %v11997, %v12004
  %v12007 = vmul.f32 %v11998, %v12004
  %v12008 = vld [vmem:[%s13] sm:$0x1]
  %v12010 = vlaneseq
  %v12011 = vshrl.u32 %v12010, 7
  %v12012 = vsub.s32 0, %v12011
  %v12013 = vrot.slane %v12008, %v12012
  %v12015 = vadd.f32 %v12006, %v12013
  %v12016 = vadd.f32 %v12007, %v12013
  %v12017 = vpack.c.bf16 %v12016, %v12015
  %v12018 = vld [vmem:[%s14] sm:$0xf]
  %v12019 = vld [vmem:[%s14 + $0x4] sm:$0xf]
  %v12020 = vld [vmem:[%s14 + $0x8] sm:$0xf]
  %v12021 = vld [vmem:[%s14 + $0xc] sm:$0xf]
  %v12022 = vld [vmem:[%s15] sm:$0x1]
  %v12024 = vlaneseq
  %v12025 = vshrl.u32 %v12024, 7
  %v12026 = vsub.s32 0, %v12025
  %v12027 = vrot.slane %v12022, %v12026
  %v12033 = vunpack.c.l.b16 %v12018
  %v12034 = vunpack.c.l.b16 %v12019
  %v12035 = vunpack.c.l.b16 %v12020
  %v12036 = vunpack.c.l.b16 %v12021
  %v12037 = vpack.c.b16 %v12034, %v12033
  %v12038 = vpack.c.b16 %v12036, %v12035
  %v12042 = vsel %vm11942, %v12017, 0
  %12044 = vmatprep.subr.bf16.mxu0 0
  %12045 = vmatpush1.bf16.msra.mxu0 0
  %12046 = vmatprep.subr.bf16.mxu0 0
  %12047 = vmatpush1.bf16.msra.mxu0 0
  %12048 = vmatprep.subr.bf16.mxu0 0
  %12049 = vmatpush1.bf16.msra.mxu0 0
  %12050 = vmatprep.subr.bf16.mxu0 0
  %12051 = vmatpush1.bf16.msra.mxu0 0
  %12052 = vmatprep.subr.bf16.mxu0 0
  %12053 = vmatpush1.bf16.msra.mxu0 0
  %12054 = vmatprep.subr.bf16.mxu0 0
  %12055 = vmatpush1.bf16.msra.mxu0 0
  %12056 = vmatprep.subr.bf16.mxu0 0
  %12057 = vmatpush1.bf16.msra.mxu0 %v12038
  %12058 = vmatprep.subr.bf16.mxu0 0
  %12059 = vmatpush1.bf16.msra.mxu0 %v12037
  %12060 = vmatprep.subr.bf16.mxu0 0
  %12061 = vmatpush2.bf16.msra.mxu0 0
  %12062 = vmatprep.subr.bf16.mxu0 0
  %12063 = vmatpush2.bf16.msra.mxu0 0
  %12064 = vmatprep.subr.bf16.mxu0 0
  %12065 = vmatpush2.bf16.msra.mxu0 0
  %12066 = vmatprep.subr.bf16.mxu0 0
  %12067 = vmatpush2.bf16.msra.mxu0 0
  %12068 = vmatprep.subr.bf16.mxu0 0
  %12069 = vmatpush2.bf16.msra.mxu0 0
  %12070 = vmatprep.subr.bf16.mxu0 0
  %12071 = vmatpush2.bf16.msra.mxu0 0
  %12072 = vmatprep.subr.bf16.mxu0 0
  %12073 = vmatpush2.bf16.msra.mxu0 0
  %12074 = vmatprep.subr.bf16.mxu0 0
  %12075 = vmatpush2.bf16.msra.mxu0 0
  %12076 = vmatprep.mubr.bf16.mxu0 0
  %12077 = vmatmul.mubr.bf16.gmra.mxu0 %v12042
  %v12078 = vpop.f32.mrf.mxu0
  %v12079 = vadd.f32 %v12027, %v12078
  %v12080 = vpop.f32.mrf.mxu0
  %v12081 = vpop.f32.mrf.mxu0
  %v12082 = vadd.f32 %v12027, %v12081
  %v12083 = vpop.f32.mrf.mxu0
  %12084 = vdwg.mxu0
  %vm12085 = vcmp.gt.f32.partialorder %v12079, 0.0
  %vm12086 = vcmp.gt.f32.partialorder %v12082, 0.0
  %v12087 = vmin.f32 %v12079, 0.0
  %v12088 = vmin.f32 %v12082, 0.0
  %v12089 = vmul.f32 %v12087, 1.442695
  %v12090 = vpow.pop %v12089
  %v12091 = vmul.f32 %v12088, 1.442695
  %v12092 = vpow.pop %v12091
  %v12093 = vsub.f32 %v12090, 1.0
  %v12094 = vsub.f32 %v12092, 1.0
  %v12095 = vsel %vm12085, %v12079, %v12093
  %v12096 = vsel %vm12086, %v12082, %v12094
  %v12097 = vld [vmem:[%s16] sm:$0x1]
  %v12099 = vlaneseq
  %v12100 = vshrl.u32 %v12099, 7
  %v12101 = vsub.s32 0, %v12100
  %v12102 = vrot.slane %v12097, %v12101
  %v12104 = vmul.f32 %v12095, %v12102
  %v12105 = vmul.f32 %v12096, %v12102
  %v12106 = vld [vmem:[%s17] sm:$0x1]
  %v12108 = vlaneseq
  %v12109 = vshrl.u32 %v12108, 7
  %v12110 = vsub.s32 0, %v12109
  %v12111 = vrot.slane %v12106, %v12110
  %v12113 = vadd.f32 %v12104, %v12111
  %v12114 = vadd.f32 %v12105, %v12111
  %v12115 = vpack.c.bf16 %v12114, %v12113
  %v12116 = vld [vmem:[%s18] sm:$0xf]
  %v12117 = vld [vmem:[%s18 + $0x4] sm:$0xf]
  %v12118 = vld [vmem:[%s18 + $0x8] sm:$0xf]
  %v12119 = vld [vmem:[%s18 + $0xc] sm:$0xf]
  %v12120 = vld [vmem:[%s19] sm:$0x1]
  %v12122 = vlaneseq
  %v12123 = vshrl.u32 %v12122, 7
  %v12124 = vsub.s32 0, %v12123
  %v12125 = vrot.slane %v12120, %v12124
  %v12131 = vunpack.c.l.b16 %v12116
  %v12132 = vunpack.c.l.b16 %v12117
  %v12133 = vunpack.c.l.b16 %v12118
  %v12134 = vunpack.c.l.b16 %v12119
  %v12135 = vpack.c.b16 %v12132, %v12131
  %v12136 = vpack.c.b16 %v12134, %v12133
  %v12140 = vsel %vm11942, %v12115, 0
  %12142 = vmatprep.subr.bf16.mxu0 0
  %12143 = vmatpush1.bf16.msra.mxu0 0
  %12144 = vmatprep.subr.bf16.mxu0 0
  %12145 = vmatpush1.bf16.msra.mxu0 0
  %12146 = vmatprep.subr.bf16.mxu0 0
  %12147 = vmatpush1.bf16.msra.mxu0 0
  %12148 = vmatprep.subr.bf16.mxu0 0
  %12149 = vmatpush1.bf16.msra.mxu0 0
  %12150 = vmatprep.subr.bf16.mxu0 0
  %12151 = vmatpush1.bf16.msra.mxu0 0
  %12152 = vmatprep.subr.bf16.mxu0 0
  %12153 = vmatpush1.bf16.msra.mxu0 0
  %12154 = vmatprep.subr.bf16.mxu0 0
  %12155 = vmatpush1.bf16.msra.mxu0 %v12136
  %12156 = vmatprep.subr.bf16.mxu0 0
  %12157 = vmatpush1.bf16.msra.mxu0 %v12135
  %12158 = vmatprep.subr.bf16.mxu0 0
  %12159 = vmatpush2.bf16.msra.mxu0 0
  %12160 = vmatprep.subr.bf16.mxu0 0
  %12161 = vmatpush2.bf16.msra.mxu0 0
  %12162 = vmatprep.subr.bf16.mxu0 0
  %12163 = vmatpush2.bf16.msra.mxu0 0
  %12164 = vmatprep.subr.bf16.mxu0 0
  %12165 = vmatpush2.bf16.msra.mxu0 0
  %12166 = vmatprep.subr.bf16.mxu0 0
  %12167 = vmatpush2.bf16.msra.mxu0 0
  %12168 = vmatprep.subr.bf16.mxu0 0
  %12169 = vmatpush2.bf16.msra.mxu0 0
  %12170 = vmatprep.subr.bf16.mxu0 0
  %12171 = vmatpush2.bf16.msra.mxu0 0
  %12172 = vmatprep.subr.bf16.mxu0 0
  %12173 = vmatpush2.bf16.msra.mxu0 0
  %12174 = vmatprep.mubr.bf16.mxu0 0
  %12175 = vmatmul.mubr.bf16.gmra.mxu0 %v12140
  %v12176 = vpop.f32.mrf.mxu0
  %v12177 = vadd.f32 %v12125, %v12176
  %v12178 = vpop.f32.mrf.mxu0
  %v12179 = vpop.f32.mrf.mxu0
  %v12180 = vadd.f32 %v12125, %v12179
  %v12181 = vpop.f32.mrf.mxu0
  %12182 = vdwg.mxu0
  %vm12183 = vcmp.gt.f32.partialorder %v12177, 0.0
  %vm12184 = vcmp.gt.f32.partialorder %v12180, 0.0
  %v12185 = vmin.f32 %v12177, 0.0
  %v12186 = vmin.f32 %v12180, 0.0
  %v12187 = vmul.f32 %v12185, 1.442695
  %v12188 = vpow.pop %v12187
  %v12189 = vmul.f32 %v12186, 1.442695
  %v12190 = vpow.pop %v12189
  %v12191 = vsub.f32 %v12188, 1.0
  %v12192 = vsub.f32 %v12190, 1.0
  %v12193 = vsel %vm12183, %v12177, %v12191
  %v12194 = vsel %vm12184, %v12180, %v12192
  %v12197 = vrot.slane %v12193, 1
  %v12198 = vrot.slane %v12193, 2
  %v12199 = vrot.slane %v12193, 3
  %v12200 = vrot.slane %v12193, 4
  %v12201 = vrot.slane %v12193, 5
  %v12202 = vrot.slane %v12193, 6
  %v12203 = vrot.slane %v12193, 7
  %v12204 = vrot.slane %v12194, 1
  %v12205 = vrot.slane %v12194, 2
  %v12206 = vrot.slane %v12194, 3
  %v12207 = vrot.slane %v12194, 4
  %v12208 = vrot.slane %v12194, 5
  %v12209 = vrot.slane %v12194, 6
  %v12210 = vrot.slane %v12194, 7
  %v12227 = vadd.f32 %v11762, %v12193
  %v12228 = vadd.f32 %v11771, %v12197
  %v12229 = vadd.f32 %v11780, %v12198
  %v12230 = vadd.f32 %v11789, %v12199
  %v12231 = vadd.f32 %v11798, %v12200
  %v12232 = vadd.f32 %v11807, %v12201
  %v12233 = vadd.f32 %v11816, %v12202
  %v12234 = vadd.f32 %v11825, %v12203
  %v12235 = vadd.f32 %v11834, %v12194
  %v12236 = vadd.f32 %v11843, %v12204
  %v12237 = vadd.f32 %v11852, %v12205
  %v12238 = vadd.f32 %v11861, %v12206
  %v12239 = vadd.f32 %v11870, %v12207
  %v12240 = vadd.f32 %v11879, %v12208
  %v12241 = vadd.f32 %v11888, %v12209
  %v12242 = vadd.f32 %v11897, %v12210
  %v12243 = vmul.f32 %v11762, %v12193
  %v12244 = vmul.f32 %v11771, %v12197
  %v12245 = vmul.f32 %v11780, %v12198
  %v12246 = vmul.f32 %v11789, %v12199
  %v12247 = vmul.f32 %v11798, %v12200
  %v12248 = vmul.f32 %v11807, %v12201
  %v12249 = vmul.f32 %v11816, %v12202
  %v12250 = vmul.f32 %v11825, %v12203
  %v12251 = vmul.f32 %v11834, %v12194
  %v12252 = vmul.f32 %v11843, %v12204
  %v12253 = vmul.f32 %v11852, %v12205
  %v12254 = vmul.f32 %v11861, %v12206
  %v12255 = vmul.f32 %v11870, %v12207
  %v12256 = vmul.f32 %v11879, %v12208
  %v12257 = vmul.f32 %v11888, %v12209
  %v12258 = vmul.f32 %v11897, %v12210
  %v12259 = vadd.f32 %v12227, %v12243
  %v12260 = vadd.f32 %v12228, %v12244
  %v12261 = vadd.f32 %v12229, %v12245
  %v12262 = vadd.f32 %v12230, %v12246
  %v12263 = vadd.f32 %v12231, %v12247
  %v12264 = vadd.f32 %v12232, %v12248
  %v12265 = vadd.f32 %v12233, %v12249
  %v12266 = vadd.f32 %v12234, %v12250
  %v12267 = vadd.f32 %v12235, %v12251
  %v12268 = vadd.f32 %v12236, %v12252
  %v12269 = vadd.f32 %v12237, %v12253
  %v12270 = vadd.f32 %v12238, %v12254
  %v12271 = vadd.f32 %v12239, %v12255
  %v12272 = vadd.f32 %v12240, %v12256
  %v12273 = vadd.f32 %v12241, %v12257
  %v12274 = vadd.f32 %v12242, %v12258
  %v12275 = vpack.c.bf16 %v12259, %v12259
  %v12276 = vpack.c.bf16 %v12260, %v12260
  %v12277 = vpack.c.bf16 %v12261, %v12261
  %v12278 = vpack.c.bf16 %v12262, %v12262
  %v12279 = vpack.c.bf16 %v12263, %v12263
  %v12280 = vpack.c.bf16 %v12264, %v12264
  %v12281 = vpack.c.bf16 %v12265, %v12265
  %v12282 = vpack.c.bf16 %v12266, %v12266
  %v12283 = vpack.c.bf16 %v12267, %v12267
  %v12284 = vpack.c.bf16 %v12268, %v12268
  %v12285 = vpack.c.bf16 %v12269, %v12269
  %v12286 = vpack.c.bf16 %v12270, %v12270
  %v12287 = vpack.c.bf16 %v12271, %v12271
  %v12288 = vpack.c.bf16 %v12272, %v12272
  %v12289 = vpack.c.bf16 %v12273, %v12273
  %v12290 = vpack.c.bf16 %v12274, %v12274
  %v12291 = vld [vmem:[%s20] sm:$0xff]
  %v12292 = vld [vmem:[%s20 + $0x8] sm:$0xff]
  %v12293 = vld [vmem:[%s20 + $0x10] sm:$0xff]
  %v12294 = vld [vmem:[%s20 + $0x18] sm:$0xff]
  %v12295 = vld [vmem:[%s20 + $0x20] sm:$0xff]
  %v12296 = vld [vmem:[%s20 + $0x28] sm:$0xff]
  %v12297 = vld [vmem:[%s20 + $0x30] sm:$0xff]
  %v12298 = vld [vmem:[%s20 + $0x38] sm:$0xff]
  %v12299 = vld [vmem:[%s21] sm:$0x3]
  %v12301 = vlaneseq
  %v12302 = vshrl.u32 %v12301, 7
  %v12303 = vsub.s32 0, %v12302
  %v12304 = vrot.slane %v12299, %v12303
  %v12305 = vlaneseq
  %v12306 = vshrl.u32 %v12305, 7
  %v12307 = vsub.s32 1, %v12306
  %v12308 = vrot.slane %v12299, %v12307
  %v12327 = vunpack.c.l.b16 %v12275
  %v12328 = vunpack.c.l.b16 %v12276
  %v12329 = vunpack.c.l.b16 %v12277
  %v12330 = vunpack.c.l.b16 %v12278
  %v12331 = vunpack.c.l.b16 %v12279
  %v12332 = vunpack.c.l.b16 %v12280
  %v12333 = vunpack.c.l.b16 %v12281
  %v12334 = vunpack.c.l.b16 %v12282
  %v12335 = vunpack.c.l.b16 %v12283
  %v12336 = vunpack.c.l.b16 %v12284
  %v12337 = vunpack.c.l.b16 %v12285
  %v12338 = vunpack.c.l.b16 %v12286
  %v12339 = vunpack.c.l.b16 %v12287
  %v12340 = vunpack.c.l.b16 %v12288
  %v12341 = vunpack.c.l.b16 %v12289
  %v12342 = vunpack.c.l.b16 %v12290
  %v12343 = vrot.slane %v12328, 7
  %vm12344 = vcmask 1041409
  %v12345 = vsel %vm12344, %v12343, %v12327
  %v12346 = vrot.slane %v12329, 6
  %vm12347 = vcmask 1042434
  %v12348 = vsel %vm12347, %v12346, %v12345
  %v12349 = vrot.slane %v12330, 5
  %vm12350 = vcmask 1043459
  %v12351 = vsel %vm12350, %v12349, %v12348
  %v12352 = vrot.slane %v12331, 4
  %vm12353 = vcmask 1044484
  %v12354 = vsel %vm12353, %v12352, %v12351
  %v12355 = vrot.slane %v12332, 3
  %vm12356 = vcmask 1045509
  %v12357 = vsel %vm12356, %v12355, %v12354
  %v12358 = vrot.slane %v12333, 2
  %vm12359 = vcmask 1046534
  %v12360 = vsel %vm12359, %v12358, %v12357
  %v12361 = vrot.slane %v12334, 1
  %vm12362 = vcmask 1047559
  %v12363 = vsel %vm12362, %v12361, %v12360
  %v12364 = vrot.slane %v12336, 7
  %v12365 = vsel %vm12344, %v12364, %v12335
  %v12366 = vrot.slane %v12337, 6
  %v12367 = vsel %vm12347, %v12366, %v12365
  %v12368 = vrot.slane %v12338, 5
  %v12369 = vsel %vm12350, %v12368, %v12367
  %v12370 = vrot.slane %v12339, 4
  %v12371 = vsel %vm12353, %v12370, %v12369
  %v12372 = vrot.slane %v12340, 3
  %v12373 = vsel %vm12356, %v12372, %v12371
  %v12374 = vrot.slane %v12341, 2
  %v12375 = vsel %vm12359, %v12374, %v12373
  %v12376 = vrot.slane %v12342, 1
  %v12377 = vsel %vm12362, %v12376, %v12375
  %v12378 = vpack.c.b16 %v12377, %v12363
  %v12387 = vunpack.c.l.b16 %v12291
  %v12388 = vunpack.c.h.b16 %v12291
  %v12389 = vunpack.c.l.b16 %v12292
  %v12390 = vunpack.c.h.b16 %v12292
  %v12391 = vunpack.c.l.b16 %v12293
  %v12392 = vunpack.c.h.b16 %v12293
  %v12393 = vunpack.c.l.b16 %v12294
  %v12394 = vunpack.c.h.b16 %v12294
  %v12395 = vunpack.c.l.b16 %v12295
  %v12396 = vunpack.c.h.b16 %v12295
  %v12397 = vunpack.c.l.b16 %v12296
  %v12398 = vunpack.c.h.b16 %v12296
  %v12399 = vunpack.c.l.b16 %v12297
  %v12400 = vunpack.c.h.b16 %v12297
  %v12401 = vunpack.c.l.b16 %v12298
  %v12402 = vunpack.c.h.b16 %v12298
  %v12403 = vpack.c.b16 %v12389, %v12387
  %v12404 = vpack.c.b16 %v12390, %v12388
  %v12405 = vpack.c.b16 %v12393, %v12391
  %v12406 = vpack.c.b16 %v12394, %v12392
  %v12407 = vpack.c.b16 %v12397, %v12395
  %v12408 = vpack.c.b16 %v12398, %v12396
  %v12409 = vpack.c.b16 %v12401, %v12399
  %v12410 = vpack.c.b16 %v12402, %v12400
  %v12420 = vsel %vm11753, %v12378, 0
  %12422 = vmatprep.subr.bf16.mxu0 0
  %12423 = vmatpush1.bf16.msra.mxu0 0
  %12424 = vmatprep.subr.bf16.mxu0 0
  %12425 = vmatpush1.bf16.msra.mxu0 0
  %12426 = vmatprep.subr.bf16.mxu0 0
  %12427 = vmatpush1.bf16.msra.mxu0 0
  %12428 = vmatprep.subr.bf16.mxu0 0
  %12429 = vmatpush1.bf16.msra.mxu0 0
  %12430 = vmatprep.subr.bf16.mxu0 %v12410
  %12431 = vmatpush1.bf16.msra.mxu0 %v12409
  %12432 = vmatprep.subr.bf16.mxu0 %v12408
  %12433 = vmatpush1.bf16.msra.mxu0 %v12407
  %12434 = vmatprep.subr.bf16.mxu0 %v12406
  %12435 = vmatpush1.bf16.msra.mxu0 %v12405
  %12436 = vmatprep.subr.bf16.mxu0 %v12404
  %12437 = vmatpush1.bf16.msra.mxu0 %v12403
  %12438 = vmatprep.subr.bf16.mxu0 0
  %12439 = vmatpush2.bf16.msra.mxu0 0
  %12440 = vmatprep.subr.bf16.mxu0 0
  %12441 = vmatpush2.bf16.msra.mxu0 0
  %12442 = vmatprep.subr.bf16.mxu0 0
  %12443 = vmatpush2.bf16.msra.mxu0 0
  %12444 = vmatprep.subr.bf16.mxu0 0
  %12445 = vmatpush2.bf16.msra.mxu0 0
  %12446 = vmatprep.subr.bf16.mxu0 0
  %12447 = vmatpush2.bf16.msra.mxu0 0
  %12448 = vmatprep.subr.bf16.mxu0 0
  %12449 = vmatpush2.bf16.msra.mxu0 0
  %12450 = vmatprep.subr.bf16.mxu0 0
  %12451 = vmatpush2.bf16.msra.mxu0 0
  %12452 = vmatprep.subr.bf16.mxu0 0
  %12453 = vmatpush2.bf16.msra.mxu0 0
  %12454 = vmatprep.mubr.bf16.mxu0 0
  %12455 = vmatmul.mubr.bf16.gmra.mxu0 %v12420
  %v12456 = vpop.f32.mrf.mxu0
  %v12457 = vadd.f32 %v12304, %v12456
  %v12458 = vpop.f32.mrf.mxu0
  %v12459 = vadd.f32 %v12308, %v12458
  %v12460 = vpop.f32.mrf.mxu0
  %v12461 = vadd.f32 %v12304, %v12460
  %v12462 = vpop.f32.mrf.mxu0
  %v12463 = vadd.f32 %v12308, %v12462
  %12464 = vdwg.mxu0
  %vm12465 = vcmp.gt.f32.partialorder %v12457, 0.0
  %vm12466 = vcmp.gt.f32.partialorder %v12459, 0.0
  %vm12467 = vcmp.gt.f32.partialorder %v12461, 0.0
  %vm12468 = vcmp.gt.f32.partialorder %v12463, 0.0
  %v12469 = vmin.f32 %v12457, 0.0
  %v12470 = vmin.f32 %v12459, 0.0
  %v12471 = vmin.f32 %v12461, 0.0
  %v12472 = vmin.f32 %v12463, 0.0
  %v12473 = vmul.f32 %v12469, 1.442695
  %v12474 = vpow.pop %v12473
  %v12475 = vmul.f32 %v12470, 1.442695
  %v12476 = vpow.pop %v12475
  %v12477 = vmul.f32 %v12471, 1.442695
  %v12478 = vpow.pop %v12477
  %v12479 = vmul.f32 %v12472, 1.442695
  %v12480 = vpow.pop %v12479
  %v12481 = vsub.f32 %v12474, 1.0
  %v12482 = vsub.f32 %v12476, 1.0
  %v12483 = vsub.f32 %v12478, 1.0
  %v12484 = vsub.f32 %v12480, 1.0
  %v12485 = vsel %vm12465, %v12457, %v12481
  %v12486 = vsel %vm12466, %v12459, %v12482
  %v12487 = vsel %vm12467, %v12461, %v12483
  %v12488 = vsel %vm12468, %v12463, %v12484
  %v12489 = vpack.c.bf16 %v12487, %v12485
  %v12490 = vpack.c.bf16 %v12488, %v12486
  %v12491 = vld [vmem:[%s22] sm:$0xf]
  %v12492 = vld [vmem:[%s22 + $0x4] sm:$0xf]
  %v12493 = vld [vmem:[%s22 + $0x8] sm:$0xf]
  %v12494 = vld [vmem:[%s22 + $0xc] sm:$0xf]
  %v12495 = vld [vmem:[%s22 + $0x10] sm:$0xf]
  %v12496 = vld [vmem:[%s22 + $0x14] sm:$0xf]
  %v12497 = vld [vmem:[%s22 + $0x18] sm:$0xf]
  %v12498 = vld [vmem:[%s22 + $0x1c] sm:$0xf]
  %v12499 = vld [vmem:[%s22 + $0x20] sm:$0xf]
  %v12500 = vld [vmem:[%s22 + $0x24] sm:$0xf]
  %v12501 = vld [vmem:[%s22 + $0x28] sm:$0xf]
  %v12502 = vld [vmem:[%s22 + $0x2c] sm:$0xf]
  %v12503 = vld [vmem:[%s22 + $0x30] sm:$0xf]
  %v12504 = vld [vmem:[%s22 + $0x34] sm:$0xf]
  %v12505 = vld [vmem:[%s22 + $0x38] sm:$0xf]
  %v12506 = vld [vmem:[%s22 + $0x3c] sm:$0xf]
  %v12507 = vld [vmem:[%s22 + $0x40] sm:$0xf]
  %v12508 = vld [vmem:[%s22 + $0x44] sm:$0xf]
  %v12509 = vld [vmem:[%s22 + $0x48] sm:$0xf]
  %v12510 = vld [vmem:[%s22 + $0x4c] sm:$0xf]
  %v12511 = vld [vmem:[%s22 + $0x50] sm:$0xf]
  %v12512 = vld [vmem:[%s22 + $0x54] sm:$0xf]
  %v12513 = vld [vmem:[%s22 + $0x58] sm:$0xf]
  %v12514 = vld [vmem:[%s22 + $0x5c] sm:$0xf]
  %v12515 = vld [vmem:[%s22 + $0x60] sm:$0xf]
  %v12516 = vld [vmem:[%s22 + $0x64] sm:$0xf]
  %v12517 = vld [vmem:[%s22 + $0x68] sm:$0xf]
  %v12518 = vld [vmem:[%s22 + $0x6c] sm:$0xf]
  %v12519 = vld [vmem:[%s22 + $0x70] sm:$0xf]
  %v12520 = vld [vmem:[%s22 + $0x74] sm:$0xf]
  %v12521 = vld [vmem:[%s22 + $0x78] sm:$0xf]
  %v12522 = vld [vmem:[%s22 + $0x7c] sm:$0xf]
  %v12523 = vld [vmem:[%s23] sm:$0x1]
  %v12525 = vlaneseq
  %v12526 = vshrl.u32 %v12525, 7
  %v12527 = vsub.s32 0, %v12526
  %v12528 = vrot.slane %v12523, %v12527
  %v12562 = vunpack.c.l.b16 %v12491
  %v12563 = vunpack.c.l.b16 %v12492
  %v12564 = vunpack.c.l.b16 %v12493
  %v12565 = vunpack.c.l.b16 %v12494
  %v12566 = vunpack.c.l.b16 %v12495
  %v12567 = vunpack.c.l.b16 %v12496
  %v12568 = vunpack.c.l.b16 %v12497
  %v12569 = vunpack.c.l.b16 %v12498
  %v12570 = vunpack.c.l.b16 %v12499
  %v12571 = vunpack.c.l.b16 %v12500
  %v12572 = vunpack.c.l.b16 %v12501
  %v12573 = vunpack.c.l.b16 %v12502
  %v12574 = vunpack.c.l.b16 %v12503
  %v12575 = vunpack.c.l.b16 %v12504
  %v12576 = vunpack.c.l.b16 %v12505
  %v12577 = vunpack.c.l.b16 %v12506
  %v12578 = vunpack.c.l.b16 %v12507
  %v12579 = vunpack.c.l.b16 %v12508
  %v12580 = vunpack.c.l.b16 %v12509
  %v12581 = vunpack.c.l.b16 %v12510
  %v12582 = vunpack.c.l.b16 %v12511
  %v12583 = vunpack.c.l.b16 %v12512
  %v12584 = vunpack.c.l.b16 %v12513
  %v12585 = vunpack.c.l.b16 %v12514
  %v12586 = vunpack.c.l.b16 %v12515
  %v12587 = vunpack.c.l.b16 %v12516
  %v12588 = vunpack.c.l.b16 %v12517
  %v12589 = vunpack.c.l.b16 %v12518
  %v12590 = vunpack.c.l.b16 %v12519
  %v12591 = vunpack.c.l.b16 %v12520
  %v12592 = vunpack.c.l.b16 %v12521
  %v12593 = vunpack.c.l.b16 %v12522
  %v12594 = vpack.c.b16 %v12563, %v12562
  %v12595 = vpack.c.b16 %v12565, %v12564
  %v12596 = vpack.c.b16 %v12567, %v12566
  %v12597 = vpack.c.b16 %v12569, %v12568
  %v12598 = vpack.c.b16 %v12571, %v12570
  %v12599 = vpack.c.b16 %v12573, %v12572
  %v12600 = vpack.c.b16 %v12575, %v12574
  %v12601 = vpack.c.b16 %v12577, %v12576
  %v12602 = vpack.c.b16 %v12579, %v12578
  %v12603 = vpack.c.b16 %v12581, %v12580
  %v12604 = vpack.c.b16 %v12583, %v12582
  %v12605 = vpack.c.b16 %v12585, %v12584
  %v12606 = vpack.c.b16 %v12587, %v12586
  %v12607 = vpack.c.b16 %v12589, %v12588
  %v12608 = vpack.c.b16 %v12591, %v12590
  %v12609 = vpack.c.b16 %v12593, %v12592
  %12626 = vmatprep.subr.bf16.mxu0 0
  %12627 = vmatpush1.bf16.msra.mxu0 %v12601
  %12628 = vmatprep.subr.bf16.mxu0 0
  %12629 = vmatpush1.bf16.msra.mxu0 %v12600
  %12630 = vmatprep.subr.bf16.mxu0 0
  %12631 = vmatpush1.bf16.msra.mxu0 %v12599
  %12632 = vmatprep.subr.bf16.mxu0 0
  %12633 = vmatpush1.bf16.msra.mxu0 %v12598
  %12634 = vmatprep.subr.bf16.mxu0 0
  %12635 = vmatpush1.bf16.msra.mxu0 %v12597
  %12636 = vmatprep.subr.bf16.mxu0 0
  %12637 = vmatpush1.bf16.msra.mxu0 %v12596
  %12638 = vmatprep.subr.bf16.mxu0 0
  %12639 = vmatpush1.bf16.msra.mxu0 %v12595
  %12640 = vmatprep.subr.bf16.mxu0 0
  %12641 = vmatpush1.bf16.msra.mxu0 %v12594
  %12642 = vmatprep.subr.bf16.mxu0 0
  %12643 = vmatpush2.bf16.msra.mxu0 %v12609
  %12644 = vmatprep.subr.bf16.mxu0 0
  %12645 = vmatpush2.bf16.msra.mxu0 %v12608
  %12646 = vmatprep.subr.bf16.mxu0 0
  %12647 = vmatpush2.bf16.msra.mxu0 %v12607
  %12648 = vmatprep.subr.bf16.mxu0 0
  %12649 = vmatpush2.bf16.msra.mxu0 %v12606
  %12650 = vmatprep.subr.bf16.mxu0 0
  %12651 = vmatpush2.bf16.msra.mxu0 %v12605
  %12652 = vmatprep.subr.bf16.mxu0 0
  %12653 = vmatpush2.bf16.msra.mxu0 %v12604
  %12654 = vmatprep.subr.bf16.mxu0 0
  %12655 = vmatpush2.bf16.msra.mxu0 %v12603
  %12656 = vmatprep.subr.bf16.mxu0 0
  %12657 = vmatpush2.bf16.msra.mxu0 %v12602
  %12658 = vmatprep.mubr.bf16.mxu0 %v12490
  %12659 = vmatmul.mubr.bf16.gmra.mxu0 %v12489
  %v12660 = vpop.f32.mrf.mxu0
  %v12661 = vadd.f32 %v12528, %v12660
  %v12662 = vpop.f32.mrf.mxu0
  %v12663 = vpop.f32.mrf.mxu0
  %v12664 = vadd.f32 %v12528, %v12663
  %v12665 = vpop.f32.mrf.mxu0
  %12666 = vdwg.mxu0
  %12667 = vst [vmem:[%s24] sm:$0xff] %v12661
  %12668 = vst [vmem:[%s24 + $0x8] sm:$0xff] %v12664
  // Predicated region
  $region98: #{rna_model_pallas.1} parent=0 // pred_check
    _
  $region99: #{rna_model_pallas.1} parent=0 // pred_check_branch
    %12670 = sbr.rel (0) target = $region101
  $region100: #{rna_model_pallas.1} parent=0 // pred_region
    _
  $region101: #{rna_model_pallas.1} parent=0 // pred_fallthru
    _
  // Predicated region
  $region102: #{rna_model_pallas.1} parent=0 // pred_check
    _
  $region103: #{rna_model_pallas.1} parent=0 // pred_check_branch
    %12672 = sbr.rel (0) target = $region105
  $region104: #{rna_model_pallas.1} parent=0 // pred_region
    _
  $region105: #{rna_model_pallas.1} parent=0 // pred_fallthru
    _

</llo_original>
